<compile_context>
chip_gen: v7x
topology: tpu7x:2x2x1
jax: 0.10.0
libtpu: 0.0.40
codegen_flags: <defaults>
</compile_context>

<pallas_src>
import numpy as np
import jax
import jax.numpy as jnp
from jax.experimental import pallas as pl
from jax.experimental.pallas import tpu as pltpu


def _round_up(v, m):
    return (v + m - 1) // m * m


def _upsample_matrix(out_size, in_size):
    """PyTorch bilinear (align_corners=False) interpolation matrix (out, in)."""
    o = np.arange(out_size, dtype=np.float64)
    scale = in_size / out_size
    src = np.maximum((o + 0.5) * scale - 0.5, 0.0)
    i0 = np.minimum(np.floor(src).astype(np.int64), in_size - 1)
    i1 = np.minimum(i0 + 1, in_size - 1)
    l1 = (src - i0).astype(np.float32)
    l0 = 1.0 - l1
    m = np.zeros((out_size, in_size), dtype=np.float32)
    m[np.arange(out_size), i0] += l0
    m[np.arange(out_size), i1] += l1
    return m


def _make_branch_kernel(c, lpad, tap_offsets, eps):
    """One grid step == one dilation branch: dilated 3x3 conv (9 shifted long
    matmuls over all samples), masked one-pass BatchNorm (training-mode batch
    stats, biased var), ReLU, 1x1 conv; lane-dense (C, Lpad) store."""

    def kernel(xpad_ref, w3_ref, gamma_ref, beta_ref, w1_ref, mask_ref,
               o_ref, acc_ref):
        b = pl.program_id(0)

        # ---- dilated 3x3 conv: 9 shifted (C,C)@(C,Lpad) matmuls, all samples
        # merged on the lane axis.  Offsets are static per branch; the branch
        # is selected with pl.when on the (parallel) grid index.
        def conv_branch(offs):
            def body():
                acc = jnp.dot(w3_ref[0], xpad_ref[:, offs[0]:offs[0] + lpad],
                              preferred_element_type=jnp.float32)
                for t in range(1, 9):
                    acc = acc + jnp.dot(
                        w3_ref[t], xpad_ref[:, offs[t]:offs[t] + lpad],
                        preferred_element_type=jnp.float32)
                acc_ref[...] = acc
            return body

        for bi, offs in enumerate(tap_offsets):
            pl.when(b == bi)(conv_branch(offs))

        conv = acc_ref[...]                                    # (C, Lpad)

        # ---- BatchNorm2d: training-mode batch statistics, one pass, with the
        # shifted-window junk columns excluded by the 0/1 mask.
        mask = mask_ref[...]                                   # (1, Lpad)
        inv_count = 1.0 / jnp.sum(mask)
        masked = conv * mask
        mean = jnp.sum(masked, axis=1, keepdims=True) * inv_count        # (C,1)
        ex2 = jnp.sum(masked * conv, axis=1, keepdims=True) * inv_count  # (C,1)
        var = jnp.maximum(ex2 - mean * mean, 0.0)
        scale = gamma_ref[...] * jax.lax.rsqrt(var + eps)
        shift = beta_ref[...] - mean * scale

        # ---- normalize + ReLU + 1x1 conv (bias=False); lane-dense store.
        y = jnp.maximum(conv * scale + shift, 0.0)
        o_ref[...] = jnp.dot(w1_ref[...], y, preferred_element_type=jnp.float32)

    return kernel


def _make_upsample_kernel(nb):
    """One grid step == TC channels: per branch, separable bilinear upsample as
    (Mh @ z) @ blockdiag_TC(Mw^T) (two 2D matmuls, no transposes), then the
    fused final x * (x1+x3+x5+x7); output block (H, TC*W) is lane-dense."""

    def kernel(*refs):
        x_ref = refs[0]
        z_refs = refs[1:1 + nb]
        mh_refs = refs[1 + nb:1 + 2 * nb]
        mb_refs = refs[1 + 2 * nb:1 + 3 * nb]
        o_ref = refs[1 + 3 * nb]
        acc = None
        for zr, mhr, mbr in zip(z_refs, mh_refs, mb_refs):
            s = jnp.dot(mhr[...], zr[...],
                        preferred_element_type=jnp.float32)   # (H, TC*Wo)
            u = jnp.dot(s, mbr[...],
                        preferred_element_type=jnp.float32)   # (H, TC*W)
            acc = u if acc is None else acc + u
        o_ref[...] = x_ref[...] * acc

    return kernel


def spatial_attention(x_nchw, params, dilations=(1, 3, 5, 7), eps=1e-5):
    """Forward pass of SpatialAttention. x_nchw: (N, 2*n_channels, H, W) f32."""
    n, c, h, w = x_nchw.shape
    nb = len(dilations)
    hp, wp = h + 2, w + 2                      # padding=1 for every branch
    stride = hp * wp                           # per-sample flattened stride
    lpad = _round_up(n * stride, 128)          # lane-dense working width

    branch_meta = []
    for d in dilations:
        ho, wo = h + 2 - 2 * d, w + 2 - 2 * d  # k=3, pad=1, dilation=d
        if ho < 1 or wo < 1:
            raise ValueError(f"dilation {d} too large for {h}x{w} input")
        branch_meta.append((d, ho, wo, (ho - 1) * wp + wo))

    max_off = 2 * max(dilations) * (wp + 1)
    xcols = _round_up(max_off + lpad, 128)

    # Shared padded input: channels on sublanes, flattened (sample, y, x) on
    # lanes; right-padded with zeros so every shifted window stays in bounds.
    xpad = jnp.pad(jnp.transpose(x_nchw, (1, 0, 2, 3)),
                   ((0, 0), (0, 0), (1, 1), (1, 1)))          # (C, N, Hp, Wp)
    xpad_flat = jnp.pad(xpad.reshape(c, n * stride),
                        ((0, 0), (0, xcols - n * stride)))    # (C, Xcols)

    # Static per-branch tap offsets + stacked weights / validity masks.
    tap_offsets = tuple(tuple(ky * d * wp + kx * d
                              for ky in range(3) for kx in range(3))
                        for d in dilations)
    col = np.arange(lpad)
    q, nidx = col % stride, col // stride
    w3_l, w1_l, g_l, b_l, m_l = [], [], [], [], []
    for d, ho, wo, span in branch_meta:
        p = params[d]
        w3_l.append(jnp.transpose(p["w3"], (2, 3, 0, 1)).reshape(9, c, c))
        w1_l.append(p["w1"][:, :, 0, 0])
        g_l.append(p["gamma"].reshape(c, 1))
        b_l.append(p["beta"].reshape(c, 1))
        m_l.append(((nidx < n) & (q % wp < wo) & (q < span))
                   .astype(np.float32).reshape(1, lpad))
    w3_all, w1_all = jnp.stack(w3_l), jnp.stack(w1_l)
    gamma_all, beta_all = jnp.stack(g_l), jnp.stack(b_l)
    mask_all = jnp.asarray(np.stack(m_l))

    cparams = pltpu.CompilerParams(
        dimension_semantics=("parallel",),
        vmem_limit_bytes=32 * 1024 * 1024)     # > v5e default, < v7x physical

    # ---------------- stage 1: per-branch conv / BN / ReLU / 1x1 ----------------
    z_all = pl.pallas_call(
        _make_branch_kernel(c, lpad, tap_offsets, eps),
        grid=(nb,),
        in_specs=[
            pl.BlockSpec((c, xcols), lambda b: (0, 0)),        # shared, resident
            pl.BlockSpec((None, 9, c, c), lambda b: (b, 0, 0, 0)),
            pl.BlockSpec((None, c, 1), lambda b: (b, 0, 0)),
            pl.BlockSpec((None, c, 1), lambda b: (b, 0, 0)),
            pl.BlockSpec((None, c, c), lambda b: (b, 0, 0)),
            pl.BlockSpec((None, 1, lpad), lambda b: (b, 0, 0)),
        ],
        out_specs=pl.BlockSpec((None, c, lpad), lambda b: (b, 0, 0)),
        out_shape=jax.ShapeDtypeStruct((nb, c, lpad), jnp.float32),
        scratch_shapes=[pltpu.VMEM((c, lpad), jnp.float32)],
        compiler_params=cparams,
    )(xpad_flat, w3_all, gamma_all, beta_all, w1_all, mask_all)
    # TODO(synk): for very large N*H*W add a second ("arbitrary") spatial grid
    # axis with a two-pass (sum/sumsq, then normalize) BatchNorm so the whole
    # batch need not be VMEM-resident; re-derive the tile for v7x's 64 MiB VMEM.

    # ---------------- stage 2: bilinear upsample + x*(x1+x3+x5+x7) ----------------
    nc = n * c
    divisors = [t for t in range(1, nc + 1) if nc % t == 0]
    tc = next((t for t in divisors if t * w >= 128), divisors[-1])
    g = nc // tc
    tcw = tc * w

    def to_groups(a, rows, cols):
        # (NC, rows, cols) -> (G, rows, TC*cols): channel group folded on lanes.
        return (a.reshape(g, tc, rows, cols).transpose(0, 2, 1, 3)
                 .reshape(g, rows, tc * cols))

    x2 = to_groups(x_nchw.reshape(nc, h, w), h, w)

    z2, mh2, mb2 = [], [], []
    eye_tc = np.eye(tc, dtype=np.float32)
    for bi, (d, ho, wo, span) in enumerate(branch_meta):
        zb = z_all[bi][:, :n * stride].reshape(c, n, hp, wp)[:, :, :ho, :wo]
        zb = jnp.transpose(zb, (1, 0, 2, 3)).reshape(nc, ho, wo)
        z2.append(to_groups(zb, ho, wo))                      # (G, Ho, TC*Wo)
        mh2.append(jnp.asarray(_upsample_matrix(h, ho)))      # (H, Ho)
        mb2.append(jnp.asarray(np.kron(eye_tc, _upsample_matrix(w, wo).T)))
    # TODO(synk): the slice/transpose plumbing above is an extra HBM pass; it
    # could be removed by making kernel 1 store directly in the (Ho, TC*Wo)
    # layout kernel 2 consumes.

    out2 = pl.pallas_call(
        _make_upsample_kernel(nb),
        grid=(g,),
        in_specs=([pl.BlockSpec((None, h, tcw), lambda i: (i, 0, 0))]
                  + [pl.BlockSpec((None,) + zz.shape[1:], lambda i: (i, 0, 0))
                     for zz in z2]
                  + [pl.BlockSpec(m.shape, lambda i: (0, 0)) for m in mh2]
                  + [pl.BlockSpec(m.shape, lambda i: (0, 0)) for m in mb2]),
        out_specs=pl.BlockSpec((None, h, tcw), lambda i: (i, 0, 0)),
        out_shape=jax.ShapeDtypeStruct((g, h, tcw), jnp.float32),
        compiler_params=cparams,
    )(x2, *z2, *mh2, *mb2)

    return (out2.reshape(g, h, tc, w).transpose(0, 2, 1, 3)
                 .reshape(n, c, h, w))


if __name__ == "__main__":
    n_channels = 2            # SpatialAttention doubles it -> C = 4 channels
    x_size = 16
    batch = 2
    C = n_channels * 2

    key = jax.random.PRNGKey(0)
    k_x, *ks = jax.random.split(key, 1 + 4 * 4)
    x = jax.random.normal(k_x, (batch, C, x_size, x_size), dtype=jnp.float32)

    # Deterministic synthetic parameters (shapes from the module's __init__).
    params = {}
    ki = iter(ks)
    for d in (1, 3, 5, 7):
        params[d] = dict(
            w3=0.2 * jax.random.normal(next(ki), (C, C, 3, 3), dtype=jnp.float32),
            w1=0.2 * jax.random.normal(next(ki), (C, C, 1, 1), dtype=jnp.float32),
            gamma=1.0 + 0.1 * jax.random.normal(next(ki), (C,), dtype=jnp.float32),
            beta=0.1 * jax.random.normal(next(ki), (C,), dtype=jnp.float32),
        )

    out = jax.jit(spatial_attention)(x, params)
    out = jax.block_until_ready(out)
    assert out.shape == (batch, C, x_size, x_size), out.shape
    assert bool(jnp.all(jnp.isfinite(out)))
    print("KERNEL_OK")
</pallas_src>

<mosaic_0001>
module attributes {stable_mosaic.version = 11 : i64} {
  func.func @kernel(%arg0: i32, %arg1: memref<4x1152xf32, #tpu.memory_space<vmem>>, %arg2: memref<1x9x4x4xf32, #tpu.memory_space<vmem>>, %arg3: memref<1x4x1xf32, #tpu.memory_space<vmem>>, %arg4: memref<1x4x1xf32, #tpu.memory_space<vmem>>, %arg5: memref<1x4x4xf32, #tpu.memory_space<vmem>>, %arg6: memref<1x1x768xf32, #tpu.memory_space<vmem>>, %arg7: memref<1x4x768xf32, #tpu.memory_space<vmem>>, %arg8: memref<4x768xf32, #tpu.memory_space<vmem>>) attributes {dimension_semantics = [#tpu.dimension_semantics<parallel>], iteration_bounds = array<i64: 4>, scalar_prefetch = 0 : i64, scratch_operands = 1 : i64, tpu.core_type = #tpu.core_type<tc>, window_params = [{pipeline_mode = #tpu.pipeline_mode<synchronous>, transform_indices = @transform_0, window_bounds = array<i64: 4, 1152>}, {transform_indices = @transform_1, window_bounds = array<i64: 1, 9, 4, 4>}, {transform_indices = @transform_2, window_bounds = array<i64: 1, 4, 1>}, {transform_indices = @transform_3, window_bounds = array<i64: 1, 4, 1>}, {transform_indices = @transform_4, window_bounds = array<i64: 1, 4, 4>}, {transform_indices = @transform_5, window_bounds = array<i64: 1, 1, 768>}, {transform_indices = @transform_6, window_bounds = array<i64: 1, 4, 768>}]} {
    %c0_i32 = arith.constant 0 : i32
    %0 = arith.cmpi eq, %arg0, %c0_i32 : i32
    %1 = arith.extui %0 : i1 to i32
    %c0_i32_0 = arith.constant 0 : i32
    %2 = arith.cmpi ne, %1, %c0_i32_0 : i32
    scf.if %2 {
      %c0_27 = arith.constant 0 : index
      %c0_28 = arith.constant 0 : index
      %c0_29 = arith.constant 0 : index
      %c0_30 = arith.constant 0 : index
      %57 = vector.load %arg2[%c0_27, %c0_28, %c0_29, %c0_30] : memref<1x9x4x4xf32, #tpu.memory_space<vmem>>, vector<1x1x4x4xf32>
      %58 = vector.shape_cast %57 : vector<1x1x4x4xf32> to vector<4x4xf32>
      %c0_31 = arith.constant 0 : index
      %c0_32 = arith.constant 0 : index
      %59 = vector.load %arg1[%c0_31, %c0_32] : memref<4x1152xf32, #tpu.memory_space<vmem>>, vector<4x768xf32>
      %cst_33 = arith.constant dense<0.000000e+00> : vector<4x768xf32>
      %60 = tpu.matmul %58, %59, %cst_33 {dimension_numbers = #tpu.dot_dimension_numbers<[1], [0], [0], [1], [0, 0, 1, 1], [], []>} : vector<4x4xf32>, vector<4x768xf32>, vector<4x768xf32> -> vector<4x768xf32>
      %c0_34 = arith.constant 0 : index
      %c1 = arith.constant 1 : index
      %c0_35 = arith.constant 0 : index
      %c0_36 = arith.constant 0 : index
      %61 = vector.load %arg2[%c0_34, %c1, %c0_35, %c0_36] : memref<1x9x4x4xf32, #tpu.memory_space<vmem>>, vector<1x1x4x4xf32>
      %62 = vector.shape_cast %61 : vector<1x1x4x4xf32> to vector<4x4xf32>
      %c0_37 = arith.constant 0 : index
      %c1_38 = arith.constant 1 : index
      %63 = vector.load %arg1[%c0_37, %c1_38] : memref<4x1152xf32, #tpu.memory_space<vmem>>, vector<4x768xf32>
      %cst_39 = arith.constant dense<0.000000e+00> : vector<4x768xf32>
      %64 = tpu.matmul %62, %63, %cst_39 {dimension_numbers = #tpu.dot_dimension_numbers<[1], [0], [0], [1], [0, 0, 1, 1], [], []>} : vector<4x4xf32>, vector<4x768xf32>, vector<4x768xf32> -> vector<4x768xf32>
      %65 = arith.addf %60, %64 : vector<4x768xf32>
      %c0_40 = arith.constant 0 : index
      %c2 = arith.constant 2 : index
      %c0_41 = arith.constant 0 : index
      %c0_42 = arith.constant 0 : index
      %66 = vector.load %arg2[%c0_40, %c2, %c0_41, %c0_42] : memref<1x9x4x4xf32, #tpu.memory_space<vmem>>, vector<1x1x4x4xf32>
      %67 = vector.shape_cast %66 : vector<1x1x4x4xf32> to vector<4x4xf32>
      %c0_43 = arith.constant 0 : index
      %c2_44 = arith.constant 2 : index
      %68 = vector.load %arg1[%c0_43, %c2_44] : memref<4x1152xf32, #tpu.memory_space<vmem>>, vector<4x768xf32>
      %cst_45 = arith.constant dense<0.000000e+00> : vector<4x768xf32>
      %69 = tpu.matmul %67, %68, %cst_45 {dimension_numbers = #tpu.dot_dimension_numbers<[1], [0], [0], [1], [0, 0, 1, 1], [], []>} : vector<4x4xf32>, vector<4x768xf32>, vector<4x768xf32> -> vector<4x768xf32>
      %70 = arith.addf %65, %69 : vector<4x768xf32>
      %c0_46 = arith.constant 0 : index
      %c3 = arith.constant 3 : index
      %c0_47 = arith.constant 0 : index
      %c0_48 = arith.constant 0 : index
      %71 = vector.load %arg2[%c0_46, %c3, %c0_47, %c0_48] : memref<1x9x4x4xf32, #tpu.memory_space<vmem>>, vector<1x1x4x4xf32>
      %72 = vector.shape_cast %71 : vector<1x1x4x4xf32> to vector<4x4xf32>
      %c0_49 = arith.constant 0 : index
      %c18 = arith.constant 18 : index
      %73 = vector.load %arg1[%c0_49, %c18] : memref<4x1152xf32, #tpu.memory_space<vmem>>, vector<4x768xf32>
      %cst_50 = arith.constant dense<0.000000e+00> : vector<4x768xf32>
      %74 = tpu.matmul %72, %73, %cst_50 {dimension_numbers = #tpu.dot_dimension_numbers<[1], [0], [0], [1], [0, 0, 1, 1], [], []>} : vector<4x4xf32>, vector<4x768xf32>, vector<4x768xf32> -> vector<4x768xf32>
      %75 = arith.addf %70, %74 : vector<4x768xf32>
      %c0_51 = arith.constant 0 : index
      %c4 = arith.constant 4 : index
      %c0_52 = arith.constant 0 : index
      %c0_53 = arith.constant 0 : index
      %76 = vector.load %arg2[%c0_51, %c4, %c0_52, %c0_53] : memref<1x9x4x4xf32, #tpu.memory_space<vmem>>, vector<1x1x4x4xf32>
      %77 = vector.shape_cast %76 : vector<1x1x4x4xf32> to vector<4x4xf32>
      %c0_54 = arith.constant 0 : index
      %c19 = arith.constant 19 : index
      %78 = vector.load %arg1[%c0_54, %c19] : memref<4x1152xf32, #tpu.memory_space<vmem>>, vector<4x768xf32>
      %cst_55 = arith.constant dense<0.000000e+00> : vector<4x768xf32>
      %79 = tpu.matmul %77, %78, %cst_55 {dimension_numbers = #tpu.dot_dimension_numbers<[1], [0], [0], [1], [0, 0, 1, 1], [], []>} : vector<4x4xf32>, vector<4x768xf32>, vector<4x768xf32> -> vector<4x768xf32>
      %80 = arith.addf %75, %79 : vector<4x768xf32>
      %c0_56 = arith.constant 0 : index
      %c5 = arith.constant 5 : index
      %c0_57 = arith.constant 0 : index
      %c0_58 = arith.constant 0 : index
      %81 = vector.load %arg2[%c0_56, %c5, %c0_57, %c0_58] : memref<1x9x4x4xf32, #tpu.memory_space<vmem>>, vector<1x1x4x4xf32>
      %82 = vector.shape_cast %81 : vector<1x1x4x4xf32> to vector<4x4xf32>
      %c0_59 = arith.constant 0 : index
      %c20 = arith.constant 20 : index
      %83 = vector.load %arg1[%c0_59, %c20] : memref<4x1152xf32, #tpu.memory_space<vmem>>, vector<4x768xf32>
      %cst_60 = arith.constant dense<0.000000e+00> : vector<4x768xf32>
      %84 = tpu.matmul %82, %83, %cst_60 {dimension_numbers = #tpu.dot_dimension_numbers<[1], [0], [0], [1], [0, 0, 1, 1], [], []>} : vector<4x4xf32>, vector<4x768xf32>, vector<4x768xf32> -> vector<4x768xf32>
      %85 = arith.addf %80, %84 : vector<4x768xf32>
      %c0_61 = arith.constant 0 : index
      %c6 = arith.constant 6 : index
      %c0_62 = arith.constant 0 : index
      %c0_63 = arith.constant 0 : index
      %86 = vector.load %arg2[%c0_61, %c6, %c0_62, %c0_63] : memref<1x9x4x4xf32, #tpu.memory_space<vmem>>, vector<1x1x4x4xf32>
      %87 = vector.shape_cast %86 : vector<1x1x4x4xf32> to vector<4x4xf32>
      %c0_64 = arith.constant 0 : index
      %c36 = arith.constant 36 : index
      %88 = vector.load %arg1[%c0_64, %c36] : memref<4x1152xf32, #tpu.memory_space<vmem>>, vector<4x768xf32>
      %cst_65 = arith.constant dense<0.000000e+00> : vector<4x768xf32>
      %89 = tpu.matmul %87, %88, %cst_65 {dimension_numbers = #tpu.dot_dimension_numbers<[1], [0], [0], [1], [0, 0, 1, 1], [], []>} : vector<4x4xf32>, vector<4x768xf32>, vector<4x768xf32> -> vector<4x768xf32>
      %90 = arith.addf %85, %89 : vector<4x768xf32>
      %c0_66 = arith.constant 0 : index
      %c7 = arith.constant 7 : index
      %c0_67 = arith.constant 0 : index
      %c0_68 = arith.constant 0 : index
      %91 = vector.load %arg2[%c0_66, %c7, %c0_67, %c0_68] : memref<1x9x4x4xf32, #tpu.memory_space<vmem>>, vector<1x1x4x4xf32>
      %92 = vector.shape_cast %91 : vector<1x1x4x4xf32> to vector<4x4xf32>
      %c0_69 = arith.constant 0 : index
      %c37 = arith.constant 37 : index
      %93 = vector.load %arg1[%c0_69, %c37] : memref<4x1152xf32, #tpu.memory_space<vmem>>, vector<4x768xf32>
      %cst_70 = arith.constant dense<0.000000e+00> : vector<4x768xf32>
      %94 = tpu.matmul %92, %93, %cst_70 {dimension_numbers = #tpu.dot_dimension_numbers<[1], [0], [0], [1], [0, 0, 1, 1], [], []>} : vector<4x4xf32>, vector<4x768xf32>, vector<4x768xf32> -> vector<4x768xf32>
      %95 = arith.addf %90, %94 : vector<4x768xf32>
      %c0_71 = arith.constant 0 : index
      %c8 = arith.constant 8 : index
      %c0_72 = arith.constant 0 : index
      %c0_73 = arith.constant 0 : index
      %96 = vector.load %arg2[%c0_71, %c8, %c0_72, %c0_73] : memref<1x9x4x4xf32, #tpu.memory_space<vmem>>, vector<1x1x4x4xf32>
      %97 = vector.shape_cast %96 : vector<1x1x4x4xf32> to vector<4x4xf32>
      %c0_74 = arith.constant 0 : index
      %c38 = arith.constant 38 : index
      %98 = vector.load %arg1[%c0_74, %c38] : memref<4x1152xf32, #tpu.memory_space<vmem>>, vector<4x768xf32>
      %cst_75 = arith.constant dense<0.000000e+00> : vector<4x768xf32>
      %99 = tpu.matmul %97, %98, %cst_75 {dimension_numbers = #tpu.dot_dimension_numbers<[1], [0], [0], [1], [0, 0, 1, 1], [], []>} : vector<4x4xf32>, vector<4x768xf32>, vector<4x768xf32> -> vector<4x768xf32>
      %100 = arith.addf %95, %99 : vector<4x768xf32>
      %c0_76 = arith.constant 0 : index
      %c0_77 = arith.constant 0 : index
      %101 = vector.load %arg8[%c0_76, %c0_77] : memref<4x768xf32, #tpu.memory_space<vmem>>, vector<4x768xf32>
      tpu.vector_store %arg8[%c0_76, %c0_77], %100 {strides = array<i32>} : memref<4x768xf32, #tpu.memory_space<vmem>>, vector<4x768xf32>,
    } else {
    }
    %c1_i32 = arith.constant 1 : i32
    %3 = arith.cmpi eq, %arg0, %c1_i32 : i32
    %4 = arith.extui %3 : i1 to i32
    %c0_i32_1 = arith.constant 0 : i32
    %5 = arith.cmpi ne, %4, %c0_i32_1 : i32
    scf.if %5 {
      %c0_27 = arith.constant 0 : index
      %c0_28 = arith.constant 0 : index
      %c0_29 = arith.constant 0 : index
      %c0_30 = arith.constant 0 : index
      %57 = vector.load %arg2[%c0_27, %c0_28, %c0_29, %c0_30] : memref<1x9x4x4xf32, #tpu.memory_space<vmem>>, vector<1x1x4x4xf32>
      %58 = vector.shape_cast %57 : vector<1x1x4x4xf32> to vector<4x4xf32>
      %c0_31 = arith.constant 0 : index
      %c0_32 = arith.constant 0 : index
      %59 = vector.load %arg1[%c0_31, %c0_32] : memref<4x1152xf32, #tpu.memory_space<vmem>>, vector<4x768xf32>
      %cst_33 = arith.constant dense<0.000000e+00> : vector<4x768xf32>
      %60 = tpu.matmul %58, %59, %cst_33 {dimension_numbers = #tpu.dot_dimension_numbers<[1], [0], [0], [1], [0, 0, 1, 1], [], []>} : vector<4x4xf32>, vector<4x768xf32>, vector<4x768xf32> -> vector<4x768xf32>
      %c0_34 = arith.constant 0 : index
      %c1 = arith.constant 1 : index
      %c0_35 = arith.constant 0 : index
      %c0_36 = arith.constant 0 : index
      %61 = vector.load %arg2[%c0_34, %c1, %c0_35, %c0_36] : memref<1x9x4x4xf32, #tpu.memory_space<vmem>>, vector<1x1x4x4xf32>
      %62 = vector.shape_cast %61 : vector<1x1x4x4xf32> to vector<4x4xf32>
      %c0_37 = arith.constant 0 : index
      %c3 = arith.constant 3 : index
      %63 = vector.load %arg1[%c0_37, %c3] : memref<4x1152xf32, #tpu.memory_space<vmem>>, vector<4x768xf32>
      %cst_38 = arith.constant dense<0.000000e+00> : vector<4x768xf32>
      %64 = tpu.matmul %62, %63, %cst_38 {dimension_numbers = #tpu.dot_dimension_numbers<[1], [0], [0], [1], [0, 0, 1, 1], [], []>} : vector<4x4xf32>, vector<4x768xf32>, vector<4x768xf32> -> vector<4x768xf32>
      %65 = arith.addf %60, %64 : vector<4x768xf32>
      %c0_39 = arith.constant 0 : index
      %c2 = arith.constant 2 : index
      %c0_40 = arith.constant 0 : index
      %c0_41 = arith.constant 0 : index
      %66 = vector.load %arg2[%c0_39, %c2, %c0_40, %c0_41] : memref<1x9x4x4xf32, #tpu.memory_space<vmem>>, vector<1x1x4x4xf32>
      %67 = vector.shape_cast %66 : vector<1x1x4x4xf32> to vector<4x4xf32>
      %c0_42 = arith.constant 0 : index
      %c6 = arith.constant 6 : index
      %68 = vector.load %arg1[%c0_42, %c6] : memref<4x1152xf32, #tpu.memory_space<vmem>>, vector<4x768xf32>
      %cst_43 = arith.constant dense<0.000000e+00> : vector<4x768xf32>
      %69 = tpu.matmul %67, %68, %cst_43 {dimension_numbers = #tpu.dot_dimension_numbers<[1], [0], [0], [1], [0, 0, 1, 1], [], []>} : vector<4x4xf32>, vector<4x768xf32>, vector<4x768xf32> -> vector<4x768xf32>
      %70 = arith.addf %65, %69 : vector<4x768xf32>
      %c0_44 = arith.constant 0 : index
      %c3_45 = arith.constant 3 : index
      %c0_46 = arith.constant 0 : index
      %c0_47 = arith.constant 0 : index
      %71 = vector.load %arg2[%c0_44, %c3_45, %c0_46, %c0_47] : memref<1x9x4x4xf32, #tpu.memory_space<vmem>>, vector<1x1x4x4xf32>
      %72 = vector.shape_cast %71 : vector<1x1x4x4xf32> to vector<4x4xf32>
      %c0_48 = arith.constant 0 : index
      %c54 = arith.constant 54 : index
      %73 = vector.load %arg1[%c0_48, %c54] : memref<4x1152xf32, #tpu.memory_space<vmem>>, vector<4x768xf32>
      %cst_49 = arith.constant dense<0.000000e+00> : vector<4x768xf32>
      %74 = tpu.matmul %72, %73, %cst_49 {dimension_numbers = #tpu.dot_dimension_numbers<[1], [0], [0], [1], [0, 0, 1, 1], [], []>} : vector<4x4xf32>, vector<4x768xf32>, vector<4x768xf32> -> vector<4x768xf32>
      %75 = arith.addf %70, %74 : vector<4x768xf32>
      %c0_50 = arith.constant 0 : index
      %c4 = arith.constant 4 : index
      %c0_51 = arith.constant 0 : index
      %c0_52 = arith.constant 0 : index
      %76 = vector.load %arg2[%c0_50, %c4, %c0_51, %c0_52] : memref<1x9x4x4xf32, #tpu.memory_space<vmem>>, vector<1x1x4x4xf32>
      %77 = vector.shape_cast %76 : vector<1x1x4x4xf32> to vector<4x4xf32>
      %c0_53 = arith.constant 0 : index
      %c57 = arith.constant 57 : index
      %78 = vector.load %arg1[%c0_53, %c57] : memref<4x1152xf32, #tpu.memory_space<vmem>>, vector<4x768xf32>
      %cst_54 = arith.constant dense<0.000000e+00> : vector<4x768xf32>
      %79 = tpu.matmul %77, %78, %cst_54 {dimension_numbers = #tpu.dot_dimension_numbers<[1], [0], [0], [1], [0, 0, 1, 1], [], []>} : vector<4x4xf32>, vector<4x768xf32>, vector<4x768xf32> -> vector<4x768xf32>
      %80 = arith.addf %75, %79 : vector<4x768xf32>
      %c0_55 = arith.constant 0 : index
      %c5 = arith.constant 5 : index
      %c0_56 = arith.constant 0 : index
      %c0_57 = arith.constant 0 : index
      %81 = vector.load %arg2[%c0_55, %c5, %c0_56, %c0_57] : memref<1x9x4x4xf32, #tpu.memory_space<vmem>>, vector<1x1x4x4xf32>
      %82 = vector.shape_cast %81 : vector<1x1x4x4xf32> to vector<4x4xf32>
      %c0_58 = arith.constant 0 : index
      %c60 = arith.constant 60 : index
      %83 = vector.load %arg1[%c0_58, %c60] : memref<4x1152xf32, #tpu.memory_space<vmem>>, vector<4x768xf32>
      %cst_59 = arith.constant dense<0.000000e+00> : vector<4x768xf32>
      %84 = tpu.matmul %82, %83, %cst_59 {dimension_numbers = #tpu.dot_dimension_numbers<[1], [0], [0], [1], [0, 0, 1, 1], [], []>} : vector<4x4xf32>, vector<4x768xf32>, vector<4x768xf32> -> vector<4x768xf32>
      %85 = arith.addf %80, %84 : vector<4x768xf32>
      %c0_60 = arith.constant 0 : index
      %c6_61 = arith.constant 6 : index
      %c0_62 = arith.constant 0 : index
      %c0_63 = arith.constant 0 : index
      %86 = vector.load %arg2[%c0_60, %c6_61, %c0_62, %c0_63] : memref<1x9x4x4xf32, #tpu.memory_space<vmem>>, vector<1x1x4x4xf32>
      %87 = vector.shape_cast %86 : vector<1x1x4x4xf32> to vector<4x4xf32>
      %c0_64 = arith.constant 0 : index
      %c108 = arith.constant 108 : index
      %88 = vector.load %arg1[%c0_64, %c108] : memref<4x1152xf32, #tpu.memory_space<vmem>>, vector<4x768xf32>
      %cst_65 = arith.constant dense<0.000000e+00> : vector<4x768xf32>
      %89 = tpu.matmul %87, %88, %cst_65 {dimension_numbers = #tpu.dot_dimension_numbers<[1], [0], [0], [1], [0, 0, 1, 1], [], []>} : vector<4x4xf32>, vector<4x768xf32>, vector<4x768xf32> -> vector<4x768xf32>
      %90 = arith.addf %85, %89 : vector<4x768xf32>
      %c0_66 = arith.constant 0 : index
      %c7 = arith.constant 7 : index
      %c0_67 = arith.constant 0 : index
      %c0_68 = arith.constant 0 : index
      %91 = vector.load %arg2[%c0_66, %c7, %c0_67, %c0_68] : memref<1x9x4x4xf32, #tpu.memory_space<vmem>>, vector<1x1x4x4xf32>
      %92 = vector.shape_cast %91 : vector<1x1x4x4xf32> to vector<4x4xf32>
      %c0_69 = arith.constant 0 : index
      %c111 = arith.constant 111 : index
      %93 = vector.load %arg1[%c0_69, %c111] : memref<4x1152xf32, #tpu.memory_space<vmem>>, vector<4x768xf32>
      %cst_70 = arith.constant dense<0.000000e+00> : vector<4x768xf32>
      %94 = tpu.matmul %92, %93, %cst_70 {dimension_numbers = #tpu.dot_dimension_numbers<[1], [0], [0], [1], [0, 0, 1, 1], [], []>} : vector<4x4xf32>, vector<4x768xf32>, vector<4x768xf32> -> vector<4x768xf32>
      %95 = arith.addf %90, %94 : vector<4x768xf32>
      %c0_71 = arith.constant 0 : index
      %c8 = arith.constant 8 : index
      %c0_72 = arith.constant 0 : index
      %c0_73 = arith.constant 0 : index
      %96 = vector.load %arg2[%c0_71, %c8, %c0_72, %c0_73] : memref<1x9x4x4xf32, #tpu.memory_space<vmem>>, vector<1x1x4x4xf32>
      %97 = vector.shape_cast %96 : vector<1x1x4x4xf32> to vector<4x4xf32>
      %c0_74 = arith.constant 0 : index
      %c114 = arith.constant 114 : index
      %98 = vector.load %arg1[%c0_74, %c114] : memref<4x1152xf32, #tpu.memory_space<vmem>>, vector<4x768xf32>
      %cst_75 = arith.constant dense<0.000000e+00> : vector<4x768xf32>
      %99 = tpu.matmul %97, %98, %cst_75 {dimension_numbers = #tpu.dot_dimension_numbers<[1], [0], [0], [1], [0, 0, 1, 1], [], []>} : vector<4x4xf32>, vector<4x768xf32>, vector<4x768xf32> -> vector<4x768xf32>
      %100 = arith.addf %95, %99 : vector<4x768xf32>
      %c0_76 = arith.constant 0 : index
      %c0_77 = arith.constant 0 : index
      %101 = vector.load %arg8[%c0_76, %c0_77] : memref<4x768xf32, #tpu.memory_space<vmem>>, vector<4x768xf32>
      tpu.vector_store %arg8[%c0_76, %c0_77], %100 {strides = array<i32>} : memref<4x768xf32, #tpu.memory_space<vmem>>, vector<4x768xf32>,
    } else {
    }
    %c2_i32 = arith.constant 2 : i32
    %6 = arith.cmpi eq, %arg0, %c2_i32 : i32
    %7 = arith.extui %6 : i1 to i32
    %c0_i32_2 = arith.constant 0 : i32
    %8 = arith.cmpi ne, %7, %c0_i32_2 : i32
    scf.if %8 {
      %c0_27 = arith.constant 0 : index
      %c0_28 = arith.constant 0 : index
      %c0_29 = arith.constant 0 : index
      %c0_30 = arith.constant 0 : index
      %57 = vector.load %arg2[%c0_27, %c0_28, %c0_29, %c0_30] : memref<1x9x4x4xf32, #tpu.memory_space<vmem>>, vector<1x1x4x4xf32>
      %58 = vector.shape_cast %57 : vector<1x1x4x4xf32> to vector<4x4xf32>
      %c0_31 = arith.constant 0 : index
      %c0_32 = arith.constant 0 : index
      %59 = vector.load %arg1[%c0_31, %c0_32] : memref<4x1152xf32, #tpu.memory_space<vmem>>, vector<4x768xf32>
      %cst_33 = arith.constant dense<0.000000e+00> : vector<4x768xf32>
      %60 = tpu.matmul %58, %59, %cst_33 {dimension_numbers = #tpu.dot_dimension_numbers<[1], [0], [0], [1], [0, 0, 1, 1], [], []>} : vector<4x4xf32>, vector<4x768xf32>, vector<4x768xf32> -> vector<4x768xf32>
      %c0_34 = arith.constant 0 : index
      %c1 = arith.constant 1 : index
      %c0_35 = arith.constant 0 : index
      %c0_36 = arith.constant 0 : index
      %61 = vector.load %arg2[%c0_34, %c1, %c0_35, %c0_36] : memref<1x9x4x4xf32, #tpu.memory_space<vmem>>, vector<1x1x4x4xf32>
      %62 = vector.shape_cast %61 : vector<1x1x4x4xf32> to vector<4x4xf32>
      %c0_37 = arith.constant 0 : index
      %c5 = arith.constant 5 : index
      %63 = vector.load %arg1[%c0_37, %c5] : memref<4x1152xf32, #tpu.memory_space<vmem>>, vector<4x768xf32>
      %cst_38 = arith.constant dense<0.000000e+00> : vector<4x768xf32>
      %64 = tpu.matmul %62, %63, %cst_38 {dimension_numbers = #tpu.dot_dimension_numbers<[1], [0], [0], [1], [0, 0, 1, 1], [], []>} : vector<4x4xf32>, vector<4x768xf32>, vector<4x768xf32> -> vector<4x768xf32>
      %65 = arith.addf %60, %64 : vector<4x768xf32>
      %c0_39 = arith.constant 0 : index
      %c2 = arith.constant 2 : index
      %c0_40 = arith.constant 0 : index
      %c0_41 = arith.constant 0 : index
      %66 = vector.load %arg2[%c0_39, %c2, %c0_40, %c0_41] : memref<1x9x4x4xf32, #tpu.memory_space<vmem>>, vector<1x1x4x4xf32>
      %67 = vector.shape_cast %66 : vector<1x1x4x4xf32> to vector<4x4xf32>
      %c0_42 = arith.constant 0 : index
      %c10 = arith.constant 10 : index
      %68 = vector.load %arg1[%c0_42, %c10] : memref<4x1152xf32, #tpu.memory_space<vmem>>, vector<4x768xf32>
      %cst_43 = arith.constant dense<0.000000e+00> : vector<4x768xf32>
      %69 = tpu.matmul %67, %68, %cst_43 {dimension_numbers = #tpu.dot_dimension_numbers<[1], [0], [0], [1], [0, 0, 1, 1], [], []>} : vector<4x4xf32>, vector<4x768xf32>, vector<4x768xf32> -> vector<4x768xf32>
      %70 = arith.addf %65, %69 : vector<4x768xf32>
      %c0_44 = arith.constant 0 : index
      %c3 = arith.constant 3 : index
      %c0_45 = arith.constant 0 : index
      %c0_46 = arith.constant 0 : index
      %71 = vector.load %arg2[%c0_44, %c3, %c0_45, %c0_46] : memref<1x9x4x4xf32, #tpu.memory_space<vmem>>, vector<1x1x4x4xf32>
      %72 = vector.shape_cast %71 : vector<1x1x4x4xf32> to vector<4x4xf32>
      %c0_47 = arith.constant 0 : index
      %c90 = arith.constant 90 : index
      %73 = vector.load %arg1[%c0_47, %c90] : memref<4x1152xf32, #tpu.memory_space<vmem>>, vector<4x768xf32>
      %cst_48 = arith.constant dense<0.000000e+00> : vector<4x768xf32>
      %74 = tpu.matmul %72, %73, %cst_48 {dimension_numbers = #tpu.dot_dimension_numbers<[1], [0], [0], [1], [0, 0, 1, 1], [], []>} : vector<4x4xf32>, vector<4x768xf32>, vector<4x768xf32> -> vector<4x768xf32>
      %75 = arith.addf %70, %74 : vector<4x768xf32>
      %c0_49 = arith.constant 0 : index
      %c4 = arith.constant 4 : index
      %c0_50 = arith.constant 0 : index
      %c0_51 = arith.constant 0 : index
      %76 = vector.load %arg2[%c0_49, %c4, %c0_50, %c0_51] : memref<1x9x4x4xf32, #tpu.memory_space<vmem>>, vector<1x1x4x4xf32>
      %77 = vector.shape_cast %76 : vector<1x1x4x4xf32> to vector<4x4xf32>
      %c0_52 = arith.constant 0 : index
      %c95 = arith.constant 95 : index
      %78 = vector.load %arg1[%c0_52, %c95] : memref<4x1152xf32, #tpu.memory_space<vmem>>, vector<4x768xf32>
      %cst_53 = arith.constant dense<0.000000e+00> : vector<4x768xf32>
      %79 = tpu.matmul %77, %78, %cst_53 {dimension_numbers = #tpu.dot_dimension_numbers<[1], [0], [0], [1], [0, 0, 1, 1], [], []>} : vector<4x4xf32>, vector<4x768xf32>, vector<4x768xf32> -> vector<4x768xf32>
      %80 = arith.addf %75, %79 : vector<4x768xf32>
      %c0_54 = arith.constant 0 : index
      %c5_55 = arith.constant 5 : index
      %c0_56 = arith.constant 0 : index
      %c0_57 = arith.constant 0 : index
      %81 = vector.load %arg2[%c0_54, %c5_55, %c0_56, %c0_57] : memref<1x9x4x4xf32, #tpu.memory_space<vmem>>, vector<1x1x4x4xf32>
      %82 = vector.shape_cast %81 : vector<1x1x4x4xf32> to vector<4x4xf32>
      %c0_58 = arith.constant 0 : index
      %c100 = arith.constant 100 : index
      %83 = vector.load %arg1[%c0_58, %c100] : memref<4x1152xf32, #tpu.memory_space<vmem>>, vector<4x768xf32>
      %cst_59 = arith.constant dense<0.000000e+00> : vector<4x768xf32>
      %84 = tpu.matmul %82, %83, %cst_59 {dimension_numbers = #tpu.dot_dimension_numbers<[1], [0], [0], [1], [0, 0, 1, 1], [], []>} : vector<4x4xf32>, vector<4x768xf32>, vector<4x768xf32> -> vector<4x768xf32>
      %85 = arith.addf %80, %84 : vector<4x768xf32>
      %c0_60 = arith.constant 0 : index
      %c6 = arith.constant 6 : index
      %c0_61 = arith.constant 0 : index
      %c0_62 = arith.constant 0 : index
      %86 = vector.load %arg2[%c0_60, %c6, %c0_61, %c0_62] : memref<1x9x4x4xf32, #tpu.memory_space<vmem>>, vector<1x1x4x4xf32>
      %87 = vector.shape_cast %86 : vector<1x1x4x4xf32> to vector<4x4xf32>
      %c0_63 = arith.constant 0 : index
      %c180 = arith.constant 180 : index
      %88 = vector.load %arg1[%c0_63, %c180] : memref<4x1152xf32, #tpu.memory_space<vmem>>, vector<4x768xf32>
      %cst_64 = arith.constant dense<0.000000e+00> : vector<4x768xf32>
      %89 = tpu.matmul %87, %88, %cst_64 {dimension_numbers = #tpu.dot_dimension_numbers<[1], [0], [0], [1], [0, 0, 1, 1], [], []>} : vector<4x4xf32>, vector<4x768xf32>, vector<4x768xf32> -> vector<4x768xf32>
      %90 = arith.addf %85, %89 : vector<4x768xf32>
      %c0_65 = arith.constant 0 : index
      %c7 = arith.constant 7 : index
      %c0_66 = arith.constant 0 : index
      %c0_67 = arith.constant 0 : index
      %91 = vector.load %arg2[%c0_65, %c7, %c0_66, %c0_67] : memref<1x9x4x4xf32, #tpu.memory_space<vmem>>, vector<1x1x4x4xf32>
      %92 = vector.shape_cast %91 : vector<1x1x4x4xf32> to vector<4x4xf32>
      %c0_68 = arith.constant 0 : index
      %c185 = arith.constant 185 : index
      %93 = vector.load %arg1[%c0_68, %c185] : memref<4x1152xf32, #tpu.memory_space<vmem>>, vector<4x768xf32>
      %cst_69 = arith.constant dense<0.000000e+00> : vector<4x768xf32>
      %94 = tpu.matmul %92, %93, %cst_69 {dimension_numbers = #tpu.dot_dimension_numbers<[1], [0], [0], [1], [0, 0, 1, 1], [], []>} : vector<4x4xf32>, vector<4x768xf32>, vector<4x768xf32> -> vector<4x768xf32>
      %95 = arith.addf %90, %94 : vector<4x768xf32>
      %c0_70 = arith.constant 0 : index
      %c8 = arith.constant 8 : index
      %c0_71 = arith.constant 0 : index
      %c0_72 = arith.constant 0 : index
      %96 = vector.load %arg2[%c0_70, %c8, %c0_71, %c0_72] : memref<1x9x4x4xf32, #tpu.memory_space<vmem>>, vector<1x1x4x4xf32>
      %97 = vector.shape_cast %96 : vector<1x1x4x4xf32> to vector<4x4xf32>
      %c0_73 = arith.constant 0 : index
      %c190 = arith.constant 190 : index
      %98 = vector.load %arg1[%c0_73, %c190] : memref<4x1152xf32, #tpu.memory_space<vmem>>, vector<4x768xf32>
      %cst_74 = arith.constant dense<0.000000e+00> : vector<4x768xf32>
      %99 = tpu.matmul %97, %98, %cst_74 {dimension_numbers = #tpu.dot_dimension_numbers<[1], [0], [0], [1], [0, 0, 1, 1], [], []>} : vector<4x4xf32>, vector<4x768xf32>, vector<4x768xf32> -> vector<4x768xf32>
      %100 = arith.addf %95, %99 : vector<4x768xf32>
      %c0_75 = arith.constant 0 : index
      %c0_76 = arith.constant 0 : index
      %101 = vector.load %arg8[%c0_75, %c0_76] : memref<4x768xf32, #tpu.memory_space<vmem>>, vector<4x768xf32>
      tpu.vector_store %arg8[%c0_75, %c0_76], %100 {strides = array<i32>} : memref<4x768xf32, #tpu.memory_space<vmem>>, vector<4x768xf32>,
    } else {
    }
    %c3_i32 = arith.constant 3 : i32
    %9 = arith.cmpi eq, %arg0, %c3_i32 : i32
    %10 = arith.extui %9 : i1 to i32
    %c0_i32_3 = arith.constant 0 : i32
    %11 = arith.cmpi ne, %10, %c0_i32_3 : i32
    scf.if %11 {
      %c0_27 = arith.constant 0 : index
      %c0_28 = arith.constant 0 : index
      %c0_29 = arith.constant 0 : index
      %c0_30 = arith.constant 0 : index
      %57 = vector.load %arg2[%c0_27, %c0_28, %c0_29, %c0_30] : memref<1x9x4x4xf32, #tpu.memory_space<vmem>>, vector<1x1x4x4xf32>
      %58 = vector.shape_cast %57 : vector<1x1x4x4xf32> to vector<4x4xf32>
      %c0_31 = arith.constant 0 : index
      %c0_32 = arith.constant 0 : index
      %59 = vector.load %arg1[%c0_31, %c0_32] : memref<4x1152xf32, #tpu.memory_space<vmem>>, vector<4x768xf32>
      %cst_33 = arith.constant dense<0.000000e+00> : vector<4x768xf32>
      %60 = tpu.matmul %58, %59, %cst_33 {dimension_numbers = #tpu.dot_dimension_numbers<[1], [0], [0], [1], [0, 0, 1, 1], [], []>} : vector<4x4xf32>, vector<4x768xf32>, vector<4x768xf32> -> vector<4x768xf32>
      %c0_34 = arith.constant 0 : index
      %c1 = arith.constant 1 : index
      %c0_35 = arith.constant 0 : index
      %c0_36 = arith.constant 0 : index
      %61 = vector.load %arg2[%c0_34, %c1, %c0_35, %c0_36] : memref<1x9x4x4xf32, #tpu.memory_space<vmem>>, vector<1x1x4x4xf32>
      %62 = vector.shape_cast %61 : vector<1x1x4x4xf32> to vector<4x4xf32>
      %c0_37 = arith.constant 0 : index
      %c7 = arith.constant 7 : index
      %63 = vector.load %arg1[%c0_37, %c7] : memref<4x1152xf32, #tpu.memory_space<vmem>>, vector<4x768xf32>
      %cst_38 = arith.constant dense<0.000000e+00> : vector<4x768xf32>
      %64 = tpu.matmul %62, %63, %cst_38 {dimension_numbers = #tpu.dot_dimension_numbers<[1], [0], [0], [1], [0, 0, 1, 1], [], []>} : vector<4x4xf32>, vector<4x768xf32>, vector<4x768xf32> -> vector<4x768xf32>
      %65 = arith.addf %60, %64 : vector<4x768xf32>
      %c0_39 = arith.constant 0 : index
      %c2 = arith.constant 2 : index
      %c0_40 = arith.constant 0 : index
      %c0_41 = arith.constant 0 : index
      %66 = vector.load %arg2[%c0_39, %c2, %c0_40, %c0_41] : memref<1x9x4x4xf32, #tpu.memory_space<vmem>>, vector<1x1x4x4xf32>
      %67 = vector.shape_cast %66 : vector<1x1x4x4xf32> to vector<4x4xf32>
      %c0_42 = arith.constant 0 : index
      %c14 = arith.constant 14 : index
      %68 = vector.load %arg1[%c0_42, %c14] : memref<4x1152xf32, #tpu.memory_space<vmem>>, vector<4x768xf32>
      %cst_43 = arith.constant dense<0.000000e+00> : vector<4x768xf32>
      %69 = tpu.matmul %67, %68, %cst_43 {dimension_numbers = #tpu.dot_dimension_numbers<[1], [0], [0], [1], [0, 0, 1, 1], [], []>} : vector<4x4xf32>, vector<4x768xf32>, vector<4x768xf32> -> vector<4x768xf32>
      %70 = arith.addf %65, %69 : vector<4x768xf32>
      %c0_44 = arith.constant 0 : index
      %c3 = arith.constant 3 : index
      %c0_45 = arith.constant 0 : index
      %c0_46 = arith.constant 0 : index
      %71 = vector.load %arg2[%c0_44, %c3, %c0_45, %c0_46] : memref<1x9x4x4xf32, #tpu.memory_space<vmem>>, vector<1x1x4x4xf32>
      %72 = vector.shape_cast %71 : vector<1x1x4x4xf32> to vector<4x4xf32>
      %c0_47 = arith.constant 0 : index
      %c126 = arith.constant 126 : index
      %73 = vector.load %arg1[%c0_47, %c126] : memref<4x1152xf32, #tpu.memory_space<vmem>>, vector<4x768xf32>
      %cst_48 = arith.constant dense<0.000000e+00> : vector<4x768xf32>
      %74 = tpu.matmul %72, %73, %cst_48 {dimension_numbers = #tpu.dot_dimension_numbers<[1], [0], [0], [1], [0, 0, 1, 1], [], []>} : vector<4x4xf32>, vector<4x768xf32>, vector<4x768xf32> -> vector<4x768xf32>
      %75 = arith.addf %70, %74 : vector<4x768xf32>
      %c0_49 = arith.constant 0 : index
      %c4 = arith.constant 4 : index
      %c0_50 = arith.constant 0 : index
      %c0_51 = arith.constant 0 : index
      %76 = vector.load %arg2[%c0_49, %c4, %c0_50, %c0_51] : memref<1x9x4x4xf32, #tpu.memory_space<vmem>>, vector<1x1x4x4xf32>
      %77 = vector.shape_cast %76 : vector<1x1x4x4xf32> to vector<4x4xf32>
      %c0_52 = arith.constant 0 : index
      %c133 = arith.constant 133 : index
      %78 = vector.load %arg1[%c0_52, %c133] : memref<4x1152xf32, #tpu.memory_space<vmem>>, vector<4x768xf32>
      %cst_53 = arith.constant dense<0.000000e+00> : vector<4x768xf32>
      %79 = tpu.matmul %77, %78, %cst_53 {dimension_numbers = #tpu.dot_dimension_numbers<[1], [0], [0], [1], [0, 0, 1, 1], [], []>} : vector<4x4xf32>, vector<4x768xf32>, vector<4x768xf32> -> vector<4x768xf32>
      %80 = arith.addf %75, %79 : vector<4x768xf32>
      %c0_54 = arith.constant 0 : index
      %c5 = arith.constant 5 : index
      %c0_55 = arith.constant 0 : index
      %c0_56 = arith.constant 0 : index
      %81 = vector.load %arg2[%c0_54, %c5, %c0_55, %c0_56] : memref<1x9x4x4xf32, #tpu.memory_space<vmem>>, vector<1x1x4x4xf32>
      %82 = vector.shape_cast %81 : vector<1x1x4x4xf32> to vector<4x4xf32>
      %c0_57 = arith.constant 0 : index
      %c140 = arith.constant 140 : index
      %83 = vector.load %arg1[%c0_57, %c140] : memref<4x1152xf32, #tpu.memory_space<vmem>>, vector<4x768xf32>
      %cst_58 = arith.constant dense<0.000000e+00> : vector<4x768xf32>
      %84 = tpu.matmul %82, %83, %cst_58 {dimension_numbers = #tpu.dot_dimension_numbers<[1], [0], [0], [1], [0, 0, 1, 1], [], []>} : vector<4x4xf32>, vector<4x768xf32>, vector<4x768xf32> -> vector<4x768xf32>
      %85 = arith.addf %80, %84 : vector<4x768xf32>
      %c0_59 = arith.constant 0 : index
      %c6 = arith.constant 6 : index
      %c0_60 = arith.constant 0 : index
      %c0_61 = arith.constant 0 : index
      %86 = vector.load %arg2[%c0_59, %c6, %c0_60, %c0_61] : memref<1x9x4x4xf32, #tpu.memory_space<vmem>>, vector<1x1x4x4xf32>
      %87 = vector.shape_cast %86 : vector<1x1x4x4xf32> to vector<4x4xf32>
      %c0_62 = arith.constant 0 : index
      %c252 = arith.constant 252 : index
      %88 = vector.load %arg1[%c0_62, %c252] : memref<4x1152xf32, #tpu.memory_space<vmem>>, vector<4x768xf32>
      %cst_63 = arith.constant dense<0.000000e+00> : vector<4x768xf32>
      %89 = tpu.matmul %87, %88, %cst_63 {dimension_numbers = #tpu.dot_dimension_numbers<[1], [0], [0], [1], [0, 0, 1, 1], [], []>} : vector<4x4xf32>, vector<4x768xf32>, vector<4x768xf32> -> vector<4x768xf32>
      %90 = arith.addf %85, %89 : vector<4x768xf32>
      %c0_64 = arith.constant 0 : index
      %c7_65 = arith.constant 7 : index
      %c0_66 = arith.constant 0 : index
      %c0_67 = arith.constant 0 : index
      %91 = vector.load %arg2[%c0_64, %c7_65, %c0_66, %c0_67] : memref<1x9x4x4xf32, #tpu.memory_space<vmem>>, vector<1x1x4x4xf32>
      %92 = vector.shape_cast %91 : vector<1x1x4x4xf32> to vector<4x4xf32>
      %c0_68 = arith.constant 0 : index
      %c259 = arith.constant 259 : index
      %93 = vector.load %arg1[%c0_68, %c259] : memref<4x1152xf32, #tpu.memory_space<vmem>>, vector<4x768xf32>
      %cst_69 = arith.constant dense<0.000000e+00> : vector<4x768xf32>
      %94 = tpu.matmul %92, %93, %cst_69 {dimension_numbers = #tpu.dot_dimension_numbers<[1], [0], [0], [1], [0, 0, 1, 1], [], []>} : vector<4x4xf32>, vector<4x768xf32>, vector<4x768xf32> -> vector<4x768xf32>
      %95 = arith.addf %90, %94 : vector<4x768xf32>
      %c0_70 = arith.constant 0 : index
      %c8 = arith.constant 8 : index
      %c0_71 = arith.constant 0 : index
      %c0_72 = arith.constant 0 : index
      %96 = vector.load %arg2[%c0_70, %c8, %c0_71, %c0_72] : memref<1x9x4x4xf32, #tpu.memory_space<vmem>>, vector<1x1x4x4xf32>
      %97 = vector.shape_cast %96 : vector<1x1x4x4xf32> to vector<4x4xf32>
      %c0_73 = arith.constant 0 : index
      %c266 = arith.constant 266 : index
      %98 = vector.load %arg1[%c0_73, %c266] : memref<4x1152xf32, #tpu.memory_space<vmem>>, vector<4x768xf32>
      %cst_74 = arith.constant dense<0.000000e+00> : vector<4x768xf32>
      %99 = tpu.matmul %97, %98, %cst_74 {dimension_numbers = #tpu.dot_dimension_numbers<[1], [0], [0], [1], [0, 0, 1, 1], [], []>} : vector<4x4xf32>, vector<4x768xf32>, vector<4x768xf32> -> vector<4x768xf32>
      %100 = arith.addf %95, %99 : vector<4x768xf32>
      %c0_75 = arith.constant 0 : index
      %c0_76 = arith.constant 0 : index
      %101 = vector.load %arg8[%c0_75, %c0_76] : memref<4x768xf32, #tpu.memory_space<vmem>>, vector<4x768xf32>
      tpu.vector_store %arg8[%c0_75, %c0_76], %100 {strides = array<i32>} : memref<4x768xf32, #tpu.memory_space<vmem>>, vector<4x768xf32>,
    } else {
    }
    %c0 = arith.constant 0 : index
    %c0_4 = arith.constant 0 : index
    %12 = vector.load %arg8[%c0, %c0_4] : memref<4x768xf32, #tpu.memory_space<vmem>>, vector<4x768xf32>
    %c0_5 = arith.constant 0 : index
    %c0_6 = arith.constant 0 : index
    %c0_7 = arith.constant 0 : index
    %13 = vector.load %arg6[%c0_5, %c0_6, %c0_7] : memref<1x1x768xf32, #tpu.memory_space<vmem>>, vector<1x1x768xf32>
    %14 = vector.shape_cast %13 : vector<1x1x768xf32> to vector<1x768xf32>
    %15 = vector.shape_cast %14 : vector<1x768xf32> to vector<1x1x768xf32>
    %cst = arith.constant dense<0.000000e+00> : vector<1xf32>
    %16 = vector.multi_reduction <add>, %15, %cst [1, 2] : vector<1x1x768xf32> to vector<1xf32>
    %17 = vector.shape_cast %16 : vector<1xf32> to vector<1x1x1xf32>
    %18 = vector.extract %17[0, 0, 0] : f32 from vector<1x1x1xf32>
    %cst_8 = arith.constant 1.000000e+00 : f32
    %19 = arith.divf %cst_8, %18 : f32
    %20 = vector.broadcast %14 : vector<1x768xf32> to vector<4x768xf32>
    %21 = arith.mulf %12, %20 : vector<4x768xf32>
    %cst_9 = arith.constant dense<0.000000e+00> : vector<4xf32>
    %22 = vector.multi_reduction <add>, %21, %cst_9 [1] : vector<4x768xf32> to vector<4xf32>
    %23 = vector.shape_cast %22 : vector<4xf32> to vector<4x1xf32>
    %24 = vector.broadcast %19 : f32 to vector<4x1xf32>
    %25 = arith.mulf %23, %24 : vector<4x1xf32>
    %26 = arith.mulf %21, %12 : vector<4x768xf32>
    %cst_10 = arith.constant dense<0.000000e+00> : vector<4xf32>
    %27 = vector.multi_reduction <add>, %26, %cst_10 [1] : vector<4x768xf32> to vector<4xf32>
    %28 = vector.shape_cast %27 : vector<4xf32> to vector<4x1xf32>
    %29 = vector.broadcast %19 : f32 to vector<4x1xf32>
    %30 = arith.mulf %28, %29 : vector<4x1xf32>
    %31 = arith.mulf %25, %25 : vector<4x1xf32>
    %32 = arith.subf %30, %31 : vector<4x1xf32>
    %cst_11 = arith.constant 0.000000e+00 : f32
    %33 = vector.broadcast %cst_11 : f32 to vector<4x1xf32>
    %34 = arith.maximumf %32, %33 : vector<4x1xf32>
    %c0_12 = arith.constant 0 : index
    %c0_13 = arith.constant 0 : index
    %c0_14 = arith.constant 0 : index
    %35 = vector.load %arg3[%c0_12, %c0_13, %c0_14] : memref<1x4x1xf32, #tpu.memory_space<vmem>>, vector<1x4x1xf32>
    %36 = vector.shape_cast %35 : vector<1x4x1xf32> to vector<4x1xf32>
    %cst_15 = arith.constant 9.99999974E-6 : f32
    %37 = vector.broadcast %cst_15 : f32 to vector<4x1xf32>
    %38 = arith.addf %34, %37 : vector<4x1xf32>
    %39 = math.rsqrt %38 : vector<4x1xf32>
    %40 = arith.mulf %36, %39 : vector<4x1xf32>
    %c0_16 = arith.constant 0 : index
    %c0_17 = arith.constant 0 : index
    %c0_18 = arith.constant 0 : index
    %41 = vector.load %arg4[%c0_16, %c0_17, %c0_18] : memref<1x4x1xf32, #tpu.memory_space<vmem>>, vector<1x4x1xf32>
    %42 = vector.shape_cast %41 : vector<1x4x1xf32> to vector<4x1xf32>
    %43 = arith.mulf %25, %40 : vector<4x1xf32>
    %44 = arith.subf %42, %43 : vector<4x1xf32>
    %45 = vector.broadcast %40 : vector<4x1xf32> to vector<4x768xf32>
    %46 = arith.mulf %12, %45 : vector<4x768xf32>
    %47 = vector.broadcast %44 : vector<4x1xf32> to vector<4x768xf32>
    %48 = arith.addf %46, %47 : vector<4x768xf32>
    %cst_19 = arith.constant 0.000000e+00 : f32
    %49 = vector.broadcast %cst_19 : f32 to vector<4x768xf32>
    %50 = arith.maximumf %48, %49 : vector<4x768xf32>
    %c0_20 = arith.constant 0 : index
    %c0_21 = arith.constant 0 : index
    %c0_22 = arith.constant 0 : index
    %51 = vector.load %arg5[%c0_20, %c0_21, %c0_22] : memref<1x4x4xf32, #tpu.memory_space<vmem>>, vector<1x4x4xf32>
    %52 = vector.shape_cast %51 : vector<1x4x4xf32> to vector<4x4xf32>
    %cst_23 = arith.constant dense<0.000000e+00> : vector<4x768xf32>
    %53 = tpu.matmul %52, %50, %cst_23 {dimension_numbers = #tpu.dot_dimension_numbers<[1], [0], [0], [1], [0, 0, 1, 1], [], []>} : vector<4x4xf32>, vector<4x768xf32>, vector<4x768xf32> -> vector<4x768xf32>
    %c0_24 = arith.constant 0 : index
    %c0_25 = arith.constant 0 : index
    %c0_26 = arith.constant 0 : index
    %54 = vector.load %arg7[%c0_24, %c0_25, %c0_26] : memref<1x4x768xf32, #tpu.memory_space<vmem>>, vector<1x4x768xf32>
    %55 = vector.shape_cast %54 : vector<1x4x768xf32> to vector<4x768xf32>
    %56 = vector.shape_cast %53 : vector<4x768xf32> to vector<1x4x768xf32>
    tpu.vector_store %arg7[%c0_24, %c0_25, %c0_26], %56 {strides = array<i32>} : memref<1x4x768xf32, #tpu.memory_space<vmem>>, vector<1x4x768xf32>,
    return
  }
  func.func @transform_0(%arg0: i32) -> (i32, i32) {
    %c0_i32 = arith.constant 0 : i32
    %c0_i32_0 = arith.constant 0 : i32
    %c0_i32_1 = arith.constant 0 : i32
    return %c0_i32, %c0_i32_0 : i32, i32
  }
  func.func @transform_1(%arg0: i32) -> (i32, i32, i32, i32) {
    %c0_i32 = arith.constant 0 : i32
    %c0_i32_0 = arith.constant 0 : i32
    %c0_i32_1 = arith.constant 0 : i32
    %c0_i32_2 = arith.constant 0 : i32
    return %arg0, %c0_i32, %c0_i32_0, %c0_i32_1 : i32, i32, i32, i32
  }
  func.func @transform_2(%arg0: i32) -> (i32, i32, i32) {
    %c0_i32 = arith.constant 0 : i32
    %c0_i32_0 = arith.constant 0 : i32
    %c0_i32_1 = arith.constant 0 : i32
    return %arg0, %c0_i32, %c0_i32_0 : i32, i32, i32
  }
  func.func @transform_3(%arg0: i32) -> (i32, i32, i32) {
    %c0_i32 = arith.constant 0 : i32
    %c0_i32_0 = arith.constant 0 : i32
    %c0_i32_1 = arith.constant 0 : i32
    return %arg0, %c0_i32, %c0_i32_0 : i32, i32, i32
  }
  func.func @transform_4(%arg0: i32) -> (i32, i32, i32) {
    %c0_i32 = arith.constant 0 : i32
    %c0_i32_0 = arith.constant 0 : i32
    %c0_i32_1 = arith.constant 0 : i32
    return %arg0, %c0_i32, %c0_i32_0 : i32, i32, i32
  }
  func.func @transform_5(%arg0: i32) -> (i32, i32, i32) {
    %c0_i32 = arith.constant 0 : i32
    %c0_i32_0 = arith.constant 0 : i32
    %c0_i32_1 = arith.constant 0 : i32
    return %arg0, %c0_i32, %c0_i32_0 : i32, i32, i32
  }
  func.func @transform_6(%arg0: i32) -> (i32, i32, i32) {
    %c0_i32 = arith.constant 0 : i32
    %c0_i32_0 = arith.constant 0 : i32
    %c0_i32_1 = arith.constant 0 : i32
    return %arg0, %c0_i32, %c0_i32_0 : i32, i32, i32
  }
}

module attributes {stable_mosaic.version = 11 : i64} {
  func.func @kernel(%arg0: i32, %arg1: memref<1x16x128xf32, #tpu.memory_space<vmem>>, %arg2: memref<1x16x128xf32, #tpu.memory_space<vmem>>, %arg3: memref<1x12x96xf32, #tpu.memory_space<vmem>>, %arg4: memref<1x8x64xf32, #tpu.memory_space<vmem>>, %arg5: memref<1x4x32xf32, #tpu.memory_space<vmem>>, %arg6: memref<16x16xf32, #tpu.memory_space<vmem>>, %arg7: memref<16x12xf32, #tpu.memory_space<vmem>>, %arg8: memref<16x8xf32, #tpu.memory_space<vmem>>, %arg9: memref<16x4xf32, #tpu.memory_space<vmem>>, %arg10: memref<128x128xf32, #tpu.memory_space<vmem>>, %arg11: memref<96x128xf32, #tpu.memory_space<vmem>>, %arg12: memref<64x128xf32, #tpu.memory_space<vmem>>, %arg13: memref<32x128xf32, #tpu.memory_space<vmem>>, %arg14: memref<1x16x128xf32, #tpu.memory_space<vmem>>) attributes {dimension_semantics = [#tpu.dimension_semantics<parallel>], iteration_bounds = array<i64: 1>, scalar_prefetch = 0 : i64, scratch_operands = 0 : i64, tpu.core_type = #tpu.core_type<tc>, window_params = [{transform_indices = @transform_0, window_bounds = array<i64: 1, 16, 128>}, {transform_indices = @transform_1, window_bounds = array<i64: 1, 16, 128>}, {transform_indices = @transform_2, window_bounds = array<i64: 1, 12, 96>}, {transform_indices = @transform_3, window_bounds = array<i64: 1, 8, 64>}, {transform_indices = @transform_4, window_bounds = array<i64: 1, 4, 32>}, {pipeline_mode = #tpu.pipeline_mode<synchronous>, transform_indices = @transform_5, window_bounds = array<i64: 16, 16>}, {pipeline_mode = #tpu.pipeline_mode<synchronous>, transform_indices = @transform_6, window_bounds = array<i64: 16, 12>}, {pipeline_mode = #tpu.pipeline_mode<synchronous>, transform_indices = @transform_7, window_bounds = array<i64: 16, 8>}, {pipeline_mode = #tpu.pipeline_mode<synchronous>, transform_indices = @transform_8, window_bounds = array<i64: 16, 4>}, {pipeline_mode = #tpu.pipeline_mode<synchronous>, transform_indices = @transform_9, window_bounds = array<i64: 128, 128>}, {pipeline_mode = #tpu.pipeline_mode<synchronous>, transform_indices = @transform_10, window_bounds = array<i64: 96, 128>}, {pipeline_mode = #tpu.pipeline_mode<synchronous>, transform_indices = @transform_11, window_bounds = array<i64: 64, 128>}, {pipeline_mode = #tpu.pipeline_mode<synchronous>, transform_indices = @transform_12, window_bounds = array<i64: 32, 128>}, {transform_indices = @transform_13, window_bounds = array<i64: 1, 16, 128>}]} {
    %c0 = arith.constant 0 : index
    %c0_0 = arith.constant 0 : index
    %0 = vector.load %arg6[%c0, %c0_0] : memref<16x16xf32, #tpu.memory_space<vmem>>, vector<16x16xf32>
    %c0_1 = arith.constant 0 : index
    %c0_2 = arith.constant 0 : index
    %c0_3 = arith.constant 0 : index
    %1 = vector.load %arg2[%c0_1, %c0_2, %c0_3] : memref<1x16x128xf32, #tpu.memory_space<vmem>>, vector<1x16x128xf32>
    %2 = vector.shape_cast %1 : vector<1x16x128xf32> to vector<16x128xf32>
    %cst = arith.constant dense<0.000000e+00> : vector<16x128xf32>
    %3 = tpu.matmul %0, %2, %cst {dimension_numbers = #tpu.dot_dimension_numbers<[1], [0], [0], [1], [0, 0, 1, 1], [], []>} : vector<16x16xf32>, vector<16x128xf32>, vector<16x128xf32> -> vector<16x128xf32>
    %c0_4 = arith.constant 0 : index
    %c0_5 = arith.constant 0 : index
    %4 = vector.load %arg10[%c0_4, %c0_5] : memref<128x128xf32, #tpu.memory_space<vmem>>, vector<128x128xf32>
    %cst_6 = arith.constant dense<0.000000e+00> : vector<16x128xf32>
    %5 = tpu.matmul %3, %4, %cst_6 {dimension_numbers = #tpu.dot_dimension_numbers<[1], [0], [0], [1], [0, 0, 1, 1], [], []>} : vector<16x128xf32>, vector<128x128xf32>, vector<16x128xf32> -> vector<16x128xf32>
    %c0_7 = arith.constant 0 : index
    %c0_8 = arith.constant 0 : index
    %6 = vector.load %arg7[%c0_7, %c0_8] : memref<16x12xf32, #tpu.memory_space<vmem>>, vector<16x12xf32>
    %c0_9 = arith.constant 0 : index
    %c0_10 = arith.constant 0 : index
    %c0_11 = arith.constant 0 : index
    %7 = vector.load %arg3[%c0_9, %c0_10, %c0_11] : memref<1x12x96xf32, #tpu.memory_space<vmem>>, vector<1x12x96xf32>
    %8 = vector.shape_cast %7 : vector<1x12x96xf32> to vector<12x96xf32>
    %cst_12 = arith.constant dense<0.000000e+00> : vector<16x96xf32>
    %9 = tpu.matmul %6, %8, %cst_12 {dimension_numbers = #tpu.dot_dimension_numbers<[1], [0], [0], [1], [0, 0, 1, 1], [], []>} : vector<16x12xf32>, vector<12x96xf32>, vector<16x96xf32> -> vector<16x96xf32>
    %c0_13 = arith.constant 0 : index
    %c0_14 = arith.constant 0 : index
    %10 = vector.load %arg11[%c0_13, %c0_14] : memref<96x128xf32, #tpu.memory_space<vmem>>, vector<96x128xf32>
    %cst_15 = arith.constant dense<0.000000e+00> : vector<16x128xf32>
    %11 = tpu.matmul %9, %10, %cst_15 {dimension_numbers = #tpu.dot_dimension_numbers<[1], [0], [0], [1], [0, 0, 1, 1], [], []>} : vector<16x96xf32>, vector<96x128xf32>, vector<16x128xf32> -> vector<16x128xf32>
    %12 = arith.addf %5, %11 : vector<16x128xf32>
    %c0_16 = arith.constant 0 : index
    %c0_17 = arith.constant 0 : index
    %13 = vector.load %arg8[%c0_16, %c0_17] : memref<16x8xf32, #tpu.memory_space<vmem>>, vector<16x8xf32>
    %c0_18 = arith.constant 0 : index
    %c0_19 = arith.constant 0 : index
    %c0_20 = arith.constant 0 : index
    %14 = vector.load %arg4[%c0_18, %c0_19, %c0_20] : memref<1x8x64xf32, #tpu.memory_space<vmem>>, vector<1x8x64xf32>
    %15 = vector.shape_cast %14 : vector<1x8x64xf32> to vector<8x64xf32>
    %cst_21 = arith.constant dense<0.000000e+00> : vector<16x64xf32>
    %16 = tpu.matmul %13, %15, %cst_21 {dimension_numbers = #tpu.dot_dimension_numbers<[1], [0], [0], [1], [0, 0, 1, 1], [], []>} : vector<16x8xf32>, vector<8x64xf32>, vector<16x64xf32> -> vector<16x64xf32>
    %c0_22 = arith.constant 0 : index
    %c0_23 = arith.constant 0 : index
    %17 = vector.load %arg12[%c0_22, %c0_23] : memref<64x128xf32, #tpu.memory_space<vmem>>, vector<64x128xf32>
    %cst_24 = arith.constant dense<0.000000e+00> : vector<16x128xf32>
    %18 = tpu.matmul %16, %17, %cst_24 {dimension_numbers = #tpu.dot_dimension_numbers<[1], [0], [0], [1], [0, 0, 1, 1], [], []>} : vector<16x64xf32>, vector<64x128xf32>, vector<16x128xf32> -> vector<16x128xf32>
    %19 = arith.addf %12, %18 : vector<16x128xf32>
    %c0_25 = arith.constant 0 : index
    %c0_26 = arith.constant 0 : index
    %20 = vector.load %arg9[%c0_25, %c0_26] : memref<16x4xf32, #tpu.memory_space<vmem>>, vector<16x4xf32>
    %c0_27 = arith.constant 0 : index
    %c0_28 = arith.constant 0 : index
    %c0_29 = arith.constant 0 : index
    %21 = vector.load %arg5[%c0_27, %c0_28, %c0_29] : memref<1x4x32xf32, #tpu.memory_space<vmem>>, vector<1x4x32xf32>
    %22 = vector.shape_cast %21 : vector<1x4x32xf32> to vector<4x32xf32>
    %cst_30 = arith.constant dense<0.000000e+00> : vector<16x32xf32>
    %23 = tpu.matmul %20, %22, %cst_30 {dimension_numbers = #tpu.dot_dimension_numbers<[1], [0], [0], [1], [0, 0, 1, 1], [], []>} : vector<16x4xf32>, vector<4x32xf32>, vector<16x32xf32> -> vector<16x32xf32>
    %c0_31 = arith.constant 0 : index
    %c0_32 = arith.constant 0 : index
    %24 = vector.load %arg13[%c0_31, %c0_32] : memref<32x128xf32, #tpu.memory_space<vmem>>, vector<32x128xf32>
    %cst_33 = arith.constant dense<0.000000e+00> : vector<16x128xf32>
    %25 = tpu.matmul %23, %24, %cst_33 {dimension_numbers = #tpu.dot_dimension_numbers<[1], [0], [0], [1], [0, 0, 1, 1], [], []>} : vector<16x32xf32>, vector<32x128xf32>, vector<16x128xf32> -> vector<16x128xf32>
    %26 = arith.addf %19, %25 : vector<16x128xf32>
    %c0_34 = arith.constant 0 : index
    %c0_35 = arith.constant 0 : index
    %c0_36 = arith.constant 0 : index
    %27 = vector.load %arg1[%c0_34, %c0_35, %c0_36] : memref<1x16x128xf32, #tpu.memory_space<vmem>>, vector<1x16x128xf32>
    %28 = vector.shape_cast %27 : vector<1x16x128xf32> to vector<16x128xf32>
    %29 = arith.mulf %28, %26 : vector<16x128xf32>
    %c0_37 = arith.constant 0 : index
    %c0_38 = arith.constant 0 : index
    %c0_39 = arith.constant 0 : index
    %30 = vector.load %arg14[%c0_37, %c0_38, %c0_39] : memref<1x16x128xf32, #tpu.memory_space<vmem>>, vector<1x16x128xf32>
    %31 = vector.shape_cast %30 : vector<1x16x128xf32> to vector<16x128xf32>
    %32 = vector.shape_cast %29 : vector<16x128xf32> to vector<1x16x128xf32>
    tpu.vector_store %arg14[%c0_37, %c0_38, %c0_39], %32 {strides = array<i32>} : memref<1x16x128xf32, #tpu.memory_space<vmem>>, vector<1x16x128xf32>,
    return
  }
  func.func @transform_0(%arg0: i32) -> (i32, i32, i32) {
    %c0_i32 = arith.constant 0 : i32
    %c0_i32_0 = arith.constant 0 : i32
    %c0_i32_1 = arith.constant 0 : i32
    return %arg0, %c0_i32, %c0_i32_0 : i32, i32, i32
  }
  func.func @transform_1(%arg0: i32) -> (i32, i32, i32) {
    %c0_i32 = arith.constant 0 : i32
    %c0_i32_0 = arith.constant 0 : i32
    %c0_i32_1 = arith.constant 0 : i32
    return %arg0, %c0_i32, %c0_i32_0 : i32, i32, i32
  }
  func.func @transform_2(%arg0: i32) -> (i32, i32, i32) {
    %c0_i32 = arith.constant 0 : i32
    %c0_i32_0 = arith.constant 0 : i32
    %c0_i32_1 = arith.constant 0 : i32
    return %arg0, %c0_i32, %c0_i32_0 : i32, i32, i32
  }
  func.func @transform_3(%arg0: i32) -> (i32, i32, i32) {
    %c0_i32 = arith.constant 0 : i32
    %c0_i32_0 = arith.constant 0 : i32
    %c0_i32_1 = arith.constant 0 : i32
    return %arg0, %c0_i32, %c0_i32_0 : i32, i32, i32
  }
  func.func @transform_4(%arg0: i32) -> (i32, i32, i32) {
    %c0_i32 = arith.constant 0 : i32
    %c0_i32_0 = arith.constant 0 : i32
    %c0_i32_1 = arith.constant 0 : i32
    return %arg0, %c0_i32, %c0_i32_0 : i32, i32, i32
  }
  func.func @transform_5(%arg0: i32) -> (i32, i32) {
    %c0_i32 = arith.constant 0 : i32
    %c0_i32_0 = arith.constant 0 : i32
    %c0_i32_1 = arith.constant 0 : i32
    return %c0_i32, %c0_i32_0 : i32, i32
  }
  func.func @transform_6(%arg0: i32) -> (i32, i32) {
    %c0_i32 = arith.constant 0 : i32
    %c0_i32_0 = arith.constant 0 : i32
    %c0_i32_1 = arith.constant 0 : i32
    return %c0_i32, %c0_i32_0 : i32, i32
  }
  func.func @transform_7(%arg0: i32) -> (i32, i32) {
    %c0_i32 = arith.constant 0 : i32
    %c0_i32_0 = arith.constant 0 : i32
    %c0_i32_1 = arith.constant 0 : i32
    return %c0_i32, %c0_i32_0 : i32, i32
  }
  func.func @transform_8(%arg0: i32) -> (i32, i32) {
    %c0_i32 = arith.constant 0 : i32
    %c0_i32_0 = arith.constant 0 : i32
    %c0_i32_1 = arith.constant 0 : i32
    return %c0_i32, %c0_i32_0 : i32, i32
  }
  func.func @transform_9(%arg0: i32) -> (i32, i32) {
    %c0_i32 = arith.constant 0 : i32
    %c0_i32_0 = arith.constant 0 : i32
    %c0_i32_1 = arith.constant 0 : i32
    return %c0_i32, %c0_i32_0 : i32, i32
  }
  func.func @transform_10(%arg0: i32) -> (i32, i32) {
    %c0_i32 = arith.constant 0 : i32
    %c0_i32_0 = arith.constant 0 : i32
    %c0_i32_1 = arith.constant 0 : i32
    return %c0_i32, %c0_i32_0 : i32, i32
  }
  func.func @transform_11(%arg0: i32) -> (i32, i32) {
    %c0_i32 = arith.constant 0 : i32
    %c0_i32_0 = arith.constant 0 : i32
    %c0_i32_1 = arith.constant 0 : i32
    return %c0_i32, %c0_i32_0 : i32, i32
  }
  func.func @transform_12(%arg0: i32) -> (i32, i32) {
    %c0_i32 = arith.constant 0 : i32
    %c0_i32_0 = arith.constant 0 : i32
    %c0_i32_1 = arith.constant 0 : i32
    return %c0_i32, %c0_i32_0 : i32, i32
  }
  func.func @transform_13(%arg0: i32) -> (i32, i32, i32) {
    %c0_i32 = arith.constant 0 : i32
    %c0_i32_0 = arith.constant 0 : i32
    %c0_i32_1 = arith.constant 0 : i32
    return %arg0, %c0_i32, %c0_i32_0 : i32, i32, i32
  }
}

</mosaic_0001>

<llo_original>
// kernel: spatial_attention.3
$region0: #{spatial_attention.3}
  #allocation0 [shape = 'u32[]', space=smem, size = 0x4, offset = 0x4, fixed_abs, tag = 'smem constant byte address 0x4 - core index']
  #allocation1 [shape = 'u32[144,128]{1,0:T(1,128)}', space=vmem, size = 0x12000, scoped, tag = 'internal scratch']
  %s0 = inlined_call_operand.vmem [shape: f32[1,16,128], index: 0, kind: input, shape index: {}]
  %s1 = inlined_call_operand.vmem [shape: f32[1,16,128], index: 1, kind: input, shape index: {}]
  %s2 = inlined_call_operand.vmem [shape: f32[1,12,96], index: 2, kind: input, shape index: {}]
  %s3 = inlined_call_operand.vmem [shape: f32[1,8,64], index: 3, kind: input, shape index: {}]
  %s4 = inlined_call_operand.vmem [shape: f32[1,4,32], index: 4, kind: input, shape index: {}]
  %s5 = inlined_call_operand.vmem [shape: f32[16,16], index: 5, kind: input, shape index: {}]
  %s6 = inlined_call_operand.vmem [shape: f32[16,12], index: 6, kind: input, shape index: {}]
  %s7 = inlined_call_operand.vmem [shape: f32[16,8], index: 7, kind: input, shape index: {}]
  %s8 = inlined_call_operand.vmem [shape: f32[16,4], index: 8, kind: input, shape index: {}]
  %s9 = inlined_call_operand.vmem [shape: f32[128,128], index: 9, kind: input, shape index: {}]
  %s10 = inlined_call_operand.vmem [shape: f32[96,128], index: 10, kind: input, shape index: {}]
  %s11 = inlined_call_operand.vmem [shape: f32[64,128], index: 11, kind: input, shape index: {}]
  %s12 = inlined_call_operand.vmem [shape: f32[32,128], index: 12, kind: input, shape index: {}]
  %s13 = inlined_call_operand.vmem [shape: f32[1,16,128], index: 13, kind: output, shape index: {}]
  %s14 = sld [smem:[#allocation0]]
  $region62: #{spatial_attention.3} parent=0
    _
  %s16 = ssub.s32 1, %s14
  %s17 = scalar_select 0, %s16, %s14
  // Predicated region
  $region2: #{spatial_attention.3} parent=0 // pred_check
    _
  $region3: #{spatial_attention.3} parent=0 // pred_check_branch
    %19 = sbr.rel (0) target = $region5
  $region4: #{spatial_attention.3} parent=0 // pred_region
    _
  $region5: #{spatial_attention.3} parent=0 // pred_fallthru
    _
  // Predicated region
  $region6: #{spatial_attention.3} parent=0 // pred_check
    _
  $region7: #{spatial_attention.3} parent=0 // pred_check_branch
    %21 = sbr.rel (0) target = $region9
  $region8: #{spatial_attention.3} parent=0 // pred_region
    _
  $region9: #{spatial_attention.3} parent=0 // pred_fallthru
    _
  // Predicated region
  $region10: #{spatial_attention.3} parent=0 // pred_check
    _
  $region11: #{spatial_attention.3} parent=0 // pred_check_branch
    %23 = sbr.rel (0) target = $region13
  $region12: #{spatial_attention.3} parent=0 // pred_region
    _
  $region13: #{spatial_attention.3} parent=0 // pred_fallthru
    _
  // Predicated region
  $region14: #{spatial_attention.3} parent=0 // pred_check
    _
  $region15: #{spatial_attention.3} parent=0 // pred_check_branch
    %25 = sbr.rel (0) target = $region17
  $region16: #{spatial_attention.3} parent=0 // pred_region
    _
  $region17: #{spatial_attention.3} parent=0 // pred_fallthru
    _
  // Predicated region
  $region18: #{spatial_attention.3} parent=0 // pred_check
    _
  $region19: #{spatial_attention.3} parent=0 // pred_check_branch
    %27 = sbr.rel (0) target = $region21
  $region20: #{spatial_attention.3} parent=0 // pred_region
    _
  $region21: #{spatial_attention.3} parent=0 // pred_fallthru
    _
  // Predicated region
  $region22: #{spatial_attention.3} parent=0 // pred_check
    _
  $region23: #{spatial_attention.3} parent=0 // pred_check_branch
    %29 = sbr.rel (0) target = $region25
  $region24: #{spatial_attention.3} parent=0 // pred_region
    _
  $region25: #{spatial_attention.3} parent=0 // pred_fallthru
    _
  // Predicated region
  $region26: #{spatial_attention.3} parent=0 // pred_check
    _
  $region27: #{spatial_attention.3} parent=0 // pred_check_branch
    %31 = sbr.rel (0) target = $region29
  $region28: #{spatial_attention.3} parent=0 // pred_region
    _
  $region29: #{spatial_attention.3} parent=0 // pred_fallthru
    _
  // Predicated region
  $region30: #{spatial_attention.3} parent=0 // pred_check
    _
  $region31: #{spatial_attention.3} parent=0 // pred_check_branch
    %33 = sbr.rel (0) target = $region33
  $region32: #{spatial_attention.3} parent=0 // pred_region
    _
  $region33: #{spatial_attention.3} parent=0 // pred_fallthru
    _
  // Predicated region
  $region34: #{spatial_attention.3} parent=0 // pred_check
    _
  $region35: #{spatial_attention.3} parent=0 // pred_check_branch
    %35 = sbr.rel (0) target = $region37
  $region36: #{spatial_attention.3} parent=0 // pred_region
    _
  $region37: #{spatial_attention.3} parent=0 // pred_fallthru
    _
  // Predicated region
  $region38: #{spatial_attention.3} parent=0 // pred_check
    _
  $region39: #{spatial_attention.3} parent=0 // pred_check_branch
    %37 = sbr.rel (0) target = $region41
  $region40: #{spatial_attention.3} parent=0 // pred_region
    _
  $region41: #{spatial_attention.3} parent=0 // pred_fallthru
    _
  // Predicated region
  $region42: #{spatial_attention.3} parent=0 // pred_check
    _
  $region43: #{spatial_attention.3} parent=0 // pred_check_branch
    %39 = sbr.rel (0) target = $region45
  $region44: #{spatial_attention.3} parent=0 // pred_region
    _
  $region45: #{spatial_attention.3} parent=0 // pred_fallthru
    _
  // Predicated region
  $region46: #{spatial_attention.3} parent=0 // pred_check
    _
  $region47: #{spatial_attention.3} parent=0 // pred_check_branch
    %41 = sbr.rel (0) target = $region49
  $region48: #{spatial_attention.3} parent=0 // pred_region
    _
  $region49: #{spatial_attention.3} parent=0 // pred_fallthru
    _
  // Predicated region
  $region50: #{spatial_attention.3} parent=0 // pred_check
    _
  $region51: #{spatial_attention.3} parent=0 // pred_check_branch
    %43 = sbr.rel (0) target = $region53
  $region52: #{spatial_attention.3} parent=0 // pred_region
    _
  $region53: #{spatial_attention.3} parent=0 // pred_fallthru
    _
  %v44 = vld [vmem:[%s5] sm:$0xff]
  %v45 = vld [vmem:[%s5 + $0x8] sm:$0xff]
  %v46 = vld [vmem:[%s1] sm:$0xff]
  %v47 = vld [vmem:[%s1 + $0x8] sm:$0xff]
  %vm48 = vcmask 130048
  %v50 = vsel %vm48, %v44, 0
  %v53 = vsel %vm48, %v45, 0
  %55 = vmatprep.subr.mxu0 0.0
  %56 = vmatpush1.msra.mxu0 %v46
  %57 = vmatprep.subr.mxu0 0.0
  %58 = vmatpush1.msra.mxu0 %v47
  %59 = vmatprep.subr.mxu0 0.0
  %60 = vmatpush1.msra.mxu0 0.0
  %61 = vmatprep.subr.mxu0 0.0
  %62 = vmatpush1.msra.mxu0 0.0
  %63 = vmatprep.subr.mxu0 0.0
  %64 = vmatpush1.msra.mxu0 0.0
  %65 = vmatprep.subr.mxu0 0.0
  %66 = vmatpush1.msra.mxu0 0.0
  %67 = vmatprep.subr.mxu0 0.0
  %68 = vmatpush1.msra.mxu0 0.0
  %69 = vmatprep.subr.mxu0 0.0
  %70 = vmatpush1.msra.mxu0 0.0
  %71 = vmatprep.subr.mxu0 0.0
  %72 = vmatpush1.msra.mxu0 0.0
  %73 = vmatprep.subr.mxu0 0.0
  %74 = vmatpush1.msra.mxu0 0.0
  %75 = vmatprep.subr.mxu0 0.0
  %76 = vmatpush1.msra.mxu0 0.0
  %77 = vmatprep.subr.mxu0 0.0
  %78 = vmatpush1.msra.mxu0 0.0
  %79 = vmatprep.subr.mxu0 0.0
  %80 = vmatpush1.msra.mxu0 0.0
  %81 = vmatprep.subr.mxu0 0.0
  %82 = vmatpush1.msra.mxu0 0.0
  %83 = vmatprep.subr.mxu0 0.0
  %84 = vmatpush1.msra.mxu0 0.0
  %85 = vmatprep.subr.mxu0 0.0
  %86 = vmatpush1.msra.mxu0 0.0
  %87 = vmatprep.subr.mxu0 0.0
  %88 = vmatpush1.msra.mxu0 0.0
  %89 = vmatprep.subr.mxu0 0.0
  %90 = vmatpush1.msra.mxu0 0.0
  %91 = vmatprep.subr.mxu0 0.0
  %92 = vmatpush1.msra.mxu0 0.0
  %93 = vmatprep.subr.mxu0 0.0
  %94 = vmatpush1.msra.mxu0 0.0
  %95 = vmatprep.subr.mxu0 0.0
  %96 = vmatpush1.msra.mxu0 0.0
  %97 = vmatprep.subr.mxu0 0.0
  %98 = vmatpush1.msra.mxu0 0.0
  %99 = vmatprep.subr.mxu0 0.0
  %100 = vmatpush1.msra.mxu0 0.0
  %101 = vmatprep.subr.mxu0 0.0
  %102 = vmatpush1.msra.mxu0 0.0
  %103 = vmatprep.subr.mxu0 0.0
  %104 = vmatpush1.msra.mxu0 0.0
  %105 = vmatprep.subr.mxu0 0.0
  %106 = vmatpush1.msra.mxu0 0.0
  %107 = vmatprep.subr.mxu0 0.0
  %108 = vmatpush1.msra.mxu0 0.0
  %109 = vmatprep.subr.mxu0 0.0
  %110 = vmatpush1.msra.mxu0 0.0
  %111 = vmatprep.subr.mxu0 0.0
  %112 = vmatpush1.msra.mxu0 0.0
  %113 = vmatprep.subr.mxu0 0.0
  %114 = vmatpush1.msra.mxu0 0.0
  %115 = vmatprep.subr.mxu0 0.0
  %116 = vmatpush1.msra.mxu0 0.0
  %117 = vmatprep.subr.mxu0 0.0
  %118 = vmatpush1.msra.mxu0 0.0
  %119 = vmatprep.mubr.f32.mxu0 0.0
  %120 = vmatmul.mubr.f32.gmra.mrb[0].mxu0 %v50
  %v121 = vpop.f32.mrb[0].mxu0
  %v122 = vadd.f32 0.0, %v121
  %v123 = vpop.f32.mrb[0].mxu0
  %124 = vmatprep.mubr.f32.mxu0 0.0
  %125 = vmatmul.mubr.f32.gmra.mrb[0].mxu0 %v53
  %v126 = vpop.f32.mrb[0].mxu0
  %v127 = vadd.f32 0.0, %v126
  %v128 = vpop.f32.mrb[0].mxu0
  %129 = vdwg.mxu0
  %v130 = vld [vmem:[%s9] sm:$0xff]
  %v131 = vld [vmem:[%s9 + $0x8] sm:$0xff]
  %v132 = vld [vmem:[%s9 + $0x10] sm:$0xff]
  %v133 = vld [vmem:[%s9 + $0x18] sm:$0xff]
  %v134 = vld [vmem:[%s9 + $0x20] sm:$0xff]
  %v135 = vld [vmem:[%s9 + $0x28] sm:$0xff]
  %v136 = vld [vmem:[%s9 + $0x30] sm:$0xff]
  %v137 = vld [vmem:[%s9 + $0x38] sm:$0xff]
  %v138 = vld [vmem:[%s9 + $0x40] sm:$0xff]
  %v139 = vld [vmem:[%s9 + $0x48] sm:$0xff]
  %v140 = vld [vmem:[%s9 + $0x50] sm:$0xff]
  %v141 = vld [vmem:[%s9 + $0x58] sm:$0xff]
  %v142 = vld [vmem:[%s9 + $0x60] sm:$0xff]
  %v143 = vld [vmem:[%s9 + $0x68] sm:$0xff]
  %v144 = vld [vmem:[%s9 + $0x70] sm:$0xff]
  %v145 = vld [vmem:[%s9 + $0x78] sm:$0xff]
  %v146 = vld [vmem:[%s6] sm:$0xff]
  %v147 = vld [vmem:[%s6 + $0x8] sm:$0xff]
  %v148 = vld [vmem:[%s2] sm:$0xff]
  %v149 = vld [vmem:[%s2 + $0x8] sm:$0xf]
  %vm150 = vcmask 97280
  %v152 = vsel %vm150, %v146, 0
  %v155 = vsel %vm150, %v147, 0
  %vm157 = vcmask 1043456
  %v159 = vsel %vm157, %v149, 0
  %161 = vmatprep.subr.mxu0 0.0
  %162 = vmatpush1.msra.mxu0 %v148
  %163 = vmatprep.subr.mxu0 0.0
  %164 = vmatpush1.msra.mxu0 %v159
  %165 = vmatprep.subr.mxu0 0.0
  %166 = vmatpush1.msra.mxu0 0.0
  %167 = vmatprep.subr.mxu0 0.0
  %168 = vmatpush1.msra.mxu0 0.0
  %169 = vmatprep.subr.mxu0 0.0
  %170 = vmatpush1.msra.mxu0 0.0
  %171 = vmatprep.subr.mxu0 0.0
  %172 = vmatpush1.msra.mxu0 0.0
  %173 = vmatprep.subr.mxu0 0.0
  %174 = vmatpush1.msra.mxu0 0.0
  %175 = vmatprep.subr.mxu0 0.0
  %176 = vmatpush1.msra.mxu0 0.0
  %177 = vmatprep.subr.mxu0 0.0
  %178 = vmatpush1.msra.mxu0 0.0
  %179 = vmatprep.subr.mxu0 0.0
  %180 = vmatpush1.msra.mxu0 0.0
  %181 = vmatprep.subr.mxu0 0.0
  %182 = vmatpush1.msra.mxu0 0.0
  %183 = vmatprep.subr.mxu0 0.0
  %184 = vmatpush1.msra.mxu0 0.0
  %185 = vmatprep.subr.mxu0 0.0
  %186 = vmatpush1.msra.mxu0 0.0
  %187 = vmatprep.subr.mxu0 0.0
  %188 = vmatpush1.msra.mxu0 0.0
  %189 = vmatprep.subr.mxu0 0.0
  %190 = vmatpush1.msra.mxu0 0.0
  %191 = vmatprep.subr.mxu0 0.0
  %192 = vmatpush1.msra.mxu0 0.0
  %193 = vmatprep.subr.mxu0 0.0
  %194 = vmatpush1.msra.mxu0 0.0
  %195 = vmatprep.subr.mxu0 0.0
  %196 = vmatpush1.msra.mxu0 0.0
  %197 = vmatprep.subr.mxu0 0.0
  %198 = vmatpush1.msra.mxu0 0.0
  %199 = vmatprep.subr.mxu0 0.0
  %200 = vmatpush1.msra.mxu0 0.0
  %201 = vmatprep.subr.mxu0 0.0
  %202 = vmatpush1.msra.mxu0 0.0
  %203 = vmatprep.subr.mxu0 0.0
  %204 = vmatpush1.msra.mxu0 0.0
  %205 = vmatprep.subr.mxu0 0.0
  %206 = vmatpush1.msra.mxu0 0.0
  %207 = vmatprep.subr.mxu0 0.0
  %208 = vmatpush1.msra.mxu0 0.0
  %209 = vmatprep.subr.mxu0 0.0
  %210 = vmatpush1.msra.mxu0 0.0
  %211 = vmatprep.subr.mxu0 0.0
  %212 = vmatpush1.msra.mxu0 0.0
  %213 = vmatprep.subr.mxu0 0.0
  %214 = vmatpush1.msra.mxu0 0.0
  %215 = vmatprep.subr.mxu0 0.0
  %216 = vmatpush1.msra.mxu0 0.0
  %217 = vmatprep.subr.mxu0 0.0
  %218 = vmatpush1.msra.mxu0 0.0
  %219 = vmatprep.subr.mxu0 0.0
  %220 = vmatpush1.msra.mxu0 0.0
  %221 = vmatprep.subr.mxu0 0.0
  %222 = vmatpush1.msra.mxu0 0.0
  %223 = vmatprep.subr.mxu0 0.0
  %224 = vmatpush1.msra.mxu0 0.0
  %225 = vmatprep.mubr.f32.mxu0 0.0
  %226 = vmatmul.mubr.f32.gmra.mrb[0].mxu0 %v152
  %v227 = vpop.f32.mrb[0].mxu0
  %v228 = vadd.f32 0.0, %v227
  %v229 = vpop.f32.mrb[0].mxu0
  %230 = vmatprep.mubr.f32.mxu0 0.0
  %231 = vmatmul.mubr.f32.gmra.mrb[0].mxu0 %v155
  %v232 = vpop.f32.mrb[0].mxu0
  %v233 = vadd.f32 0.0, %v232
  %v234 = vpop.f32.mrb[0].mxu0
  %235 = vdwg.mxu0
  %v236 = vld [vmem:[%s10] sm:$0xff]
  %v237 = vld [vmem:[%s10 + $0x8] sm:$0xff]
  %v238 = vld [vmem:[%s10 + $0x10] sm:$0xff]
  %v239 = vld [vmem:[%s10 + $0x18] sm:$0xff]
  %v240 = vld [vmem:[%s10 + $0x20] sm:$0xff]
  %v241 = vld [vmem:[%s10 + $0x28] sm:$0xff]
  %v242 = vld [vmem:[%s10 + $0x30] sm:$0xff]
  %v243 = vld [vmem:[%s10 + $0x38] sm:$0xff]
  %v244 = vld [vmem:[%s10 + $0x40] sm:$0xff]
  %v245 = vld [vmem:[%s10 + $0x48] sm:$0xff]
  %v246 = vld [vmem:[%s10 + $0x50] sm:$0xff]
  %v247 = vld [vmem:[%s10 + $0x58] sm:$0xff]
  %vm248 = vcmask 785408
  %v250 = vsel %vm248, %v228, 0
  %v253 = vsel %vm248, %v233, 0
  %255 = vmatprep.subr.mxu0 0.0
  %256 = vmatpush1.msra.mxu0 %v236
  %257 = vmatprep.subr.mxu0 0.0
  %258 = vmatpush1.msra.mxu0 %v237
  %259 = vmatprep.subr.mxu0 0.0
  %260 = vmatpush1.msra.mxu0 %v238
  %261 = vmatprep.subr.mxu0 0.0
  %262 = vmatpush1.msra.mxu0 %v239
  %263 = vmatprep.subr.mxu0 0.0
  %264 = vmatpush1.msra.mxu0 %v240
  %265 = vmatprep.subr.mxu0 0.0
  %266 = vmatpush1.msra.mxu0 %v241
  %267 = vmatprep.subr.mxu0 0.0
  %268 = vmatpush1.msra.mxu0 %v242
  %269 = vmatprep.subr.mxu0 0.0
  %270 = vmatpush1.msra.mxu0 %v243
  %271 = vmatprep.subr.mxu0 0.0
  %272 = vmatpush1.msra.mxu0 %v244
  %273 = vmatprep.subr.mxu0 0.0
  %274 = vmatpush1.msra.mxu0 %v245
  %275 = vmatprep.subr.mxu0 0.0
  %276 = vmatpush1.msra.mxu0 %v246
  %277 = vmatprep.subr.mxu0 0.0
  %278 = vmatpush1.msra.mxu0 %v247
  %279 = vmatprep.subr.mxu0 0.0
  %280 = vmatpush1.msra.mxu0 0.0
  %281 = vmatprep.subr.mxu0 0.0
  %282 = vmatpush1.msra.mxu0 0.0
  %283 = vmatprep.subr.mxu0 0.0
  %284 = vmatpush1.msra.mxu0 0.0
  %285 = vmatprep.subr.mxu0 0.0
  %286 = vmatpush1.msra.mxu0 0.0
  %287 = vmatprep.subr.mxu0 0.0
  %288 = vmatpush1.msra.mxu0 0.0
  %289 = vmatprep.subr.mxu0 0.0
  %290 = vmatpush1.msra.mxu0 0.0
  %291 = vmatprep.subr.mxu0 0.0
  %292 = vmatpush1.msra.mxu0 0.0
  %293 = vmatprep.subr.mxu0 0.0
  %294 = vmatpush1.msra.mxu0 0.0
  %295 = vmatprep.subr.mxu0 0.0
  %296 = vmatpush1.msra.mxu0 0.0
  %297 = vmatprep.subr.mxu0 0.0
  %298 = vmatpush1.msra.mxu0 0.0
  %299 = vmatprep.subr.mxu0 0.0
  %300 = vmatpush1.msra.mxu0 0.0
  %301 = vmatprep.subr.mxu0 0.0
  %302 = vmatpush1.msra.mxu0 0.0
  %303 = vmatprep.subr.mxu0 0.0
  %304 = vmatpush1.msra.mxu0 0.0
  %305 = vmatprep.subr.mxu0 0.0
  %306 = vmatpush1.msra.mxu0 0.0
  %307 = vmatprep.subr.mxu0 0.0
  %308 = vmatpush1.msra.mxu0 0.0
  %309 = vmatprep.subr.mxu0 0.0
  %310 = vmatpush1.msra.mxu0 0.0
  %311 = vmatprep.subr.mxu0 0.0
  %312 = vmatpush1.msra.mxu0 0.0
  %313 = vmatprep.subr.mxu0 0.0
  %314 = vmatpush1.msra.mxu0 0.0
  %315 = vmatprep.subr.mxu0 0.0
  %316 = vmatpush1.msra.mxu0 0.0
  %317 = vmatprep.subr.mxu0 0.0
  %318 = vmatpush1.msra.mxu0 0.0
  %319 = vmatprep.mubr.f32.mxu0 0.0
  %320 = vmatmul.mubr.f32.gmra.mrb[0].mxu0 %v250
  %v321 = vpop.f32.mrb[0].mxu0
  %v322 = vadd.f32 0.0, %v321
  %v323 = vpop.f32.mrb[0].mxu0
  %324 = vmatprep.mubr.f32.mxu0 0.0
  %325 = vmatmul.mubr.f32.gmra.mrb[0].mxu0 %v253
  %v326 = vpop.f32.mrb[0].mxu0
  %v327 = vadd.f32 0.0, %v326
  %v328 = vpop.f32.mrb[0].mxu0
  %329 = vdwg.mxu0
  %330 = vmatprep.subr.mxu0 0.0
  %331 = vmatpush1.msra.mxu0 %v130
  %332 = vmatprep.subr.mxu0 0.0
  %333 = vmatpush1.msra.mxu0 %v131
  %334 = vmatprep.subr.mxu0 0.0
  %335 = vmatpush1.msra.mxu0 %v132
  %336 = vmatprep.subr.mxu0 0.0
  %337 = vmatpush1.msra.mxu0 %v133
  %338 = vmatprep.subr.mxu0 0.0
  %339 = vmatpush1.msra.mxu0 %v134
  %340 = vmatprep.subr.mxu0 0.0
  %341 = vmatpush1.msra.mxu0 %v135
  %342 = vmatprep.subr.mxu0 0.0
  %343 = vmatpush1.msra.mxu0 %v136
  %344 = vmatprep.subr.mxu0 0.0
  %345 = vmatpush1.msra.mxu0 %v137
  %346 = vmatprep.subr.mxu0 0.0
  %347 = vmatpush1.msra.mxu0 %v138
  %348 = vmatprep.subr.mxu0 0.0
  %349 = vmatpush1.msra.mxu0 %v139
  %350 = vmatprep.subr.mxu0 0.0
  %351 = vmatpush1.msra.mxu0 %v140
  %352 = vmatprep.subr.mxu0 0.0
  %353 = vmatpush1.msra.mxu0 %v141
  %354 = vmatprep.subr.mxu0 0.0
  %355 = vmatpush1.msra.mxu0 %v142
  %356 = vmatprep.subr.mxu0 0.0
  %357 = vmatpush1.msra.mxu0 %v143
  %358 = vmatprep.subr.mxu0 0.0
  %359 = vmatpush1.msra.mxu0 %v144
  %360 = vmatprep.subr.mxu0 0.0
  %361 = vmatpush1.msra.mxu0 %v145
  %362 = vmatprep.subr.mxu0 0.0
  %363 = vmatpush1.msra.mxu0 0.0
  %364 = vmatprep.subr.mxu0 0.0
  %365 = vmatpush1.msra.mxu0 0.0
  %366 = vmatprep.subr.mxu0 0.0
  %367 = vmatpush1.msra.mxu0 0.0
  %368 = vmatprep.subr.mxu0 0.0
  %369 = vmatpush1.msra.mxu0 0.0
  %370 = vmatprep.subr.mxu0 0.0
  %371 = vmatpush1.msra.mxu0 0.0
  %372 = vmatprep.subr.mxu0 0.0
  %373 = vmatpush1.msra.mxu0 0.0
  %374 = vmatprep.subr.mxu0 0.0
  %375 = vmatpush1.msra.mxu0 0.0
  %376 = vmatprep.subr.mxu0 0.0
  %377 = vmatpush1.msra.mxu0 0.0
  %378 = vmatprep.subr.mxu0 0.0
  %379 = vmatpush1.msra.mxu0 0.0
  %380 = vmatprep.subr.mxu0 0.0
  %381 = vmatpush1.msra.mxu0 0.0
  %382 = vmatprep.subr.mxu0 0.0
  %383 = vmatpush1.msra.mxu0 0.0
  %384 = vmatprep.subr.mxu0 0.0
  %385 = vmatpush1.msra.mxu0 0.0
  %386 = vmatprep.subr.mxu0 0.0
  %387 = vmatpush1.msra.mxu0 0.0
  %388 = vmatprep.subr.mxu0 0.0
  %389 = vmatpush1.msra.mxu0 0.0
  %390 = vmatprep.subr.mxu0 0.0
  %391 = vmatpush1.msra.mxu0 0.0
  %392 = vmatprep.subr.mxu0 0.0
  %393 = vmatpush1.msra.mxu0 0.0
  %394 = vmatprep.mubr.f32.mxu0 0.0
  %395 = vmatmul.mubr.f32.gmra.mrb[0].mxu0 %v122
  %v396 = vpop.f32.mrb[0].mxu0
  %v397 = vadd.f32 %v322, %v396
  %v398 = vpop.f32.mrb[0].mxu0
  %399 = vmatprep.mubr.f32.mxu0 0.0
  %400 = vmatmul.mubr.f32.gmra.mrb[0].mxu0 %v127
  %v401 = vpop.f32.mrb[0].mxu0
  %v402 = vadd.f32 %v327, %v401
  %v403 = vpop.f32.mrb[0].mxu0
  %404 = vdwg.mxu0
  %v405 = vld [vmem:[%s7] sm:$0xff]
  %v406 = vld [vmem:[%s7 + $0x8] sm:$0xff]
  %v407 = vld [vmem:[%s3] sm:$0xff]
  %vm408 = vcmask 64512
  %v410 = vsel %vm408, %v405, 0
  %v413 = vsel %vm408, %v406, 0
  %415 = vmatprep.subr.mxu0 0.0
  %416 = vmatpush1.msra.mxu0 %v407
  %417 = vmatprep.subr.mxu0 0.0
  %418 = vmatpush1.msra.mxu0 0.0
  %419 = vmatprep.subr.mxu0 0.0
  %420 = vmatpush1.msra.mxu0 0.0
  %421 = vmatprep.subr.mxu0 0.0
  %422 = vmatpush1.msra.mxu0 0.0
  %423 = vmatprep.subr.mxu0 0.0
  %424 = vmatpush1.msra.mxu0 0.0
  %425 = vmatprep.subr.mxu0 0.0
  %426 = vmatpush1.msra.mxu0 0.0
  %427 = vmatprep.subr.mxu0 0.0
  %428 = vmatpush1.msra.mxu0 0.0
  %429 = vmatprep.subr.mxu0 0.0
  %430 = vmatpush1.msra.mxu0 0.0
  %431 = vmatprep.subr.mxu0 0.0
  %432 = vmatpush1.msra.mxu0 0.0
  %433 = vmatprep.subr.mxu0 0.0
  %434 = vmatpush1.msra.mxu0 0.0
  %435 = vmatprep.subr.mxu0 0.0
  %436 = vmatpush1.msra.mxu0 0.0
  %437 = vmatprep.subr.mxu0 0.0
  %438 = vmatpush1.msra.mxu0 0.0
  %439 = vmatprep.subr.mxu0 0.0
  %440 = vmatpush1.msra.mxu0 0.0
  %441 = vmatprep.subr.mxu0 0.0
  %442 = vmatpush1.msra.mxu0 0.0
  %443 = vmatprep.subr.mxu0 0.0
  %444 = vmatpush1.msra.mxu0 0.0
  %445 = vmatprep.subr.mxu0 0.0
  %446 = vmatpush1.msra.mxu0 0.0
  %447 = vmatprep.subr.mxu0 0.0
  %448 = vmatpush1.msra.mxu0 0.0
  %449 = vmatprep.subr.mxu0 0.0
  %450 = vmatpush1.msra.mxu0 0.0
  %451 = vmatprep.subr.mxu0 0.0
  %452 = vmatpush1.msra.mxu0 0.0
  %453 = vmatprep.subr.mxu0 0.0
  %454 = vmatpush1.msra.mxu0 0.0
  %455 = vmatprep.subr.mxu0 0.0
  %456 = vmatpush1.msra.mxu0 0.0
  %457 = vmatprep.subr.mxu0 0.0
  %458 = vmatpush1.msra.mxu0 0.0
  %459 = vmatprep.subr.mxu0 0.0
  %460 = vmatpush1.msra.mxu0 0.0
  %461 = vmatprep.subr.mxu0 0.0
  %462 = vmatpush1.msra.mxu0 0.0
  %463 = vmatprep.subr.mxu0 0.0
  %464 = vmatpush1.msra.mxu0 0.0
  %465 = vmatprep.subr.mxu0 0.0
  %466 = vmatpush1.msra.mxu0 0.0
  %467 = vmatprep.subr.mxu0 0.0
  %468 = vmatpush1.msra.mxu0 0.0
  %469 = vmatprep.subr.mxu0 0.0
  %470 = vmatpush1.msra.mxu0 0.0
  %471 = vmatprep.subr.mxu0 0.0
  %472 = vmatpush1.msra.mxu0 0.0
  %473 = vmatprep.subr.mxu0 0.0
  %474 = vmatpush1.msra.mxu0 0.0
  %475 = vmatprep.subr.mxu0 0.0
  %476 = vmatpush1.msra.mxu0 0.0
  %477 = vmatprep.subr.mxu0 0.0
  %478 = vmatpush1.msra.mxu0 0.0
  %479 = vmatprep.mubr.f32.mxu0 0.0
  %480 = vmatmul.mubr.f32.gmra.mrb[0].mxu0 %v410
  %v481 = vpop.f32.mrb[0].mxu0
  %v482 = vadd.f32 0.0, %v481
  %v483 = vpop.f32.mrb[0].mxu0
  %484 = vmatprep.mubr.f32.mxu0 0.0
  %485 = vmatmul.mubr.f32.gmra.mrb[0].mxu0 %v413
  %v486 = vpop.f32.mrb[0].mxu0
  %v487 = vadd.f32 0.0, %v486
  %v488 = vpop.f32.mrb[0].mxu0
  %489 = vdwg.mxu0
  %v490 = vld [vmem:[%s11] sm:$0xff]
  %v491 = vld [vmem:[%s11 + $0x8] sm:$0xff]
  %v492 = vld [vmem:[%s11 + $0x10] sm:$0xff]
  %v493 = vld [vmem:[%s11 + $0x18] sm:$0xff]
  %v494 = vld [vmem:[%s11 + $0x20] sm:$0xff]
  %v495 = vld [vmem:[%s11 + $0x28] sm:$0xff]
  %v496 = vld [vmem:[%s11 + $0x30] sm:$0xff]
  %v497 = vld [vmem:[%s11 + $0x38] sm:$0xff]
  %vm498 = vcmask 523264
  %v500 = vsel %vm498, %v482, 0
  %v503 = vsel %vm498, %v487, 0
  %505 = vmatprep.subr.mxu0 0.0
  %506 = vmatpush1.msra.mxu0 %v490
  %507 = vmatprep.subr.mxu0 0.0
  %508 = vmatpush1.msra.mxu0 %v491
  %509 = vmatprep.subr.mxu0 0.0
  %510 = vmatpush1.msra.mxu0 %v492
  %511 = vmatprep.subr.mxu0 0.0
  %512 = vmatpush1.msra.mxu0 %v493
  %513 = vmatprep.subr.mxu0 0.0
  %514 = vmatpush1.msra.mxu0 %v494
  %515 = vmatprep.subr.mxu0 0.0
  %516 = vmatpush1.msra.mxu0 %v495
  %517 = vmatprep.subr.mxu0 0.0
  %518 = vmatpush1.msra.mxu0 %v496
  %519 = vmatprep.subr.mxu0 0.0
  %520 = vmatpush1.msra.mxu0 %v497
  %521 = vmatprep.subr.mxu0 0.0
  %522 = vmatpush1.msra.mxu0 0.0
  %523 = vmatprep.subr.mxu0 0.0
  %524 = vmatpush1.msra.mxu0 0.0
  %525 = vmatprep.subr.mxu0 0.0
  %526 = vmatpush1.msra.mxu0 0.0
  %527 = vmatprep.subr.mxu0 0.0
  %528 = vmatpush1.msra.mxu0 0.0
  %529 = vmatprep.subr.mxu0 0.0
  %530 = vmatpush1.msra.mxu0 0.0
  %531 = vmatprep.subr.mxu0 0.0
  %532 = vmatpush1.msra.mxu0 0.0
  %533 = vmatprep.subr.mxu0 0.0
  %534 = vmatpush1.msra.mxu0 0.0
  %535 = vmatprep.subr.mxu0 0.0
  %536 = vmatpush1.msra.mxu0 0.0
  %537 = vmatprep.subr.mxu0 0.0
  %538 = vmatpush1.msra.mxu0 0.0
  %539 = vmatprep.subr.mxu0 0.0
  %540 = vmatpush1.msra.mxu0 0.0
  %541 = vmatprep.subr.mxu0 0.0
  %542 = vmatpush1.msra.mxu0 0.0
  %543 = vmatprep.subr.mxu0 0.0
  %544 = vmatpush1.msra.mxu0 0.0
  %545 = vmatprep.subr.mxu0 0.0
  %546 = vmatpush1.msra.mxu0 0.0
  %547 = vmatprep.subr.mxu0 0.0
  %548 = vmatpush1.msra.mxu0 0.0
  %549 = vmatprep.subr.mxu0 0.0
  %550 = vmatpush1.msra.mxu0 0.0
  %551 = vmatprep.subr.mxu0 0.0
  %552 = vmatpush1.msra.mxu0 0.0
  %553 = vmatprep.subr.mxu0 0.0
  %554 = vmatpush1.msra.mxu0 0.0
  %555 = vmatprep.subr.mxu0 0.0
  %556 = vmatpush1.msra.mxu0 0.0
  %557 = vmatprep.subr.mxu0 0.0
  %558 = vmatpush1.msra.mxu0 0.0
  %559 = vmatprep.subr.mxu0 0.0
  %560 = vmatpush1.msra.mxu0 0.0
  %561 = vmatprep.subr.mxu0 0.0
  %562 = vmatpush1.msra.mxu0 0.0
  %563 = vmatprep.subr.mxu0 0.0
  %564 = vmatpush1.msra.mxu0 0.0
  %565 = vmatprep.subr.mxu0 0.0
  %566 = vmatpush1.msra.mxu0 0.0
  %567 = vmatprep.subr.mxu0 0.0
  %568 = vmatpush1.msra.mxu0 0.0
  %569 = vmatprep.mubr.f32.mxu0 0.0
  %570 = vmatmul.mubr.f32.gmra.mrb[0].mxu0 %v500
  %v571 = vpop.f32.mrb[0].mxu0
  %v572 = vadd.f32 0.0, %v571
  %v573 = vpop.f32.mrb[0].mxu0
  %574 = vmatprep.mubr.f32.mxu0 0.0
  %575 = vmatmul.mubr.f32.gmra.mrb[0].mxu0 %v503
  %v576 = vpop.f32.mrb[0].mxu0
  %v577 = vadd.f32 0.0, %v576
  %v578 = vpop.f32.mrb[0].mxu0
  %579 = vdwg.mxu0
  %v580 = vadd.f32 %v397, %v572
  %v581 = vadd.f32 %v402, %v577
  %v582 = vld [vmem:[%s8] sm:$0xff]
  %v583 = vld [vmem:[%s8 + $0x8] sm:$0xff]
  %v584 = vld [vmem:[%s4] sm:$0xf]
  %vm585 = vcmask 31744
  %v587 = vsel %vm585, %v582, 0
  %v590 = vsel %vm585, %v583, 0
  %v593 = vsel %vm157, %v584, 0
  %595 = vmatprep.subr.mxu0 0.0
  %596 = vmatpush1.msra.mxu0 %v593
  %597 = vmatprep.subr.mxu0 0.0
  %598 = vmatpush1.msra.mxu0 0.0
  %599 = vmatprep.subr.mxu0 0.0
  %600 = vmatpush1.msra.mxu0 0.0
  %601 = vmatprep.subr.mxu0 0.0
  %602 = vmatpush1.msra.mxu0 0.0
  %603 = vmatprep.subr.mxu0 0.0
  %604 = vmatpush1.msra.mxu0 0.0
  %605 = vmatprep.subr.mxu0 0.0
  %606 = vmatpush1.msra.mxu0 0.0
  %607 = vmatprep.subr.mxu0 0.0
  %608 = vmatpush1.msra.mxu0 0.0
  %609 = vmatprep.subr.mxu0 0.0
  %610 = vmatpush1.msra.mxu0 0.0
  %611 = vmatprep.subr.mxu0 0.0
  %612 = vmatpush1.msra.mxu0 0.0
  %613 = vmatprep.subr.mxu0 0.0
  %614 = vmatpush1.msra.mxu0 0.0
  %615 = vmatprep.subr.mxu0 0.0
  %616 = vmatpush1.msra.mxu0 0.0
  %617 = vmatprep.subr.mxu0 0.0
  %618 = vmatpush1.msra.mxu0 0.0
  %619 = vmatprep.subr.mxu0 0.0
  %620 = vmatpush1.msra.mxu0 0.0
  %621 = vmatprep.subr.mxu0 0.0
  %622 = vmatpush1.msra.mxu0 0.0
  %623 = vmatprep.subr.mxu0 0.0
  %624 = vmatpush1.msra.mxu0 0.0
  %625 = vmatprep.subr.mxu0 0.0
  %626 = vmatpush1.msra.mxu0 0.0
  %627 = vmatprep.subr.mxu0 0.0
  %628 = vmatpush1.msra.mxu0 0.0
  %629 = vmatprep.subr.mxu0 0.0
  %630 = vmatpush1.msra.mxu0 0.0
  %631 = vmatprep.subr.mxu0 0.0
  %632 = vmatpush1.msra.mxu0 0.0
  %633 = vmatprep.subr.mxu0 0.0
  %634 = vmatpush1.msra.mxu0 0.0
  %635 = vmatprep.subr.mxu0 0.0
  %636 = vmatpush1.msra.mxu0 0.0
  %637 = vmatprep.subr.mxu0 0.0
  %638 = vmatpush1.msra.mxu0 0.0
  %639 = vmatprep.subr.mxu0 0.0
  %640 = vmatpush1.msra.mxu0 0.0
  %641 = vmatprep.subr.mxu0 0.0
  %642 = vmatpush1.msra.mxu0 0.0
  %643 = vmatprep.subr.mxu0 0.0
  %644 = vmatpush1.msra.mxu0 0.0
  %645 = vmatprep.subr.mxu0 0.0
  %646 = vmatpush1.msra.mxu0 0.0
  %647 = vmatprep.subr.mxu0 0.0
  %648 = vmatpush1.msra.mxu0 0.0
  %649 = vmatprep.subr.mxu0 0.0
  %650 = vmatpush1.msra.mxu0 0.0
  %651 = vmatprep.subr.mxu0 0.0
  %652 = vmatpush1.msra.mxu0 0.0
  %653 = vmatprep.subr.mxu0 0.0
  %654 = vmatpush1.msra.mxu0 0.0
  %655 = vmatprep.subr.mxu0 0.0
  %656 = vmatpush1.msra.mxu0 0.0
  %657 = vmatprep.subr.mxu0 0.0
  %658 = vmatpush1.msra.mxu0 0.0
  %659 = vmatprep.mubr.f32.mxu0 0.0
  %660 = vmatmul.mubr.f32.gmra.mrb[0].mxu0 %v587
  %v661 = vpop.f32.mrb[0].mxu0
  %v662 = vadd.f32 0.0, %v661
  %v663 = vpop.f32.mrb[0].mxu0
  %664 = vmatprep.mubr.f32.mxu0 0.0
  %665 = vmatmul.mubr.f32.gmra.mrb[0].mxu0 %v590
  %v666 = vpop.f32.mrb[0].mxu0
  %v667 = vadd.f32 0.0, %v666
  %v668 = vpop.f32.mrb[0].mxu0
  %669 = vdwg.mxu0
  %v670 = vld [vmem:[%s12] sm:$0xff]
  %v671 = vld [vmem:[%s12 + $0x8] sm:$0xff]
  %v672 = vld [vmem:[%s12 + $0x10] sm:$0xff]
  %v673 = vld [vmem:[%s12 + $0x18] sm:$0xff]
  %vm674 = vcmask 261120
  %v676 = vsel %vm674, %v662, 0
  %v679 = vsel %vm674, %v667, 0
  %681 = vmatprep.subr.mxu0 0.0
  %682 = vmatpush1.msra.mxu0 %v670
  %683 = vmatprep.subr.mxu0 0.0
  %684 = vmatpush1.msra.mxu0 %v671
  %685 = vmatprep.subr.mxu0 0.0
  %686 = vmatpush1.msra.mxu0 %v672
  %687 = vmatprep.subr.mxu0 0.0
  %688 = vmatpush1.msra.mxu0 %v673
  %689 = vmatprep.subr.mxu0 0.0
  %690 = vmatpush1.msra.mxu0 0.0
  %691 = vmatprep.subr.mxu0 0.0
  %692 = vmatpush1.msra.mxu0 0.0
  %693 = vmatprep.subr.mxu0 0.0
  %694 = vmatpush1.msra.mxu0 0.0
  %695 = vmatprep.subr.mxu0 0.0
  %696 = vmatpush1.msra.mxu0 0.0
  %697 = vmatprep.subr.mxu0 0.0
  %698 = vmatpush1.msra.mxu0 0.0
  %699 = vmatprep.subr.mxu0 0.0
  %700 = vmatpush1.msra.mxu0 0.0
  %701 = vmatprep.subr.mxu0 0.0
  %702 = vmatpush1.msra.mxu0 0.0
  %703 = vmatprep.subr.mxu0 0.0
  %704 = vmatpush1.msra.mxu0 0.0
  %705 = vmatprep.subr.mxu0 0.0
  %706 = vmatpush1.msra.mxu0 0.0
  %707 = vmatprep.subr.mxu0 0.0
  %708 = vmatpush1.msra.mxu0 0.0
  %709 = vmatprep.subr.mxu0 0.0
  %710 = vmatpush1.msra.mxu0 0.0
  %711 = vmatprep.subr.mxu0 0.0
  %712 = vmatpush1.msra.mxu0 0.0
  %713 = vmatprep.subr.mxu0 0.0
  %714 = vmatpush1.msra.mxu0 0.0
  %715 = vmatprep.subr.mxu0 0.0
  %716 = vmatpush1.msra.mxu0 0.0
  %717 = vmatprep.subr.mxu0 0.0
  %718 = vmatpush1.msra.mxu0 0.0
  %719 = vmatprep.subr.mxu0 0.0
  %720 = vmatpush1.msra.mxu0 0.0
  %721 = vmatprep.subr.mxu0 0.0
  %722 = vmatpush1.msra.mxu0 0.0
  %723 = vmatprep.subr.mxu0 0.0
  %724 = vmatpush1.msra.mxu0 0.0
  %725 = vmatprep.subr.mxu0 0.0
  %726 = vmatpush1.msra.mxu0 0.0
  %727 = vmatprep.subr.mxu0 0.0
  %728 = vmatpush1.msra.mxu0 0.0
  %729 = vmatprep.subr.mxu0 0.0
  %730 = vmatpush1.msra.mxu0 0.0
  %731 = vmatprep.subr.mxu0 0.0
  %732 = vmatpush1.msra.mxu0 0.0
  %733 = vmatprep.subr.mxu0 0.0
  %734 = vmatpush1.msra.mxu0 0.0
  %735 = vmatprep.subr.mxu0 0.0
  %736 = vmatpush1.msra.mxu0 0.0
  %737 = vmatprep.subr.mxu0 0.0
  %738 = vmatpush1.msra.mxu0 0.0
  %739 = vmatprep.subr.mxu0 0.0
  %740 = vmatpush1.msra.mxu0 0.0
  %741 = vmatprep.subr.mxu0 0.0
  %742 = vmatpush1.msra.mxu0 0.0
  %743 = vmatprep.subr.mxu0 0.0
  %744 = vmatpush1.msra.mxu0 0.0
  %745 = vmatprep.mubr.f32.mxu0 0.0
  %746 = vmatmul.mubr.f32.gmra.mrb[0].mxu0 %v676
  %v747 = vpop.f32.mrb[0].mxu0
  %v748 = vadd.f32 0.0, %v747
  %v749 = vpop.f32.mrb[0].mxu0
  %750 = vmatprep.mubr.f32.mxu0 0.0
  %751 = vmatmul.mubr.f32.gmra.mrb[0].mxu0 %v679
  %v752 = vpop.f32.mrb[0].mxu0
  %v753 = vadd.f32 0.0, %v752
  %v754 = vpop.f32.mrb[0].mxu0
  %755 = vdwg.mxu0
  %v756 = vadd.f32 %v580, %v748
  %v757 = vadd.f32 %v581, %v753
  %v758 = vld [vmem:[%s0] sm:$0xff]
  %v759 = vld [vmem:[%s0 + $0x8] sm:$0xff]
  %v760 = vmul.f32 %v758, %v756
  %v761 = vmul.f32 %v759, %v757
  %762 = vst [vmem:[%s13] sm:$0xff] %v760
  %763 = vst [vmem:[%s13 + $0x8] sm:$0xff] %v761
  // Predicated region
  $region54: #{spatial_attention.3} parent=0 // pred_check
    _
  $region55: #{spatial_attention.3} parent=0 // pred_check_branch
    %765 = sbr.rel (0) target = $region57
  $region56: #{spatial_attention.3} parent=0 // pred_region
    _
  $region57: #{spatial_attention.3} parent=0 // pred_fallthru
    _
  // Predicated region
  $region58: #{spatial_attention.3} parent=0 // pred_check
    _
  $region59: #{spatial_attention.3} parent=0 // pred_check_branch
    %767 = sbr.rel (0) target = $region61
  $region60: #{spatial_attention.3} parent=0 // pred_region
    _
  $region61: #{spatial_attention.3} parent=0 // pred_fallthru
    _

// kernel: spatial_attention.2
$region0: #{spatial_attention.2}
  #allocation0 [shape = 'u32[]', space=smem, size = 0x4, offset = 0x4, fixed_abs, tag = 'smem constant byte address 0x4 - core index']
  #allocation1 [shape = 'u32[144,128]{1,0:T(1,128)}', space=vmem, size = 0x12000, scoped, tag = 'internal scratch']
  #allocation2 [shape = 'f32[4,768]{1,0:T(4,128)}', space=vmem, size = 0x3000, scoped, tag = 'scratch operand']
  %s0 = inlined_call_operand.vmem [shape: f32[4,1152], index: 0, kind: input, shape index: {}]
  %s1 = inlined_call_operand.vmem [shape: f32[4,9,4,4], index: 1, kind: input, shape index: {}]
  %s2 = inlined_call_operand.vmem [shape: f32[4,4,1], index: 2, kind: input, shape index: {}]
  %s3 = inlined_call_operand.vmem [shape: f32[4,4,1], index: 3, kind: input, shape index: {}]
  %s4 = inlined_call_operand.vmem [shape: f32[4,4,4], index: 4, kind: input, shape index: {}]
  %s5 = inlined_call_operand.vmem [shape: f32[4,1,768], index: 5, kind: input, shape index: {}]
  %s6 = inlined_call_operand.vmem [shape: f32[4,4,768], index: 6, kind: output, shape index: {}]
  %s7 = sld [smem:[#allocation0]]
  $region73: #{spatial_attention.2} parent=0
    _
  %s9 = ssub.s32 1, %s7
  %s10 = scalar_select 0, %s9, %s7
  loop: start=0, step=1, limit=6
  $region2: #{spatial_attention.2} parent=0 // loop_pre_header
    _
  $region3: #{spatial_attention.2} parent=0 // loop_header
    %s12 = sphi 0, %s16
    %p13 = scmp.ge.s32.totalorder %s12, 6
    %s20 = sphi 0, %s20
    %s22 = sphi 0, %s20
    %s23 = sphi 0, %s22
    %s37 = sphi 0, %s23
    %s43 = sphi 0, %s45
    %s46 = sphi 0, %s43
    %s47 = sphi 0, %s46
    %s63 = sphi 0, %s47
    %s69 = sphi 0, %s71
    %s72 = sphi 0, %s69
    %s73 = sphi 0, %s72
    %s89 = sphi 0, %s73
    %s95 = sphi 0, %s97
    %s98 = sphi 0, %s95
    %s99 = sphi 0, %s98
    %s115 = sphi 0, %s99
    %s121 = sphi 0, %s123
    %s124 = sphi 0, %s121
    %s125 = sphi 0, %s124
    %s141 = sphi 0, %s125
    %s147 = sphi 0, %s149
    %s150 = sphi 0, %s147
    %s151 = sphi 0, %s150
    %s167 = sphi 0, %s151
    %s173 = sphi 0, %s175
    %s176 = sphi 0, %s173
    %s177 = sphi 0, %s176
    %s193 = sphi 0, %s177
  $region4: #{spatial_attention.2} parent=0 // loop_header_branch
    %15 = sbr.rel (%p13) target = $region8
  $region5: #{spatial_attention.2} parent=0 // loop_body
    %s17 = ssub.s32 %s12, 1
    %s18 = ssub.s32 %s12, 2
    %s19 = sadd.s32 %s12, 1
    %s21 = sadd.s32 %s20, 1
    %p24 = scmp.eq.s32.totalorder %s12, 3
    %p25 = scmp.ne.s32.totalorder %s20, %s22
    %p26 = scmp.eq.s32.totalorder %s12, 0
    %p27 = por %p25, %p26
    %p28 = scmp.ne.s32.totalorder %s20, %s22
    %p29 = scmp.eq.s32.totalorder %s17, 3
    %p30 = por %p28, %p29
    %p31 = scmp.ne.s32.totalorder %s22, %s23
    %p32 = scmp.eq.s32.totalorder %s17, 0
    %p33 = por %p31, %p32
    %p34 = scmp.ne.s32.totalorder %s22, %s23
    %p35 = scmp.eq.s32.totalorder %s18, 3
    %p36 = por %p34, %p35
    %p38 = scmp.ne.s32.totalorder %s23, %s37
    %p39 = scmp.eq.s32.totalorder %s18, 0
    %p40 = por %p38, %p39
    %s41 = ssub.s32 %s12, %s19
    %p42 = scmp.eq.s32.totalorder %s41, 0
    %s44 = sadd.s32 %s43, 1
    %s45 = scalar_select %p42, %s43, %s44
    %p48 = pneg %p42
    %p49 = scmp.eq.s32.totalorder %s12, 3
    %p50 = por %p48, %p49
    %p51 = scmp.ne.s32.totalorder %s43, %s46
    %p52 = scmp.eq.s32.totalorder %s12, 0
    %p53 = por %p51, %p52
    %p54 = scmp.ne.s32.totalorder %s43, %s46
    %p55 = scmp.eq.s32.totalorder %s17, 3
    %p56 = por %p54, %p55
    %p57 = scmp.ne.s32.totalorder %s46, %s47
    %p58 = scmp.eq.s32.totalorder %s17, 0
    %p59 = por %p57, %p58
    %p60 = scmp.ne.s32.totalorder %s46, %s47
    %p61 = scmp.eq.s32.totalorder %s18, 3
    %p62 = por %p60, %p61
    %p64 = scmp.ne.s32.totalorder %s47, %s63
    %p65 = scmp.eq.s32.totalorder %s18, 0
    %p66 = por %p64, %p65
    %s67 = ssub.s32 %s12, %s19
    %p68 = scmp.eq.s32.totalorder %s67, 0
    %s70 = sadd.s32 %s69, 1
    %s71 = scalar_select %p68, %s69, %s70
    %p74 = pneg %p68
    %p75 = scmp.eq.s32.totalorder %s12, 3
    %p76 = por %p74, %p75
    %p77 = scmp.ne.s32.totalorder %s69, %s72
    %p78 = scmp.eq.s32.totalorder %s12, 0
    %p79 = por %p77, %p78
    %p80 = scmp.ne.s32.totalorder %s69, %s72
    %p81 = scmp.eq.s32.totalorder %s17, 3
    %p82 = por %p80, %p81
    %p83 = scmp.ne.s32.totalorder %s72, %s73
    %p84 = scmp.eq.s32.totalorder %s17, 0
    %p85 = por %p83, %p84
    %p86 = scmp.ne.s32.totalorder %s72, %s73
    %p87 = scmp.eq.s32.totalorder %s18, 3
    %p88 = por %p86, %p87
    %p90 = scmp.ne.s32.totalorder %s73, %s89
    %p91 = scmp.eq.s32.totalorder %s18, 0
    %p92 = por %p90, %p91
    %s93 = ssub.s32 %s12, %s19
    %p94 = scmp.eq.s32.totalorder %s93, 0
    %s96 = sadd.s32 %s95, 1
    %s97 = scalar_select %p94, %s95, %s96
    %p100 = pneg %p94
    %p101 = scmp.eq.s32.totalorder %s12, 3
    %p102 = por %p100, %p101
    %p103 = scmp.ne.s32.totalorder %s95, %s98
    %p104 = scmp.eq.s32.totalorder %s12, 0
    %p105 = por %p103, %p104
    %p106 = scmp.ne.s32.totalorder %s95, %s98
    %p107 = scmp.eq.s32.totalorder %s17, 3
    %p108 = por %p106, %p107
    %p109 = scmp.ne.s32.totalorder %s98, %s99
    %p110 = scmp.eq.s32.totalorder %s17, 0
    %p111 = por %p109, %p110
    %p112 = scmp.ne.s32.totalorder %s98, %s99
    %p113 = scmp.eq.s32.totalorder %s18, 3
    %p114 = por %p112, %p113
    %p116 = scmp.ne.s32.totalorder %s99, %s115
    %p117 = scmp.eq.s32.totalorder %s18, 0
    %p118 = por %p116, %p117
    %s119 = ssub.s32 %s12, %s19
    %p120 = scmp.eq.s32.totalorder %s119, 0
    %s122 = sadd.s32 %s121, 1
    %s123 = scalar_select %p120, %s121, %s122
    %p126 = pneg %p120
    %p127 = scmp.eq.s32.totalorder %s12, 3
    %p128 = por %p126, %p127
    %p129 = scmp.ne.s32.totalorder %s121, %s124
    %p130 = scmp.eq.s32.totalorder %s12, 0
    %p131 = por %p129, %p130
    %p132 = scmp.ne.s32.totalorder %s121, %s124
    %p133 = scmp.eq.s32.totalorder %s17, 3
    %p134 = por %p132, %p133
    %p135 = scmp.ne.s32.totalorder %s124, %s125
    %p136 = scmp.eq.s32.totalorder %s17, 0
    %p137 = por %p135, %p136
    %p138 = scmp.ne.s32.totalorder %s124, %s125
    %p139 = scmp.eq.s32.totalorder %s18, 3
    %p140 = por %p138, %p139
    %p142 = scmp.ne.s32.totalorder %s125, %s141
    %p143 = scmp.eq.s32.totalorder %s18, 0
    %p144 = por %p142, %p143
    %s145 = ssub.s32 %s12, %s19
    %p146 = scmp.eq.s32.totalorder %s145, 0
    %s148 = sadd.s32 %s147, 1
    %s149 = scalar_select %p146, %s147, %s148
    %p152 = pneg %p146
    %p153 = scmp.eq.s32.totalorder %s12, 3
    %p154 = por %p152, %p153
    %p155 = scmp.ne.s32.totalorder %s147, %s150
    %p156 = scmp.eq.s32.totalorder %s12, 0
    %p157 = por %p155, %p156
    %p158 = scmp.ne.s32.totalorder %s147, %s150
    %p159 = scmp.eq.s32.totalorder %s17, 3
    %p160 = por %p158, %p159
    %p161 = scmp.ne.s32.totalorder %s150, %s151
    %p162 = scmp.eq.s32.totalorder %s17, 0
    %p163 = por %p161, %p162
    %p164 = scmp.ne.s32.totalorder %s150, %s151
    %p165 = scmp.eq.s32.totalorder %s18, 3
    %p166 = por %p164, %p165
    %p168 = scmp.ne.s32.totalorder %s151, %s167
    %p169 = scmp.eq.s32.totalorder %s18, 0
    %p170 = por %p168, %p169
    %s171 = ssub.s32 %s12, %s19
    %p172 = scmp.eq.s32.totalorder %s171, 0
    %s174 = sadd.s32 %s173, 1
    %s175 = scalar_select %p172, %s173, %s174
    %p178 = pneg %p172
    %p179 = scmp.eq.s32.totalorder %s12, 3
    %p180 = por %p178, %p179
    %p181 = scmp.ne.s32.totalorder %s173, %s176
    %p182 = scmp.eq.s32.totalorder %s12, 0
    %p183 = por %p181, %p182
    %p184 = scmp.ne.s32.totalorder %s173, %s176
    %p185 = scmp.eq.s32.totalorder %s17, 3
    %p186 = por %p184, %p185
    %p187 = scmp.ne.s32.totalorder %s176, %s177
    %p188 = scmp.eq.s32.totalorder %s17, 0
    %p189 = por %p187, %p188
    %p190 = scmp.ne.s32.totalorder %s176, %s177
    %p191 = scmp.eq.s32.totalorder %s18, 3
    %p192 = por %p190, %p191
    %p194 = scmp.ne.s32.totalorder %s177, %s193
    %p195 = scmp.eq.s32.totalorder %s18, 0
    %p196 = por %p194, %p195
    %p197 = scmp.le.s32.totalorder 1, %s12
    %p198 = scmp.lt.s32.totalorder %s12, 5
    %p199 = pnand %p197, %p198
    %p200 = pneg %p199
    // Predicated region
    $region9: #{spatial_attention.2} parent=5 // pred_check
      _
    $region10: #{spatial_attention.2} parent=5 // pred_check_branch
      %202 = sbr.rel (%p199) target = $region12
    $region11: #{spatial_attention.2} parent=5 // pred_region
      %s203 = ssub.s32 %s12, 1
      // Predicated region
      $region13: #{spatial_attention.2} parent=11 // pred_check
        %p204 = pneg %p33
      $region14: #{spatial_attention.2} parent=11 // pred_check_branch
        %206 = sbr.rel (%p204) target = $region16
      $region15: #{spatial_attention.2} parent=11 // pred_region
        _
      $region16: #{spatial_attention.2} parent=11 // pred_fallthru
        _
    $region12: #{spatial_attention.2} parent=5 // pred_fallthru
      _
    %p207 = scmp.lt.s32.totalorder %s12, 4
    // Predicated region
    $region17: #{spatial_attention.2} parent=5 // pred_check
      %p208 = pneg %p207
    $region18: #{spatial_attention.2} parent=5 // pred_check_branch
      %210 = sbr.rel (%p208) target = $region20
    $region19: #{spatial_attention.2} parent=5 // pred_region
      // Predicated region
      $region21: #{spatial_attention.2} parent=19 // pred_check
        %p211 = pneg %p53
      $region22: #{spatial_attention.2} parent=19 // pred_check_branch
        %213 = sbr.rel (%p211) target = $region24
      $region23: #{spatial_attention.2} parent=19 // pred_region
        %p214 = scmp.lt.s32.totalorder %s12, 3
        %s215 = scalar_select %p214, %s12, 3
        %s216 = smul.addr %s215, 9
        %s217 = smul.addr %s216, 4
        %s218 = scalar_lea.vmem %s1, %s217
      $region24: #{spatial_attention.2} parent=19 // pred_fallthru
        _
      // Predicated region
      $region25: #{spatial_attention.2} parent=19 // pred_check
        %p219 = pneg %p79
      $region26: #{spatial_attention.2} parent=19 // pred_check_branch
        %221 = sbr.rel (%p219) target = $region28
      $region27: #{spatial_attention.2} parent=19 // pred_region
        %p222 = scmp.lt.s32.totalorder %s12, 3
        %s223 = scalar_select %p222, %s12, 3
        %s224 = smul.addr %s223, 4
        %s225 = scalar_lea.vmem %s2, %s224
      $region28: #{spatial_attention.2} parent=19 // pred_fallthru
        _
      // Predicated region
      $region29: #{spatial_attention.2} parent=19 // pred_check
        %p226 = pneg %p105
      $region30: #{spatial_attention.2} parent=19 // pred_check_branch
        %228 = sbr.rel (%p226) target = $region32
      $region31: #{spatial_attention.2} parent=19 // pred_region
        %p229 = scmp.lt.s32.totalorder %s12, 3
        %s230 = scalar_select %p229, %s12, 3
        %s231 = smul.addr %s230, 4
        %s232 = scalar_lea.vmem %s3, %s231
      $region32: #{spatial_attention.2} parent=19 // pred_fallthru
        _
      // Predicated region
      $region33: #{spatial_attention.2} parent=19 // pred_check
        %p233 = pneg %p131
      $region34: #{spatial_attention.2} parent=19 // pred_check_branch
        %235 = sbr.rel (%p233) target = $region36
      $region35: #{spatial_attention.2} parent=19 // pred_region
        %p236 = scmp.lt.s32.totalorder %s12, 3
        %s237 = scalar_select %p236, %s12, 3
        %s238 = smul.addr %s237, 4
        %s239 = scalar_lea.vmem %s4, %s238
      $region36: #{spatial_attention.2} parent=19 // pred_fallthru
        _
      // Predicated region
      $region37: #{spatial_attention.2} parent=19 // pred_check
        %p240 = pneg %p157
      $region38: #{spatial_attention.2} parent=19 // pred_check_branch
        %242 = sbr.rel (%p240) target = $region40
      $region39: #{spatial_attention.2} parent=19 // pred_region
        %p243 = scmp.lt.s32.totalorder %s12, 3
        %s244 = scalar_select %p243, %s12, 3
        %s245 = smul.addr %s244, 6
        %s246 = scalar_lea.vmem %s5, %s245
      $region40: #{spatial_attention.2} parent=19 // pred_fallthru
        _
    $region20: #{spatial_attention.2} parent=5 // pred_fallthru
      _
    %p247 = scmp.le.s32.totalorder 1, %s12
    %p248 = scmp.lt.s32.totalorder %s12, 5
    %p249 = pnand %p247, %p248
    %p250 = pneg %p249
    // Predicated region
    $region41: #{spatial_attention.2} parent=5 // pred_check
      _
    $region42: #{spatial_attention.2} parent=5 // pred_check_branch
      %252 = sbr.rel (%p249) target = $region44
    $region43: #{spatial_attention.2} parent=5 // pred_region
      %s253 = ssub.s32 %s12, 1
      %p254 = pneg %p33
      %p255 = pneg %p30
      %p256 = scmp.lt.s32.totalorder %s17, 3
      %s257 = scalar_select %p256, %s17, 3
      %s258 = smul.addr %s257, 9
      %s259 = smul.addr %s258, 4
      %s260 = scalar_lea.vmem %s1, %s259
      %p261 = pneg %p59
      %p262 = pneg %p56
      %p263 = scmp.lt.s32.totalorder %s17, 3
      %s264 = scalar_select %p263, %s17, 3
      %s265 = smul.addr %s264, 4
      %s266 = scalar_lea.vmem %s2, %s265
      %p267 = pneg %p85
      %p268 = pneg %p82
      %p269 = scmp.lt.s32.totalorder %s17, 3
      %s270 = scalar_select %p269, %s17, 3
      %s271 = smul.addr %s270, 4
      %s272 = scalar_lea.vmem %s3, %s271
      %p273 = pneg %p111
      %p274 = pneg %p108
      %p275 = scmp.lt.s32.totalorder %s17, 3
      %s276 = scalar_select %p275, %s17, 3
      %s277 = smul.addr %s276, 4
      %s278 = scalar_lea.vmem %s4, %s277
      %p279 = pneg %p137
      %p280 = pneg %p134
      %p281 = scmp.lt.s32.totalorder %s17, 3
      %s282 = scalar_select %p281, %s17, 3
      %s283 = smul.addr %s282, 6
      %s284 = scalar_lea.vmem %s5, %s283
      %p285 = pneg %p163
      %p286 = pneg %p160
      %p287 = pneg %p189
      %p288 = pneg %p186
      %p289 = scmp.lt.s32.totalorder %s17, 3
      %s290 = scalar_select %p289, %s17, 3
      %s291 = smul.addr %s290, 6
      %s292 = smul.addr %s291, 4
      %s293 = scalar_lea.vmem %s6, %s292
      %p294 = scmp.lt.s32.totalorder %s17, 3
      %s295 = scalar_select %p294, %s17, 3
      %s296 = smul.addr %s295, 9
      %s297 = smul.addr %s296, 4
      %s298 = scalar_lea.vmem %s1, %s297
      %p299 = scmp.lt.s32.totalorder %s17, 3
      %s300 = scalar_select %p299, %s17, 3
      %s301 = smul.addr %s300, 4
      %s302 = scalar_lea.vmem %s2, %s301
      %p303 = scmp.lt.s32.totalorder %s17, 3
      %s304 = scalar_select %p303, %s17, 3
      %s305 = smul.addr %s304, 4
      %s306 = scalar_lea.vmem %s3, %s305
      %p307 = scmp.lt.s32.totalorder %s17, 3
      %s308 = scalar_select %p307, %s17, 3
      %s309 = smul.addr %s308, 4
      %s310 = scalar_lea.vmem %s4, %s309
      %p311 = scmp.lt.s32.totalorder %s17, 3
      %s312 = scalar_select %p311, %s17, 3
      %s313 = smul.addr %s312, 6
      %s314 = scalar_lea.vmem %s5, %s313
      %p315 = scmp.lt.s32.totalorder %s17, 3
      %s316 = scalar_select %p315, %s17, 3
      %s317 = smul.addr %s316, 6
      %s318 = smul.addr %s317, 4
      %s319 = scalar_lea.vmem %s6, %s318
      %p320 = scmp.eq.s32.totalorder %s17, 0
      // Predicated region
      $region45: #{spatial_attention.2} parent=43 // pred_check
        %p321 = pneg %p320
      $region46: #{spatial_attention.2} parent=43 // pred_check_branch
        %323 = sbr.rel (%p321) target = $region48
      $region47: #{spatial_attention.2} parent=43 // pred_region
        %v324 = vld [vmem:[%s298] sm:$0xf]
        %v325 = vld [vmem:[%s0] sm:$0xff]
        %v326 = vld [vmem:[%s0 + $0x8] sm:$0xff]
        %v327 = vld [vmem:[%s0 + $0x10] sm:$0xff]
        %s328 = scalar_lea.vmem %s298, 4
        %v329 = vld [vmem:[%s328] sm:$0xf]
        %v330 = vld [vmem:[%s0 + $0x18] sm:$0xf]
        %v335 = vcombine.high %v325, %v325
        %v336 = vcombine.high %v326, %v326
        %v337 = vcombine.high %v327, %v327
        %338 = vrot.lane.b32.xlu0 %v325, 127
        %v339 = vpop.permute.xlu0 %338
        %340 = vrot.lane.b32.xlu0 %v335, 127
        %v341 = vpop.permute.xlu0 %340
        %342 = vrot.lane.b32.xlu0 %v326, 127
        %v343 = vpop.permute.xlu0 %342
        %344 = vrot.lane.b32.xlu0 %v336, 127
        %v345 = vpop.permute.xlu0 %344
        %346 = vrot.lane.b32.xlu0 %v327, 127
        %v347 = vpop.permute.xlu0 %346
        %348 = vrot.lane.b32.xlu0 %v337, 127
        %v349 = vpop.permute.xlu0 %348
        %350 = vrot.lane.b32.xlu0 %v330, 127
        %v351 = vpop.permute.xlu0 %350
        %vm352 = vcmask 1039360
        %v353 = vsel %vm352, %v339, %v341
        %v354 = vsel %vm352, %v341, %v343
        %v355 = vsel %vm352, %v343, %v345
        %v356 = vsel %vm352, %v345, %v347
        %v357 = vsel %vm352, %v347, %v349
        %v358 = vsel %vm352, %v349, %v351
        %vm359 = vcmask 31744
        %v361 = vsel %vm359, %v329, 0
        %vm363 = vcmask 1043456
        %v364 = vsel %vm363, %v353, 0
        %v366 = vsel %vm363, %v354, 0
        %v368 = vsel %vm363, %v355, 0
        %v370 = vsel %vm363, %v356, 0
        %v372 = vsel %vm363, %v357, 0
        %v374 = vsel %vm363, %v358, 0
        %376 = vmatprep.subr.mxu0 %v366
        %377 = vmatpush1.msra.mxu0 %v364
        %378 = vmatprep.subr.mxu0 0.0
        %379 = vmatpush1.msra.mxu0 0.0
        %380 = vmatprep.subr.mxu0 0.0
        %381 = vmatpush1.msra.mxu0 0.0
        %382 = vmatprep.subr.mxu0 0.0
        %383 = vmatpush1.msra.mxu0 0.0
        %384 = vmatprep.subr.mxu0 0.0
        %385 = vmatpush1.msra.mxu0 0.0
        %386 = vmatprep.subr.mxu0 0.0
        %387 = vmatpush1.msra.mxu0 0.0
        %388 = vmatprep.subr.mxu0 0.0
        %389 = vmatpush1.msra.mxu0 0.0
        %390 = vmatprep.subr.mxu0 0.0
        %391 = vmatpush1.msra.mxu0 0.0
        %392 = vmatprep.subr.mxu0 0.0
        %393 = vmatpush1.msra.mxu0 0.0
        %394 = vmatprep.subr.mxu0 0.0
        %395 = vmatpush1.msra.mxu0 0.0
        %396 = vmatprep.subr.mxu0 0.0
        %397 = vmatpush1.msra.mxu0 0.0
        %398 = vmatprep.subr.mxu0 0.0
        %399 = vmatpush1.msra.mxu0 0.0
        %400 = vmatprep.subr.mxu0 0.0
        %401 = vmatpush1.msra.mxu0 0.0
        %402 = vmatprep.subr.mxu0 0.0
        %403 = vmatpush1.msra.mxu0 0.0
        %404 = vmatprep.subr.mxu0 0.0
        %405 = vmatpush1.msra.mxu0 0.0
        %406 = vmatprep.subr.mxu0 0.0
        %407 = vmatpush1.msra.mxu0 0.0
        %408 = vmatprep.subr.mxu0 0.0
        %409 = vmatpush1.msra.mxu0 0.0
        %410 = vmatprep.subr.mxu0 0.0
        %411 = vmatpush1.msra.mxu0 0.0
        %412 = vmatprep.subr.mxu0 0.0
        %413 = vmatpush1.msra.mxu0 0.0
        %414 = vmatprep.subr.mxu0 0.0
        %415 = vmatpush1.msra.mxu0 0.0
        %416 = vmatprep.subr.mxu0 0.0
        %417 = vmatpush1.msra.mxu0 0.0
        %418 = vmatprep.subr.mxu0 0.0
        %419 = vmatpush1.msra.mxu0 0.0
        %420 = vmatprep.subr.mxu0 0.0
        %421 = vmatpush1.msra.mxu0 0.0
        %422 = vmatprep.subr.mxu0 0.0
        %423 = vmatpush1.msra.mxu0 0.0
        %424 = vmatprep.subr.mxu0 0.0
        %425 = vmatpush1.msra.mxu0 0.0
        %426 = vmatprep.subr.mxu0 0.0
        %427 = vmatpush1.msra.mxu0 0.0
        %428 = vmatprep.subr.mxu0 0.0
        %429 = vmatpush1.msra.mxu0 0.0
        %430 = vmatprep.subr.mxu0 0.0
        %431 = vmatpush1.msra.mxu0 0.0
        %432 = vmatprep.subr.mxu0 0.0
        %433 = vmatpush1.msra.mxu0 0.0
        %434 = vmatprep.subr.mxu0 0.0
        %435 = vmatpush1.msra.mxu0 0.0
        %436 = vmatprep.subr.mxu0 0.0
        %437 = vmatpush1.msra.mxu0 0.0
        %438 = vmatprep.subr.mxu0 0.0
        %439 = vmatpush1.msra.mxu0 0.0
        %440 = vmatprep.mubr.f32.mxu0 0.0
        %441 = vmatmul.mubr.f32.gmra.mrb[0].mxu0 %v361
        %v442 = vpop.f32.mrb[0].mxu0
        %v443 = vadd.f32 0.0, %v442
        %v444 = vpop.f32.mrb[0].mxu0
        %v445 = vadd.f32 0.0, %v444
        %446 = vdwg.mxu0
        %447 = vmatprep.subr.mxu0 %v370
        %448 = vmatpush1.msra.mxu0 %v368
        %449 = vmatprep.subr.mxu0 0.0
        %450 = vmatpush1.msra.mxu0 0.0
        %451 = vmatprep.subr.mxu0 0.0
        %452 = vmatpush1.msra.mxu0 0.0
        %453 = vmatprep.subr.mxu0 0.0
        %454 = vmatpush1.msra.mxu0 0.0
        %455 = vmatprep.subr.mxu0 0.0
        %456 = vmatpush1.msra.mxu0 0.0
        %457 = vmatprep.subr.mxu0 0.0
        %458 = vmatpush1.msra.mxu0 0.0
        %459 = vmatprep.subr.mxu0 0.0
        %460 = vmatpush1.msra.mxu0 0.0
        %461 = vmatprep.subr.mxu0 0.0
        %462 = vmatpush1.msra.mxu0 0.0
        %463 = vmatprep.subr.mxu0 0.0
        %464 = vmatpush1.msra.mxu0 0.0
        %465 = vmatprep.subr.mxu0 0.0
        %466 = vmatpush1.msra.mxu0 0.0
        %467 = vmatprep.subr.mxu0 0.0
        %468 = vmatpush1.msra.mxu0 0.0
        %469 = vmatprep.subr.mxu0 0.0
        %470 = vmatpush1.msra.mxu0 0.0
        %471 = vmatprep.subr.mxu0 0.0
        %472 = vmatpush1.msra.mxu0 0.0
        %473 = vmatprep.subr.mxu0 0.0
        %474 = vmatpush1.msra.mxu0 0.0
        %475 = vmatprep.subr.mxu0 0.0
        %476 = vmatpush1.msra.mxu0 0.0
        %477 = vmatprep.subr.mxu0 0.0
        %478 = vmatpush1.msra.mxu0 0.0
        %479 = vmatprep.subr.mxu0 0.0
        %480 = vmatpush1.msra.mxu0 0.0
        %481 = vmatprep.subr.mxu0 0.0
        %482 = vmatpush1.msra.mxu0 0.0
        %483 = vmatprep.subr.mxu0 0.0
        %484 = vmatpush1.msra.mxu0 0.0
        %485 = vmatprep.subr.mxu0 0.0
        %486 = vmatpush1.msra.mxu0 0.0
        %487 = vmatprep.subr.mxu0 0.0
        %488 = vmatpush1.msra.mxu0 0.0
        %489 = vmatprep.subr.mxu0 0.0
        %490 = vmatpush1.msra.mxu0 0.0
        %491 = vmatprep.subr.mxu0 0.0
        %492 = vmatpush1.msra.mxu0 0.0
        %493 = vmatprep.subr.mxu0 0.0
        %494 = vmatpush1.msra.mxu0 0.0
        %495 = vmatprep.subr.mxu0 0.0
        %496 = vmatpush1.msra.mxu0 0.0
        %497 = vmatprep.subr.mxu0 0.0
        %498 = vmatpush1.msra.mxu0 0.0
        %499 = vmatprep.subr.mxu0 0.0
        %500 = vmatpush1.msra.mxu0 0.0
        %501 = vmatprep.subr.mxu0 0.0
        %502 = vmatpush1.msra.mxu0 0.0
        %503 = vmatprep.subr.mxu0 0.0
        %504 = vmatpush1.msra.mxu0 0.0
        %505 = vmatprep.subr.mxu0 0.0
        %506 = vmatpush1.msra.mxu0 0.0
        %507 = vmatprep.subr.mxu0 0.0
        %508 = vmatpush1.msra.mxu0 0.0
        %509 = vmatprep.subr.mxu0 0.0
        %510 = vmatpush1.msra.mxu0 0.0
        %511 = vmatprep.mubr.f32.mxu0 0.0
        %512 = vmatmul.mubr.f32.gmra.mrb[0].mxu0 %v361
        %v513 = vpop.f32.mrb[0].mxu0
        %v514 = vadd.f32 0.0, %v513
        %v515 = vpop.f32.mrb[0].mxu0
        %v516 = vadd.f32 0.0, %v515
        %517 = vdwg.mxu0
        %518 = vmatprep.subr.mxu0 %v374
        %519 = vmatpush1.msra.mxu0 %v372
        %520 = vmatprep.subr.mxu0 0.0
        %521 = vmatpush1.msra.mxu0 0.0
        %522 = vmatprep.subr.mxu0 0.0
        %523 = vmatpush1.msra.mxu0 0.0
        %524 = vmatprep.subr.mxu0 0.0
        %525 = vmatpush1.msra.mxu0 0.0
        %526 = vmatprep.subr.mxu0 0.0
        %527 = vmatpush1.msra.mxu0 0.0
        %528 = vmatprep.subr.mxu0 0.0
        %529 = vmatpush1.msra.mxu0 0.0
        %530 = vmatprep.subr.mxu0 0.0
        %531 = vmatpush1.msra.mxu0 0.0
        %532 = vmatprep.subr.mxu0 0.0
        %533 = vmatpush1.msra.mxu0 0.0
        %534 = vmatprep.subr.mxu0 0.0
        %535 = vmatpush1.msra.mxu0 0.0
        %536 = vmatprep.subr.mxu0 0.0
        %537 = vmatpush1.msra.mxu0 0.0
        %538 = vmatprep.subr.mxu0 0.0
        %539 = vmatpush1.msra.mxu0 0.0
        %540 = vmatprep.subr.mxu0 0.0
        %541 = vmatpush1.msra.mxu0 0.0
        %542 = vmatprep.subr.mxu0 0.0
        %543 = vmatpush1.msra.mxu0 0.0
        %544 = vmatprep.subr.mxu0 0.0
        %545 = vmatpush1.msra.mxu0 0.0
        %546 = vmatprep.subr.mxu0 0.0
        %547 = vmatpush1.msra.mxu0 0.0
        %548 = vmatprep.subr.mxu0 0.0
        %549 = vmatpush1.msra.mxu0 0.0
        %550 = vmatprep.subr.mxu0 0.0
        %551 = vmatpush1.msra.mxu0 0.0
        %552 = vmatprep.subr.mxu0 0.0
        %553 = vmatpush1.msra.mxu0 0.0
        %554 = vmatprep.subr.mxu0 0.0
        %555 = vmatpush1.msra.mxu0 0.0
        %556 = vmatprep.subr.mxu0 0.0
        %557 = vmatpush1.msra.mxu0 0.0
        %558 = vmatprep.subr.mxu0 0.0
        %559 = vmatpush1.msra.mxu0 0.0
        %560 = vmatprep.subr.mxu0 0.0
        %561 = vmatpush1.msra.mxu0 0.0
        %562 = vmatprep.subr.mxu0 0.0
        %563 = vmatpush1.msra.mxu0 0.0
        %564 = vmatprep.subr.mxu0 0.0
        %565 = vmatpush1.msra.mxu0 0.0
        %566 = vmatprep.subr.mxu0 0.0
        %567 = vmatpush1.msra.mxu0 0.0
        %568 = vmatprep.subr.mxu0 0.0
        %569 = vmatpush1.msra.mxu0 0.0
        %570 = vmatprep.subr.mxu0 0.0
        %571 = vmatpush1.msra.mxu0 0.0
        %572 = vmatprep.subr.mxu0 0.0
        %573 = vmatpush1.msra.mxu0 0.0
        %574 = vmatprep.subr.mxu0 0.0
        %575 = vmatpush1.msra.mxu0 0.0
        %576 = vmatprep.subr.mxu0 0.0
        %577 = vmatpush1.msra.mxu0 0.0
        %578 = vmatprep.subr.mxu0 0.0
        %579 = vmatpush1.msra.mxu0 0.0
        %580 = vmatprep.subr.mxu0 0.0
        %581 = vmatpush1.msra.mxu0 0.0
        %582 = vmatprep.mubr.f32.mxu0 0.0
        %583 = vmatmul.mubr.f32.gmra.mrb[0].mxu0 %v361
        %v584 = vpop.f32.mrb[0].mxu0
        %v585 = vadd.f32 0.0, %v584
        %v586 = vpop.f32.mrb[0].mxu0
        %v587 = vadd.f32 0.0, %v586
        %588 = vdwg.mxu0
        %v590 = vsel %vm359, %v324, 0
        %v592 = vsel %vm363, %v325, 0
        %v594 = vsel %vm363, %v335, 0
        %v596 = vsel %vm363, %v326, 0
        %v598 = vsel %vm363, %v336, 0
        %v600 = vsel %vm363, %v327, 0
        %v602 = vsel %vm363, %v337, 0
        %604 = vmatprep.subr.mxu0 %v594
        %605 = vmatpush1.msra.mxu0 %v592
        %606 = vmatprep.subr.mxu0 0.0
        %607 = vmatpush1.msra.mxu0 0.0
        %608 = vmatprep.subr.mxu0 0.0
        %609 = vmatpush1.msra.mxu0 0.0
        %610 = vmatprep.subr.mxu0 0.0
        %611 = vmatpush1.msra.mxu0 0.0
        %612 = vmatprep.subr.mxu0 0.0
        %613 = vmatpush1.msra.mxu0 0.0
        %614 = vmatprep.subr.mxu0 0.0
        %615 = vmatpush1.msra.mxu0 0.0
        %616 = vmatprep.subr.mxu0 0.0
        %617 = vmatpush1.msra.mxu0 0.0
        %618 = vmatprep.subr.mxu0 0.0
        %619 = vmatpush1.msra.mxu0 0.0
        %620 = vmatprep.subr.mxu0 0.0
        %621 = vmatpush1.msra.mxu0 0.0
        %622 = vmatprep.subr.mxu0 0.0
        %623 = vmatpush1.msra.mxu0 0.0
        %624 = vmatprep.subr.mxu0 0.0
        %625 = vmatpush1.msra.mxu0 0.0
        %626 = vmatprep.subr.mxu0 0.0
        %627 = vmatpush1.msra.mxu0 0.0
        %628 = vmatprep.subr.mxu0 0.0
        %629 = vmatpush1.msra.mxu0 0.0
        %630 = vmatprep.subr.mxu0 0.0
        %631 = vmatpush1.msra.mxu0 0.0
        %632 = vmatprep.subr.mxu0 0.0
        %633 = vmatpush1.msra.mxu0 0.0
        %634 = vmatprep.subr.mxu0 0.0
        %635 = vmatpush1.msra.mxu0 0.0
        %636 = vmatprep.subr.mxu0 0.0
        %637 = vmatpush1.msra.mxu0 0.0
        %638 = vmatprep.subr.mxu0 0.0
        %639 = vmatpush1.msra.mxu0 0.0
        %640 = vmatprep.subr.mxu0 0.0
        %641 = vmatpush1.msra.mxu0 0.0
        %642 = vmatprep.subr.mxu0 0.0
        %643 = vmatpush1.msra.mxu0 0.0
        %644 = vmatprep.subr.mxu0 0.0
        %645 = vmatpush1.msra.mxu0 0.0
        %646 = vmatprep.subr.mxu0 0.0
        %647 = vmatpush1.msra.mxu0 0.0
        %648 = vmatprep.subr.mxu0 0.0
        %649 = vmatpush1.msra.mxu0 0.0
        %650 = vmatprep.subr.mxu0 0.0
        %651 = vmatpush1.msra.mxu0 0.0
        %652 = vmatprep.subr.mxu0 0.0
        %653 = vmatpush1.msra.mxu0 0.0
        %654 = vmatprep.subr.mxu0 0.0
        %655 = vmatpush1.msra.mxu0 0.0
        %656 = vmatprep.subr.mxu0 0.0
        %657 = vmatpush1.msra.mxu0 0.0
        %658 = vmatprep.subr.mxu0 0.0
        %659 = vmatpush1.msra.mxu0 0.0
        %660 = vmatprep.subr.mxu0 0.0
        %661 = vmatpush1.msra.mxu0 0.0
        %662 = vmatprep.subr.mxu0 0.0
        %663 = vmatpush1.msra.mxu0 0.0
        %664 = vmatprep.subr.mxu0 0.0
        %665 = vmatpush1.msra.mxu0 0.0
        %666 = vmatprep.subr.mxu0 0.0
        %667 = vmatpush1.msra.mxu0 0.0
        %668 = vmatprep.mubr.f32.mxu0 0.0
        %669 = vmatmul.mubr.f32.gmra.mrb[0].mxu0 %v590
        %v670 = vpop.f32.mrb[0].mxu0
        %v671 = vadd.f32 %v443, %v670
        %v672 = vpop.f32.mrb[0].mxu0
        %v673 = vadd.f32 %v445, %v672
        %674 = vdwg.mxu0
        %675 = vmatprep.subr.mxu0 %v598
        %676 = vmatpush1.msra.mxu0 %v596
        %677 = vmatprep.subr.mxu0 0.0
        %678 = vmatpush1.msra.mxu0 0.0
        %679 = vmatprep.subr.mxu0 0.0
        %680 = vmatpush1.msra.mxu0 0.0
        %681 = vmatprep.subr.mxu0 0.0
        %682 = vmatpush1.msra.mxu0 0.0
        %683 = vmatprep.subr.mxu0 0.0
        %684 = vmatpush1.msra.mxu0 0.0
        %685 = vmatprep.subr.mxu0 0.0
        %686 = vmatpush1.msra.mxu0 0.0
        %687 = vmatprep.subr.mxu0 0.0
        %688 = vmatpush1.msra.mxu0 0.0
        %689 = vmatprep.subr.mxu0 0.0
        %690 = vmatpush1.msra.mxu0 0.0
        %691 = vmatprep.subr.mxu0 0.0
        %692 = vmatpush1.msra.mxu0 0.0
        %693 = vmatprep.subr.mxu0 0.0
        %694 = vmatpush1.msra.mxu0 0.0
        %695 = vmatprep.subr.mxu0 0.0
        %696 = vmatpush1.msra.mxu0 0.0
        %697 = vmatprep.subr.mxu0 0.0
        %698 = vmatpush1.msra.mxu0 0.0
        %699 = vmatprep.subr.mxu0 0.0
        %700 = vmatpush1.msra.mxu0 0.0
        %701 = vmatprep.subr.mxu0 0.0
        %702 = vmatpush1.msra.mxu0 0.0
        %703 = vmatprep.subr.mxu0 0.0
        %704 = vmatpush1.msra.mxu0 0.0
        %705 = vmatprep.subr.mxu0 0.0
        %706 = vmatpush1.msra.mxu0 0.0
        %707 = vmatprep.subr.mxu0 0.0
        %708 = vmatpush1.msra.mxu0 0.0
        %709 = vmatprep.subr.mxu0 0.0
        %710 = vmatpush1.msra.mxu0 0.0
        %711 = vmatprep.subr.mxu0 0.0
        %712 = vmatpush1.msra.mxu0 0.0
        %713 = vmatprep.subr.mxu0 0.0
        %714 = vmatpush1.msra.mxu0 0.0
        %715 = vmatprep.subr.mxu0 0.0
        %716 = vmatpush1.msra.mxu0 0.0
        %717 = vmatprep.subr.mxu0 0.0
        %718 = vmatpush1.msra.mxu0 0.0
        %719 = vmatprep.subr.mxu0 0.0
        %720 = vmatpush1.msra.mxu0 0.0
        %721 = vmatprep.subr.mxu0 0.0
        %722 = vmatpush1.msra.mxu0 0.0
        %723 = vmatprep.subr.mxu0 0.0
        %724 = vmatpush1.msra.mxu0 0.0
        %725 = vmatprep.subr.mxu0 0.0
        %726 = vmatpush1.msra.mxu0 0.0
        %727 = vmatprep.subr.mxu0 0.0
        %728 = vmatpush1.msra.mxu0 0.0
        %729 = vmatprep.subr.mxu0 0.0
        %730 = vmatpush1.msra.mxu0 0.0
        %731 = vmatprep.subr.mxu0 0.0
        %732 = vmatpush1.msra.mxu0 0.0
        %733 = vmatprep.subr.mxu0 0.0
        %734 = vmatpush1.msra.mxu0 0.0
        %735 = vmatprep.subr.mxu0 0.0
        %736 = vmatpush1.msra.mxu0 0.0
        %737 = vmatprep.subr.mxu0 0.0
        %738 = vmatpush1.msra.mxu0 0.0
        %739 = vmatprep.mubr.f32.mxu0 0.0
        %740 = vmatmul.mubr.f32.gmra.mrb[0].mxu0 %v590
        %v741 = vpop.f32.mrb[0].mxu0
        %v742 = vadd.f32 %v514, %v741
        %v743 = vpop.f32.mrb[0].mxu0
        %v744 = vadd.f32 %v516, %v743
        %745 = vdwg.mxu0
        %746 = vmatprep.subr.mxu0 %v602
        %747 = vmatpush1.msra.mxu0 %v600
        %748 = vmatprep.subr.mxu0 0.0
        %749 = vmatpush1.msra.mxu0 0.0
        %750 = vmatprep.subr.mxu0 0.0
        %751 = vmatpush1.msra.mxu0 0.0
        %752 = vmatprep.subr.mxu0 0.0
        %753 = vmatpush1.msra.mxu0 0.0
        %754 = vmatprep.subr.mxu0 0.0
        %755 = vmatpush1.msra.mxu0 0.0
        %756 = vmatprep.subr.mxu0 0.0
        %757 = vmatpush1.msra.mxu0 0.0
        %758 = vmatprep.subr.mxu0 0.0
        %759 = vmatpush1.msra.mxu0 0.0
        %760 = vmatprep.subr.mxu0 0.0
        %761 = vmatpush1.msra.mxu0 0.0
        %762 = vmatprep.subr.mxu0 0.0
        %763 = vmatpush1.msra.mxu0 0.0
        %764 = vmatprep.subr.mxu0 0.0
        %765 = vmatpush1.msra.mxu0 0.0
        %766 = vmatprep.subr.mxu0 0.0
        %767 = vmatpush1.msra.mxu0 0.0
        %768 = vmatprep.subr.mxu0 0.0
        %769 = vmatpush1.msra.mxu0 0.0
        %770 = vmatprep.subr.mxu0 0.0
        %771 = vmatpush1.msra.mxu0 0.0
        %772 = vmatprep.subr.mxu0 0.0
        %773 = vmatpush1.msra.mxu0 0.0
        %774 = vmatprep.subr.mxu0 0.0
        %775 = vmatpush1.msra.mxu0 0.0
        %776 = vmatprep.subr.mxu0 0.0
        %777 = vmatpush1.msra.mxu0 0.0
        %778 = vmatprep.subr.mxu0 0.0
        %779 = vmatpush1.msra.mxu0 0.0
        %780 = vmatprep.subr.mxu0 0.0
        %781 = vmatpush1.msra.mxu0 0.0
        %782 = vmatprep.subr.mxu0 0.0
        %783 = vmatpush1.msra.mxu0 0.0
        %784 = vmatprep.subr.mxu0 0.0
        %785 = vmatpush1.msra.mxu0 0.0
        %786 = vmatprep.subr.mxu0 0.0
        %787 = vmatpush1.msra.mxu0 0.0
        %788 = vmatprep.subr.mxu0 0.0
        %789 = vmatpush1.msra.mxu0 0.0
        %790 = vmatprep.subr.mxu0 0.0
        %791 = vmatpush1.msra.mxu0 0.0
        %792 = vmatprep.subr.mxu0 0.0
        %793 = vmatpush1.msra.mxu0 0.0
        %794 = vmatprep.subr.mxu0 0.0
        %795 = vmatpush1.msra.mxu0 0.0
        %796 = vmatprep.subr.mxu0 0.0
        %797 = vmatpush1.msra.mxu0 0.0
        %798 = vmatprep.subr.mxu0 0.0
        %799 = vmatpush1.msra.mxu0 0.0
        %800 = vmatprep.subr.mxu0 0.0
        %801 = vmatpush1.msra.mxu0 0.0
        %802 = vmatprep.subr.mxu0 0.0
        %803 = vmatpush1.msra.mxu0 0.0
        %804 = vmatprep.subr.mxu0 0.0
        %805 = vmatpush1.msra.mxu0 0.0
        %806 = vmatprep.subr.mxu0 0.0
        %807 = vmatpush1.msra.mxu0 0.0
        %808 = vmatprep.subr.mxu0 0.0
        %809 = vmatpush1.msra.mxu0 0.0
        %810 = vmatprep.mubr.f32.mxu0 0.0
        %811 = vmatmul.mubr.f32.gmra.mrb[0].mxu0 %v590
        %v812 = vpop.f32.mrb[0].mxu0
        %v813 = vadd.f32 %v585, %v812
        %v814 = vpop.f32.mrb[0].mxu0
        %v815 = vadd.f32 %v587, %v814
        %816 = vdwg.mxu0
        %s817 = scalar_lea.vmem %s298, 8
        %v818 = vld [vmem:[%s817] sm:$0xf]
        %v819 = vld [vmem:[%s0] sm:$0xff]
        %v820 = vld [vmem:[%s0 + $0x8] sm:$0xff]
        %v821 = vld [vmem:[%s0 + $0x10] sm:$0xff]
        %v822 = vld [vmem:[%s0 + $0x18] sm:$0xf]
        %v827 = vcombine.high %v819, %v819
        %v828 = vcombine.high %v820, %v820
        %v829 = vcombine.high %v821, %v821
        %830 = vrot.lane.b32.xlu0 %v819, 126
        %v831 = vpop.permute.xlu0 %830
        %832 = vrot.lane.b32.xlu0 %v827, 126
        %v833 = vpop.permute.xlu0 %832
        %834 = vrot.lane.b32.xlu0 %v820, 126
        %v835 = vpop.permute.xlu0 %834
        %836 = vrot.lane.b32.xlu0 %v828, 126
        %v837 = vpop.permute.xlu0 %836
        %838 = vrot.lane.b32.xlu0 %v821, 126
        %v839 = vpop.permute.xlu0 %838
        %840 = vrot.lane.b32.xlu0 %v829, 126
        %v841 = vpop.permute.xlu0 %840
        %842 = vrot.lane.b32.xlu0 %v822, 126
        %v843 = vpop.permute.xlu0 %842
        %vm844 = vcmask 1031168
        %v845 = vsel %vm844, %v831, %v833
        %v846 = vsel %vm844, %v833, %v835
        %v847 = vsel %vm844, %v835, %v837
        %v848 = vsel %vm844, %v837, %v839
        %v849 = vsel %vm844, %v839, %v841
        %v850 = vsel %vm844, %v841, %v843
        %v852 = vsel %vm359, %v818, 0
        %v854 = vsel %vm363, %v845, 0
        %v856 = vsel %vm363, %v846, 0
        %v858 = vsel %vm363, %v847, 0
        %v860 = vsel %vm363, %v848, 0
        %v862 = vsel %vm363, %v849, 0
        %v864 = vsel %vm363, %v850, 0
        %866 = vmatprep.subr.mxu0 %v856
        %867 = vmatpush1.msra.mxu0 %v854
        %868 = vmatprep.subr.mxu0 0.0
        %869 = vmatpush1.msra.mxu0 0.0
        %870 = vmatprep.subr.mxu0 0.0
        %871 = vmatpush1.msra.mxu0 0.0
        %872 = vmatprep.subr.mxu0 0.0
        %873 = vmatpush1.msra.mxu0 0.0
        %874 = vmatprep.subr.mxu0 0.0
        %875 = vmatpush1.msra.mxu0 0.0
        %876 = vmatprep.subr.mxu0 0.0
        %877 = vmatpush1.msra.mxu0 0.0
        %878 = vmatprep.subr.mxu0 0.0
        %879 = vmatpush1.msra.mxu0 0.0
        %880 = vmatprep.subr.mxu0 0.0
        %881 = vmatpush1.msra.mxu0 0.0
        %882 = vmatprep.subr.mxu0 0.0
        %883 = vmatpush1.msra.mxu0 0.0
        %884 = vmatprep.subr.mxu0 0.0
        %885 = vmatpush1.msra.mxu0 0.0
        %886 = vmatprep.subr.mxu0 0.0
        %887 = vmatpush1.msra.mxu0 0.0
        %888 = vmatprep.subr.mxu0 0.0
        %889 = vmatpush1.msra.mxu0 0.0
        %890 = vmatprep.subr.mxu0 0.0
        %891 = vmatpush1.msra.mxu0 0.0
        %892 = vmatprep.subr.mxu0 0.0
        %893 = vmatpush1.msra.mxu0 0.0
        %894 = vmatprep.subr.mxu0 0.0
        %895 = vmatpush1.msra.mxu0 0.0
        %896 = vmatprep.subr.mxu0 0.0
        %897 = vmatpush1.msra.mxu0 0.0
        %898 = vmatprep.subr.mxu0 0.0
        %899 = vmatpush1.msra.mxu0 0.0
        %900 = vmatprep.subr.mxu0 0.0
        %901 = vmatpush1.msra.mxu0 0.0
        %902 = vmatprep.subr.mxu0 0.0
        %903 = vmatpush1.msra.mxu0 0.0
        %904 = vmatprep.subr.mxu0 0.0
        %905 = vmatpush1.msra.mxu0 0.0
        %906 = vmatprep.subr.mxu0 0.0
        %907 = vmatpush1.msra.mxu0 0.0
        %908 = vmatprep.subr.mxu0 0.0
        %909 = vmatpush1.msra.mxu0 0.0
        %910 = vmatprep.subr.mxu0 0.0
        %911 = vmatpush1.msra.mxu0 0.0
        %912 = vmatprep.subr.mxu0 0.0
        %913 = vmatpush1.msra.mxu0 0.0
        %914 = vmatprep.subr.mxu0 0.0
        %915 = vmatpush1.msra.mxu0 0.0
        %916 = vmatprep.subr.mxu0 0.0
        %917 = vmatpush1.msra.mxu0 0.0
        %918 = vmatprep.subr.mxu0 0.0
        %919 = vmatpush1.msra.mxu0 0.0
        %920 = vmatprep.subr.mxu0 0.0
        %921 = vmatpush1.msra.mxu0 0.0
        %922 = vmatprep.subr.mxu0 0.0
        %923 = vmatpush1.msra.mxu0 0.0
        %924 = vmatprep.subr.mxu0 0.0
        %925 = vmatpush1.msra.mxu0 0.0
        %926 = vmatprep.subr.mxu0 0.0
        %927 = vmatpush1.msra.mxu0 0.0
        %928 = vmatprep.subr.mxu0 0.0
        %929 = vmatpush1.msra.mxu0 0.0
        %930 = vmatprep.mubr.f32.mxu0 0.0
        %931 = vmatmul.mubr.f32.gmra.mrb[0].mxu0 %v852
        %v932 = vpop.f32.mrb[0].mxu0
        %v933 = vadd.f32 0.0, %v932
        %v934 = vpop.f32.mrb[0].mxu0
        %v935 = vadd.f32 0.0, %v934
        %936 = vdwg.mxu0
        %937 = vmatprep.subr.mxu0 %v860
        %938 = vmatpush1.msra.mxu0 %v858
        %939 = vmatprep.subr.mxu0 0.0
        %940 = vmatpush1.msra.mxu0 0.0
        %941 = vmatprep.subr.mxu0 0.0
        %942 = vmatpush1.msra.mxu0 0.0
        %943 = vmatprep.subr.mxu0 0.0
        %944 = vmatpush1.msra.mxu0 0.0
        %945 = vmatprep.subr.mxu0 0.0
        %946 = vmatpush1.msra.mxu0 0.0
        %947 = vmatprep.subr.mxu0 0.0
        %948 = vmatpush1.msra.mxu0 0.0
        %949 = vmatprep.subr.mxu0 0.0
        %950 = vmatpush1.msra.mxu0 0.0
        %951 = vmatprep.subr.mxu0 0.0
        %952 = vmatpush1.msra.mxu0 0.0
        %953 = vmatprep.subr.mxu0 0.0
        %954 = vmatpush1.msra.mxu0 0.0
        %955 = vmatprep.subr.mxu0 0.0
        %956 = vmatpush1.msra.mxu0 0.0
        %957 = vmatprep.subr.mxu0 0.0
        %958 = vmatpush1.msra.mxu0 0.0
        %959 = vmatprep.subr.mxu0 0.0
        %960 = vmatpush1.msra.mxu0 0.0
        %961 = vmatprep.subr.mxu0 0.0
        %962 = vmatpush1.msra.mxu0 0.0
        %963 = vmatprep.subr.mxu0 0.0
        %964 = vmatpush1.msra.mxu0 0.0
        %965 = vmatprep.subr.mxu0 0.0
        %966 = vmatpush1.msra.mxu0 0.0
        %967 = vmatprep.subr.mxu0 0.0
        %968 = vmatpush1.msra.mxu0 0.0
        %969 = vmatprep.subr.mxu0 0.0
        %970 = vmatpush1.msra.mxu0 0.0
        %971 = vmatprep.subr.mxu0 0.0
        %972 = vmatpush1.msra.mxu0 0.0
        %973 = vmatprep.subr.mxu0 0.0
        %974 = vmatpush1.msra.mxu0 0.0
        %975 = vmatprep.subr.mxu0 0.0
        %976 = vmatpush1.msra.mxu0 0.0
        %977 = vmatprep.subr.mxu0 0.0
        %978 = vmatpush1.msra.mxu0 0.0
        %979 = vmatprep.subr.mxu0 0.0
        %980 = vmatpush1.msra.mxu0 0.0
        %981 = vmatprep.subr.mxu0 0.0
        %982 = vmatpush1.msra.mxu0 0.0
        %983 = vmatprep.subr.mxu0 0.0
        %984 = vmatpush1.msra.mxu0 0.0
        %985 = vmatprep.subr.mxu0 0.0
        %986 = vmatpush1.msra.mxu0 0.0
        %987 = vmatprep.subr.mxu0 0.0
        %988 = vmatpush1.msra.mxu0 0.0
        %989 = vmatprep.subr.mxu0 0.0
        %990 = vmatpush1.msra.mxu0 0.0
        %991 = vmatprep.subr.mxu0 0.0
        %992 = vmatpush1.msra.mxu0 0.0
        %993 = vmatprep.subr.mxu0 0.0
        %994 = vmatpush1.msra.mxu0 0.0
        %995 = vmatprep.subr.mxu0 0.0
        %996 = vmatpush1.msra.mxu0 0.0
        %997 = vmatprep.subr.mxu0 0.0
        %998 = vmatpush1.msra.mxu0 0.0
        %999 = vmatprep.subr.mxu0 0.0
        %1000 = vmatpush1.msra.mxu0 0.0
        %1001 = vmatprep.mubr.f32.mxu0 0.0
        %1002 = vmatmul.mubr.f32.gmra.mrb[0].mxu0 %v852
        %v1003 = vpop.f32.mrb[0].mxu0
        %v1004 = vadd.f32 0.0, %v1003
        %v1005 = vpop.f32.mrb[0].mxu0
        %v1006 = vadd.f32 0.0, %v1005
        %1007 = vdwg.mxu0
        %1008 = vmatprep.subr.mxu0 %v864
        %1009 = vmatpush1.msra.mxu0 %v862
        %1010 = vmatprep.subr.mxu0 0.0
        %1011 = vmatpush1.msra.mxu0 0.0
        %1012 = vmatprep.subr.mxu0 0.0
        %1013 = vmatpush1.msra.mxu0 0.0
        %1014 = vmatprep.subr.mxu0 0.0
        %1015 = vmatpush1.msra.mxu0 0.0
        %1016 = vmatprep.subr.mxu0 0.0
        %1017 = vmatpush1.msra.mxu0 0.0
        %1018 = vmatprep.subr.mxu0 0.0
        %1019 = vmatpush1.msra.mxu0 0.0
        %1020 = vmatprep.subr.mxu0 0.0
        %1021 = vmatpush1.msra.mxu0 0.0
        %1022 = vmatprep.subr.mxu0 0.0
        %1023 = vmatpush1.msra.mxu0 0.0
        %1024 = vmatprep.subr.mxu0 0.0
        %1025 = vmatpush1.msra.mxu0 0.0
        %1026 = vmatprep.subr.mxu0 0.0
        %1027 = vmatpush1.msra.mxu0 0.0
        %1028 = vmatprep.subr.mxu0 0.0
        %1029 = vmatpush1.msra.mxu0 0.0
        %1030 = vmatprep.subr.mxu0 0.0
        %1031 = vmatpush1.msra.mxu0 0.0
        %1032 = vmatprep.subr.mxu0 0.0
        %1033 = vmatpush1.msra.mxu0 0.0
        %1034 = vmatprep.subr.mxu0 0.0
        %1035 = vmatpush1.msra.mxu0 0.0
        %1036 = vmatprep.subr.mxu0 0.0
        %1037 = vmatpush1.msra.mxu0 0.0
        %1038 = vmatprep.subr.mxu0 0.0
        %1039 = vmatpush1.msra.mxu0 0.0
        %1040 = vmatprep.subr.mxu0 0.0
        %1041 = vmatpush1.msra.mxu0 0.0
        %1042 = vmatprep.subr.mxu0 0.0
        %1043 = vmatpush1.msra.mxu0 0.0
        %1044 = vmatprep.subr.mxu0 0.0
        %1045 = vmatpush1.msra.mxu0 0.0
        %1046 = vmatprep.subr.mxu0 0.0
        %1047 = vmatpush1.msra.mxu0 0.0
        %1048 = vmatprep.subr.mxu0 0.0
        %1049 = vmatpush1.msra.mxu0 0.0
        %1050 = vmatprep.subr.mxu0 0.0
        %1051 = vmatpush1.msra.mxu0 0.0
        %1052 = vmatprep.subr.mxu0 0.0
        %1053 = vmatpush1.msra.mxu0 0.0
        %1054 = vmatprep.subr.mxu0 0.0
        %1055 = vmatpush1.msra.mxu0 0.0
        %1056 = vmatprep.subr.mxu0 0.0
        %1057 = vmatpush1.msra.mxu0 0.0
        %1058 = vmatprep.subr.mxu0 0.0
        %1059 = vmatpush1.msra.mxu0 0.0
        %1060 = vmatprep.subr.mxu0 0.0
        %1061 = vmatpush1.msra.mxu0 0.0
        %1062 = vmatprep.subr.mxu0 0.0
        %1063 = vmatpush1.msra.mxu0 0.0
        %1064 = vmatprep.subr.mxu0 0.0
        %1065 = vmatpush1.msra.mxu0 0.0
        %1066 = vmatprep.subr.mxu0 0.0
        %1067 = vmatpush1.msra.mxu0 0.0
        %1068 = vmatprep.subr.mxu0 0.0
        %1069 = vmatpush1.msra.mxu0 0.0
        %1070 = vmatprep.subr.mxu0 0.0
        %1071 = vmatpush1.msra.mxu0 0.0
        %1072 = vmatprep.mubr.f32.mxu0 0.0
        %1073 = vmatmul.mubr.f32.gmra.mrb[0].mxu0 %v852
        %v1074 = vpop.f32.mrb[0].mxu0
        %v1075 = vadd.f32 0.0, %v1074
        %v1076 = vpop.f32.mrb[0].mxu0
        %v1077 = vadd.f32 0.0, %v1076
        %1078 = vdwg.mxu0
        %v1079 = vadd.f32 %v671, %v933
        %v1080 = vadd.f32 %v673, %v935
        %v1081 = vadd.f32 %v742, %v1004
        %v1082 = vadd.f32 %v744, %v1006
        %v1083 = vadd.f32 %v813, %v1075
        %v1084 = vadd.f32 %v815, %v1077
        %s1085 = scalar_lea.vmem %s298, 12
        %v1086 = vld [vmem:[%s1085] sm:$0xf]
        %v1087 = vld [vmem:[%s0] sm:$0xff]
        %v1088 = vld [vmem:[%s0 + $0x8] sm:$0xff]
        %v1089 = vld [vmem:[%s0 + $0x10] sm:$0xff]
        %v1090 = vld [vmem:[%s0 + $0x18] sm:$0xf]
        %v1095 = vcombine.high %v1087, %v1087
        %v1096 = vcombine.high %v1088, %v1088
        %v1097 = vcombine.high %v1089, %v1089
        %1098 = vrot.lane.b32.xlu0 %v1087, 110
        %v1099 = vpop.permute.xlu0 %1098
        %1100 = vrot.lane.b32.xlu0 %v1095, 110
        %v1101 = vpop.permute.xlu0 %1100
        %1102 = vrot.lane.b32.xlu0 %v1088, 110
        %v1103 = vpop.permute.xlu0 %1102
        %1104 = vrot.lane.b32.xlu0 %v1096, 110
        %v1105 = vpop.permute.xlu0 %1104
        %1106 = vrot.lane.b32.xlu0 %v1089, 110
        %v1107 = vpop.permute.xlu0 %1106
        %1108 = vrot.lane.b32.xlu0 %v1097, 110
        %v1109 = vpop.permute.xlu0 %1108
        %1110 = vrot.lane.b32.xlu0 %v1090, 110
        %v1111 = vpop.permute.xlu0 %1110
        %vm1112 = vcmask 900096
        %v1113 = vsel %vm1112, %v1099, %v1101
        %v1114 = vsel %vm1112, %v1101, %v1103
        %v1115 = vsel %vm1112, %v1103, %v1105
        %v1116 = vsel %vm1112, %v1105, %v1107
        %v1117 = vsel %vm1112, %v1107, %v1109
        %v1118 = vsel %vm1112, %v1109, %v1111
        %v1120 = vsel %vm359, %v1086, 0
        %v1122 = vsel %vm363, %v1113, 0
        %v1124 = vsel %vm363, %v1114, 0
        %v1126 = vsel %vm363, %v1115, 0
        %v1128 = vsel %vm363, %v1116, 0
        %v1130 = vsel %vm363, %v1117, 0
        %v1132 = vsel %vm363, %v1118, 0
        %1134 = vmatprep.subr.mxu0 %v1124
        %1135 = vmatpush1.msra.mxu0 %v1122
        %1136 = vmatprep.subr.mxu0 0.0
        %1137 = vmatpush1.msra.mxu0 0.0
        %1138 = vmatprep.subr.mxu0 0.0
        %1139 = vmatpush1.msra.mxu0 0.0
        %1140 = vmatprep.subr.mxu0 0.0
        %1141 = vmatpush1.msra.mxu0 0.0
        %1142 = vmatprep.subr.mxu0 0.0
        %1143 = vmatpush1.msra.mxu0 0.0
        %1144 = vmatprep.subr.mxu0 0.0
        %1145 = vmatpush1.msra.mxu0 0.0
        %1146 = vmatprep.subr.mxu0 0.0
        %1147 = vmatpush1.msra.mxu0 0.0
        %1148 = vmatprep.subr.mxu0 0.0
        %1149 = vmatpush1.msra.mxu0 0.0
        %1150 = vmatprep.subr.mxu0 0.0
        %1151 = vmatpush1.msra.mxu0 0.0
        %1152 = vmatprep.subr.mxu0 0.0
        %1153 = vmatpush1.msra.mxu0 0.0
        %1154 = vmatprep.subr.mxu0 0.0
        %1155 = vmatpush1.msra.mxu0 0.0
        %1156 = vmatprep.subr.mxu0 0.0
        %1157 = vmatpush1.msra.mxu0 0.0
        %1158 = vmatprep.subr.mxu0 0.0
        %1159 = vmatpush1.msra.mxu0 0.0
        %1160 = vmatprep.subr.mxu0 0.0
        %1161 = vmatpush1.msra.mxu0 0.0
        %1162 = vmatprep.subr.mxu0 0.0
        %1163 = vmatpush1.msra.mxu0 0.0
        %1164 = vmatprep.subr.mxu0 0.0
        %1165 = vmatpush1.msra.mxu0 0.0
        %1166 = vmatprep.subr.mxu0 0.0
        %1167 = vmatpush1.msra.mxu0 0.0
        %1168 = vmatprep.subr.mxu0 0.0
        %1169 = vmatpush1.msra.mxu0 0.0
        %1170 = vmatprep.subr.mxu0 0.0
        %1171 = vmatpush1.msra.mxu0 0.0
        %1172 = vmatprep.subr.mxu0 0.0
        %1173 = vmatpush1.msra.mxu0 0.0
        %1174 = vmatprep.subr.mxu0 0.0
        %1175 = vmatpush1.msra.mxu0 0.0
        %1176 = vmatprep.subr.mxu0 0.0
        %1177 = vmatpush1.msra.mxu0 0.0
        %1178 = vmatprep.subr.mxu0 0.0
        %1179 = vmatpush1.msra.mxu0 0.0
        %1180 = vmatprep.subr.mxu0 0.0
        %1181 = vmatpush1.msra.mxu0 0.0
        %1182 = vmatprep.subr.mxu0 0.0
        %1183 = vmatpush1.msra.mxu0 0.0
        %1184 = vmatprep.subr.mxu0 0.0
        %1185 = vmatpush1.msra.mxu0 0.0
        %1186 = vmatprep.subr.mxu0 0.0
        %1187 = vmatpush1.msra.mxu0 0.0
        %1188 = vmatprep.subr.mxu0 0.0
        %1189 = vmatpush1.msra.mxu0 0.0
        %1190 = vmatprep.subr.mxu0 0.0
        %1191 = vmatpush1.msra.mxu0 0.0
        %1192 = vmatprep.subr.mxu0 0.0
        %1193 = vmatpush1.msra.mxu0 0.0
        %1194 = vmatprep.subr.mxu0 0.0
        %1195 = vmatpush1.msra.mxu0 0.0
        %1196 = vmatprep.subr.mxu0 0.0
        %1197 = vmatpush1.msra.mxu0 0.0
        %1198 = vmatprep.mubr.f32.mxu0 0.0
        %1199 = vmatmul.mubr.f32.gmra.mrb[0].mxu0 %v1120
        %v1200 = vpop.f32.mrb[0].mxu0
        %v1201 = vadd.f32 0.0, %v1200
        %v1202 = vpop.f32.mrb[0].mxu0
        %v1203 = vadd.f32 0.0, %v1202
        %1204 = vdwg.mxu0
        %1205 = vmatprep.subr.mxu0 %v1128
        %1206 = vmatpush1.msra.mxu0 %v1126
        %1207 = vmatprep.subr.mxu0 0.0
        %1208 = vmatpush1.msra.mxu0 0.0
        %1209 = vmatprep.subr.mxu0 0.0
        %1210 = vmatpush1.msra.mxu0 0.0
        %1211 = vmatprep.subr.mxu0 0.0
        %1212 = vmatpush1.msra.mxu0 0.0
        %1213 = vmatprep.subr.mxu0 0.0
        %1214 = vmatpush1.msra.mxu0 0.0
        %1215 = vmatprep.subr.mxu0 0.0
        %1216 = vmatpush1.msra.mxu0 0.0
        %1217 = vmatprep.subr.mxu0 0.0
        %1218 = vmatpush1.msra.mxu0 0.0
        %1219 = vmatprep.subr.mxu0 0.0
        %1220 = vmatpush1.msra.mxu0 0.0
        %1221 = vmatprep.subr.mxu0 0.0
        %1222 = vmatpush1.msra.mxu0 0.0
        %1223 = vmatprep.subr.mxu0 0.0
        %1224 = vmatpush1.msra.mxu0 0.0
        %1225 = vmatprep.subr.mxu0 0.0
        %1226 = vmatpush1.msra.mxu0 0.0
        %1227 = vmatprep.subr.mxu0 0.0
        %1228 = vmatpush1.msra.mxu0 0.0
        %1229 = vmatprep.subr.mxu0 0.0
        %1230 = vmatpush1.msra.mxu0 0.0
        %1231 = vmatprep.subr.mxu0 0.0
        %1232 = vmatpush1.msra.mxu0 0.0
        %1233 = vmatprep.subr.mxu0 0.0
        %1234 = vmatpush1.msra.mxu0 0.0
        %1235 = vmatprep.subr.mxu0 0.0
        %1236 = vmatpush1.msra.mxu0 0.0
        %1237 = vmatprep.subr.mxu0 0.0
        %1238 = vmatpush1.msra.mxu0 0.0
        %1239 = vmatprep.subr.mxu0 0.0
        %1240 = vmatpush1.msra.mxu0 0.0
        %1241 = vmatprep.subr.mxu0 0.0
        %1242 = vmatpush1.msra.mxu0 0.0
        %1243 = vmatprep.subr.mxu0 0.0
        %1244 = vmatpush1.msra.mxu0 0.0
        %1245 = vmatprep.subr.mxu0 0.0
        %1246 = vmatpush1.msra.mxu0 0.0
        %1247 = vmatprep.subr.mxu0 0.0
        %1248 = vmatpush1.msra.mxu0 0.0
        %1249 = vmatprep.subr.mxu0 0.0
        %1250 = vmatpush1.msra.mxu0 0.0
        %1251 = vmatprep.subr.mxu0 0.0
        %1252 = vmatpush1.msra.mxu0 0.0
        %1253 = vmatprep.subr.mxu0 0.0
        %1254 = vmatpush1.msra.mxu0 0.0
        %1255 = vmatprep.subr.mxu0 0.0
        %1256 = vmatpush1.msra.mxu0 0.0
        %1257 = vmatprep.subr.mxu0 0.0
        %1258 = vmatpush1.msra.mxu0 0.0
        %1259 = vmatprep.subr.mxu0 0.0
        %1260 = vmatpush1.msra.mxu0 0.0
        %1261 = vmatprep.subr.mxu0 0.0
        %1262 = vmatpush1.msra.mxu0 0.0
        %1263 = vmatprep.subr.mxu0 0.0
        %1264 = vmatpush1.msra.mxu0 0.0
        %1265 = vmatprep.subr.mxu0 0.0
        %1266 = vmatpush1.msra.mxu0 0.0
        %1267 = vmatprep.subr.mxu0 0.0
        %1268 = vmatpush1.msra.mxu0 0.0
        %1269 = vmatprep.mubr.f32.mxu0 0.0
        %1270 = vmatmul.mubr.f32.gmra.mrb[0].mxu0 %v1120
        %v1271 = vpop.f32.mrb[0].mxu0
        %v1272 = vadd.f32 0.0, %v1271
        %v1273 = vpop.f32.mrb[0].mxu0
        %v1274 = vadd.f32 0.0, %v1273
        %1275 = vdwg.mxu0
        %1276 = vmatprep.subr.mxu0 %v1132
        %1277 = vmatpush1.msra.mxu0 %v1130
        %1278 = vmatprep.subr.mxu0 0.0
        %1279 = vmatpush1.msra.mxu0 0.0
        %1280 = vmatprep.subr.mxu0 0.0
        %1281 = vmatpush1.msra.mxu0 0.0
        %1282 = vmatprep.subr.mxu0 0.0
        %1283 = vmatpush1.msra.mxu0 0.0
        %1284 = vmatprep.subr.mxu0 0.0
        %1285 = vmatpush1.msra.mxu0 0.0
        %1286 = vmatprep.subr.mxu0 0.0
        %1287 = vmatpush1.msra.mxu0 0.0
        %1288 = vmatprep.subr.mxu0 0.0
        %1289 = vmatpush1.msra.mxu0 0.0
        %1290 = vmatprep.subr.mxu0 0.0
        %1291 = vmatpush1.msra.mxu0 0.0
        %1292 = vmatprep.subr.mxu0 0.0
        %1293 = vmatpush1.msra.mxu0 0.0
        %1294 = vmatprep.subr.mxu0 0.0
        %1295 = vmatpush1.msra.mxu0 0.0
        %1296 = vmatprep.subr.mxu0 0.0
        %1297 = vmatpush1.msra.mxu0 0.0
        %1298 = vmatprep.subr.mxu0 0.0
        %1299 = vmatpush1.msra.mxu0 0.0
        %1300 = vmatprep.subr.mxu0 0.0
        %1301 = vmatpush1.msra.mxu0 0.0
        %1302 = vmatprep.subr.mxu0 0.0
        %1303 = vmatpush1.msra.mxu0 0.0
        %1304 = vmatprep.subr.mxu0 0.0
        %1305 = vmatpush1.msra.mxu0 0.0
        %1306 = vmatprep.subr.mxu0 0.0
        %1307 = vmatpush1.msra.mxu0 0.0
        %1308 = vmatprep.subr.mxu0 0.0
        %1309 = vmatpush1.msra.mxu0 0.0
        %1310 = vmatprep.subr.mxu0 0.0
        %1311 = vmatpush1.msra.mxu0 0.0
        %1312 = vmatprep.subr.mxu0 0.0
        %1313 = vmatpush1.msra.mxu0 0.0
        %1314 = vmatprep.subr.mxu0 0.0
        %1315 = vmatpush1.msra.mxu0 0.0
        %1316 = vmatprep.subr.mxu0 0.0
        %1317 = vmatpush1.msra.mxu0 0.0
        %1318 = vmatprep.subr.mxu0 0.0
        %1319 = vmatpush1.msra.mxu0 0.0
        %1320 = vmatprep.subr.mxu0 0.0
        %1321 = vmatpush1.msra.mxu0 0.0
        %1322 = vmatprep.subr.mxu0 0.0
        %1323 = vmatpush1.msra.mxu0 0.0
        %1324 = vmatprep.subr.mxu0 0.0
        %1325 = vmatpush1.msra.mxu0 0.0
        %1326 = vmatprep.subr.mxu0 0.0
        %1327 = vmatpush1.msra.mxu0 0.0
        %1328 = vmatprep.subr.mxu0 0.0
        %1329 = vmatpush1.msra.mxu0 0.0
        %1330 = vmatprep.subr.mxu0 0.0
        %1331 = vmatpush1.msra.mxu0 0.0
        %1332 = vmatprep.subr.mxu0 0.0
        %1333 = vmatpush1.msra.mxu0 0.0
        %1334 = vmatprep.subr.mxu0 0.0
        %1335 = vmatpush1.msra.mxu0 0.0
        %1336 = vmatprep.subr.mxu0 0.0
        %1337 = vmatpush1.msra.mxu0 0.0
        %1338 = vmatprep.subr.mxu0 0.0
        %1339 = vmatpush1.msra.mxu0 0.0
        %1340 = vmatprep.mubr.f32.mxu0 0.0
        %1341 = vmatmul.mubr.f32.gmra.mrb[0].mxu0 %v1120
        %v1342 = vpop.f32.mrb[0].mxu0
        %v1343 = vadd.f32 0.0, %v1342
        %v1344 = vpop.f32.mrb[0].mxu0
        %v1345 = vadd.f32 0.0, %v1344
        %1346 = vdwg.mxu0
        %v1347 = vadd.f32 %v1079, %v1201
        %v1348 = vadd.f32 %v1080, %v1203
        %v1349 = vadd.f32 %v1081, %v1272
        %v1350 = vadd.f32 %v1082, %v1274
        %v1351 = vadd.f32 %v1083, %v1343
        %v1352 = vadd.f32 %v1084, %v1345
        %s1353 = scalar_lea.vmem %s298, 16
        %v1354 = vld [vmem:[%s1353] sm:$0xf]
        %v1355 = vld [vmem:[%s0] sm:$0xff]
        %v1356 = vld [vmem:[%s0 + $0x8] sm:$0xff]
        %v1357 = vld [vmem:[%s0 + $0x10] sm:$0xff]
        %v1358 = vld [vmem:[%s0 + $0x18] sm:$0xf]
        %v1363 = vcombine.high %v1355, %v1355
        %v1364 = vcombine.high %v1356, %v1356
        %v1365 = vcombine.high %v1357, %v1357
        %1366 = vrot.lane.b32.xlu0 %v1355, 109
        %v1367 = vpop.permute.xlu0 %1366
        %1368 = vrot.lane.b32.xlu0 %v1363, 109
        %v1369 = vpop.permute.xlu0 %1368
        %1370 = vrot.lane.b32.xlu0 %v1356, 109
        %v1371 = vpop.permute.xlu0 %1370
        %1372 = vrot.lane.b32.xlu0 %v1364, 109
        %v1373 = vpop.permute.xlu0 %1372
        %1374 = vrot.lane.b32.xlu0 %v1357, 109
        %v1375 = vpop.permute.xlu0 %1374
        %1376 = vrot.lane.b32.xlu0 %v1365, 109
        %v1377 = vpop.permute.xlu0 %1376
        %1378 = vrot.lane.b32.xlu0 %v1358, 109
        %v1379 = vpop.permute.xlu0 %1378
        %vm1380 = vcmask 891904
        %v1381 = vsel %vm1380, %v1367, %v1369
        %v1382 = vsel %vm1380, %v1369, %v1371
        %v1383 = vsel %vm1380, %v1371, %v1373
        %v1384 = vsel %vm1380, %v1373, %v1375
        %v1385 = vsel %vm1380, %v1375, %v1377
        %v1386 = vsel %vm1380, %v1377, %v1379
        %v1388 = vsel %vm359, %v1354, 0
        %v1390 = vsel %vm363, %v1381, 0
        %v1392 = vsel %vm363, %v1382, 0
        %v1394 = vsel %vm363, %v1383, 0
        %v1396 = vsel %vm363, %v1384, 0
        %v1398 = vsel %vm363, %v1385, 0
        %v1400 = vsel %vm363, %v1386, 0
        %1402 = vmatprep.subr.mxu0 %v1392
        %1403 = vmatpush1.msra.mxu0 %v1390
        %1404 = vmatprep.subr.mxu0 0.0
        %1405 = vmatpush1.msra.mxu0 0.0
        %1406 = vmatprep.subr.mxu0 0.0
        %1407 = vmatpush1.msra.mxu0 0.0
        %1408 = vmatprep.subr.mxu0 0.0
        %1409 = vmatpush1.msra.mxu0 0.0
        %1410 = vmatprep.subr.mxu0 0.0
        %1411 = vmatpush1.msra.mxu0 0.0
        %1412 = vmatprep.subr.mxu0 0.0
        %1413 = vmatpush1.msra.mxu0 0.0
        %1414 = vmatprep.subr.mxu0 0.0
        %1415 = vmatpush1.msra.mxu0 0.0
        %1416 = vmatprep.subr.mxu0 0.0
        %1417 = vmatpush1.msra.mxu0 0.0
        %1418 = vmatprep.subr.mxu0 0.0
        %1419 = vmatpush1.msra.mxu0 0.0
        %1420 = vmatprep.subr.mxu0 0.0
        %1421 = vmatpush1.msra.mxu0 0.0
        %1422 = vmatprep.subr.mxu0 0.0
        %1423 = vmatpush1.msra.mxu0 0.0
        %1424 = vmatprep.subr.mxu0 0.0
        %1425 = vmatpush1.msra.mxu0 0.0
        %1426 = vmatprep.subr.mxu0 0.0
        %1427 = vmatpush1.msra.mxu0 0.0
        %1428 = vmatprep.subr.mxu0 0.0
        %1429 = vmatpush1.msra.mxu0 0.0
        %1430 = vmatprep.subr.mxu0 0.0
        %1431 = vmatpush1.msra.mxu0 0.0
        %1432 = vmatprep.subr.mxu0 0.0
        %1433 = vmatpush1.msra.mxu0 0.0
        %1434 = vmatprep.subr.mxu0 0.0
        %1435 = vmatpush1.msra.mxu0 0.0
        %1436 = vmatprep.subr.mxu0 0.0
        %1437 = vmatpush1.msra.mxu0 0.0
        %1438 = vmatprep.subr.mxu0 0.0
        %1439 = vmatpush1.msra.mxu0 0.0
        %1440 = vmatprep.subr.mxu0 0.0
        %1441 = vmatpush1.msra.mxu0 0.0
        %1442 = vmatprep.subr.mxu0 0.0
        %1443 = vmatpush1.msra.mxu0 0.0
        %1444 = vmatprep.subr.mxu0 0.0
        %1445 = vmatpush1.msra.mxu0 0.0
        %1446 = vmatprep.subr.mxu0 0.0
        %1447 = vmatpush1.msra.mxu0 0.0
        %1448 = vmatprep.subr.mxu0 0.0
        %1449 = vmatpush1.msra.mxu0 0.0
        %1450 = vmatprep.subr.mxu0 0.0
        %1451 = vmatpush1.msra.mxu0 0.0
        %1452 = vmatprep.subr.mxu0 0.0
        %1453 = vmatpush1.msra.mxu0 0.0
        %1454 = vmatprep.subr.mxu0 0.0
        %1455 = vmatpush1.msra.mxu0 0.0
        %1456 = vmatprep.subr.mxu0 0.0
        %1457 = vmatpush1.msra.mxu0 0.0
        %1458 = vmatprep.subr.mxu0 0.0
        %1459 = vmatpush1.msra.mxu0 0.0
        %1460 = vmatprep.subr.mxu0 0.0
        %1461 = vmatpush1.msra.mxu0 0.0
        %1462 = vmatprep.subr.mxu0 0.0
        %1463 = vmatpush1.msra.mxu0 0.0
        %1464 = vmatprep.subr.mxu0 0.0
        %1465 = vmatpush1.msra.mxu0 0.0
        %1466 = vmatprep.mubr.f32.mxu0 0.0
        %1467 = vmatmul.mubr.f32.gmra.mrb[0].mxu0 %v1388
        %v1468 = vpop.f32.mrb[0].mxu0
        %v1469 = vadd.f32 0.0, %v1468
        %v1470 = vpop.f32.mrb[0].mxu0
        %v1471 = vadd.f32 0.0, %v1470
        %1472 = vdwg.mxu0
        %1473 = vmatprep.subr.mxu0 %v1396
        %1474 = vmatpush1.msra.mxu0 %v1394
        %1475 = vmatprep.subr.mxu0 0.0
        %1476 = vmatpush1.msra.mxu0 0.0
        %1477 = vmatprep.subr.mxu0 0.0
        %1478 = vmatpush1.msra.mxu0 0.0
        %1479 = vmatprep.subr.mxu0 0.0
        %1480 = vmatpush1.msra.mxu0 0.0
        %1481 = vmatprep.subr.mxu0 0.0
        %1482 = vmatpush1.msra.mxu0 0.0
        %1483 = vmatprep.subr.mxu0 0.0
        %1484 = vmatpush1.msra.mxu0 0.0
        %1485 = vmatprep.subr.mxu0 0.0
        %1486 = vmatpush1.msra.mxu0 0.0
        %1487 = vmatprep.subr.mxu0 0.0
        %1488 = vmatpush1.msra.mxu0 0.0
        %1489 = vmatprep.subr.mxu0 0.0
        %1490 = vmatpush1.msra.mxu0 0.0
        %1491 = vmatprep.subr.mxu0 0.0
        %1492 = vmatpush1.msra.mxu0 0.0
        %1493 = vmatprep.subr.mxu0 0.0
        %1494 = vmatpush1.msra.mxu0 0.0
        %1495 = vmatprep.subr.mxu0 0.0
        %1496 = vmatpush1.msra.mxu0 0.0
        %1497 = vmatprep.subr.mxu0 0.0
        %1498 = vmatpush1.msra.mxu0 0.0
        %1499 = vmatprep.subr.mxu0 0.0
        %1500 = vmatpush1.msra.mxu0 0.0
        %1501 = vmatprep.subr.mxu0 0.0
        %1502 = vmatpush1.msra.mxu0 0.0
        %1503 = vmatprep.subr.mxu0 0.0
        %1504 = vmatpush1.msra.mxu0 0.0
        %1505 = vmatprep.subr.mxu0 0.0
        %1506 = vmatpush1.msra.mxu0 0.0
        %1507 = vmatprep.subr.mxu0 0.0
        %1508 = vmatpush1.msra.mxu0 0.0
        %1509 = vmatprep.subr.mxu0 0.0
        %1510 = vmatpush1.msra.mxu0 0.0
        %1511 = vmatprep.subr.mxu0 0.0
        %1512 = vmatpush1.msra.mxu0 0.0
        %1513 = vmatprep.subr.mxu0 0.0
        %1514 = vmatpush1.msra.mxu0 0.0
        %1515 = vmatprep.subr.mxu0 0.0
        %1516 = vmatpush1.msra.mxu0 0.0
        %1517 = vmatprep.subr.mxu0 0.0
        %1518 = vmatpush1.msra.mxu0 0.0
        %1519 = vmatprep.subr.mxu0 0.0
        %1520 = vmatpush1.msra.mxu0 0.0
        %1521 = vmatprep.subr.mxu0 0.0
        %1522 = vmatpush1.msra.mxu0 0.0
        %1523 = vmatprep.subr.mxu0 0.0
        %1524 = vmatpush1.msra.mxu0 0.0
        %1525 = vmatprep.subr.mxu0 0.0
        %1526 = vmatpush1.msra.mxu0 0.0
        %1527 = vmatprep.subr.mxu0 0.0
        %1528 = vmatpush1.msra.mxu0 0.0
        %1529 = vmatprep.subr.mxu0 0.0
        %1530 = vmatpush1.msra.mxu0 0.0
        %1531 = vmatprep.subr.mxu0 0.0
        %1532 = vmatpush1.msra.mxu0 0.0
        %1533 = vmatprep.subr.mxu0 0.0
        %1534 = vmatpush1.msra.mxu0 0.0
        %1535 = vmatprep.subr.mxu0 0.0
        %1536 = vmatpush1.msra.mxu0 0.0
        %1537 = vmatprep.mubr.f32.mxu0 0.0
        %1538 = vmatmul.mubr.f32.gmra.mrb[0].mxu0 %v1388
        %v1539 = vpop.f32.mrb[0].mxu0
        %v1540 = vadd.f32 0.0, %v1539
        %v1541 = vpop.f32.mrb[0].mxu0
        %v1542 = vadd.f32 0.0, %v1541
        %1543 = vdwg.mxu0
        %1544 = vmatprep.subr.mxu0 %v1400
        %1545 = vmatpush1.msra.mxu0 %v1398
        %1546 = vmatprep.subr.mxu0 0.0
        %1547 = vmatpush1.msra.mxu0 0.0
        %1548 = vmatprep.subr.mxu0 0.0
        %1549 = vmatpush1.msra.mxu0 0.0
        %1550 = vmatprep.subr.mxu0 0.0
        %1551 = vmatpush1.msra.mxu0 0.0
        %1552 = vmatprep.subr.mxu0 0.0
        %1553 = vmatpush1.msra.mxu0 0.0
        %1554 = vmatprep.subr.mxu0 0.0
        %1555 = vmatpush1.msra.mxu0 0.0
        %1556 = vmatprep.subr.mxu0 0.0
        %1557 = vmatpush1.msra.mxu0 0.0
        %1558 = vmatprep.subr.mxu0 0.0
        %1559 = vmatpush1.msra.mxu0 0.0
        %1560 = vmatprep.subr.mxu0 0.0
        %1561 = vmatpush1.msra.mxu0 0.0
        %1562 = vmatprep.subr.mxu0 0.0
        %1563 = vmatpush1.msra.mxu0 0.0
        %1564 = vmatprep.subr.mxu0 0.0
        %1565 = vmatpush1.msra.mxu0 0.0
        %1566 = vmatprep.subr.mxu0 0.0
        %1567 = vmatpush1.msra.mxu0 0.0
        %1568 = vmatprep.subr.mxu0 0.0
        %1569 = vmatpush1.msra.mxu0 0.0
        %1570 = vmatprep.subr.mxu0 0.0
        %1571 = vmatpush1.msra.mxu0 0.0
        %1572 = vmatprep.subr.mxu0 0.0
        %1573 = vmatpush1.msra.mxu0 0.0
        %1574 = vmatprep.subr.mxu0 0.0
        %1575 = vmatpush1.msra.mxu0 0.0
        %1576 = vmatprep.subr.mxu0 0.0
        %1577 = vmatpush1.msra.mxu0 0.0
        %1578 = vmatprep.subr.mxu0 0.0
        %1579 = vmatpush1.msra.mxu0 0.0
        %1580 = vmatprep.subr.mxu0 0.0
        %1581 = vmatpush1.msra.mxu0 0.0
        %1582 = vmatprep.subr.mxu0 0.0
        %1583 = vmatpush1.msra.mxu0 0.0
        %1584 = vmatprep.subr.mxu0 0.0
        %1585 = vmatpush1.msra.mxu0 0.0
        %1586 = vmatprep.subr.mxu0 0.0
        %1587 = vmatpush1.msra.mxu0 0.0
        %1588 = vmatprep.subr.mxu0 0.0
        %1589 = vmatpush1.msra.mxu0 0.0
        %1590 = vmatprep.subr.mxu0 0.0
        %1591 = vmatpush1.msra.mxu0 0.0
        %1592 = vmatprep.subr.mxu0 0.0
        %1593 = vmatpush1.msra.mxu0 0.0
        %1594 = vmatprep.subr.mxu0 0.0
        %1595 = vmatpush1.msra.mxu0 0.0
        %1596 = vmatprep.subr.mxu0 0.0
        %1597 = vmatpush1.msra.mxu0 0.0
        %1598 = vmatprep.subr.mxu0 0.0
        %1599 = vmatpush1.msra.mxu0 0.0
        %1600 = vmatprep.subr.mxu0 0.0
        %1601 = vmatpush1.msra.mxu0 0.0
        %1602 = vmatprep.subr.mxu0 0.0
        %1603 = vmatpush1.msra.mxu0 0.0
        %1604 = vmatprep.subr.mxu0 0.0
        %1605 = vmatpush1.msra.mxu0 0.0
        %1606 = vmatprep.subr.mxu0 0.0
        %1607 = vmatpush1.msra.mxu0 0.0
        %1608 = vmatprep.mubr.f32.mxu0 0.0
        %1609 = vmatmul.mubr.f32.gmra.mrb[0].mxu0 %v1388
        %v1610 = vpop.f32.mrb[0].mxu0
        %v1611 = vadd.f32 0.0, %v1610
        %v1612 = vpop.f32.mrb[0].mxu0
        %v1613 = vadd.f32 0.0, %v1612
        %1614 = vdwg.mxu0
        %v1615 = vadd.f32 %v1347, %v1469
        %v1616 = vadd.f32 %v1348, %v1471
        %v1617 = vadd.f32 %v1349, %v1540
        %v1618 = vadd.f32 %v1350, %v1542
        %v1619 = vadd.f32 %v1351, %v1611
        %v1620 = vadd.f32 %v1352, %v1613
        %s1621 = scalar_lea.vmem %s298, 20
        %v1622 = vld [vmem:[%s1621] sm:$0xf]
        %v1623 = vld [vmem:[%s0] sm:$0xff]
        %v1624 = vld [vmem:[%s0 + $0x8] sm:$0xff]
        %v1625 = vld [vmem:[%s0 + $0x10] sm:$0xff]
        %v1626 = vld [vmem:[%s0 + $0x18] sm:$0xf]
        %v1631 = vcombine.high %v1623, %v1623
        %v1632 = vcombine.high %v1624, %v1624
        %v1633 = vcombine.high %v1625, %v1625
        %1634 = vrot.lane.b32.xlu0 %v1623, 108
        %v1635 = vpop.permute.xlu0 %1634
        %1636 = vrot.lane.b32.xlu0 %v1631, 108
        %v1637 = vpop.permute.xlu0 %1636
        %1638 = vrot.lane.b32.xlu0 %v1624, 108
        %v1639 = vpop.permute.xlu0 %1638
        %1640 = vrot.lane.b32.xlu0 %v1632, 108
        %v1641 = vpop.permute.xlu0 %1640
        %1642 = vrot.lane.b32.xlu0 %v1625, 108
        %v1643 = vpop.permute.xlu0 %1642
        %1644 = vrot.lane.b32.xlu0 %v1633, 108
        %v1645 = vpop.permute.xlu0 %1644
        %1646 = vrot.lane.b32.xlu0 %v1626, 108
        %v1647 = vpop.permute.xlu0 %1646
        %vm1648 = vcmask 883712
        %v1649 = vsel %vm1648, %v1635, %v1637
        %v1650 = vsel %vm1648, %v1637, %v1639
        %v1651 = vsel %vm1648, %v1639, %v1641
        %v1652 = vsel %vm1648, %v1641, %v1643
        %v1653 = vsel %vm1648, %v1643, %v1645
        %v1654 = vsel %vm1648, %v1645, %v1647
        %v1656 = vsel %vm359, %v1622, 0
        %v1658 = vsel %vm363, %v1649, 0
        %v1660 = vsel %vm363, %v1650, 0
        %v1662 = vsel %vm363, %v1651, 0
        %v1664 = vsel %vm363, %v1652, 0
        %v1666 = vsel %vm363, %v1653, 0
        %v1668 = vsel %vm363, %v1654, 0
        %1670 = vmatprep.subr.mxu0 %v1660
        %1671 = vmatpush1.msra.mxu0 %v1658
        %1672 = vmatprep.subr.mxu0 0.0
        %1673 = vmatpush1.msra.mxu0 0.0
        %1674 = vmatprep.subr.mxu0 0.0
        %1675 = vmatpush1.msra.mxu0 0.0
        %1676 = vmatprep.subr.mxu0 0.0
        %1677 = vmatpush1.msra.mxu0 0.0
        %1678 = vmatprep.subr.mxu0 0.0
        %1679 = vmatpush1.msra.mxu0 0.0
        %1680 = vmatprep.subr.mxu0 0.0
        %1681 = vmatpush1.msra.mxu0 0.0
        %1682 = vmatprep.subr.mxu0 0.0
        %1683 = vmatpush1.msra.mxu0 0.0
        %1684 = vmatprep.subr.mxu0 0.0
        %1685 = vmatpush1.msra.mxu0 0.0
        %1686 = vmatprep.subr.mxu0 0.0
        %1687 = vmatpush1.msra.mxu0 0.0
        %1688 = vmatprep.subr.mxu0 0.0
        %1689 = vmatpush1.msra.mxu0 0.0
        %1690 = vmatprep.subr.mxu0 0.0
        %1691 = vmatpush1.msra.mxu0 0.0
        %1692 = vmatprep.subr.mxu0 0.0
        %1693 = vmatpush1.msra.mxu0 0.0
        %1694 = vmatprep.subr.mxu0 0.0
        %1695 = vmatpush1.msra.mxu0 0.0
        %1696 = vmatprep.subr.mxu0 0.0
        %1697 = vmatpush1.msra.mxu0 0.0
        %1698 = vmatprep.subr.mxu0 0.0
        %1699 = vmatpush1.msra.mxu0 0.0
        %1700 = vmatprep.subr.mxu0 0.0
        %1701 = vmatpush1.msra.mxu0 0.0
        %1702 = vmatprep.subr.mxu0 0.0
        %1703 = vmatpush1.msra.mxu0 0.0
        %1704 = vmatprep.subr.mxu0 0.0
        %1705 = vmatpush1.msra.mxu0 0.0
        %1706 = vmatprep.subr.mxu0 0.0
        %1707 = vmatpush1.msra.mxu0 0.0
        %1708 = vmatprep.subr.mxu0 0.0
        %1709 = vmatpush1.msra.mxu0 0.0
        %1710 = vmatprep.subr.mxu0 0.0
        %1711 = vmatpush1.msra.mxu0 0.0
        %1712 = vmatprep.subr.mxu0 0.0
        %1713 = vmatpush1.msra.mxu0 0.0
        %1714 = vmatprep.subr.mxu0 0.0
        %1715 = vmatpush1.msra.mxu0 0.0
        %1716 = vmatprep.subr.mxu0 0.0
        %1717 = vmatpush1.msra.mxu0 0.0
        %1718 = vmatprep.subr.mxu0 0.0
        %1719 = vmatpush1.msra.mxu0 0.0
        %1720 = vmatprep.subr.mxu0 0.0
        %1721 = vmatpush1.msra.mxu0 0.0
        %1722 = vmatprep.subr.mxu0 0.0
        %1723 = vmatpush1.msra.mxu0 0.0
        %1724 = vmatprep.subr.mxu0 0.0
        %1725 = vmatpush1.msra.mxu0 0.0
        %1726 = vmatprep.subr.mxu0 0.0
        %1727 = vmatpush1.msra.mxu0 0.0
        %1728 = vmatprep.subr.mxu0 0.0
        %1729 = vmatpush1.msra.mxu0 0.0
        %1730 = vmatprep.subr.mxu0 0.0
        %1731 = vmatpush1.msra.mxu0 0.0
        %1732 = vmatprep.subr.mxu0 0.0
        %1733 = vmatpush1.msra.mxu0 0.0
        %1734 = vmatprep.mubr.f32.mxu0 0.0
        %1735 = vmatmul.mubr.f32.gmra.mrb[0].mxu0 %v1656
        %v1736 = vpop.f32.mrb[0].mxu0
        %v1737 = vadd.f32 0.0, %v1736
        %v1738 = vpop.f32.mrb[0].mxu0
        %v1739 = vadd.f32 0.0, %v1738
        %1740 = vdwg.mxu0
        %1741 = vmatprep.subr.mxu0 %v1664
        %1742 = vmatpush1.msra.mxu0 %v1662
        %1743 = vmatprep.subr.mxu0 0.0
        %1744 = vmatpush1.msra.mxu0 0.0
        %1745 = vmatprep.subr.mxu0 0.0
        %1746 = vmatpush1.msra.mxu0 0.0
        %1747 = vmatprep.subr.mxu0 0.0
        %1748 = vmatpush1.msra.mxu0 0.0
        %1749 = vmatprep.subr.mxu0 0.0
        %1750 = vmatpush1.msra.mxu0 0.0
        %1751 = vmatprep.subr.mxu0 0.0
        %1752 = vmatpush1.msra.mxu0 0.0
        %1753 = vmatprep.subr.mxu0 0.0
        %1754 = vmatpush1.msra.mxu0 0.0
        %1755 = vmatprep.subr.mxu0 0.0
        %1756 = vmatpush1.msra.mxu0 0.0
        %1757 = vmatprep.subr.mxu0 0.0
        %1758 = vmatpush1.msra.mxu0 0.0
        %1759 = vmatprep.subr.mxu0 0.0
        %1760 = vmatpush1.msra.mxu0 0.0
        %1761 = vmatprep.subr.mxu0 0.0
        %1762 = vmatpush1.msra.mxu0 0.0
        %1763 = vmatprep.subr.mxu0 0.0
        %1764 = vmatpush1.msra.mxu0 0.0
        %1765 = vmatprep.subr.mxu0 0.0
        %1766 = vmatpush1.msra.mxu0 0.0
        %1767 = vmatprep.subr.mxu0 0.0
        %1768 = vmatpush1.msra.mxu0 0.0
        %1769 = vmatprep.subr.mxu0 0.0
        %1770 = vmatpush1.msra.mxu0 0.0
        %1771 = vmatprep.subr.mxu0 0.0
        %1772 = vmatpush1.msra.mxu0 0.0
        %1773 = vmatprep.subr.mxu0 0.0
        %1774 = vmatpush1.msra.mxu0 0.0
        %1775 = vmatprep.subr.mxu0 0.0
        %1776 = vmatpush1.msra.mxu0 0.0
        %1777 = vmatprep.subr.mxu0 0.0
        %1778 = vmatpush1.msra.mxu0 0.0
        %1779 = vmatprep.subr.mxu0 0.0
        %1780 = vmatpush1.msra.mxu0 0.0
        %1781 = vmatprep.subr.mxu0 0.0
        %1782 = vmatpush1.msra.mxu0 0.0
        %1783 = vmatprep.subr.mxu0 0.0
        %1784 = vmatpush1.msra.mxu0 0.0
        %1785 = vmatprep.subr.mxu0 0.0
        %1786 = vmatpush1.msra.mxu0 0.0
        %1787 = vmatprep.subr.mxu0 0.0
        %1788 = vmatpush1.msra.mxu0 0.0
        %1789 = vmatprep.subr.mxu0 0.0
        %1790 = vmatpush1.msra.mxu0 0.0
        %1791 = vmatprep.subr.mxu0 0.0
        %1792 = vmatpush1.msra.mxu0 0.0
        %1793 = vmatprep.subr.mxu0 0.0
        %1794 = vmatpush1.msra.mxu0 0.0
        %1795 = vmatprep.subr.mxu0 0.0
        %1796 = vmatpush1.msra.mxu0 0.0
        %1797 = vmatprep.subr.mxu0 0.0
        %1798 = vmatpush1.msra.mxu0 0.0
        %1799 = vmatprep.subr.mxu0 0.0
        %1800 = vmatpush1.msra.mxu0 0.0
        %1801 = vmatprep.subr.mxu0 0.0
        %1802 = vmatpush1.msra.mxu0 0.0
        %1803 = vmatprep.subr.mxu0 0.0
        %1804 = vmatpush1.msra.mxu0 0.0
        %1805 = vmatprep.mubr.f32.mxu0 0.0
        %1806 = vmatmul.mubr.f32.gmra.mrb[0].mxu0 %v1656
        %v1807 = vpop.f32.mrb[0].mxu0
        %v1808 = vadd.f32 0.0, %v1807
        %v1809 = vpop.f32.mrb[0].mxu0
        %v1810 = vadd.f32 0.0, %v1809
        %1811 = vdwg.mxu0
        %1812 = vmatprep.subr.mxu0 %v1668
        %1813 = vmatpush1.msra.mxu0 %v1666
        %1814 = vmatprep.subr.mxu0 0.0
        %1815 = vmatpush1.msra.mxu0 0.0
        %1816 = vmatprep.subr.mxu0 0.0
        %1817 = vmatpush1.msra.mxu0 0.0
        %1818 = vmatprep.subr.mxu0 0.0
        %1819 = vmatpush1.msra.mxu0 0.0
        %1820 = vmatprep.subr.mxu0 0.0
        %1821 = vmatpush1.msra.mxu0 0.0
        %1822 = vmatprep.subr.mxu0 0.0
        %1823 = vmatpush1.msra.mxu0 0.0
        %1824 = vmatprep.subr.mxu0 0.0
        %1825 = vmatpush1.msra.mxu0 0.0
        %1826 = vmatprep.subr.mxu0 0.0
        %1827 = vmatpush1.msra.mxu0 0.0
        %1828 = vmatprep.subr.mxu0 0.0
        %1829 = vmatpush1.msra.mxu0 0.0
        %1830 = vmatprep.subr.mxu0 0.0
        %1831 = vmatpush1.msra.mxu0 0.0
        %1832 = vmatprep.subr.mxu0 0.0
        %1833 = vmatpush1.msra.mxu0 0.0
        %1834 = vmatprep.subr.mxu0 0.0
        %1835 = vmatpush1.msra.mxu0 0.0
        %1836 = vmatprep.subr.mxu0 0.0
        %1837 = vmatpush1.msra.mxu0 0.0
        %1838 = vmatprep.subr.mxu0 0.0
        %1839 = vmatpush1.msra.mxu0 0.0
        %1840 = vmatprep.subr.mxu0 0.0
        %1841 = vmatpush1.msra.mxu0 0.0
        %1842 = vmatprep.subr.mxu0 0.0
        %1843 = vmatpush1.msra.mxu0 0.0
        %1844 = vmatprep.subr.mxu0 0.0
        %1845 = vmatpush1.msra.mxu0 0.0
        %1846 = vmatprep.subr.mxu0 0.0
        %1847 = vmatpush1.msra.mxu0 0.0
        %1848 = vmatprep.subr.mxu0 0.0
        %1849 = vmatpush1.msra.mxu0 0.0
        %1850 = vmatprep.subr.mxu0 0.0
        %1851 = vmatpush1.msra.mxu0 0.0
        %1852 = vmatprep.subr.mxu0 0.0
        %1853 = vmatpush1.msra.mxu0 0.0
        %1854 = vmatprep.subr.mxu0 0.0
        %1855 = vmatpush1.msra.mxu0 0.0
        %1856 = vmatprep.subr.mxu0 0.0
        %1857 = vmatpush1.msra.mxu0 0.0
        %1858 = vmatprep.subr.mxu0 0.0
        %1859 = vmatpush1.msra.mxu0 0.0
        %1860 = vmatprep.subr.mxu0 0.0
        %1861 = vmatpush1.msra.mxu0 0.0
        %1862 = vmatprep.subr.mxu0 0.0
        %1863 = vmatpush1.msra.mxu0 0.0
        %1864 = vmatprep.subr.mxu0 0.0
        %1865 = vmatpush1.msra.mxu0 0.0
        %1866 = vmatprep.subr.mxu0 0.0
        %1867 = vmatpush1.msra.mxu0 0.0
        %1868 = vmatprep.subr.mxu0 0.0
        %1869 = vmatpush1.msra.mxu0 0.0
        %1870 = vmatprep.subr.mxu0 0.0
        %1871 = vmatpush1.msra.mxu0 0.0
        %1872 = vmatprep.subr.mxu0 0.0
        %1873 = vmatpush1.msra.mxu0 0.0
        %1874 = vmatprep.subr.mxu0 0.0
        %1875 = vmatpush1.msra.mxu0 0.0
        %1876 = vmatprep.mubr.f32.mxu0 0.0
        %1877 = vmatmul.mubr.f32.gmra.mrb[0].mxu0 %v1656
        %v1878 = vpop.f32.mrb[0].mxu0
        %v1879 = vadd.f32 0.0, %v1878
        %v1880 = vpop.f32.mrb[0].mxu0
        %v1881 = vadd.f32 0.0, %v1880
        %1882 = vdwg.mxu0
        %v1883 = vadd.f32 %v1615, %v1737
        %v1884 = vadd.f32 %v1616, %v1739
        %v1885 = vadd.f32 %v1617, %v1808
        %v1886 = vadd.f32 %v1618, %v1810
        %v1887 = vadd.f32 %v1619, %v1879
        %v1888 = vadd.f32 %v1620, %v1881
        %s1889 = scalar_lea.vmem %s298, 24
        %v1890 = vld [vmem:[%s1889] sm:$0xf]
        %v1891 = vld [vmem:[%s0] sm:$0xff]
        %v1892 = vld [vmem:[%s0 + $0x8] sm:$0xff]
        %v1893 = vld [vmem:[%s0 + $0x10] sm:$0xff]
        %v1894 = vld [vmem:[%s0 + $0x18] sm:$0xf]
        %v1899 = vcombine.high %v1891, %v1891
        %v1900 = vcombine.high %v1892, %v1892
        %v1901 = vcombine.high %v1893, %v1893
        %1902 = vrot.lane.b32.xlu0 %v1891, 92
        %v1903 = vpop.permute.xlu0 %1902
        %1904 = vrot.lane.b32.xlu0 %v1899, 92
        %v1905 = vpop.permute.xlu0 %1904
        %1906 = vrot.lane.b32.xlu0 %v1892, 92
        %v1907 = vpop.permute.xlu0 %1906
        %1908 = vrot.lane.b32.xlu0 %v1900, 92
        %v1909 = vpop.permute.xlu0 %1908
        %1910 = vrot.lane.b32.xlu0 %v1893, 92
        %v1911 = vpop.permute.xlu0 %1910
        %1912 = vrot.lane.b32.xlu0 %v1901, 92
        %v1913 = vpop.permute.xlu0 %1912
        %1914 = vrot.lane.b32.xlu0 %v1894, 92
        %v1915 = vpop.permute.xlu0 %1914
        %vm1916 = vcmask 752640
        %v1917 = vsel %vm1916, %v1903, %v1905
        %v1918 = vsel %vm1916, %v1905, %v1907
        %v1919 = vsel %vm1916, %v1907, %v1909
        %v1920 = vsel %vm1916, %v1909, %v1911
        %v1921 = vsel %vm1916, %v1911, %v1913
        %v1922 = vsel %vm1916, %v1913, %v1915
        %v1924 = vsel %vm359, %v1890, 0
        %v1926 = vsel %vm363, %v1917, 0
        %v1928 = vsel %vm363, %v1918, 0
        %v1930 = vsel %vm363, %v1919, 0
        %v1932 = vsel %vm363, %v1920, 0
        %v1934 = vsel %vm363, %v1921, 0
        %v1936 = vsel %vm363, %v1922, 0
        %1938 = vmatprep.subr.mxu0 %v1928
        %1939 = vmatpush1.msra.mxu0 %v1926
        %1940 = vmatprep.subr.mxu0 0.0
        %1941 = vmatpush1.msra.mxu0 0.0
        %1942 = vmatprep.subr.mxu0 0.0
        %1943 = vmatpush1.msra.mxu0 0.0
        %1944 = vmatprep.subr.mxu0 0.0
        %1945 = vmatpush1.msra.mxu0 0.0
        %1946 = vmatprep.subr.mxu0 0.0
        %1947 = vmatpush1.msra.mxu0 0.0
        %1948 = vmatprep.subr.mxu0 0.0
        %1949 = vmatpush1.msra.mxu0 0.0
        %1950 = vmatprep.subr.mxu0 0.0
        %1951 = vmatpush1.msra.mxu0 0.0
        %1952 = vmatprep.subr.mxu0 0.0
        %1953 = vmatpush1.msra.mxu0 0.0
        %1954 = vmatprep.subr.mxu0 0.0
        %1955 = vmatpush1.msra.mxu0 0.0
        %1956 = vmatprep.subr.mxu0 0.0
        %1957 = vmatpush1.msra.mxu0 0.0
        %1958 = vmatprep.subr.mxu0 0.0
        %1959 = vmatpush1.msra.mxu0 0.0
        %1960 = vmatprep.subr.mxu0 0.0
        %1961 = vmatpush1.msra.mxu0 0.0
        %1962 = vmatprep.subr.mxu0 0.0
        %1963 = vmatpush1.msra.mxu0 0.0
        %1964 = vmatprep.subr.mxu0 0.0
        %1965 = vmatpush1.msra.mxu0 0.0
        %1966 = vmatprep.subr.mxu0 0.0
        %1967 = vmatpush1.msra.mxu0 0.0
        %1968 = vmatprep.subr.mxu0 0.0
        %1969 = vmatpush1.msra.mxu0 0.0
        %1970 = vmatprep.subr.mxu0 0.0
        %1971 = vmatpush1.msra.mxu0 0.0
        %1972 = vmatprep.subr.mxu0 0.0
        %1973 = vmatpush1.msra.mxu0 0.0
        %1974 = vmatprep.subr.mxu0 0.0
        %1975 = vmatpush1.msra.mxu0 0.0
        %1976 = vmatprep.subr.mxu0 0.0
        %1977 = vmatpush1.msra.mxu0 0.0
        %1978 = vmatprep.subr.mxu0 0.0
        %1979 = vmatpush1.msra.mxu0 0.0
        %1980 = vmatprep.subr.mxu0 0.0
        %1981 = vmatpush1.msra.mxu0 0.0
        %1982 = vmatprep.subr.mxu0 0.0
        %1983 = vmatpush1.msra.mxu0 0.0
        %1984 = vmatprep.subr.mxu0 0.0
        %1985 = vmatpush1.msra.mxu0 0.0
        %1986 = vmatprep.subr.mxu0 0.0
        %1987 = vmatpush1.msra.mxu0 0.0
        %1988 = vmatprep.subr.mxu0 0.0
        %1989 = vmatpush1.msra.mxu0 0.0
        %1990 = vmatprep.subr.mxu0 0.0
        %1991 = vmatpush1.msra.mxu0 0.0
        %1992 = vmatprep.subr.mxu0 0.0
        %1993 = vmatpush1.msra.mxu0 0.0
        %1994 = vmatprep.subr.mxu0 0.0
        %1995 = vmatpush1.msra.mxu0 0.0
        %1996 = vmatprep.subr.mxu0 0.0
        %1997 = vmatpush1.msra.mxu0 0.0
        %1998 = vmatprep.subr.mxu0 0.0
        %1999 = vmatpush1.msra.mxu0 0.0
        %2000 = vmatprep.subr.mxu0 0.0
        %2001 = vmatpush1.msra.mxu0 0.0
        %2002 = vmatprep.mubr.f32.mxu0 0.0
        %2003 = vmatmul.mubr.f32.gmra.mrb[0].mxu0 %v1924
        %v2004 = vpop.f32.mrb[0].mxu0
        %v2005 = vadd.f32 0.0, %v2004
        %v2006 = vpop.f32.mrb[0].mxu0
        %v2007 = vadd.f32 0.0, %v2006
        %2008 = vdwg.mxu0
        %2009 = vmatprep.subr.mxu0 %v1932
        %2010 = vmatpush1.msra.mxu0 %v1930
        %2011 = vmatprep.subr.mxu0 0.0
        %2012 = vmatpush1.msra.mxu0 0.0
        %2013 = vmatprep.subr.mxu0 0.0
        %2014 = vmatpush1.msra.mxu0 0.0
        %2015 = vmatprep.subr.mxu0 0.0
        %2016 = vmatpush1.msra.mxu0 0.0
        %2017 = vmatprep.subr.mxu0 0.0
        %2018 = vmatpush1.msra.mxu0 0.0
        %2019 = vmatprep.subr.mxu0 0.0
        %2020 = vmatpush1.msra.mxu0 0.0
        %2021 = vmatprep.subr.mxu0 0.0
        %2022 = vmatpush1.msra.mxu0 0.0
        %2023 = vmatprep.subr.mxu0 0.0
        %2024 = vmatpush1.msra.mxu0 0.0
        %2025 = vmatprep.subr.mxu0 0.0
        %2026 = vmatpush1.msra.mxu0 0.0
        %2027 = vmatprep.subr.mxu0 0.0
        %2028 = vmatpush1.msra.mxu0 0.0
        %2029 = vmatprep.subr.mxu0 0.0
        %2030 = vmatpush1.msra.mxu0 0.0
        %2031 = vmatprep.subr.mxu0 0.0
        %2032 = vmatpush1.msra.mxu0 0.0
        %2033 = vmatprep.subr.mxu0 0.0
        %2034 = vmatpush1.msra.mxu0 0.0
        %2035 = vmatprep.subr.mxu0 0.0
        %2036 = vmatpush1.msra.mxu0 0.0
        %2037 = vmatprep.subr.mxu0 0.0
        %2038 = vmatpush1.msra.mxu0 0.0
        %2039 = vmatprep.subr.mxu0 0.0
        %2040 = vmatpush1.msra.mxu0 0.0
        %2041 = vmatprep.subr.mxu0 0.0
        %2042 = vmatpush1.msra.mxu0 0.0
        %2043 = vmatprep.subr.mxu0 0.0
        %2044 = vmatpush1.msra.mxu0 0.0
        %2045 = vmatprep.subr.mxu0 0.0
        %2046 = vmatpush1.msra.mxu0 0.0
        %2047 = vmatprep.subr.mxu0 0.0
        %2048 = vmatpush1.msra.mxu0 0.0
        %2049 = vmatprep.subr.mxu0 0.0
        %2050 = vmatpush1.msra.mxu0 0.0
        %2051 = vmatprep.subr.mxu0 0.0
        %2052 = vmatpush1.msra.mxu0 0.0
        %2053 = vmatprep.subr.mxu0 0.0
        %2054 = vmatpush1.msra.mxu0 0.0
        %2055 = vmatprep.subr.mxu0 0.0
        %2056 = vmatpush1.msra.mxu0 0.0
        %2057 = vmatprep.subr.mxu0 0.0
        %2058 = vmatpush1.msra.mxu0 0.0
        %2059 = vmatprep.subr.mxu0 0.0
        %2060 = vmatpush1.msra.mxu0 0.0
        %2061 = vmatprep.subr.mxu0 0.0
        %2062 = vmatpush1.msra.mxu0 0.0
        %2063 = vmatprep.subr.mxu0 0.0
        %2064 = vmatpush1.msra.mxu0 0.0
        %2065 = vmatprep.subr.mxu0 0.0
        %2066 = vmatpush1.msra.mxu0 0.0
        %2067 = vmatprep.subr.mxu0 0.0
        %2068 = vmatpush1.msra.mxu0 0.0
        %2069 = vmatprep.subr.mxu0 0.0
        %2070 = vmatpush1.msra.mxu0 0.0
        %2071 = vmatprep.subr.mxu0 0.0
        %2072 = vmatpush1.msra.mxu0 0.0
        %2073 = vmatprep.mubr.f32.mxu0 0.0
        %2074 = vmatmul.mubr.f32.gmra.mrb[0].mxu0 %v1924
        %v2075 = vpop.f32.mrb[0].mxu0
        %v2076 = vadd.f32 0.0, %v2075
        %v2077 = vpop.f32.mrb[0].mxu0
        %v2078 = vadd.f32 0.0, %v2077
        %2079 = vdwg.mxu0
        %2080 = vmatprep.subr.mxu0 %v1936
        %2081 = vmatpush1.msra.mxu0 %v1934
        %2082 = vmatprep.subr.mxu0 0.0
        %2083 = vmatpush1.msra.mxu0 0.0
        %2084 = vmatprep.subr.mxu0 0.0
        %2085 = vmatpush1.msra.mxu0 0.0
        %2086 = vmatprep.subr.mxu0 0.0
        %2087 = vmatpush1.msra.mxu0 0.0
        %2088 = vmatprep.subr.mxu0 0.0
        %2089 = vmatpush1.msra.mxu0 0.0
        %2090 = vmatprep.subr.mxu0 0.0
        %2091 = vmatpush1.msra.mxu0 0.0
        %2092 = vmatprep.subr.mxu0 0.0
        %2093 = vmatpush1.msra.mxu0 0.0
        %2094 = vmatprep.subr.mxu0 0.0
        %2095 = vmatpush1.msra.mxu0 0.0
        %2096 = vmatprep.subr.mxu0 0.0
        %2097 = vmatpush1.msra.mxu0 0.0
        %2098 = vmatprep.subr.mxu0 0.0
        %2099 = vmatpush1.msra.mxu0 0.0
        %2100 = vmatprep.subr.mxu0 0.0
        %2101 = vmatpush1.msra.mxu0 0.0
        %2102 = vmatprep.subr.mxu0 0.0
        %2103 = vmatpush1.msra.mxu0 0.0
        %2104 = vmatprep.subr.mxu0 0.0
        %2105 = vmatpush1.msra.mxu0 0.0
        %2106 = vmatprep.subr.mxu0 0.0
        %2107 = vmatpush1.msra.mxu0 0.0
        %2108 = vmatprep.subr.mxu0 0.0
        %2109 = vmatpush1.msra.mxu0 0.0
        %2110 = vmatprep.subr.mxu0 0.0
        %2111 = vmatpush1.msra.mxu0 0.0
        %2112 = vmatprep.subr.mxu0 0.0
        %2113 = vmatpush1.msra.mxu0 0.0
        %2114 = vmatprep.subr.mxu0 0.0
        %2115 = vmatpush1.msra.mxu0 0.0
        %2116 = vmatprep.subr.mxu0 0.0
        %2117 = vmatpush1.msra.mxu0 0.0
        %2118 = vmatprep.subr.mxu0 0.0
        %2119 = vmatpush1.msra.mxu0 0.0
        %2120 = vmatprep.subr.mxu0 0.0
        %2121 = vmatpush1.msra.mxu0 0.0
        %2122 = vmatprep.subr.mxu0 0.0
        %2123 = vmatpush1.msra.mxu0 0.0
        %2124 = vmatprep.subr.mxu0 0.0
        %2125 = vmatpush1.msra.mxu0 0.0
        %2126 = vmatprep.subr.mxu0 0.0
        %2127 = vmatpush1.msra.mxu0 0.0
        %2128 = vmatprep.subr.mxu0 0.0
        %2129 = vmatpush1.msra.mxu0 0.0
        %2130 = vmatprep.subr.mxu0 0.0
        %2131 = vmatpush1.msra.mxu0 0.0
        %2132 = vmatprep.subr.mxu0 0.0
        %2133 = vmatpush1.msra.mxu0 0.0
        %2134 = vmatprep.subr.mxu0 0.0
        %2135 = vmatpush1.msra.mxu0 0.0
        %2136 = vmatprep.subr.mxu0 0.0
        %2137 = vmatpush1.msra.mxu0 0.0
        %2138 = vmatprep.subr.mxu0 0.0
        %2139 = vmatpush1.msra.mxu0 0.0
        %2140 = vmatprep.subr.mxu0 0.0
        %2141 = vmatpush1.msra.mxu0 0.0
        %2142 = vmatprep.subr.mxu0 0.0
        %2143 = vmatpush1.msra.mxu0 0.0
        %2144 = vmatprep.mubr.f32.mxu0 0.0
        %2145 = vmatmul.mubr.f32.gmra.mrb[0].mxu0 %v1924
        %v2146 = vpop.f32.mrb[0].mxu0
        %v2147 = vadd.f32 0.0, %v2146
        %v2148 = vpop.f32.mrb[0].mxu0
        %v2149 = vadd.f32 0.0, %v2148
        %2150 = vdwg.mxu0
        %v2151 = vadd.f32 %v1883, %v2005
        %v2152 = vadd.f32 %v1884, %v2007
        %v2153 = vadd.f32 %v1885, %v2076
        %v2154 = vadd.f32 %v1886, %v2078
        %v2155 = vadd.f32 %v1887, %v2147
        %v2156 = vadd.f32 %v1888, %v2149
        %s2157 = scalar_lea.vmem %s298, 28
        %v2158 = vld [vmem:[%s2157] sm:$0xf]
        %v2159 = vld [vmem:[%s0] sm:$0xff]
        %v2160 = vld [vmem:[%s0 + $0x8] sm:$0xff]
        %v2161 = vld [vmem:[%s0 + $0x10] sm:$0xff]
        %v2162 = vld [vmem:[%s0 + $0x18] sm:$0xf]
        %v2167 = vcombine.high %v2159, %v2159
        %v2168 = vcombine.high %v2160, %v2160
        %v2169 = vcombine.high %v2161, %v2161
        %2170 = vrot.lane.b32.xlu0 %v2159, 91
        %v2171 = vpop.permute.xlu0 %2170
        %2172 = vrot.lane.b32.xlu0 %v2167, 91
        %v2173 = vpop.permute.xlu0 %2172
        %2174 = vrot.lane.b32.xlu0 %v2160, 91
        %v2175 = vpop.permute.xlu0 %2174
        %2176 = vrot.lane.b32.xlu0 %v2168, 91
        %v2177 = vpop.permute.xlu0 %2176
        %2178 = vrot.lane.b32.xlu0 %v2161, 91
        %v2179 = vpop.permute.xlu0 %2178
        %2180 = vrot.lane.b32.xlu0 %v2169, 91
        %v2181 = vpop.permute.xlu0 %2180
        %2182 = vrot.lane.b32.xlu0 %v2162, 91
        %v2183 = vpop.permute.xlu0 %2182
        %vm2184 = vcmask 744448
        %v2185 = vsel %vm2184, %v2171, %v2173
        %v2186 = vsel %vm2184, %v2173, %v2175
        %v2187 = vsel %vm2184, %v2175, %v2177
        %v2188 = vsel %vm2184, %v2177, %v2179
        %v2189 = vsel %vm2184, %v2179, %v2181
        %v2190 = vsel %vm2184, %v2181, %v2183
        %v2192 = vsel %vm359, %v2158, 0
        %v2194 = vsel %vm363, %v2185, 0
        %v2196 = vsel %vm363, %v2186, 0
        %v2198 = vsel %vm363, %v2187, 0
        %v2200 = vsel %vm363, %v2188, 0
        %v2202 = vsel %vm363, %v2189, 0
        %v2204 = vsel %vm363, %v2190, 0
        %2206 = vmatprep.subr.mxu0 %v2196
        %2207 = vmatpush1.msra.mxu0 %v2194
        %2208 = vmatprep.subr.mxu0 0.0
        %2209 = vmatpush1.msra.mxu0 0.0
        %2210 = vmatprep.subr.mxu0 0.0
        %2211 = vmatpush1.msra.mxu0 0.0
        %2212 = vmatprep.subr.mxu0 0.0
        %2213 = vmatpush1.msra.mxu0 0.0
        %2214 = vmatprep.subr.mxu0 0.0
        %2215 = vmatpush1.msra.mxu0 0.0
        %2216 = vmatprep.subr.mxu0 0.0
        %2217 = vmatpush1.msra.mxu0 0.0
        %2218 = vmatprep.subr.mxu0 0.0
        %2219 = vmatpush1.msra.mxu0 0.0
        %2220 = vmatprep.subr.mxu0 0.0
        %2221 = vmatpush1.msra.mxu0 0.0
        %2222 = vmatprep.subr.mxu0 0.0
        %2223 = vmatpush1.msra.mxu0 0.0
        %2224 = vmatprep.subr.mxu0 0.0
        %2225 = vmatpush1.msra.mxu0 0.0
        %2226 = vmatprep.subr.mxu0 0.0
        %2227 = vmatpush1.msra.mxu0 0.0
        %2228 = vmatprep.subr.mxu0 0.0
        %2229 = vmatpush1.msra.mxu0 0.0
        %2230 = vmatprep.subr.mxu0 0.0
        %2231 = vmatpush1.msra.mxu0 0.0
        %2232 = vmatprep.subr.mxu0 0.0
        %2233 = vmatpush1.msra.mxu0 0.0
        %2234 = vmatprep.subr.mxu0 0.0
        %2235 = vmatpush1.msra.mxu0 0.0
        %2236 = vmatprep.subr.mxu0 0.0
        %2237 = vmatpush1.msra.mxu0 0.0
        %2238 = vmatprep.subr.mxu0 0.0
        %2239 = vmatpush1.msra.mxu0 0.0
        %2240 = vmatprep.subr.mxu0 0.0
        %2241 = vmatpush1.msra.mxu0 0.0
        %2242 = vmatprep.subr.mxu0 0.0
        %2243 = vmatpush1.msra.mxu0 0.0
        %2244 = vmatprep.subr.mxu0 0.0
        %2245 = vmatpush1.msra.mxu0 0.0
        %2246 = vmatprep.subr.mxu0 0.0
        %2247 = vmatpush1.msra.mxu0 0.0
        %2248 = vmatprep.subr.mxu0 0.0
        %2249 = vmatpush1.msra.mxu0 0.0
        %2250 = vmatprep.subr.mxu0 0.0
        %2251 = vmatpush1.msra.mxu0 0.0
        %2252 = vmatprep.subr.mxu0 0.0
        %2253 = vmatpush1.msra.mxu0 0.0
        %2254 = vmatprep.subr.mxu0 0.0
        %2255 = vmatpush1.msra.mxu0 0.0
        %2256 = vmatprep.subr.mxu0 0.0
        %2257 = vmatpush1.msra.mxu0 0.0
        %2258 = vmatprep.subr.mxu0 0.0
        %2259 = vmatpush1.msra.mxu0 0.0
        %2260 = vmatprep.subr.mxu0 0.0
        %2261 = vmatpush1.msra.mxu0 0.0
        %2262 = vmatprep.subr.mxu0 0.0
        %2263 = vmatpush1.msra.mxu0 0.0
        %2264 = vmatprep.subr.mxu0 0.0
        %2265 = vmatpush1.msra.mxu0 0.0
        %2266 = vmatprep.subr.mxu0 0.0
        %2267 = vmatpush1.msra.mxu0 0.0
        %2268 = vmatprep.subr.mxu0 0.0
        %2269 = vmatpush1.msra.mxu0 0.0
        %2270 = vmatprep.mubr.f32.mxu0 0.0
        %2271 = vmatmul.mubr.f32.gmra.mrb[0].mxu0 %v2192
        %v2272 = vpop.f32.mrb[0].mxu0
        %v2273 = vadd.f32 0.0, %v2272
        %v2274 = vpop.f32.mrb[0].mxu0
        %v2275 = vadd.f32 0.0, %v2274
        %2276 = vdwg.mxu0
        %2277 = vmatprep.subr.mxu0 %v2200
        %2278 = vmatpush1.msra.mxu0 %v2198
        %2279 = vmatprep.subr.mxu0 0.0
        %2280 = vmatpush1.msra.mxu0 0.0
        %2281 = vmatprep.subr.mxu0 0.0
        %2282 = vmatpush1.msra.mxu0 0.0
        %2283 = vmatprep.subr.mxu0 0.0
        %2284 = vmatpush1.msra.mxu0 0.0
        %2285 = vmatprep.subr.mxu0 0.0
        %2286 = vmatpush1.msra.mxu0 0.0
        %2287 = vmatprep.subr.mxu0 0.0
        %2288 = vmatpush1.msra.mxu0 0.0
        %2289 = vmatprep.subr.mxu0 0.0
        %2290 = vmatpush1.msra.mxu0 0.0
        %2291 = vmatprep.subr.mxu0 0.0
        %2292 = vmatpush1.msra.mxu0 0.0
        %2293 = vmatprep.subr.mxu0 0.0
        %2294 = vmatpush1.msra.mxu0 0.0
        %2295 = vmatprep.subr.mxu0 0.0
        %2296 = vmatpush1.msra.mxu0 0.0
        %2297 = vmatprep.subr.mxu0 0.0
        %2298 = vmatpush1.msra.mxu0 0.0
        %2299 = vmatprep.subr.mxu0 0.0
        %2300 = vmatpush1.msra.mxu0 0.0
        %2301 = vmatprep.subr.mxu0 0.0
        %2302 = vmatpush1.msra.mxu0 0.0
        %2303 = vmatprep.subr.mxu0 0.0
        %2304 = vmatpush1.msra.mxu0 0.0
        %2305 = vmatprep.subr.mxu0 0.0
        %2306 = vmatpush1.msra.mxu0 0.0
        %2307 = vmatprep.subr.mxu0 0.0
        %2308 = vmatpush1.msra.mxu0 0.0
        %2309 = vmatprep.subr.mxu0 0.0
        %2310 = vmatpush1.msra.mxu0 0.0
        %2311 = vmatprep.subr.mxu0 0.0
        %2312 = vmatpush1.msra.mxu0 0.0
        %2313 = vmatprep.subr.mxu0 0.0
        %2314 = vmatpush1.msra.mxu0 0.0
        %2315 = vmatprep.subr.mxu0 0.0
        %2316 = vmatpush1.msra.mxu0 0.0
        %2317 = vmatprep.subr.mxu0 0.0
        %2318 = vmatpush1.msra.mxu0 0.0
        %2319 = vmatprep.subr.mxu0 0.0
        %2320 = vmatpush1.msra.mxu0 0.0
        %2321 = vmatprep.subr.mxu0 0.0
        %2322 = vmatpush1.msra.mxu0 0.0
        %2323 = vmatprep.subr.mxu0 0.0
        %2324 = vmatpush1.msra.mxu0 0.0
        %2325 = vmatprep.subr.mxu0 0.0
        %2326 = vmatpush1.msra.mxu0 0.0
        %2327 = vmatprep.subr.mxu0 0.0
        %2328 = vmatpush1.msra.mxu0 0.0
        %2329 = vmatprep.subr.mxu0 0.0
        %2330 = vmatpush1.msra.mxu0 0.0
        %2331 = vmatprep.subr.mxu0 0.0
        %2332 = vmatpush1.msra.mxu0 0.0
        %2333 = vmatprep.subr.mxu0 0.0
        %2334 = vmatpush1.msra.mxu0 0.0
        %2335 = vmatprep.subr.mxu0 0.0
        %2336 = vmatpush1.msra.mxu0 0.0
        %2337 = vmatprep.subr.mxu0 0.0
        %2338 = vmatpush1.msra.mxu0 0.0
        %2339 = vmatprep.subr.mxu0 0.0
        %2340 = vmatpush1.msra.mxu0 0.0
        %2341 = vmatprep.mubr.f32.mxu0 0.0
        %2342 = vmatmul.mubr.f32.gmra.mrb[0].mxu0 %v2192
        %v2343 = vpop.f32.mrb[0].mxu0
        %v2344 = vadd.f32 0.0, %v2343
        %v2345 = vpop.f32.mrb[0].mxu0
        %v2346 = vadd.f32 0.0, %v2345
        %2347 = vdwg.mxu0
        %2348 = vmatprep.subr.mxu0 %v2204
        %2349 = vmatpush1.msra.mxu0 %v2202
        %2350 = vmatprep.subr.mxu0 0.0
        %2351 = vmatpush1.msra.mxu0 0.0
        %2352 = vmatprep.subr.mxu0 0.0
        %2353 = vmatpush1.msra.mxu0 0.0
        %2354 = vmatprep.subr.mxu0 0.0
        %2355 = vmatpush1.msra.mxu0 0.0
        %2356 = vmatprep.subr.mxu0 0.0
        %2357 = vmatpush1.msra.mxu0 0.0
        %2358 = vmatprep.subr.mxu0 0.0
        %2359 = vmatpush1.msra.mxu0 0.0
        %2360 = vmatprep.subr.mxu0 0.0
        %2361 = vmatpush1.msra.mxu0 0.0
        %2362 = vmatprep.subr.mxu0 0.0
        %2363 = vmatpush1.msra.mxu0 0.0
        %2364 = vmatprep.subr.mxu0 0.0
        %2365 = vmatpush1.msra.mxu0 0.0
        %2366 = vmatprep.subr.mxu0 0.0
        %2367 = vmatpush1.msra.mxu0 0.0
        %2368 = vmatprep.subr.mxu0 0.0
        %2369 = vmatpush1.msra.mxu0 0.0
        %2370 = vmatprep.subr.mxu0 0.0
        %2371 = vmatpush1.msra.mxu0 0.0
        %2372 = vmatprep.subr.mxu0 0.0
        %2373 = vmatpush1.msra.mxu0 0.0
        %2374 = vmatprep.subr.mxu0 0.0
        %2375 = vmatpush1.msra.mxu0 0.0
        %2376 = vmatprep.subr.mxu0 0.0
        %2377 = vmatpush1.msra.mxu0 0.0
        %2378 = vmatprep.subr.mxu0 0.0
        %2379 = vmatpush1.msra.mxu0 0.0
        %2380 = vmatprep.subr.mxu0 0.0
        %2381 = vmatpush1.msra.mxu0 0.0
        %2382 = vmatprep.subr.mxu0 0.0
        %2383 = vmatpush1.msra.mxu0 0.0
        %2384 = vmatprep.subr.mxu0 0.0
        %2385 = vmatpush1.msra.mxu0 0.0
        %2386 = vmatprep.subr.mxu0 0.0
        %2387 = vmatpush1.msra.mxu0 0.0
        %2388 = vmatprep.subr.mxu0 0.0
        %2389 = vmatpush1.msra.mxu0 0.0
        %2390 = vmatprep.subr.mxu0 0.0
        %2391 = vmatpush1.msra.mxu0 0.0
        %2392 = vmatprep.subr.mxu0 0.0
        %2393 = vmatpush1.msra.mxu0 0.0
        %2394 = vmatprep.subr.mxu0 0.0
        %2395 = vmatpush1.msra.mxu0 0.0
        %2396 = vmatprep.subr.mxu0 0.0
        %2397 = vmatpush1.msra.mxu0 0.0
        %2398 = vmatprep.subr.mxu0 0.0
        %2399 = vmatpush1.msra.mxu0 0.0
        %2400 = vmatprep.subr.mxu0 0.0
        %2401 = vmatpush1.msra.mxu0 0.0
        %2402 = vmatprep.subr.mxu0 0.0
        %2403 = vmatpush1.msra.mxu0 0.0
        %2404 = vmatprep.subr.mxu0 0.0
        %2405 = vmatpush1.msra.mxu0 0.0
        %2406 = vmatprep.subr.mxu0 0.0
        %2407 = vmatpush1.msra.mxu0 0.0
        %2408 = vmatprep.subr.mxu0 0.0
        %2409 = vmatpush1.msra.mxu0 0.0
        %2410 = vmatprep.subr.mxu0 0.0
        %2411 = vmatpush1.msra.mxu0 0.0
        %2412 = vmatprep.mubr.f32.mxu0 0.0
        %2413 = vmatmul.mubr.f32.gmra.mrb[0].mxu0 %v2192
        %v2414 = vpop.f32.mrb[0].mxu0
        %v2415 = vadd.f32 0.0, %v2414
        %v2416 = vpop.f32.mrb[0].mxu0
        %v2417 = vadd.f32 0.0, %v2416
        %2418 = vdwg.mxu0
        %v2419 = vadd.f32 %v2151, %v2273
        %v2420 = vadd.f32 %v2152, %v2275
        %v2421 = vadd.f32 %v2153, %v2344
        %v2422 = vadd.f32 %v2154, %v2346
        %v2423 = vadd.f32 %v2155, %v2415
        %v2424 = vadd.f32 %v2156, %v2417
        %s2425 = scalar_lea.vmem %s298, 32
        %v2426 = vld [vmem:[%s2425] sm:$0xf]
        %v2427 = vld [vmem:[%s0] sm:$0xff]
        %v2428 = vld [vmem:[%s0 + $0x8] sm:$0xff]
        %v2429 = vld [vmem:[%s0 + $0x10] sm:$0xff]
        %v2430 = vld [vmem:[%s0 + $0x18] sm:$0xf]
        %v2435 = vcombine.high %v2427, %v2427
        %v2436 = vcombine.high %v2428, %v2428
        %v2437 = vcombine.high %v2429, %v2429
        %2438 = vrot.lane.b32.xlu0 %v2427, 90
        %v2439 = vpop.permute.xlu0 %2438
        %2440 = vrot.lane.b32.xlu0 %v2435, 90
        %v2441 = vpop.permute.xlu0 %2440
        %2442 = vrot.lane.b32.xlu0 %v2428, 90
        %v2443 = vpop.permute.xlu0 %2442
        %2444 = vrot.lane.b32.xlu0 %v2436, 90
        %v2445 = vpop.permute.xlu0 %2444
        %2446 = vrot.lane.b32.xlu0 %v2429, 90
        %v2447 = vpop.permute.xlu0 %2446
        %2448 = vrot.lane.b32.xlu0 %v2437, 90
        %v2449 = vpop.permute.xlu0 %2448
        %2450 = vrot.lane.b32.xlu0 %v2430, 90
        %v2451 = vpop.permute.xlu0 %2450
        %vm2452 = vcmask 736256
        %v2453 = vsel %vm2452, %v2439, %v2441
        %v2454 = vsel %vm2452, %v2441, %v2443
        %v2455 = vsel %vm2452, %v2443, %v2445
        %v2456 = vsel %vm2452, %v2445, %v2447
        %v2457 = vsel %vm2452, %v2447, %v2449
        %v2458 = vsel %vm2452, %v2449, %v2451
        %v2460 = vsel %vm359, %v2426, 0
        %v2462 = vsel %vm363, %v2453, 0
        %v2464 = vsel %vm363, %v2454, 0
        %v2466 = vsel %vm363, %v2455, 0
        %v2468 = vsel %vm363, %v2456, 0
        %v2470 = vsel %vm363, %v2457, 0
        %v2472 = vsel %vm363, %v2458, 0
        %2474 = vmatprep.subr.mxu0 %v2464
        %2475 = vmatpush1.msra.mxu0 %v2462
        %2476 = vmatprep.subr.mxu0 0.0
        %2477 = vmatpush1.msra.mxu0 0.0
        %2478 = vmatprep.subr.mxu0 0.0
        %2479 = vmatpush1.msra.mxu0 0.0
        %2480 = vmatprep.subr.mxu0 0.0
        %2481 = vmatpush1.msra.mxu0 0.0
        %2482 = vmatprep.subr.mxu0 0.0
        %2483 = vmatpush1.msra.mxu0 0.0
        %2484 = vmatprep.subr.mxu0 0.0
        %2485 = vmatpush1.msra.mxu0 0.0
        %2486 = vmatprep.subr.mxu0 0.0
        %2487 = vmatpush1.msra.mxu0 0.0
        %2488 = vmatprep.subr.mxu0 0.0
        %2489 = vmatpush1.msra.mxu0 0.0
        %2490 = vmatprep.subr.mxu0 0.0
        %2491 = vmatpush1.msra.mxu0 0.0
        %2492 = vmatprep.subr.mxu0 0.0
        %2493 = vmatpush1.msra.mxu0 0.0
        %2494 = vmatprep.subr.mxu0 0.0
        %2495 = vmatpush1.msra.mxu0 0.0
        %2496 = vmatprep.subr.mxu0 0.0
        %2497 = vmatpush1.msra.mxu0 0.0
        %2498 = vmatprep.subr.mxu0 0.0
        %2499 = vmatpush1.msra.mxu0 0.0
        %2500 = vmatprep.subr.mxu0 0.0
        %2501 = vmatpush1.msra.mxu0 0.0
        %2502 = vmatprep.subr.mxu0 0.0
        %2503 = vmatpush1.msra.mxu0 0.0
        %2504 = vmatprep.subr.mxu0 0.0
        %2505 = vmatpush1.msra.mxu0 0.0
        %2506 = vmatprep.subr.mxu0 0.0
        %2507 = vmatpush1.msra.mxu0 0.0
        %2508 = vmatprep.subr.mxu0 0.0
        %2509 = vmatpush1.msra.mxu0 0.0
        %2510 = vmatprep.subr.mxu0 0.0
        %2511 = vmatpush1.msra.mxu0 0.0
        %2512 = vmatprep.subr.mxu0 0.0
        %2513 = vmatpush1.msra.mxu0 0.0
        %2514 = vmatprep.subr.mxu0 0.0
        %2515 = vmatpush1.msra.mxu0 0.0
        %2516 = vmatprep.subr.mxu0 0.0
        %2517 = vmatpush1.msra.mxu0 0.0
        %2518 = vmatprep.subr.mxu0 0.0
        %2519 = vmatpush1.msra.mxu0 0.0
        %2520 = vmatprep.subr.mxu0 0.0
        %2521 = vmatpush1.msra.mxu0 0.0
        %2522 = vmatprep.subr.mxu0 0.0
        %2523 = vmatpush1.msra.mxu0 0.0
        %2524 = vmatprep.subr.mxu0 0.0
        %2525 = vmatpush1.msra.mxu0 0.0
        %2526 = vmatprep.subr.mxu0 0.0
        %2527 = vmatpush1.msra.mxu0 0.0
        %2528 = vmatprep.subr.mxu0 0.0
        %2529 = vmatpush1.msra.mxu0 0.0
        %2530 = vmatprep.subr.mxu0 0.0
        %2531 = vmatpush1.msra.mxu0 0.0
        %2532 = vmatprep.subr.mxu0 0.0
        %2533 = vmatpush1.msra.mxu0 0.0
        %2534 = vmatprep.subr.mxu0 0.0
        %2535 = vmatpush1.msra.mxu0 0.0
        %2536 = vmatprep.subr.mxu0 0.0
        %2537 = vmatpush1.msra.mxu0 0.0
        %2538 = vmatprep.mubr.f32.mxu0 0.0
        %2539 = vmatmul.mubr.f32.gmra.mrb[0].mxu0 %v2460
        %v2540 = vpop.f32.mrb[0].mxu0
        %v2541 = vadd.f32 0.0, %v2540
        %v2542 = vpop.f32.mrb[0].mxu0
        %v2543 = vadd.f32 0.0, %v2542
        %2544 = vdwg.mxu0
        %2545 = vmatprep.subr.mxu0 %v2468
        %2546 = vmatpush1.msra.mxu0 %v2466
        %2547 = vmatprep.subr.mxu0 0.0
        %2548 = vmatpush1.msra.mxu0 0.0
        %2549 = vmatprep.subr.mxu0 0.0
        %2550 = vmatpush1.msra.mxu0 0.0
        %2551 = vmatprep.subr.mxu0 0.0
        %2552 = vmatpush1.msra.mxu0 0.0
        %2553 = vmatprep.subr.mxu0 0.0
        %2554 = vmatpush1.msra.mxu0 0.0
        %2555 = vmatprep.subr.mxu0 0.0
        %2556 = vmatpush1.msra.mxu0 0.0
        %2557 = vmatprep.subr.mxu0 0.0
        %2558 = vmatpush1.msra.mxu0 0.0
        %2559 = vmatprep.subr.mxu0 0.0
        %2560 = vmatpush1.msra.mxu0 0.0
        %2561 = vmatprep.subr.mxu0 0.0
        %2562 = vmatpush1.msra.mxu0 0.0
        %2563 = vmatprep.subr.mxu0 0.0
        %2564 = vmatpush1.msra.mxu0 0.0
        %2565 = vmatprep.subr.mxu0 0.0
        %2566 = vmatpush1.msra.mxu0 0.0
        %2567 = vmatprep.subr.mxu0 0.0
        %2568 = vmatpush1.msra.mxu0 0.0
        %2569 = vmatprep.subr.mxu0 0.0
        %2570 = vmatpush1.msra.mxu0 0.0
        %2571 = vmatprep.subr.mxu0 0.0
        %2572 = vmatpush1.msra.mxu0 0.0
        %2573 = vmatprep.subr.mxu0 0.0
        %2574 = vmatpush1.msra.mxu0 0.0
        %2575 = vmatprep.subr.mxu0 0.0
        %2576 = vmatpush1.msra.mxu0 0.0
        %2577 = vmatprep.subr.mxu0 0.0
        %2578 = vmatpush1.msra.mxu0 0.0
        %2579 = vmatprep.subr.mxu0 0.0
        %2580 = vmatpush1.msra.mxu0 0.0
        %2581 = vmatprep.subr.mxu0 0.0
        %2582 = vmatpush1.msra.mxu0 0.0
        %2583 = vmatprep.subr.mxu0 0.0
        %2584 = vmatpush1.msra.mxu0 0.0
        %2585 = vmatprep.subr.mxu0 0.0
        %2586 = vmatpush1.msra.mxu0 0.0
        %2587 = vmatprep.subr.mxu0 0.0
        %2588 = vmatpush1.msra.mxu0 0.0
        %2589 = vmatprep.subr.mxu0 0.0
        %2590 = vmatpush1.msra.mxu0 0.0
        %2591 = vmatprep.subr.mxu0 0.0
        %2592 = vmatpush1.msra.mxu0 0.0
        %2593 = vmatprep.subr.mxu0 0.0
        %2594 = vmatpush1.msra.mxu0 0.0
        %2595 = vmatprep.subr.mxu0 0.0
        %2596 = vmatpush1.msra.mxu0 0.0
        %2597 = vmatprep.subr.mxu0 0.0
        %2598 = vmatpush1.msra.mxu0 0.0
        %2599 = vmatprep.subr.mxu0 0.0
        %2600 = vmatpush1.msra.mxu0 0.0
        %2601 = vmatprep.subr.mxu0 0.0
        %2602 = vmatpush1.msra.mxu0 0.0
        %2603 = vmatprep.subr.mxu0 0.0
        %2604 = vmatpush1.msra.mxu0 0.0
        %2605 = vmatprep.subr.mxu0 0.0
        %2606 = vmatpush1.msra.mxu0 0.0
        %2607 = vmatprep.subr.mxu0 0.0
        %2608 = vmatpush1.msra.mxu0 0.0
        %2609 = vmatprep.mubr.f32.mxu0 0.0
        %2610 = vmatmul.mubr.f32.gmra.mrb[0].mxu0 %v2460
        %v2611 = vpop.f32.mrb[0].mxu0
        %v2612 = vadd.f32 0.0, %v2611
        %v2613 = vpop.f32.mrb[0].mxu0
        %v2614 = vadd.f32 0.0, %v2613
        %2615 = vdwg.mxu0
        %2616 = vmatprep.subr.mxu0 %v2472
        %2617 = vmatpush1.msra.mxu0 %v2470
        %2618 = vmatprep.subr.mxu0 0.0
        %2619 = vmatpush1.msra.mxu0 0.0
        %2620 = vmatprep.subr.mxu0 0.0
        %2621 = vmatpush1.msra.mxu0 0.0
        %2622 = vmatprep.subr.mxu0 0.0
        %2623 = vmatpush1.msra.mxu0 0.0
        %2624 = vmatprep.subr.mxu0 0.0
        %2625 = vmatpush1.msra.mxu0 0.0
        %2626 = vmatprep.subr.mxu0 0.0
        %2627 = vmatpush1.msra.mxu0 0.0
        %2628 = vmatprep.subr.mxu0 0.0
        %2629 = vmatpush1.msra.mxu0 0.0
        %2630 = vmatprep.subr.mxu0 0.0
        %2631 = vmatpush1.msra.mxu0 0.0
        %2632 = vmatprep.subr.mxu0 0.0
        %2633 = vmatpush1.msra.mxu0 0.0
        %2634 = vmatprep.subr.mxu0 0.0
        %2635 = vmatpush1.msra.mxu0 0.0
        %2636 = vmatprep.subr.mxu0 0.0
        %2637 = vmatpush1.msra.mxu0 0.0
        %2638 = vmatprep.subr.mxu0 0.0
        %2639 = vmatpush1.msra.mxu0 0.0
        %2640 = vmatprep.subr.mxu0 0.0
        %2641 = vmatpush1.msra.mxu0 0.0
        %2642 = vmatprep.subr.mxu0 0.0
        %2643 = vmatpush1.msra.mxu0 0.0
        %2644 = vmatprep.subr.mxu0 0.0
        %2645 = vmatpush1.msra.mxu0 0.0
        %2646 = vmatprep.subr.mxu0 0.0
        %2647 = vmatpush1.msra.mxu0 0.0
        %2648 = vmatprep.subr.mxu0 0.0
        %2649 = vmatpush1.msra.mxu0 0.0
        %2650 = vmatprep.subr.mxu0 0.0
        %2651 = vmatpush1.msra.mxu0 0.0
        %2652 = vmatprep.subr.mxu0 0.0
        %2653 = vmatpush1.msra.mxu0 0.0
        %2654 = vmatprep.subr.mxu0 0.0
        %2655 = vmatpush1.msra.mxu0 0.0
        %2656 = vmatprep.subr.mxu0 0.0
        %2657 = vmatpush1.msra.mxu0 0.0
        %2658 = vmatprep.subr.mxu0 0.0
        %2659 = vmatpush1.msra.mxu0 0.0
        %2660 = vmatprep.subr.mxu0 0.0
        %2661 = vmatpush1.msra.mxu0 0.0
        %2662 = vmatprep.subr.mxu0 0.0
        %2663 = vmatpush1.msra.mxu0 0.0
        %2664 = vmatprep.subr.mxu0 0.0
        %2665 = vmatpush1.msra.mxu0 0.0
        %2666 = vmatprep.subr.mxu0 0.0
        %2667 = vmatpush1.msra.mxu0 0.0
        %2668 = vmatprep.subr.mxu0 0.0
        %2669 = vmatpush1.msra.mxu0 0.0
        %2670 = vmatprep.subr.mxu0 0.0
        %2671 = vmatpush1.msra.mxu0 0.0
        %2672 = vmatprep.subr.mxu0 0.0
        %2673 = vmatpush1.msra.mxu0 0.0
        %2674 = vmatprep.subr.mxu0 0.0
        %2675 = vmatpush1.msra.mxu0 0.0
        %2676 = vmatprep.subr.mxu0 0.0
        %2677 = vmatpush1.msra.mxu0 0.0
        %2678 = vmatprep.subr.mxu0 0.0
        %2679 = vmatpush1.msra.mxu0 0.0
        %2680 = vmatprep.mubr.f32.mxu0 0.0
        %2681 = vmatmul.mubr.f32.gmra.mrb[0].mxu0 %v2460
        %v2682 = vpop.f32.mrb[0].mxu0
        %v2683 = vadd.f32 0.0, %v2682
        %v2684 = vpop.f32.mrb[0].mxu0
        %v2685 = vadd.f32 0.0, %v2684
        %2686 = vdwg.mxu0
        %v2687 = vadd.f32 %v2419, %v2541
        %v2688 = vadd.f32 %v2420, %v2543
        %v2689 = vadd.f32 %v2421, %v2612
        %v2690 = vadd.f32 %v2422, %v2614
        %v2691 = vadd.f32 %v2423, %v2683
        %v2692 = vadd.f32 %v2424, %v2685
        %v2699 = vcombine.low %v2687, %v2688
        %v2700 = vcombine.low %v2689, %v2690
        %v2701 = vcombine.low %v2691, %v2692
        %2705 = vst [vmem:[#allocation2] sm:$0xff] %v2699
        %2706 = vst [vmem:[#allocation2 + $0x8] sm:$0xff] %v2700
        %2707 = vst [vmem:[#allocation2 + $0x10] sm:$0xff] %v2701
      $region48: #{spatial_attention.2} parent=43 // pred_fallthru
        _
      %p2708 = scmp.eq.s32.totalorder %s17, 1
      // Predicated region
      $region49: #{spatial_attention.2} parent=43 // pred_check
        %p2709 = pneg %p2708
      $region50: #{spatial_attention.2} parent=43 // pred_check_branch
        %2711 = sbr.rel (%p2709) target = $region52
      $region51: #{spatial_attention.2} parent=43 // pred_region
        %v2712 = vld [vmem:[%s298] sm:$0xf]
        %v2713 = vld [vmem:[%s0] sm:$0xff]
        %v2714 = vld [vmem:[%s0 + $0x8] sm:$0xff]
        %v2715 = vld [vmem:[%s0 + $0x10] sm:$0xff]
        %s2716 = scalar_lea.vmem %s298, 4
        %v2717 = vld [vmem:[%s2716] sm:$0xf]
        %v2718 = vld [vmem:[%s0 + $0x18] sm:$0xf]
        %v2723 = vcombine.high %v2713, %v2713
        %v2724 = vcombine.high %v2714, %v2714
        %v2725 = vcombine.high %v2715, %v2715
        %2726 = vrot.lane.b32.xlu0 %v2713, 125
        %v2727 = vpop.permute.xlu0 %2726
        %2728 = vrot.lane.b32.xlu0 %v2723, 125
        %v2729 = vpop.permute.xlu0 %2728
        %2730 = vrot.lane.b32.xlu0 %v2714, 125
        %v2731 = vpop.permute.xlu0 %2730
        %2732 = vrot.lane.b32.xlu0 %v2724, 125
        %v2733 = vpop.permute.xlu0 %2732
        %2734 = vrot.lane.b32.xlu0 %v2715, 125
        %v2735 = vpop.permute.xlu0 %2734
        %2736 = vrot.lane.b32.xlu0 %v2725, 125
        %v2737 = vpop.permute.xlu0 %2736
        %2738 = vrot.lane.b32.xlu0 %v2718, 125
        %v2739 = vpop.permute.xlu0 %2738
        %vm2740 = vcmask 1022976
        %v2741 = vsel %vm2740, %v2727, %v2729
        %v2742 = vsel %vm2740, %v2729, %v2731
        %v2743 = vsel %vm2740, %v2731, %v2733
        %v2744 = vsel %vm2740, %v2733, %v2735
        %v2745 = vsel %vm2740, %v2735, %v2737
        %v2746 = vsel %vm2740, %v2737, %v2739
        %vm2747 = vcmask 31744
        %v2749 = vsel %vm2747, %v2717, 0
        %vm2751 = vcmask 1043456
        %v2752 = vsel %vm2751, %v2741, 0
        %v2754 = vsel %vm2751, %v2742, 0
        %v2756 = vsel %vm2751, %v2743, 0
        %v2758 = vsel %vm2751, %v2744, 0
        %v2760 = vsel %vm2751, %v2745, 0
        %v2762 = vsel %vm2751, %v2746, 0
        %2764 = vmatprep.subr.mxu0 %v2754
        %2765 = vmatpush1.msra.mxu0 %v2752
        %2766 = vmatprep.subr.mxu0 0.0
        %2767 = vmatpush1.msra.mxu0 0.0
        %2768 = vmatprep.subr.mxu0 0.0
        %2769 = vmatpush1.msra.mxu0 0.0
        %2770 = vmatprep.subr.mxu0 0.0
        %2771 = vmatpush1.msra.mxu0 0.0
        %2772 = vmatprep.subr.mxu0 0.0
        %2773 = vmatpush1.msra.mxu0 0.0
        %2774 = vmatprep.subr.mxu0 0.0
        %2775 = vmatpush1.msra.mxu0 0.0
        %2776 = vmatprep.subr.mxu0 0.0
        %2777 = vmatpush1.msra.mxu0 0.0
        %2778 = vmatprep.subr.mxu0 0.0
        %2779 = vmatpush1.msra.mxu0 0.0
        %2780 = vmatprep.subr.mxu0 0.0
        %2781 = vmatpush1.msra.mxu0 0.0
        %2782 = vmatprep.subr.mxu0 0.0
        %2783 = vmatpush1.msra.mxu0 0.0
        %2784 = vmatprep.subr.mxu0 0.0
        %2785 = vmatpush1.msra.mxu0 0.0
        %2786 = vmatprep.subr.mxu0 0.0
        %2787 = vmatpush1.msra.mxu0 0.0
        %2788 = vmatprep.subr.mxu0 0.0
        %2789 = vmatpush1.msra.mxu0 0.0
        %2790 = vmatprep.subr.mxu0 0.0
        %2791 = vmatpush1.msra.mxu0 0.0
        %2792 = vmatprep.subr.mxu0 0.0
        %2793 = vmatpush1.msra.mxu0 0.0
        %2794 = vmatprep.subr.mxu0 0.0
        %2795 = vmatpush1.msra.mxu0 0.0
        %2796 = vmatprep.subr.mxu0 0.0
        %2797 = vmatpush1.msra.mxu0 0.0
        %2798 = vmatprep.subr.mxu0 0.0
        %2799 = vmatpush1.msra.mxu0 0.0
        %2800 = vmatprep.subr.mxu0 0.0
        %2801 = vmatpush1.msra.mxu0 0.0
        %2802 = vmatprep.subr.mxu0 0.0
        %2803 = vmatpush1.msra.mxu0 0.0
        %2804 = vmatprep.subr.mxu0 0.0
        %2805 = vmatpush1.msra.mxu0 0.0
        %2806 = vmatprep.subr.mxu0 0.0
        %2807 = vmatpush1.msra.mxu0 0.0
        %2808 = vmatprep.subr.mxu0 0.0
        %2809 = vmatpush1.msra.mxu0 0.0
        %2810 = vmatprep.subr.mxu0 0.0
        %2811 = vmatpush1.msra.mxu0 0.0
        %2812 = vmatprep.subr.mxu0 0.0
        %2813 = vmatpush1.msra.mxu0 0.0
        %2814 = vmatprep.subr.mxu0 0.0
        %2815 = vmatpush1.msra.mxu0 0.0
        %2816 = vmatprep.subr.mxu0 0.0
        %2817 = vmatpush1.msra.mxu0 0.0
        %2818 = vmatprep.subr.mxu0 0.0
        %2819 = vmatpush1.msra.mxu0 0.0
        %2820 = vmatprep.subr.mxu0 0.0
        %2821 = vmatpush1.msra.mxu0 0.0
        %2822 = vmatprep.subr.mxu0 0.0
        %2823 = vmatpush1.msra.mxu0 0.0
        %2824 = vmatprep.subr.mxu0 0.0
        %2825 = vmatpush1.msra.mxu0 0.0
        %2826 = vmatprep.subr.mxu0 0.0
        %2827 = vmatpush1.msra.mxu0 0.0
        %2828 = vmatprep.mubr.f32.mxu0 0.0
        %2829 = vmatmul.mubr.f32.gmra.mrb[0].mxu0 %v2749
        %v2830 = vpop.f32.mrb[0].mxu0
        %v2831 = vadd.f32 0.0, %v2830
        %v2832 = vpop.f32.mrb[0].mxu0
        %v2833 = vadd.f32 0.0, %v2832
        %2834 = vdwg.mxu0
        %2835 = vmatprep.subr.mxu0 %v2758
        %2836 = vmatpush1.msra.mxu0 %v2756
        %2837 = vmatprep.subr.mxu0 0.0
        %2838 = vmatpush1.msra.mxu0 0.0
        %2839 = vmatprep.subr.mxu0 0.0
        %2840 = vmatpush1.msra.mxu0 0.0
        %2841 = vmatprep.subr.mxu0 0.0
        %2842 = vmatpush1.msra.mxu0 0.0
        %2843 = vmatprep.subr.mxu0 0.0
        %2844 = vmatpush1.msra.mxu0 0.0
        %2845 = vmatprep.subr.mxu0 0.0
        %2846 = vmatpush1.msra.mxu0 0.0
        %2847 = vmatprep.subr.mxu0 0.0
        %2848 = vmatpush1.msra.mxu0 0.0
        %2849 = vmatprep.subr.mxu0 0.0
        %2850 = vmatpush1.msra.mxu0 0.0
        %2851 = vmatprep.subr.mxu0 0.0
        %2852 = vmatpush1.msra.mxu0 0.0
        %2853 = vmatprep.subr.mxu0 0.0
        %2854 = vmatpush1.msra.mxu0 0.0
        %2855 = vmatprep.subr.mxu0 0.0
        %2856 = vmatpush1.msra.mxu0 0.0
        %2857 = vmatprep.subr.mxu0 0.0
        %2858 = vmatpush1.msra.mxu0 0.0
        %2859 = vmatprep.subr.mxu0 0.0
        %2860 = vmatpush1.msra.mxu0 0.0
        %2861 = vmatprep.subr.mxu0 0.0
        %2862 = vmatpush1.msra.mxu0 0.0
        %2863 = vmatprep.subr.mxu0 0.0
        %2864 = vmatpush1.msra.mxu0 0.0
        %2865 = vmatprep.subr.mxu0 0.0
        %2866 = vmatpush1.msra.mxu0 0.0
        %2867 = vmatprep.subr.mxu0 0.0
        %2868 = vmatpush1.msra.mxu0 0.0
        %2869 = vmatprep.subr.mxu0 0.0
        %2870 = vmatpush1.msra.mxu0 0.0
        %2871 = vmatprep.subr.mxu0 0.0
        %2872 = vmatpush1.msra.mxu0 0.0
        %2873 = vmatprep.subr.mxu0 0.0
        %2874 = vmatpush1.msra.mxu0 0.0
        %2875 = vmatprep.subr.mxu0 0.0
        %2876 = vmatpush1.msra.mxu0 0.0
        %2877 = vmatprep.subr.mxu0 0.0
        %2878 = vmatpush1.msra.mxu0 0.0
        %2879 = vmatprep.subr.mxu0 0.0
        %2880 = vmatpush1.msra.mxu0 0.0
        %2881 = vmatprep.subr.mxu0 0.0
        %2882 = vmatpush1.msra.mxu0 0.0
        %2883 = vmatprep.subr.mxu0 0.0
        %2884 = vmatpush1.msra.mxu0 0.0
        %2885 = vmatprep.subr.mxu0 0.0
        %2886 = vmatpush1.msra.mxu0 0.0
        %2887 = vmatprep.subr.mxu0 0.0
        %2888 = vmatpush1.msra.mxu0 0.0
        %2889 = vmatprep.subr.mxu0 0.0
        %2890 = vmatpush1.msra.mxu0 0.0
        %2891 = vmatprep.subr.mxu0 0.0
        %2892 = vmatpush1.msra.mxu0 0.0
        %2893 = vmatprep.subr.mxu0 0.0
        %2894 = vmatpush1.msra.mxu0 0.0
        %2895 = vmatprep.subr.mxu0 0.0
        %2896 = vmatpush1.msra.mxu0 0.0
        %2897 = vmatprep.subr.mxu0 0.0
        %2898 = vmatpush1.msra.mxu0 0.0
        %2899 = vmatprep.mubr.f32.mxu0 0.0
        %2900 = vmatmul.mubr.f32.gmra.mrb[0].mxu0 %v2749
        %v2901 = vpop.f32.mrb[0].mxu0
        %v2902 = vadd.f32 0.0, %v2901
        %v2903 = vpop.f32.mrb[0].mxu0
        %v2904 = vadd.f32 0.0, %v2903
        %2905 = vdwg.mxu0
        %2906 = vmatprep.subr.mxu0 %v2762
        %2907 = vmatpush1.msra.mxu0 %v2760
        %2908 = vmatprep.subr.mxu0 0.0
        %2909 = vmatpush1.msra.mxu0 0.0
        %2910 = vmatprep.subr.mxu0 0.0
        %2911 = vmatpush1.msra.mxu0 0.0
        %2912 = vmatprep.subr.mxu0 0.0
        %2913 = vmatpush1.msra.mxu0 0.0
        %2914 = vmatprep.subr.mxu0 0.0
        %2915 = vmatpush1.msra.mxu0 0.0
        %2916 = vmatprep.subr.mxu0 0.0
        %2917 = vmatpush1.msra.mxu0 0.0
        %2918 = vmatprep.subr.mxu0 0.0
        %2919 = vmatpush1.msra.mxu0 0.0
        %2920 = vmatprep.subr.mxu0 0.0
        %2921 = vmatpush1.msra.mxu0 0.0
        %2922 = vmatprep.subr.mxu0 0.0
        %2923 = vmatpush1.msra.mxu0 0.0
        %2924 = vmatprep.subr.mxu0 0.0
        %2925 = vmatpush1.msra.mxu0 0.0
        %2926 = vmatprep.subr.mxu0 0.0
        %2927 = vmatpush1.msra.mxu0 0.0
        %2928 = vmatprep.subr.mxu0 0.0
        %2929 = vmatpush1.msra.mxu0 0.0
        %2930 = vmatprep.subr.mxu0 0.0
        %2931 = vmatpush1.msra.mxu0 0.0
        %2932 = vmatprep.subr.mxu0 0.0
        %2933 = vmatpush1.msra.mxu0 0.0
        %2934 = vmatprep.subr.mxu0 0.0
        %2935 = vmatpush1.msra.mxu0 0.0
        %2936 = vmatprep.subr.mxu0 0.0
        %2937 = vmatpush1.msra.mxu0 0.0
        %2938 = vmatprep.subr.mxu0 0.0
        %2939 = vmatpush1.msra.mxu0 0.0
        %2940 = vmatprep.subr.mxu0 0.0
        %2941 = vmatpush1.msra.mxu0 0.0
        %2942 = vmatprep.subr.mxu0 0.0
        %2943 = vmatpush1.msra.mxu0 0.0
        %2944 = vmatprep.subr.mxu0 0.0
        %2945 = vmatpush1.msra.mxu0 0.0
        %2946 = vmatprep.subr.mxu0 0.0
        %2947 = vmatpush1.msra.mxu0 0.0
        %2948 = vmatprep.subr.mxu0 0.0
        %2949 = vmatpush1.msra.mxu0 0.0
        %2950 = vmatprep.subr.mxu0 0.0
        %2951 = vmatpush1.msra.mxu0 0.0
        %2952 = vmatprep.subr.mxu0 0.0
        %2953 = vmatpush1.msra.mxu0 0.0
        %2954 = vmatprep.subr.mxu0 0.0
        %2955 = vmatpush1.msra.mxu0 0.0
        %2956 = vmatprep.subr.mxu0 0.0
        %2957 = vmatpush1.msra.mxu0 0.0
        %2958 = vmatprep.subr.mxu0 0.0
        %2959 = vmatpush1.msra.mxu0 0.0
        %2960 = vmatprep.subr.mxu0 0.0
        %2961 = vmatpush1.msra.mxu0 0.0
        %2962 = vmatprep.subr.mxu0 0.0
        %2963 = vmatpush1.msra.mxu0 0.0
        %2964 = vmatprep.subr.mxu0 0.0
        %2965 = vmatpush1.msra.mxu0 0.0
        %2966 = vmatprep.subr.mxu0 0.0
        %2967 = vmatpush1.msra.mxu0 0.0
        %2968 = vmatprep.subr.mxu0 0.0
        %2969 = vmatpush1.msra.mxu0 0.0
        %2970 = vmatprep.mubr.f32.mxu0 0.0
        %2971 = vmatmul.mubr.f32.gmra.mrb[0].mxu0 %v2749
        %v2972 = vpop.f32.mrb[0].mxu0
        %v2973 = vadd.f32 0.0, %v2972
        %v2974 = vpop.f32.mrb[0].mxu0
        %v2975 = vadd.f32 0.0, %v2974
        %2976 = vdwg.mxu0
        %v2978 = vsel %vm2747, %v2712, 0
        %v2980 = vsel %vm2751, %v2713, 0
        %v2982 = vsel %vm2751, %v2723, 0
        %v2984 = vsel %vm2751, %v2714, 0
        %v2986 = vsel %vm2751, %v2724, 0
        %v2988 = vsel %vm2751, %v2715, 0
        %v2990 = vsel %vm2751, %v2725, 0
        %2992 = vmatprep.subr.mxu0 %v2982
        %2993 = vmatpush1.msra.mxu0 %v2980
        %2994 = vmatprep.subr.mxu0 0.0
        %2995 = vmatpush1.msra.mxu0 0.0
        %2996 = vmatprep.subr.mxu0 0.0
        %2997 = vmatpush1.msra.mxu0 0.0
        %2998 = vmatprep.subr.mxu0 0.0
        %2999 = vmatpush1.msra.mxu0 0.0
        %3000 = vmatprep.subr.mxu0 0.0
        %3001 = vmatpush1.msra.mxu0 0.0
        %3002 = vmatprep.subr.mxu0 0.0
        %3003 = vmatpush1.msra.mxu0 0.0
        %3004 = vmatprep.subr.mxu0 0.0
        %3005 = vmatpush1.msra.mxu0 0.0
        %3006 = vmatprep.subr.mxu0 0.0
        %3007 = vmatpush1.msra.mxu0 0.0
        %3008 = vmatprep.subr.mxu0 0.0
        %3009 = vmatpush1.msra.mxu0 0.0
        %3010 = vmatprep.subr.mxu0 0.0
        %3011 = vmatpush1.msra.mxu0 0.0
        %3012 = vmatprep.subr.mxu0 0.0
        %3013 = vmatpush1.msra.mxu0 0.0
        %3014 = vmatprep.subr.mxu0 0.0
        %3015 = vmatpush1.msra.mxu0 0.0
        %3016 = vmatprep.subr.mxu0 0.0
        %3017 = vmatpush1.msra.mxu0 0.0
        %3018 = vmatprep.subr.mxu0 0.0
        %3019 = vmatpush1.msra.mxu0 0.0
        %3020 = vmatprep.subr.mxu0 0.0
        %3021 = vmatpush1.msra.mxu0 0.0
        %3022 = vmatprep.subr.mxu0 0.0
        %3023 = vmatpush1.msra.mxu0 0.0
        %3024 = vmatprep.subr.mxu0 0.0
        %3025 = vmatpush1.msra.mxu0 0.0
        %3026 = vmatprep.subr.mxu0 0.0
        %3027 = vmatpush1.msra.mxu0 0.0
        %3028 = vmatprep.subr.mxu0 0.0
        %3029 = vmatpush1.msra.mxu0 0.0
        %3030 = vmatprep.subr.mxu0 0.0
        %3031 = vmatpush1.msra.mxu0 0.0
        %3032 = vmatprep.subr.mxu0 0.0
        %3033 = vmatpush1.msra.mxu0 0.0
        %3034 = vmatprep.subr.mxu0 0.0
        %3035 = vmatpush1.msra.mxu0 0.0
        %3036 = vmatprep.subr.mxu0 0.0
        %3037 = vmatpush1.msra.mxu0 0.0
        %3038 = vmatprep.subr.mxu0 0.0
        %3039 = vmatpush1.msra.mxu0 0.0
        %3040 = vmatprep.subr.mxu0 0.0
        %3041 = vmatpush1.msra.mxu0 0.0
        %3042 = vmatprep.subr.mxu0 0.0
        %3043 = vmatpush1.msra.mxu0 0.0
        %3044 = vmatprep.subr.mxu0 0.0
        %3045 = vmatpush1.msra.mxu0 0.0
        %3046 = vmatprep.subr.mxu0 0.0
        %3047 = vmatpush1.msra.mxu0 0.0
        %3048 = vmatprep.subr.mxu0 0.0
        %3049 = vmatpush1.msra.mxu0 0.0
        %3050 = vmatprep.subr.mxu0 0.0
        %3051 = vmatpush1.msra.mxu0 0.0
        %3052 = vmatprep.subr.mxu0 0.0
        %3053 = vmatpush1.msra.mxu0 0.0
        %3054 = vmatprep.subr.mxu0 0.0
        %3055 = vmatpush1.msra.mxu0 0.0
        %3056 = vmatprep.mubr.f32.mxu0 0.0
        %3057 = vmatmul.mubr.f32.gmra.mrb[0].mxu0 %v2978
        %v3058 = vpop.f32.mrb[0].mxu0
        %v3059 = vadd.f32 %v2831, %v3058
        %v3060 = vpop.f32.mrb[0].mxu0
        %v3061 = vadd.f32 %v2833, %v3060
        %3062 = vdwg.mxu0
        %3063 = vmatprep.subr.mxu0 %v2986
        %3064 = vmatpush1.msra.mxu0 %v2984
        %3065 = vmatprep.subr.mxu0 0.0
        %3066 = vmatpush1.msra.mxu0 0.0
        %3067 = vmatprep.subr.mxu0 0.0
        %3068 = vmatpush1.msra.mxu0 0.0
        %3069 = vmatprep.subr.mxu0 0.0
        %3070 = vmatpush1.msra.mxu0 0.0
        %3071 = vmatprep.subr.mxu0 0.0
        %3072 = vmatpush1.msra.mxu0 0.0
        %3073 = vmatprep.subr.mxu0 0.0
        %3074 = vmatpush1.msra.mxu0 0.0
        %3075 = vmatprep.subr.mxu0 0.0
        %3076 = vmatpush1.msra.mxu0 0.0
        %3077 = vmatprep.subr.mxu0 0.0
        %3078 = vmatpush1.msra.mxu0 0.0
        %3079 = vmatprep.subr.mxu0 0.0
        %3080 = vmatpush1.msra.mxu0 0.0
        %3081 = vmatprep.subr.mxu0 0.0
        %3082 = vmatpush1.msra.mxu0 0.0
        %3083 = vmatprep.subr.mxu0 0.0
        %3084 = vmatpush1.msra.mxu0 0.0
        %3085 = vmatprep.subr.mxu0 0.0
        %3086 = vmatpush1.msra.mxu0 0.0
        %3087 = vmatprep.subr.mxu0 0.0
        %3088 = vmatpush1.msra.mxu0 0.0
        %3089 = vmatprep.subr.mxu0 0.0
        %3090 = vmatpush1.msra.mxu0 0.0
        %3091 = vmatprep.subr.mxu0 0.0
        %3092 = vmatpush1.msra.mxu0 0.0
        %3093 = vmatprep.subr.mxu0 0.0
        %3094 = vmatpush1.msra.mxu0 0.0
        %3095 = vmatprep.subr.mxu0 0.0
        %3096 = vmatpush1.msra.mxu0 0.0
        %3097 = vmatprep.subr.mxu0 0.0
        %3098 = vmatpush1.msra.mxu0 0.0
        %3099 = vmatprep.subr.mxu0 0.0
        %3100 = vmatpush1.msra.mxu0 0.0
        %3101 = vmatprep.subr.mxu0 0.0
        %3102 = vmatpush1.msra.mxu0 0.0
        %3103 = vmatprep.subr.mxu0 0.0
        %3104 = vmatpush1.msra.mxu0 0.0
        %3105 = vmatprep.subr.mxu0 0.0
        %3106 = vmatpush1.msra.mxu0 0.0
        %3107 = vmatprep.subr.mxu0 0.0
        %3108 = vmatpush1.msra.mxu0 0.0
        %3109 = vmatprep.subr.mxu0 0.0
        %3110 = vmatpush1.msra.mxu0 0.0
        %3111 = vmatprep.subr.mxu0 0.0
        %3112 = vmatpush1.msra.mxu0 0.0
        %3113 = vmatprep.subr.mxu0 0.0
        %3114 = vmatpush1.msra.mxu0 0.0
        %3115 = vmatprep.subr.mxu0 0.0
        %3116 = vmatpush1.msra.mxu0 0.0
        %3117 = vmatprep.subr.mxu0 0.0
        %3118 = vmatpush1.msra.mxu0 0.0
        %3119 = vmatprep.subr.mxu0 0.0
        %3120 = vmatpush1.msra.mxu0 0.0
        %3121 = vmatprep.subr.mxu0 0.0
        %3122 = vmatpush1.msra.mxu0 0.0
        %3123 = vmatprep.subr.mxu0 0.0
        %3124 = vmatpush1.msra.mxu0 0.0
        %3125 = vmatprep.subr.mxu0 0.0
        %3126 = vmatpush1.msra.mxu0 0.0
        %3127 = vmatprep.mubr.f32.mxu0 0.0
        %3128 = vmatmul.mubr.f32.gmra.mrb[0].mxu0 %v2978
        %v3129 = vpop.f32.mrb[0].mxu0
        %v3130 = vadd.f32 %v2902, %v3129
        %v3131 = vpop.f32.mrb[0].mxu0
        %v3132 = vadd.f32 %v2904, %v3131
        %3133 = vdwg.mxu0
        %3134 = vmatprep.subr.mxu0 %v2990
        %3135 = vmatpush1.msra.mxu0 %v2988
        %3136 = vmatprep.subr.mxu0 0.0
        %3137 = vmatpush1.msra.mxu0 0.0
        %3138 = vmatprep.subr.mxu0 0.0
        %3139 = vmatpush1.msra.mxu0 0.0
        %3140 = vmatprep.subr.mxu0 0.0
        %3141 = vmatpush1.msra.mxu0 0.0
        %3142 = vmatprep.subr.mxu0 0.0
        %3143 = vmatpush1.msra.mxu0 0.0
        %3144 = vmatprep.subr.mxu0 0.0
        %3145 = vmatpush1.msra.mxu0 0.0
        %3146 = vmatprep.subr.mxu0 0.0
        %3147 = vmatpush1.msra.mxu0 0.0
        %3148 = vmatprep.subr.mxu0 0.0
        %3149 = vmatpush1.msra.mxu0 0.0
        %3150 = vmatprep.subr.mxu0 0.0
        %3151 = vmatpush1.msra.mxu0 0.0
        %3152 = vmatprep.subr.mxu0 0.0
        %3153 = vmatpush1.msra.mxu0 0.0
        %3154 = vmatprep.subr.mxu0 0.0
        %3155 = vmatpush1.msra.mxu0 0.0
        %3156 = vmatprep.subr.mxu0 0.0
        %3157 = vmatpush1.msra.mxu0 0.0
        %3158 = vmatprep.subr.mxu0 0.0
        %3159 = vmatpush1.msra.mxu0 0.0
        %3160 = vmatprep.subr.mxu0 0.0
        %3161 = vmatpush1.msra.mxu0 0.0
        %3162 = vmatprep.subr.mxu0 0.0
        %3163 = vmatpush1.msra.mxu0 0.0
        %3164 = vmatprep.subr.mxu0 0.0
        %3165 = vmatpush1.msra.mxu0 0.0
        %3166 = vmatprep.subr.mxu0 0.0
        %3167 = vmatpush1.msra.mxu0 0.0
        %3168 = vmatprep.subr.mxu0 0.0
        %3169 = vmatpush1.msra.mxu0 0.0
        %3170 = vmatprep.subr.mxu0 0.0
        %3171 = vmatpush1.msra.mxu0 0.0
        %3172 = vmatprep.subr.mxu0 0.0
        %3173 = vmatpush1.msra.mxu0 0.0
        %3174 = vmatprep.subr.mxu0 0.0
        %3175 = vmatpush1.msra.mxu0 0.0
        %3176 = vmatprep.subr.mxu0 0.0
        %3177 = vmatpush1.msra.mxu0 0.0
        %3178 = vmatprep.subr.mxu0 0.0
        %3179 = vmatpush1.msra.mxu0 0.0
        %3180 = vmatprep.subr.mxu0 0.0
        %3181 = vmatpush1.msra.mxu0 0.0
        %3182 = vmatprep.subr.mxu0 0.0
        %3183 = vmatpush1.msra.mxu0 0.0
        %3184 = vmatprep.subr.mxu0 0.0
        %3185 = vmatpush1.msra.mxu0 0.0
        %3186 = vmatprep.subr.mxu0 0.0
        %3187 = vmatpush1.msra.mxu0 0.0
        %3188 = vmatprep.subr.mxu0 0.0
        %3189 = vmatpush1.msra.mxu0 0.0
        %3190 = vmatprep.subr.mxu0 0.0
        %3191 = vmatpush1.msra.mxu0 0.0
        %3192 = vmatprep.subr.mxu0 0.0
        %3193 = vmatpush1.msra.mxu0 0.0
        %3194 = vmatprep.subr.mxu0 0.0
        %3195 = vmatpush1.msra.mxu0 0.0
        %3196 = vmatprep.subr.mxu0 0.0
        %3197 = vmatpush1.msra.mxu0 0.0
        %3198 = vmatprep.mubr.f32.mxu0 0.0
        %3199 = vmatmul.mubr.f32.gmra.mrb[0].mxu0 %v2978
        %v3200 = vpop.f32.mrb[0].mxu0
        %v3201 = vadd.f32 %v2973, %v3200
        %v3202 = vpop.f32.mrb[0].mxu0
        %v3203 = vadd.f32 %v2975, %v3202
        %3204 = vdwg.mxu0
        %s3205 = scalar_lea.vmem %s298, 8
        %v3206 = vld [vmem:[%s3205] sm:$0xf]
        %v3207 = vld [vmem:[%s0] sm:$0xff]
        %v3208 = vld [vmem:[%s0 + $0x8] sm:$0xff]
        %v3209 = vld [vmem:[%s0 + $0x10] sm:$0xff]
        %v3210 = vld [vmem:[%s0 + $0x18] sm:$0xf]
        %v3215 = vcombine.high %v3207, %v3207
        %v3216 = vcombine.high %v3208, %v3208
        %v3217 = vcombine.high %v3209, %v3209
        %3218 = vrot.lane.b32.xlu0 %v3207, 122
        %v3219 = vpop.permute.xlu0 %3218
        %3220 = vrot.lane.b32.xlu0 %v3215, 122
        %v3221 = vpop.permute.xlu0 %3220
        %3222 = vrot.lane.b32.xlu0 %v3208, 122
        %v3223 = vpop.permute.xlu0 %3222
        %3224 = vrot.lane.b32.xlu0 %v3216, 122
        %v3225 = vpop.permute.xlu0 %3224
        %3226 = vrot.lane.b32.xlu0 %v3209, 122
        %v3227 = vpop.permute.xlu0 %3226
        %3228 = vrot.lane.b32.xlu0 %v3217, 122
        %v3229 = vpop.permute.xlu0 %3228
        %3230 = vrot.lane.b32.xlu0 %v3210, 122
        %v3231 = vpop.permute.xlu0 %3230
        %vm3232 = vcmask 998400
        %v3233 = vsel %vm3232, %v3219, %v3221
        %v3234 = vsel %vm3232, %v3221, %v3223
        %v3235 = vsel %vm3232, %v3223, %v3225
        %v3236 = vsel %vm3232, %v3225, %v3227
        %v3237 = vsel %vm3232, %v3227, %v3229
        %v3238 = vsel %vm3232, %v3229, %v3231
        %v3240 = vsel %vm2747, %v3206, 0
        %v3242 = vsel %vm2751, %v3233, 0
        %v3244 = vsel %vm2751, %v3234, 0
        %v3246 = vsel %vm2751, %v3235, 0
        %v3248 = vsel %vm2751, %v3236, 0
        %v3250 = vsel %vm2751, %v3237, 0
        %v3252 = vsel %vm2751, %v3238, 0
        %3254 = vmatprep.subr.mxu0 %v3244
        %3255 = vmatpush1.msra.mxu0 %v3242
        %3256 = vmatprep.subr.mxu0 0.0
        %3257 = vmatpush1.msra.mxu0 0.0
        %3258 = vmatprep.subr.mxu0 0.0
        %3259 = vmatpush1.msra.mxu0 0.0
        %3260 = vmatprep.subr.mxu0 0.0
        %3261 = vmatpush1.msra.mxu0 0.0
        %3262 = vmatprep.subr.mxu0 0.0
        %3263 = vmatpush1.msra.mxu0 0.0
        %3264 = vmatprep.subr.mxu0 0.0
        %3265 = vmatpush1.msra.mxu0 0.0
        %3266 = vmatprep.subr.mxu0 0.0
        %3267 = vmatpush1.msra.mxu0 0.0
        %3268 = vmatprep.subr.mxu0 0.0
        %3269 = vmatpush1.msra.mxu0 0.0
        %3270 = vmatprep.subr.mxu0 0.0
        %3271 = vmatpush1.msra.mxu0 0.0
        %3272 = vmatprep.subr.mxu0 0.0
        %3273 = vmatpush1.msra.mxu0 0.0
        %3274 = vmatprep.subr.mxu0 0.0
        %3275 = vmatpush1.msra.mxu0 0.0
        %3276 = vmatprep.subr.mxu0 0.0
        %3277 = vmatpush1.msra.mxu0 0.0
        %3278 = vmatprep.subr.mxu0 0.0
        %3279 = vmatpush1.msra.mxu0 0.0
        %3280 = vmatprep.subr.mxu0 0.0
        %3281 = vmatpush1.msra.mxu0 0.0
        %3282 = vmatprep.subr.mxu0 0.0
        %3283 = vmatpush1.msra.mxu0 0.0
        %3284 = vmatprep.subr.mxu0 0.0
        %3285 = vmatpush1.msra.mxu0 0.0
        %3286 = vmatprep.subr.mxu0 0.0
        %3287 = vmatpush1.msra.mxu0 0.0
        %3288 = vmatprep.subr.mxu0 0.0
        %3289 = vmatpush1.msra.mxu0 0.0
        %3290 = vmatprep.subr.mxu0 0.0
        %3291 = vmatpush1.msra.mxu0 0.0
        %3292 = vmatprep.subr.mxu0 0.0
        %3293 = vmatpush1.msra.mxu0 0.0
        %3294 = vmatprep.subr.mxu0 0.0
        %3295 = vmatpush1.msra.mxu0 0.0
        %3296 = vmatprep.subr.mxu0 0.0
        %3297 = vmatpush1.msra.mxu0 0.0
        %3298 = vmatprep.subr.mxu0 0.0
        %3299 = vmatpush1.msra.mxu0 0.0
        %3300 = vmatprep.subr.mxu0 0.0
        %3301 = vmatpush1.msra.mxu0 0.0
        %3302 = vmatprep.subr.mxu0 0.0
        %3303 = vmatpush1.msra.mxu0 0.0
        %3304 = vmatprep.subr.mxu0 0.0
        %3305 = vmatpush1.msra.mxu0 0.0
        %3306 = vmatprep.subr.mxu0 0.0
        %3307 = vmatpush1.msra.mxu0 0.0
        %3308 = vmatprep.subr.mxu0 0.0
        %3309 = vmatpush1.msra.mxu0 0.0
        %3310 = vmatprep.subr.mxu0 0.0
        %3311 = vmatpush1.msra.mxu0 0.0
        %3312 = vmatprep.subr.mxu0 0.0
        %3313 = vmatpush1.msra.mxu0 0.0
        %3314 = vmatprep.subr.mxu0 0.0
        %3315 = vmatpush1.msra.mxu0 0.0
        %3316 = vmatprep.subr.mxu0 0.0
        %3317 = vmatpush1.msra.mxu0 0.0
        %3318 = vmatprep.mubr.f32.mxu0 0.0
        %3319 = vmatmul.mubr.f32.gmra.mrb[0].mxu0 %v3240
        %v3320 = vpop.f32.mrb[0].mxu0
        %v3321 = vadd.f32 0.0, %v3320
        %v3322 = vpop.f32.mrb[0].mxu0
        %v3323 = vadd.f32 0.0, %v3322
        %3324 = vdwg.mxu0
        %3325 = vmatprep.subr.mxu0 %v3248
        %3326 = vmatpush1.msra.mxu0 %v3246
        %3327 = vmatprep.subr.mxu0 0.0
        %3328 = vmatpush1.msra.mxu0 0.0
        %3329 = vmatprep.subr.mxu0 0.0
        %3330 = vmatpush1.msra.mxu0 0.0
        %3331 = vmatprep.subr.mxu0 0.0
        %3332 = vmatpush1.msra.mxu0 0.0
        %3333 = vmatprep.subr.mxu0 0.0
        %3334 = vmatpush1.msra.mxu0 0.0
        %3335 = vmatprep.subr.mxu0 0.0
        %3336 = vmatpush1.msra.mxu0 0.0
        %3337 = vmatprep.subr.mxu0 0.0
        %3338 = vmatpush1.msra.mxu0 0.0
        %3339 = vmatprep.subr.mxu0 0.0
        %3340 = vmatpush1.msra.mxu0 0.0
        %3341 = vmatprep.subr.mxu0 0.0
        %3342 = vmatpush1.msra.mxu0 0.0
        %3343 = vmatprep.subr.mxu0 0.0
        %3344 = vmatpush1.msra.mxu0 0.0
        %3345 = vmatprep.subr.mxu0 0.0
        %3346 = vmatpush1.msra.mxu0 0.0
        %3347 = vmatprep.subr.mxu0 0.0
        %3348 = vmatpush1.msra.mxu0 0.0
        %3349 = vmatprep.subr.mxu0 0.0
        %3350 = vmatpush1.msra.mxu0 0.0
        %3351 = vmatprep.subr.mxu0 0.0
        %3352 = vmatpush1.msra.mxu0 0.0
        %3353 = vmatprep.subr.mxu0 0.0
        %3354 = vmatpush1.msra.mxu0 0.0
        %3355 = vmatprep.subr.mxu0 0.0
        %3356 = vmatpush1.msra.mxu0 0.0
        %3357 = vmatprep.subr.mxu0 0.0
        %3358 = vmatpush1.msra.mxu0 0.0
        %3359 = vmatprep.subr.mxu0 0.0
        %3360 = vmatpush1.msra.mxu0 0.0
        %3361 = vmatprep.subr.mxu0 0.0
        %3362 = vmatpush1.msra.mxu0 0.0
        %3363 = vmatprep.subr.mxu0 0.0
        %3364 = vmatpush1.msra.mxu0 0.0
        %3365 = vmatprep.subr.mxu0 0.0
        %3366 = vmatpush1.msra.mxu0 0.0
        %3367 = vmatprep.subr.mxu0 0.0
        %3368 = vmatpush1.msra.mxu0 0.0
        %3369 = vmatprep.subr.mxu0 0.0
        %3370 = vmatpush1.msra.mxu0 0.0
        %3371 = vmatprep.subr.mxu0 0.0
        %3372 = vmatpush1.msra.mxu0 0.0
        %3373 = vmatprep.subr.mxu0 0.0
        %3374 = vmatpush1.msra.mxu0 0.0
        %3375 = vmatprep.subr.mxu0 0.0
        %3376 = vmatpush1.msra.mxu0 0.0
        %3377 = vmatprep.subr.mxu0 0.0
        %3378 = vmatpush1.msra.mxu0 0.0
        %3379 = vmatprep.subr.mxu0 0.0
        %3380 = vmatpush1.msra.mxu0 0.0
        %3381 = vmatprep.subr.mxu0 0.0
        %3382 = vmatpush1.msra.mxu0 0.0
        %3383 = vmatprep.subr.mxu0 0.0
        %3384 = vmatpush1.msra.mxu0 0.0
        %3385 = vmatprep.subr.mxu0 0.0
        %3386 = vmatpush1.msra.mxu0 0.0
        %3387 = vmatprep.subr.mxu0 0.0
        %3388 = vmatpush1.msra.mxu0 0.0
        %3389 = vmatprep.mubr.f32.mxu0 0.0
        %3390 = vmatmul.mubr.f32.gmra.mrb[0].mxu0 %v3240
        %v3391 = vpop.f32.mrb[0].mxu0
        %v3392 = vadd.f32 0.0, %v3391
        %v3393 = vpop.f32.mrb[0].mxu0
        %v3394 = vadd.f32 0.0, %v3393
        %3395 = vdwg.mxu0
        %3396 = vmatprep.subr.mxu0 %v3252
        %3397 = vmatpush1.msra.mxu0 %v3250
        %3398 = vmatprep.subr.mxu0 0.0
        %3399 = vmatpush1.msra.mxu0 0.0
        %3400 = vmatprep.subr.mxu0 0.0
        %3401 = vmatpush1.msra.mxu0 0.0
        %3402 = vmatprep.subr.mxu0 0.0
        %3403 = vmatpush1.msra.mxu0 0.0
        %3404 = vmatprep.subr.mxu0 0.0
        %3405 = vmatpush1.msra.mxu0 0.0
        %3406 = vmatprep.subr.mxu0 0.0
        %3407 = vmatpush1.msra.mxu0 0.0
        %3408 = vmatprep.subr.mxu0 0.0
        %3409 = vmatpush1.msra.mxu0 0.0
        %3410 = vmatprep.subr.mxu0 0.0
        %3411 = vmatpush1.msra.mxu0 0.0
        %3412 = vmatprep.subr.mxu0 0.0
        %3413 = vmatpush1.msra.mxu0 0.0
        %3414 = vmatprep.subr.mxu0 0.0
        %3415 = vmatpush1.msra.mxu0 0.0
        %3416 = vmatprep.subr.mxu0 0.0
        %3417 = vmatpush1.msra.mxu0 0.0
        %3418 = vmatprep.subr.mxu0 0.0
        %3419 = vmatpush1.msra.mxu0 0.0
        %3420 = vmatprep.subr.mxu0 0.0
        %3421 = vmatpush1.msra.mxu0 0.0
        %3422 = vmatprep.subr.mxu0 0.0
        %3423 = vmatpush1.msra.mxu0 0.0
        %3424 = vmatprep.subr.mxu0 0.0
        %3425 = vmatpush1.msra.mxu0 0.0
        %3426 = vmatprep.subr.mxu0 0.0
        %3427 = vmatpush1.msra.mxu0 0.0
        %3428 = vmatprep.subr.mxu0 0.0
        %3429 = vmatpush1.msra.mxu0 0.0
        %3430 = vmatprep.subr.mxu0 0.0
        %3431 = vmatpush1.msra.mxu0 0.0
        %3432 = vmatprep.subr.mxu0 0.0
        %3433 = vmatpush1.msra.mxu0 0.0
        %3434 = vmatprep.subr.mxu0 0.0
        %3435 = vmatpush1.msra.mxu0 0.0
        %3436 = vmatprep.subr.mxu0 0.0
        %3437 = vmatpush1.msra.mxu0 0.0
        %3438 = vmatprep.subr.mxu0 0.0
        %3439 = vmatpush1.msra.mxu0 0.0
        %3440 = vmatprep.subr.mxu0 0.0
        %3441 = vmatpush1.msra.mxu0 0.0
        %3442 = vmatprep.subr.mxu0 0.0
        %3443 = vmatpush1.msra.mxu0 0.0
        %3444 = vmatprep.subr.mxu0 0.0
        %3445 = vmatpush1.msra.mxu0 0.0
        %3446 = vmatprep.subr.mxu0 0.0
        %3447 = vmatpush1.msra.mxu0 0.0
        %3448 = vmatprep.subr.mxu0 0.0
        %3449 = vmatpush1.msra.mxu0 0.0
        %3450 = vmatprep.subr.mxu0 0.0
        %3451 = vmatpush1.msra.mxu0 0.0
        %3452 = vmatprep.subr.mxu0 0.0
        %3453 = vmatpush1.msra.mxu0 0.0
        %3454 = vmatprep.subr.mxu0 0.0
        %3455 = vmatpush1.msra.mxu0 0.0
        %3456 = vmatprep.subr.mxu0 0.0
        %3457 = vmatpush1.msra.mxu0 0.0
        %3458 = vmatprep.subr.mxu0 0.0
        %3459 = vmatpush1.msra.mxu0 0.0
        %3460 = vmatprep.mubr.f32.mxu0 0.0
        %3461 = vmatmul.mubr.f32.gmra.mrb[0].mxu0 %v3240
        %v3462 = vpop.f32.mrb[0].mxu0
        %v3463 = vadd.f32 0.0, %v3462
        %v3464 = vpop.f32.mrb[0].mxu0
        %v3465 = vadd.f32 0.0, %v3464
        %3466 = vdwg.mxu0
        %v3467 = vadd.f32 %v3059, %v3321
        %v3468 = vadd.f32 %v3061, %v3323
        %v3469 = vadd.f32 %v3130, %v3392
        %v3470 = vadd.f32 %v3132, %v3394
        %v3471 = vadd.f32 %v3201, %v3463
        %v3472 = vadd.f32 %v3203, %v3465
        %s3473 = scalar_lea.vmem %s298, 12
        %v3474 = vld [vmem:[%s3473] sm:$0xf]
        %v3475 = vld [vmem:[%s0] sm:$0xff]
        %v3476 = vld [vmem:[%s0 + $0x8] sm:$0xff]
        %v3477 = vld [vmem:[%s0 + $0x10] sm:$0xff]
        %v3478 = vld [vmem:[%s0 + $0x18] sm:$0xf]
        %v3483 = vcombine.high %v3475, %v3475
        %v3484 = vcombine.high %v3476, %v3476
        %v3485 = vcombine.high %v3477, %v3477
        %3486 = vrot.lane.b32.xlu0 %v3475, 74
        %v3487 = vpop.permute.xlu0 %3486
        %3488 = vrot.lane.b32.xlu0 %v3483, 74
        %v3489 = vpop.permute.xlu0 %3488
        %3490 = vrot.lane.b32.xlu0 %v3476, 74
        %v3491 = vpop.permute.xlu0 %3490
        %3492 = vrot.lane.b32.xlu0 %v3484, 74
        %v3493 = vpop.permute.xlu0 %3492
        %3494 = vrot.lane.b32.xlu0 %v3477, 74
        %v3495 = vpop.permute.xlu0 %3494
        %3496 = vrot.lane.b32.xlu0 %v3485, 74
        %v3497 = vpop.permute.xlu0 %3496
        %3498 = vrot.lane.b32.xlu0 %v3478, 74
        %v3499 = vpop.permute.xlu0 %3498
        %vm3500 = vcmask 605184
        %v3501 = vsel %vm3500, %v3487, %v3489
        %v3502 = vsel %vm3500, %v3489, %v3491
        %v3503 = vsel %vm3500, %v3491, %v3493
        %v3504 = vsel %vm3500, %v3493, %v3495
        %v3505 = vsel %vm3500, %v3495, %v3497
        %v3506 = vsel %vm3500, %v3497, %v3499
        %v3508 = vsel %vm2747, %v3474, 0
        %v3510 = vsel %vm2751, %v3501, 0
        %v3512 = vsel %vm2751, %v3502, 0
        %v3514 = vsel %vm2751, %v3503, 0
        %v3516 = vsel %vm2751, %v3504, 0
        %v3518 = vsel %vm2751, %v3505, 0
        %v3520 = vsel %vm2751, %v3506, 0
        %3522 = vmatprep.subr.mxu0 %v3512
        %3523 = vmatpush1.msra.mxu0 %v3510
        %3524 = vmatprep.subr.mxu0 0.0
        %3525 = vmatpush1.msra.mxu0 0.0
        %3526 = vmatprep.subr.mxu0 0.0
        %3527 = vmatpush1.msra.mxu0 0.0
        %3528 = vmatprep.subr.mxu0 0.0
        %3529 = vmatpush1.msra.mxu0 0.0
        %3530 = vmatprep.subr.mxu0 0.0
        %3531 = vmatpush1.msra.mxu0 0.0
        %3532 = vmatprep.subr.mxu0 0.0
        %3533 = vmatpush1.msra.mxu0 0.0
        %3534 = vmatprep.subr.mxu0 0.0
        %3535 = vmatpush1.msra.mxu0 0.0
        %3536 = vmatprep.subr.mxu0 0.0
        %3537 = vmatpush1.msra.mxu0 0.0
        %3538 = vmatprep.subr.mxu0 0.0
        %3539 = vmatpush1.msra.mxu0 0.0
        %3540 = vmatprep.subr.mxu0 0.0
        %3541 = vmatpush1.msra.mxu0 0.0
        %3542 = vmatprep.subr.mxu0 0.0
        %3543 = vmatpush1.msra.mxu0 0.0
        %3544 = vmatprep.subr.mxu0 0.0
        %3545 = vmatpush1.msra.mxu0 0.0
        %3546 = vmatprep.subr.mxu0 0.0
        %3547 = vmatpush1.msra.mxu0 0.0
        %3548 = vmatprep.subr.mxu0 0.0
        %3549 = vmatpush1.msra.mxu0 0.0
        %3550 = vmatprep.subr.mxu0 0.0
        %3551 = vmatpush1.msra.mxu0 0.0
        %3552 = vmatprep.subr.mxu0 0.0
        %3553 = vmatpush1.msra.mxu0 0.0
        %3554 = vmatprep.subr.mxu0 0.0
        %3555 = vmatpush1.msra.mxu0 0.0
        %3556 = vmatprep.subr.mxu0 0.0
        %3557 = vmatpush1.msra.mxu0 0.0
        %3558 = vmatprep.subr.mxu0 0.0
        %3559 = vmatpush1.msra.mxu0 0.0
        %3560 = vmatprep.subr.mxu0 0.0
        %3561 = vmatpush1.msra.mxu0 0.0
        %3562 = vmatprep.subr.mxu0 0.0
        %3563 = vmatpush1.msra.mxu0 0.0
        %3564 = vmatprep.subr.mxu0 0.0
        %3565 = vmatpush1.msra.mxu0 0.0
        %3566 = vmatprep.subr.mxu0 0.0
        %3567 = vmatpush1.msra.mxu0 0.0
        %3568 = vmatprep.subr.mxu0 0.0
        %3569 = vmatpush1.msra.mxu0 0.0
        %3570 = vmatprep.subr.mxu0 0.0
        %3571 = vmatpush1.msra.mxu0 0.0
        %3572 = vmatprep.subr.mxu0 0.0
        %3573 = vmatpush1.msra.mxu0 0.0
        %3574 = vmatprep.subr.mxu0 0.0
        %3575 = vmatpush1.msra.mxu0 0.0
        %3576 = vmatprep.subr.mxu0 0.0
        %3577 = vmatpush1.msra.mxu0 0.0
        %3578 = vmatprep.subr.mxu0 0.0
        %3579 = vmatpush1.msra.mxu0 0.0
        %3580 = vmatprep.subr.mxu0 0.0
        %3581 = vmatpush1.msra.mxu0 0.0
        %3582 = vmatprep.subr.mxu0 0.0
        %3583 = vmatpush1.msra.mxu0 0.0
        %3584 = vmatprep.subr.mxu0 0.0
        %3585 = vmatpush1.msra.mxu0 0.0
        %3586 = vmatprep.mubr.f32.mxu0 0.0
        %3587 = vmatmul.mubr.f32.gmra.mrb[0].mxu0 %v3508
        %v3588 = vpop.f32.mrb[0].mxu0
        %v3589 = vadd.f32 0.0, %v3588
        %v3590 = vpop.f32.mrb[0].mxu0
        %v3591 = vadd.f32 0.0, %v3590
        %3592 = vdwg.mxu0
        %3593 = vmatprep.subr.mxu0 %v3516
        %3594 = vmatpush1.msra.mxu0 %v3514
        %3595 = vmatprep.subr.mxu0 0.0
        %3596 = vmatpush1.msra.mxu0 0.0
        %3597 = vmatprep.subr.mxu0 0.0
        %3598 = vmatpush1.msra.mxu0 0.0
        %3599 = vmatprep.subr.mxu0 0.0
        %3600 = vmatpush1.msra.mxu0 0.0
        %3601 = vmatprep.subr.mxu0 0.0
        %3602 = vmatpush1.msra.mxu0 0.0
        %3603 = vmatprep.subr.mxu0 0.0
        %3604 = vmatpush1.msra.mxu0 0.0
        %3605 = vmatprep.subr.mxu0 0.0
        %3606 = vmatpush1.msra.mxu0 0.0
        %3607 = vmatprep.subr.mxu0 0.0
        %3608 = vmatpush1.msra.mxu0 0.0
        %3609 = vmatprep.subr.mxu0 0.0
        %3610 = vmatpush1.msra.mxu0 0.0
        %3611 = vmatprep.subr.mxu0 0.0
        %3612 = vmatpush1.msra.mxu0 0.0
        %3613 = vmatprep.subr.mxu0 0.0
        %3614 = vmatpush1.msra.mxu0 0.0
        %3615 = vmatprep.subr.mxu0 0.0
        %3616 = vmatpush1.msra.mxu0 0.0
        %3617 = vmatprep.subr.mxu0 0.0
        %3618 = vmatpush1.msra.mxu0 0.0
        %3619 = vmatprep.subr.mxu0 0.0
        %3620 = vmatpush1.msra.mxu0 0.0
        %3621 = vmatprep.subr.mxu0 0.0
        %3622 = vmatpush1.msra.mxu0 0.0
        %3623 = vmatprep.subr.mxu0 0.0
        %3624 = vmatpush1.msra.mxu0 0.0
        %3625 = vmatprep.subr.mxu0 0.0
        %3626 = vmatpush1.msra.mxu0 0.0
        %3627 = vmatprep.subr.mxu0 0.0
        %3628 = vmatpush1.msra.mxu0 0.0
        %3629 = vmatprep.subr.mxu0 0.0
        %3630 = vmatpush1.msra.mxu0 0.0
        %3631 = vmatprep.subr.mxu0 0.0
        %3632 = vmatpush1.msra.mxu0 0.0
        %3633 = vmatprep.subr.mxu0 0.0
        %3634 = vmatpush1.msra.mxu0 0.0
        %3635 = vmatprep.subr.mxu0 0.0
        %3636 = vmatpush1.msra.mxu0 0.0
        %3637 = vmatprep.subr.mxu0 0.0
        %3638 = vmatpush1.msra.mxu0 0.0
        %3639 = vmatprep.subr.mxu0 0.0
        %3640 = vmatpush1.msra.mxu0 0.0
        %3641 = vmatprep.subr.mxu0 0.0
        %3642 = vmatpush1.msra.mxu0 0.0
        %3643 = vmatprep.subr.mxu0 0.0
        %3644 = vmatpush1.msra.mxu0 0.0
        %3645 = vmatprep.subr.mxu0 0.0
        %3646 = vmatpush1.msra.mxu0 0.0
        %3647 = vmatprep.subr.mxu0 0.0
        %3648 = vmatpush1.msra.mxu0 0.0
        %3649 = vmatprep.subr.mxu0 0.0
        %3650 = vmatpush1.msra.mxu0 0.0
        %3651 = vmatprep.subr.mxu0 0.0
        %3652 = vmatpush1.msra.mxu0 0.0
        %3653 = vmatprep.subr.mxu0 0.0
        %3654 = vmatpush1.msra.mxu0 0.0
        %3655 = vmatprep.subr.mxu0 0.0
        %3656 = vmatpush1.msra.mxu0 0.0
        %3657 = vmatprep.mubr.f32.mxu0 0.0
        %3658 = vmatmul.mubr.f32.gmra.mrb[0].mxu0 %v3508
        %v3659 = vpop.f32.mrb[0].mxu0
        %v3660 = vadd.f32 0.0, %v3659
        %v3661 = vpop.f32.mrb[0].mxu0
        %v3662 = vadd.f32 0.0, %v3661
        %3663 = vdwg.mxu0
        %3664 = vmatprep.subr.mxu0 %v3520
        %3665 = vmatpush1.msra.mxu0 %v3518
        %3666 = vmatprep.subr.mxu0 0.0
        %3667 = vmatpush1.msra.mxu0 0.0
        %3668 = vmatprep.subr.mxu0 0.0
        %3669 = vmatpush1.msra.mxu0 0.0
        %3670 = vmatprep.subr.mxu0 0.0
        %3671 = vmatpush1.msra.mxu0 0.0
        %3672 = vmatprep.subr.mxu0 0.0
        %3673 = vmatpush1.msra.mxu0 0.0
        %3674 = vmatprep.subr.mxu0 0.0
        %3675 = vmatpush1.msra.mxu0 0.0
        %3676 = vmatprep.subr.mxu0 0.0
        %3677 = vmatpush1.msra.mxu0 0.0
        %3678 = vmatprep.subr.mxu0 0.0
        %3679 = vmatpush1.msra.mxu0 0.0
        %3680 = vmatprep.subr.mxu0 0.0
        %3681 = vmatpush1.msra.mxu0 0.0
        %3682 = vmatprep.subr.mxu0 0.0
        %3683 = vmatpush1.msra.mxu0 0.0
        %3684 = vmatprep.subr.mxu0 0.0
        %3685 = vmatpush1.msra.mxu0 0.0
        %3686 = vmatprep.subr.mxu0 0.0
        %3687 = vmatpush1.msra.mxu0 0.0
        %3688 = vmatprep.subr.mxu0 0.0
        %3689 = vmatpush1.msra.mxu0 0.0
        %3690 = vmatprep.subr.mxu0 0.0
        %3691 = vmatpush1.msra.mxu0 0.0
        %3692 = vmatprep.subr.mxu0 0.0
        %3693 = vmatpush1.msra.mxu0 0.0
        %3694 = vmatprep.subr.mxu0 0.0
        %3695 = vmatpush1.msra.mxu0 0.0
        %3696 = vmatprep.subr.mxu0 0.0
        %3697 = vmatpush1.msra.mxu0 0.0
        %3698 = vmatprep.subr.mxu0 0.0
        %3699 = vmatpush1.msra.mxu0 0.0
        %3700 = vmatprep.subr.mxu0 0.0
        %3701 = vmatpush1.msra.mxu0 0.0
        %3702 = vmatprep.subr.mxu0 0.0
        %3703 = vmatpush1.msra.mxu0 0.0
        %3704 = vmatprep.subr.mxu0 0.0
        %3705 = vmatpush1.msra.mxu0 0.0
        %3706 = vmatprep.subr.mxu0 0.0
        %3707 = vmatpush1.msra.mxu0 0.0
        %3708 = vmatprep.subr.mxu0 0.0
        %3709 = vmatpush1.msra.mxu0 0.0
        %3710 = vmatprep.subr.mxu0 0.0
        %3711 = vmatpush1.msra.mxu0 0.0
        %3712 = vmatprep.subr.mxu0 0.0
        %3713 = vmatpush1.msra.mxu0 0.0
        %3714 = vmatprep.subr.mxu0 0.0
        %3715 = vmatpush1.msra.mxu0 0.0
        %3716 = vmatprep.subr.mxu0 0.0
        %3717 = vmatpush1.msra.mxu0 0.0
        %3718 = vmatprep.subr.mxu0 0.0
        %3719 = vmatpush1.msra.mxu0 0.0
        %3720 = vmatprep.subr.mxu0 0.0
        %3721 = vmatpush1.msra.mxu0 0.0
        %3722 = vmatprep.subr.mxu0 0.0
        %3723 = vmatpush1.msra.mxu0 0.0
        %3724 = vmatprep.subr.mxu0 0.0
        %3725 = vmatpush1.msra.mxu0 0.0
        %3726 = vmatprep.subr.mxu0 0.0
        %3727 = vmatpush1.msra.mxu0 0.0
        %3728 = vmatprep.mubr.f32.mxu0 0.0
        %3729 = vmatmul.mubr.f32.gmra.mrb[0].mxu0 %v3508
        %v3730 = vpop.f32.mrb[0].mxu0
        %v3731 = vadd.f32 0.0, %v3730
        %v3732 = vpop.f32.mrb[0].mxu0
        %v3733 = vadd.f32 0.0, %v3732
        %3734 = vdwg.mxu0
        %v3735 = vadd.f32 %v3467, %v3589
        %v3736 = vadd.f32 %v3468, %v3591
        %v3737 = vadd.f32 %v3469, %v3660
        %v3738 = vadd.f32 %v3470, %v3662
        %v3739 = vadd.f32 %v3471, %v3731
        %v3740 = vadd.f32 %v3472, %v3733
        %s3741 = scalar_lea.vmem %s298, 16
        %v3742 = vld [vmem:[%s3741] sm:$0xf]
        %v3743 = vld [vmem:[%s0] sm:$0xff]
        %v3744 = vld [vmem:[%s0 + $0x8] sm:$0xff]
        %v3745 = vld [vmem:[%s0 + $0x10] sm:$0xff]
        %v3746 = vld [vmem:[%s0 + $0x18] sm:$0xf]
        %v3751 = vcombine.high %v3743, %v3743
        %v3752 = vcombine.high %v3744, %v3744
        %v3753 = vcombine.high %v3745, %v3745
        %3754 = vrot.lane.b32.xlu0 %v3743, 71
        %v3755 = vpop.permute.xlu0 %3754
        %3756 = vrot.lane.b32.xlu0 %v3751, 71
        %v3757 = vpop.permute.xlu0 %3756
        %3758 = vrot.lane.b32.xlu0 %v3744, 71
        %v3759 = vpop.permute.xlu0 %3758
        %3760 = vrot.lane.b32.xlu0 %v3752, 71
        %v3761 = vpop.permute.xlu0 %3760
        %3762 = vrot.lane.b32.xlu0 %v3745, 71
        %v3763 = vpop.permute.xlu0 %3762
        %3764 = vrot.lane.b32.xlu0 %v3753, 71
        %v3765 = vpop.permute.xlu0 %3764
        %3766 = vrot.lane.b32.xlu0 %v3746, 71
        %v3767 = vpop.permute.xlu0 %3766
        %vm3768 = vcmask 580608
        %v3769 = vsel %vm3768, %v3755, %v3757
        %v3770 = vsel %vm3768, %v3757, %v3759
        %v3771 = vsel %vm3768, %v3759, %v3761
        %v3772 = vsel %vm3768, %v3761, %v3763
        %v3773 = vsel %vm3768, %v3763, %v3765
        %v3774 = vsel %vm3768, %v3765, %v3767
        %v3776 = vsel %vm2747, %v3742, 0
        %v3778 = vsel %vm2751, %v3769, 0
        %v3780 = vsel %vm2751, %v3770, 0
        %v3782 = vsel %vm2751, %v3771, 0
        %v3784 = vsel %vm2751, %v3772, 0
        %v3786 = vsel %vm2751, %v3773, 0
        %v3788 = vsel %vm2751, %v3774, 0
        %3790 = vmatprep.subr.mxu0 %v3780
        %3791 = vmatpush1.msra.mxu0 %v3778
        %3792 = vmatprep.subr.mxu0 0.0
        %3793 = vmatpush1.msra.mxu0 0.0
        %3794 = vmatprep.subr.mxu0 0.0
        %3795 = vmatpush1.msra.mxu0 0.0
        %3796 = vmatprep.subr.mxu0 0.0
        %3797 = vmatpush1.msra.mxu0 0.0
        %3798 = vmatprep.subr.mxu0 0.0
        %3799 = vmatpush1.msra.mxu0 0.0
        %3800 = vmatprep.subr.mxu0 0.0
        %3801 = vmatpush1.msra.mxu0 0.0
        %3802 = vmatprep.subr.mxu0 0.0
        %3803 = vmatpush1.msra.mxu0 0.0
        %3804 = vmatprep.subr.mxu0 0.0
        %3805 = vmatpush1.msra.mxu0 0.0
        %3806 = vmatprep.subr.mxu0 0.0
        %3807 = vmatpush1.msra.mxu0 0.0
        %3808 = vmatprep.subr.mxu0 0.0
        %3809 = vmatpush1.msra.mxu0 0.0
        %3810 = vmatprep.subr.mxu0 0.0
        %3811 = vmatpush1.msra.mxu0 0.0
        %3812 = vmatprep.subr.mxu0 0.0
        %3813 = vmatpush1.msra.mxu0 0.0
        %3814 = vmatprep.subr.mxu0 0.0
        %3815 = vmatpush1.msra.mxu0 0.0
        %3816 = vmatprep.subr.mxu0 0.0
        %3817 = vmatpush1.msra.mxu0 0.0
        %3818 = vmatprep.subr.mxu0 0.0
        %3819 = vmatpush1.msra.mxu0 0.0
        %3820 = vmatprep.subr.mxu0 0.0
        %3821 = vmatpush1.msra.mxu0 0.0
        %3822 = vmatprep.subr.mxu0 0.0
        %3823 = vmatpush1.msra.mxu0 0.0
        %3824 = vmatprep.subr.mxu0 0.0
        %3825 = vmatpush1.msra.mxu0 0.0
        %3826 = vmatprep.subr.mxu0 0.0
        %3827 = vmatpush1.msra.mxu0 0.0
        %3828 = vmatprep.subr.mxu0 0.0
        %3829 = vmatpush1.msra.mxu0 0.0
        %3830 = vmatprep.subr.mxu0 0.0
        %3831 = vmatpush1.msra.mxu0 0.0
        %3832 = vmatprep.subr.mxu0 0.0
        %3833 = vmatpush1.msra.mxu0 0.0
        %3834 = vmatprep.subr.mxu0 0.0
        %3835 = vmatpush1.msra.mxu0 0.0
        %3836 = vmatprep.subr.mxu0 0.0
        %3837 = vmatpush1.msra.mxu0 0.0
        %3838 = vmatprep.subr.mxu0 0.0
        %3839 = vmatpush1.msra.mxu0 0.0
        %3840 = vmatprep.subr.mxu0 0.0
        %3841 = vmatpush1.msra.mxu0 0.0
        %3842 = vmatprep.subr.mxu0 0.0
        %3843 = vmatpush1.msra.mxu0 0.0
        %3844 = vmatprep.subr.mxu0 0.0
        %3845 = vmatpush1.msra.mxu0 0.0
        %3846 = vmatprep.subr.mxu0 0.0
        %3847 = vmatpush1.msra.mxu0 0.0
        %3848 = vmatprep.subr.mxu0 0.0
        %3849 = vmatpush1.msra.mxu0 0.0
        %3850 = vmatprep.subr.mxu0 0.0
        %3851 = vmatpush1.msra.mxu0 0.0
        %3852 = vmatprep.subr.mxu0 0.0
        %3853 = vmatpush1.msra.mxu0 0.0
        %3854 = vmatprep.mubr.f32.mxu0 0.0
        %3855 = vmatmul.mubr.f32.gmra.mrb[0].mxu0 %v3776
        %v3856 = vpop.f32.mrb[0].mxu0
        %v3857 = vadd.f32 0.0, %v3856
        %v3858 = vpop.f32.mrb[0].mxu0
        %v3859 = vadd.f32 0.0, %v3858
        %3860 = vdwg.mxu0
        %3861 = vmatprep.subr.mxu0 %v3784
        %3862 = vmatpush1.msra.mxu0 %v3782
        %3863 = vmatprep.subr.mxu0 0.0
        %3864 = vmatpush1.msra.mxu0 0.0
        %3865 = vmatprep.subr.mxu0 0.0
        %3866 = vmatpush1.msra.mxu0 0.0
        %3867 = vmatprep.subr.mxu0 0.0
        %3868 = vmatpush1.msra.mxu0 0.0
        %3869 = vmatprep.subr.mxu0 0.0
        %3870 = vmatpush1.msra.mxu0 0.0
        %3871 = vmatprep.subr.mxu0 0.0
        %3872 = vmatpush1.msra.mxu0 0.0
        %3873 = vmatprep.subr.mxu0 0.0
        %3874 = vmatpush1.msra.mxu0 0.0
        %3875 = vmatprep.subr.mxu0 0.0
        %3876 = vmatpush1.msra.mxu0 0.0
        %3877 = vmatprep.subr.mxu0 0.0
        %3878 = vmatpush1.msra.mxu0 0.0
        %3879 = vmatprep.subr.mxu0 0.0
        %3880 = vmatpush1.msra.mxu0 0.0
        %3881 = vmatprep.subr.mxu0 0.0
        %3882 = vmatpush1.msra.mxu0 0.0
        %3883 = vmatprep.subr.mxu0 0.0
        %3884 = vmatpush1.msra.mxu0 0.0
        %3885 = vmatprep.subr.mxu0 0.0
        %3886 = vmatpush1.msra.mxu0 0.0
        %3887 = vmatprep.subr.mxu0 0.0
        %3888 = vmatpush1.msra.mxu0 0.0
        %3889 = vmatprep.subr.mxu0 0.0
        %3890 = vmatpush1.msra.mxu0 0.0
        %3891 = vmatprep.subr.mxu0 0.0
        %3892 = vmatpush1.msra.mxu0 0.0
        %3893 = vmatprep.subr.mxu0 0.0
        %3894 = vmatpush1.msra.mxu0 0.0
        %3895 = vmatprep.subr.mxu0 0.0
        %3896 = vmatpush1.msra.mxu0 0.0
        %3897 = vmatprep.subr.mxu0 0.0
        %3898 = vmatpush1.msra.mxu0 0.0
        %3899 = vmatprep.subr.mxu0 0.0
        %3900 = vmatpush1.msra.mxu0 0.0
        %3901 = vmatprep.subr.mxu0 0.0
        %3902 = vmatpush1.msra.mxu0 0.0
        %3903 = vmatprep.subr.mxu0 0.0
        %3904 = vmatpush1.msra.mxu0 0.0
        %3905 = vmatprep.subr.mxu0 0.0
        %3906 = vmatpush1.msra.mxu0 0.0
        %3907 = vmatprep.subr.mxu0 0.0
        %3908 = vmatpush1.msra.mxu0 0.0
        %3909 = vmatprep.subr.mxu0 0.0
        %3910 = vmatpush1.msra.mxu0 0.0
        %3911 = vmatprep.subr.mxu0 0.0
        %3912 = vmatpush1.msra.mxu0 0.0
        %3913 = vmatprep.subr.mxu0 0.0
        %3914 = vmatpush1.msra.mxu0 0.0
        %3915 = vmatprep.subr.mxu0 0.0
        %3916 = vmatpush1.msra.mxu0 0.0
        %3917 = vmatprep.subr.mxu0 0.0
        %3918 = vmatpush1.msra.mxu0 0.0
        %3919 = vmatprep.subr.mxu0 0.0
        %3920 = vmatpush1.msra.mxu0 0.0
        %3921 = vmatprep.subr.mxu0 0.0
        %3922 = vmatpush1.msra.mxu0 0.0
        %3923 = vmatprep.subr.mxu0 0.0
        %3924 = vmatpush1.msra.mxu0 0.0
        %3925 = vmatprep.mubr.f32.mxu0 0.0
        %3926 = vmatmul.mubr.f32.gmra.mrb[0].mxu0 %v3776
        %v3927 = vpop.f32.mrb[0].mxu0
        %v3928 = vadd.f32 0.0, %v3927
        %v3929 = vpop.f32.mrb[0].mxu0
        %v3930 = vadd.f32 0.0, %v3929
        %3931 = vdwg.mxu0
        %3932 = vmatprep.subr.mxu0 %v3788
        %3933 = vmatpush1.msra.mxu0 %v3786
        %3934 = vmatprep.subr.mxu0 0.0
        %3935 = vmatpush1.msra.mxu0 0.0
        %3936 = vmatprep.subr.mxu0 0.0
        %3937 = vmatpush1.msra.mxu0 0.0
        %3938 = vmatprep.subr.mxu0 0.0
        %3939 = vmatpush1.msra.mxu0 0.0
        %3940 = vmatprep.subr.mxu0 0.0
        %3941 = vmatpush1.msra.mxu0 0.0
        %3942 = vmatprep.subr.mxu0 0.0
        %3943 = vmatpush1.msra.mxu0 0.0
        %3944 = vmatprep.subr.mxu0 0.0
        %3945 = vmatpush1.msra.mxu0 0.0
        %3946 = vmatprep.subr.mxu0 0.0
        %3947 = vmatpush1.msra.mxu0 0.0
        %3948 = vmatprep.subr.mxu0 0.0
        %3949 = vmatpush1.msra.mxu0 0.0
        %3950 = vmatprep.subr.mxu0 0.0
        %3951 = vmatpush1.msra.mxu0 0.0
        %3952 = vmatprep.subr.mxu0 0.0
        %3953 = vmatpush1.msra.mxu0 0.0
        %3954 = vmatprep.subr.mxu0 0.0
        %3955 = vmatpush1.msra.mxu0 0.0
        %3956 = vmatprep.subr.mxu0 0.0
        %3957 = vmatpush1.msra.mxu0 0.0
        %3958 = vmatprep.subr.mxu0 0.0
        %3959 = vmatpush1.msra.mxu0 0.0
        %3960 = vmatprep.subr.mxu0 0.0
        %3961 = vmatpush1.msra.mxu0 0.0
        %3962 = vmatprep.subr.mxu0 0.0
        %3963 = vmatpush1.msra.mxu0 0.0
        %3964 = vmatprep.subr.mxu0 0.0
        %3965 = vmatpush1.msra.mxu0 0.0
        %3966 = vmatprep.subr.mxu0 0.0
        %3967 = vmatpush1.msra.mxu0 0.0
        %3968 = vmatprep.subr.mxu0 0.0
        %3969 = vmatpush1.msra.mxu0 0.0
        %3970 = vmatprep.subr.mxu0 0.0
        %3971 = vmatpush1.msra.mxu0 0.0
        %3972 = vmatprep.subr.mxu0 0.0
        %3973 = vmatpush1.msra.mxu0 0.0
        %3974 = vmatprep.subr.mxu0 0.0
        %3975 = vmatpush1.msra.mxu0 0.0
        %3976 = vmatprep.subr.mxu0 0.0
        %3977 = vmatpush1.msra.mxu0 0.0
        %3978 = vmatprep.subr.mxu0 0.0
        %3979 = vmatpush1.msra.mxu0 0.0
        %3980 = vmatprep.subr.mxu0 0.0
        %3981 = vmatpush1.msra.mxu0 0.0
        %3982 = vmatprep.subr.mxu0 0.0
        %3983 = vmatpush1.msra.mxu0 0.0
        %3984 = vmatprep.subr.mxu0 0.0
        %3985 = vmatpush1.msra.mxu0 0.0
        %3986 = vmatprep.subr.mxu0 0.0
        %3987 = vmatpush1.msra.mxu0 0.0
        %3988 = vmatprep.subr.mxu0 0.0
        %3989 = vmatpush1.msra.mxu0 0.0
        %3990 = vmatprep.subr.mxu0 0.0
        %3991 = vmatpush1.msra.mxu0 0.0
        %3992 = vmatprep.subr.mxu0 0.0
        %3993 = vmatpush1.msra.mxu0 0.0
        %3994 = vmatprep.subr.mxu0 0.0
        %3995 = vmatpush1.msra.mxu0 0.0
        %3996 = vmatprep.mubr.f32.mxu0 0.0
        %3997 = vmatmul.mubr.f32.gmra.mrb[0].mxu0 %v3776
        %v3998 = vpop.f32.mrb[0].mxu0
        %v3999 = vadd.f32 0.0, %v3998
        %v4000 = vpop.f32.mrb[0].mxu0
        %v4001 = vadd.f32 0.0, %v4000
        %4002 = vdwg.mxu0
        %v4003 = vadd.f32 %v3735, %v3857
        %v4004 = vadd.f32 %v3736, %v3859
        %v4005 = vadd.f32 %v3737, %v3928
        %v4006 = vadd.f32 %v3738, %v3930
        %v4007 = vadd.f32 %v3739, %v3999
        %v4008 = vadd.f32 %v3740, %v4001
        %s4009 = scalar_lea.vmem %s298, 20
        %v4010 = vld [vmem:[%s4009] sm:$0xf]
        %v4011 = vld [vmem:[%s0] sm:$0xff]
        %v4012 = vld [vmem:[%s0 + $0x8] sm:$0xff]
        %v4013 = vld [vmem:[%s0 + $0x10] sm:$0xff]
        %v4014 = vld [vmem:[%s0 + $0x18] sm:$0xf]
        %v4019 = vcombine.high %v4011, %v4011
        %v4020 = vcombine.high %v4012, %v4012
        %v4021 = vcombine.high %v4013, %v4013
        %4022 = vrot.lane.b32.xlu0 %v4011, 68
        %v4023 = vpop.permute.xlu0 %4022
        %4024 = vrot.lane.b32.xlu0 %v4019, 68
        %v4025 = vpop.permute.xlu0 %4024
        %4026 = vrot.lane.b32.xlu0 %v4012, 68
        %v4027 = vpop.permute.xlu0 %4026
        %4028 = vrot.lane.b32.xlu0 %v4020, 68
        %v4029 = vpop.permute.xlu0 %4028
        %4030 = vrot.lane.b32.xlu0 %v4013, 68
        %v4031 = vpop.permute.xlu0 %4030
        %4032 = vrot.lane.b32.xlu0 %v4021, 68
        %v4033 = vpop.permute.xlu0 %4032
        %4034 = vrot.lane.b32.xlu0 %v4014, 68
        %v4035 = vpop.permute.xlu0 %4034
        %vm4036 = vcmask 556032
        %v4037 = vsel %vm4036, %v4023, %v4025
        %v4038 = vsel %vm4036, %v4025, %v4027
        %v4039 = vsel %vm4036, %v4027, %v4029
        %v4040 = vsel %vm4036, %v4029, %v4031
        %v4041 = vsel %vm4036, %v4031, %v4033
        %v4042 = vsel %vm4036, %v4033, %v4035
        %v4044 = vsel %vm2747, %v4010, 0
        %v4046 = vsel %vm2751, %v4037, 0
        %v4048 = vsel %vm2751, %v4038, 0
        %v4050 = vsel %vm2751, %v4039, 0
        %v4052 = vsel %vm2751, %v4040, 0
        %v4054 = vsel %vm2751, %v4041, 0
        %v4056 = vsel %vm2751, %v4042, 0
        %4058 = vmatprep.subr.mxu0 %v4048
        %4059 = vmatpush1.msra.mxu0 %v4046
        %4060 = vmatprep.subr.mxu0 0.0
        %4061 = vmatpush1.msra.mxu0 0.0
        %4062 = vmatprep.subr.mxu0 0.0
        %4063 = vmatpush1.msra.mxu0 0.0
        %4064 = vmatprep.subr.mxu0 0.0
        %4065 = vmatpush1.msra.mxu0 0.0
        %4066 = vmatprep.subr.mxu0 0.0
        %4067 = vmatpush1.msra.mxu0 0.0
        %4068 = vmatprep.subr.mxu0 0.0
        %4069 = vmatpush1.msra.mxu0 0.0
        %4070 = vmatprep.subr.mxu0 0.0
        %4071 = vmatpush1.msra.mxu0 0.0
        %4072 = vmatprep.subr.mxu0 0.0
        %4073 = vmatpush1.msra.mxu0 0.0
        %4074 = vmatprep.subr.mxu0 0.0
        %4075 = vmatpush1.msra.mxu0 0.0
        %4076 = vmatprep.subr.mxu0 0.0
        %4077 = vmatpush1.msra.mxu0 0.0
        %4078 = vmatprep.subr.mxu0 0.0
        %4079 = vmatpush1.msra.mxu0 0.0
        %4080 = vmatprep.subr.mxu0 0.0
        %4081 = vmatpush1.msra.mxu0 0.0
        %4082 = vmatprep.subr.mxu0 0.0
        %4083 = vmatpush1.msra.mxu0 0.0
        %4084 = vmatprep.subr.mxu0 0.0
        %4085 = vmatpush1.msra.mxu0 0.0
        %4086 = vmatprep.subr.mxu0 0.0
        %4087 = vmatpush1.msra.mxu0 0.0
        %4088 = vmatprep.subr.mxu0 0.0
        %4089 = vmatpush1.msra.mxu0 0.0
        %4090 = vmatprep.subr.mxu0 0.0
        %4091 = vmatpush1.msra.mxu0 0.0
        %4092 = vmatprep.subr.mxu0 0.0
        %4093 = vmatpush1.msra.mxu0 0.0
        %4094 = vmatprep.subr.mxu0 0.0
        %4095 = vmatpush1.msra.mxu0 0.0
        %4096 = vmatprep.subr.mxu0 0.0
        %4097 = vmatpush1.msra.mxu0 0.0
        %4098 = vmatprep.subr.mxu0 0.0
        %4099 = vmatpush1.msra.mxu0 0.0
        %4100 = vmatprep.subr.mxu0 0.0
        %4101 = vmatpush1.msra.mxu0 0.0
        %4102 = vmatprep.subr.mxu0 0.0
        %4103 = vmatpush1.msra.mxu0 0.0
        %4104 = vmatprep.subr.mxu0 0.0
        %4105 = vmatpush1.msra.mxu0 0.0
        %4106 = vmatprep.subr.mxu0 0.0
        %4107 = vmatpush1.msra.mxu0 0.0
        %4108 = vmatprep.subr.mxu0 0.0
        %4109 = vmatpush1.msra.mxu0 0.0
        %4110 = vmatprep.subr.mxu0 0.0
        %4111 = vmatpush1.msra.mxu0 0.0
        %4112 = vmatprep.subr.mxu0 0.0
        %4113 = vmatpush1.msra.mxu0 0.0
        %4114 = vmatprep.subr.mxu0 0.0
        %4115 = vmatpush1.msra.mxu0 0.0
        %4116 = vmatprep.subr.mxu0 0.0
        %4117 = vmatpush1.msra.mxu0 0.0
        %4118 = vmatprep.subr.mxu0 0.0
        %4119 = vmatpush1.msra.mxu0 0.0
        %4120 = vmatprep.subr.mxu0 0.0
        %4121 = vmatpush1.msra.mxu0 0.0
        %4122 = vmatprep.mubr.f32.mxu0 0.0
        %4123 = vmatmul.mubr.f32.gmra.mrb[0].mxu0 %v4044
        %v4124 = vpop.f32.mrb[0].mxu0
        %v4125 = vadd.f32 0.0, %v4124
        %v4126 = vpop.f32.mrb[0].mxu0
        %v4127 = vadd.f32 0.0, %v4126
        %4128 = vdwg.mxu0
        %4129 = vmatprep.subr.mxu0 %v4052
        %4130 = vmatpush1.msra.mxu0 %v4050
        %4131 = vmatprep.subr.mxu0 0.0
        %4132 = vmatpush1.msra.mxu0 0.0
        %4133 = vmatprep.subr.mxu0 0.0
        %4134 = vmatpush1.msra.mxu0 0.0
        %4135 = vmatprep.subr.mxu0 0.0
        %4136 = vmatpush1.msra.mxu0 0.0
        %4137 = vmatprep.subr.mxu0 0.0
        %4138 = vmatpush1.msra.mxu0 0.0
        %4139 = vmatprep.subr.mxu0 0.0
        %4140 = vmatpush1.msra.mxu0 0.0
        %4141 = vmatprep.subr.mxu0 0.0
        %4142 = vmatpush1.msra.mxu0 0.0
        %4143 = vmatprep.subr.mxu0 0.0
        %4144 = vmatpush1.msra.mxu0 0.0
        %4145 = vmatprep.subr.mxu0 0.0
        %4146 = vmatpush1.msra.mxu0 0.0
        %4147 = vmatprep.subr.mxu0 0.0
        %4148 = vmatpush1.msra.mxu0 0.0
        %4149 = vmatprep.subr.mxu0 0.0
        %4150 = vmatpush1.msra.mxu0 0.0
        %4151 = vmatprep.subr.mxu0 0.0
        %4152 = vmatpush1.msra.mxu0 0.0
        %4153 = vmatprep.subr.mxu0 0.0
        %4154 = vmatpush1.msra.mxu0 0.0
        %4155 = vmatprep.subr.mxu0 0.0
        %4156 = vmatpush1.msra.mxu0 0.0
        %4157 = vmatprep.subr.mxu0 0.0
        %4158 = vmatpush1.msra.mxu0 0.0
        %4159 = vmatprep.subr.mxu0 0.0
        %4160 = vmatpush1.msra.mxu0 0.0
        %4161 = vmatprep.subr.mxu0 0.0
        %4162 = vmatpush1.msra.mxu0 0.0
        %4163 = vmatprep.subr.mxu0 0.0
        %4164 = vmatpush1.msra.mxu0 0.0
        %4165 = vmatprep.subr.mxu0 0.0
        %4166 = vmatpush1.msra.mxu0 0.0
        %4167 = vmatprep.subr.mxu0 0.0
        %4168 = vmatpush1.msra.mxu0 0.0
        %4169 = vmatprep.subr.mxu0 0.0
        %4170 = vmatpush1.msra.mxu0 0.0
        %4171 = vmatprep.subr.mxu0 0.0
        %4172 = vmatpush1.msra.mxu0 0.0
        %4173 = vmatprep.subr.mxu0 0.0
        %4174 = vmatpush1.msra.mxu0 0.0
        %4175 = vmatprep.subr.mxu0 0.0
        %4176 = vmatpush1.msra.mxu0 0.0
        %4177 = vmatprep.subr.mxu0 0.0
        %4178 = vmatpush1.msra.mxu0 0.0
        %4179 = vmatprep.subr.mxu0 0.0
        %4180 = vmatpush1.msra.mxu0 0.0
        %4181 = vmatprep.subr.mxu0 0.0
        %4182 = vmatpush1.msra.mxu0 0.0
        %4183 = vmatprep.subr.mxu0 0.0
        %4184 = vmatpush1.msra.mxu0 0.0
        %4185 = vmatprep.subr.mxu0 0.0
        %4186 = vmatpush1.msra.mxu0 0.0
        %4187 = vmatprep.subr.mxu0 0.0
        %4188 = vmatpush1.msra.mxu0 0.0
        %4189 = vmatprep.subr.mxu0 0.0
        %4190 = vmatpush1.msra.mxu0 0.0
        %4191 = vmatprep.subr.mxu0 0.0
        %4192 = vmatpush1.msra.mxu0 0.0
        %4193 = vmatprep.mubr.f32.mxu0 0.0
        %4194 = vmatmul.mubr.f32.gmra.mrb[0].mxu0 %v4044
        %v4195 = vpop.f32.mrb[0].mxu0
        %v4196 = vadd.f32 0.0, %v4195
        %v4197 = vpop.f32.mrb[0].mxu0
        %v4198 = vadd.f32 0.0, %v4197
        %4199 = vdwg.mxu0
        %4200 = vmatprep.subr.mxu0 %v4056
        %4201 = vmatpush1.msra.mxu0 %v4054
        %4202 = vmatprep.subr.mxu0 0.0
        %4203 = vmatpush1.msra.mxu0 0.0
        %4204 = vmatprep.subr.mxu0 0.0
        %4205 = vmatpush1.msra.mxu0 0.0
        %4206 = vmatprep.subr.mxu0 0.0
        %4207 = vmatpush1.msra.mxu0 0.0
        %4208 = vmatprep.subr.mxu0 0.0
        %4209 = vmatpush1.msra.mxu0 0.0
        %4210 = vmatprep.subr.mxu0 0.0
        %4211 = vmatpush1.msra.mxu0 0.0
        %4212 = vmatprep.subr.mxu0 0.0
        %4213 = vmatpush1.msra.mxu0 0.0
        %4214 = vmatprep.subr.mxu0 0.0
        %4215 = vmatpush1.msra.mxu0 0.0
        %4216 = vmatprep.subr.mxu0 0.0
        %4217 = vmatpush1.msra.mxu0 0.0
        %4218 = vmatprep.subr.mxu0 0.0
        %4219 = vmatpush1.msra.mxu0 0.0
        %4220 = vmatprep.subr.mxu0 0.0
        %4221 = vmatpush1.msra.mxu0 0.0
        %4222 = vmatprep.subr.mxu0 0.0
        %4223 = vmatpush1.msra.mxu0 0.0
        %4224 = vmatprep.subr.mxu0 0.0
        %4225 = vmatpush1.msra.mxu0 0.0
        %4226 = vmatprep.subr.mxu0 0.0
        %4227 = vmatpush1.msra.mxu0 0.0
        %4228 = vmatprep.subr.mxu0 0.0
        %4229 = vmatpush1.msra.mxu0 0.0
        %4230 = vmatprep.subr.mxu0 0.0
        %4231 = vmatpush1.msra.mxu0 0.0
        %4232 = vmatprep.subr.mxu0 0.0
        %4233 = vmatpush1.msra.mxu0 0.0
        %4234 = vmatprep.subr.mxu0 0.0
        %4235 = vmatpush1.msra.mxu0 0.0
        %4236 = vmatprep.subr.mxu0 0.0
        %4237 = vmatpush1.msra.mxu0 0.0
        %4238 = vmatprep.subr.mxu0 0.0
        %4239 = vmatpush1.msra.mxu0 0.0
        %4240 = vmatprep.subr.mxu0 0.0
        %4241 = vmatpush1.msra.mxu0 0.0
        %4242 = vmatprep.subr.mxu0 0.0
        %4243 = vmatpush1.msra.mxu0 0.0
        %4244 = vmatprep.subr.mxu0 0.0
        %4245 = vmatpush1.msra.mxu0 0.0
        %4246 = vmatprep.subr.mxu0 0.0
        %4247 = vmatpush1.msra.mxu0 0.0
        %4248 = vmatprep.subr.mxu0 0.0
        %4249 = vmatpush1.msra.mxu0 0.0
        %4250 = vmatprep.subr.mxu0 0.0
        %4251 = vmatpush1.msra.mxu0 0.0
        %4252 = vmatprep.subr.mxu0 0.0
        %4253 = vmatpush1.msra.mxu0 0.0
        %4254 = vmatprep.subr.mxu0 0.0
        %4255 = vmatpush1.msra.mxu0 0.0
        %4256 = vmatprep.subr.mxu0 0.0
        %4257 = vmatpush1.msra.mxu0 0.0
        %4258 = vmatprep.subr.mxu0 0.0
        %4259 = vmatpush1.msra.mxu0 0.0
        %4260 = vmatprep.subr.mxu0 0.0
        %4261 = vmatpush1.msra.mxu0 0.0
        %4262 = vmatprep.subr.mxu0 0.0
        %4263 = vmatpush1.msra.mxu0 0.0
        %4264 = vmatprep.mubr.f32.mxu0 0.0
        %4265 = vmatmul.mubr.f32.gmra.mrb[0].mxu0 %v4044
        %v4266 = vpop.f32.mrb[0].mxu0
        %v4267 = vadd.f32 0.0, %v4266
        %v4268 = vpop.f32.mrb[0].mxu0
        %v4269 = vadd.f32 0.0, %v4268
        %4270 = vdwg.mxu0
        %v4271 = vadd.f32 %v4003, %v4125
        %v4272 = vadd.f32 %v4004, %v4127
        %v4273 = vadd.f32 %v4005, %v4196
        %v4274 = vadd.f32 %v4006, %v4198
        %v4275 = vadd.f32 %v4007, %v4267
        %v4276 = vadd.f32 %v4008, %v4269
        %s4277 = scalar_lea.vmem %s298, 24
        %v4278 = vld [vmem:[%s4277] sm:$0xf]
        %v4279 = vld [vmem:[%s0] sm:$0xff]
        %v4280 = vld [vmem:[%s0 + $0x8] sm:$0xff]
        %v4281 = vld [vmem:[%s0 + $0x10] sm:$0xff]
        %v4282 = vld [vmem:[%s0 + $0x18] sm:$0xf]
        %v4287 = vcombine.high %v4279, %v4279
        %v4288 = vcombine.high %v4280, %v4280
        %v4289 = vcombine.high %v4281, %v4281
        %4290 = vrot.lane.b32.xlu0 %v4279, 20
        %v4291 = vpop.permute.xlu0 %4290
        %4292 = vrot.lane.b32.xlu0 %v4287, 20
        %v4293 = vpop.permute.xlu0 %4292
        %4294 = vrot.lane.b32.xlu0 %v4280, 20
        %v4295 = vpop.permute.xlu0 %4294
        %4296 = vrot.lane.b32.xlu0 %v4288, 20
        %v4297 = vpop.permute.xlu0 %4296
        %4298 = vrot.lane.b32.xlu0 %v4281, 20
        %v4299 = vpop.permute.xlu0 %4298
        %4300 = vrot.lane.b32.xlu0 %v4289, 20
        %v4301 = vpop.permute.xlu0 %4300
        %4302 = vrot.lane.b32.xlu0 %v4282, 20
        %v4303 = vpop.permute.xlu0 %4302
        %vm4304 = vcmask 162816
        %v4305 = vsel %vm4304, %v4291, %v4293
        %v4306 = vsel %vm4304, %v4293, %v4295
        %v4307 = vsel %vm4304, %v4295, %v4297
        %v4308 = vsel %vm4304, %v4297, %v4299
        %v4309 = vsel %vm4304, %v4299, %v4301
        %v4310 = vsel %vm4304, %v4301, %v4303
        %v4312 = vsel %vm2747, %v4278, 0
        %v4314 = vsel %vm2751, %v4305, 0
        %v4316 = vsel %vm2751, %v4306, 0
        %v4318 = vsel %vm2751, %v4307, 0
        %v4320 = vsel %vm2751, %v4308, 0
        %v4322 = vsel %vm2751, %v4309, 0
        %v4324 = vsel %vm2751, %v4310, 0
        %4326 = vmatprep.subr.mxu0 %v4316
        %4327 = vmatpush1.msra.mxu0 %v4314
        %4328 = vmatprep.subr.mxu0 0.0
        %4329 = vmatpush1.msra.mxu0 0.0
        %4330 = vmatprep.subr.mxu0 0.0
        %4331 = vmatpush1.msra.mxu0 0.0
        %4332 = vmatprep.subr.mxu0 0.0
        %4333 = vmatpush1.msra.mxu0 0.0
        %4334 = vmatprep.subr.mxu0 0.0
        %4335 = vmatpush1.msra.mxu0 0.0
        %4336 = vmatprep.subr.mxu0 0.0
        %4337 = vmatpush1.msra.mxu0 0.0
        %4338 = vmatprep.subr.mxu0 0.0
        %4339 = vmatpush1.msra.mxu0 0.0
        %4340 = vmatprep.subr.mxu0 0.0
        %4341 = vmatpush1.msra.mxu0 0.0
        %4342 = vmatprep.subr.mxu0 0.0
        %4343 = vmatpush1.msra.mxu0 0.0
        %4344 = vmatprep.subr.mxu0 0.0
        %4345 = vmatpush1.msra.mxu0 0.0
        %4346 = vmatprep.subr.mxu0 0.0
        %4347 = vmatpush1.msra.mxu0 0.0
        %4348 = vmatprep.subr.mxu0 0.0
        %4349 = vmatpush1.msra.mxu0 0.0
        %4350 = vmatprep.subr.mxu0 0.0
        %4351 = vmatpush1.msra.mxu0 0.0
        %4352 = vmatprep.subr.mxu0 0.0
        %4353 = vmatpush1.msra.mxu0 0.0
        %4354 = vmatprep.subr.mxu0 0.0
        %4355 = vmatpush1.msra.mxu0 0.0
        %4356 = vmatprep.subr.mxu0 0.0
        %4357 = vmatpush1.msra.mxu0 0.0
        %4358 = vmatprep.subr.mxu0 0.0
        %4359 = vmatpush1.msra.mxu0 0.0
        %4360 = vmatprep.subr.mxu0 0.0
        %4361 = vmatpush1.msra.mxu0 0.0
        %4362 = vmatprep.subr.mxu0 0.0
        %4363 = vmatpush1.msra.mxu0 0.0
        %4364 = vmatprep.subr.mxu0 0.0
        %4365 = vmatpush1.msra.mxu0 0.0
        %4366 = vmatprep.subr.mxu0 0.0
        %4367 = vmatpush1.msra.mxu0 0.0
        %4368 = vmatprep.subr.mxu0 0.0
        %4369 = vmatpush1.msra.mxu0 0.0
        %4370 = vmatprep.subr.mxu0 0.0
        %4371 = vmatpush1.msra.mxu0 0.0
        %4372 = vmatprep.subr.mxu0 0.0
        %4373 = vmatpush1.msra.mxu0 0.0
        %4374 = vmatprep.subr.mxu0 0.0
        %4375 = vmatpush1.msra.mxu0 0.0
        %4376 = vmatprep.subr.mxu0 0.0
        %4377 = vmatpush1.msra.mxu0 0.0
        %4378 = vmatprep.subr.mxu0 0.0
        %4379 = vmatpush1.msra.mxu0 0.0
        %4380 = vmatprep.subr.mxu0 0.0
        %4381 = vmatpush1.msra.mxu0 0.0
        %4382 = vmatprep.subr.mxu0 0.0
        %4383 = vmatpush1.msra.mxu0 0.0
        %4384 = vmatprep.subr.mxu0 0.0
        %4385 = vmatpush1.msra.mxu0 0.0
        %4386 = vmatprep.subr.mxu0 0.0
        %4387 = vmatpush1.msra.mxu0 0.0
        %4388 = vmatprep.subr.mxu0 0.0
        %4389 = vmatpush1.msra.mxu0 0.0
        %4390 = vmatprep.mubr.f32.mxu0 0.0
        %4391 = vmatmul.mubr.f32.gmra.mrb[0].mxu0 %v4312
        %v4392 = vpop.f32.mrb[0].mxu0
        %v4393 = vadd.f32 0.0, %v4392
        %v4394 = vpop.f32.mrb[0].mxu0
        %v4395 = vadd.f32 0.0, %v4394
        %4396 = vdwg.mxu0
        %4397 = vmatprep.subr.mxu0 %v4320
        %4398 = vmatpush1.msra.mxu0 %v4318
        %4399 = vmatprep.subr.mxu0 0.0
        %4400 = vmatpush1.msra.mxu0 0.0
        %4401 = vmatprep.subr.mxu0 0.0
        %4402 = vmatpush1.msra.mxu0 0.0
        %4403 = vmatprep.subr.mxu0 0.0
        %4404 = vmatpush1.msra.mxu0 0.0
        %4405 = vmatprep.subr.mxu0 0.0
        %4406 = vmatpush1.msra.mxu0 0.0
        %4407 = vmatprep.subr.mxu0 0.0
        %4408 = vmatpush1.msra.mxu0 0.0
        %4409 = vmatprep.subr.mxu0 0.0
        %4410 = vmatpush1.msra.mxu0 0.0
        %4411 = vmatprep.subr.mxu0 0.0
        %4412 = vmatpush1.msra.mxu0 0.0
        %4413 = vmatprep.subr.mxu0 0.0
        %4414 = vmatpush1.msra.mxu0 0.0
        %4415 = vmatprep.subr.mxu0 0.0
        %4416 = vmatpush1.msra.mxu0 0.0
        %4417 = vmatprep.subr.mxu0 0.0
        %4418 = vmatpush1.msra.mxu0 0.0
        %4419 = vmatprep.subr.mxu0 0.0
        %4420 = vmatpush1.msra.mxu0 0.0
        %4421 = vmatprep.subr.mxu0 0.0
        %4422 = vmatpush1.msra.mxu0 0.0
        %4423 = vmatprep.subr.mxu0 0.0
        %4424 = vmatpush1.msra.mxu0 0.0
        %4425 = vmatprep.subr.mxu0 0.0
        %4426 = vmatpush1.msra.mxu0 0.0
        %4427 = vmatprep.subr.mxu0 0.0
        %4428 = vmatpush1.msra.mxu0 0.0
        %4429 = vmatprep.subr.mxu0 0.0
        %4430 = vmatpush1.msra.mxu0 0.0
        %4431 = vmatprep.subr.mxu0 0.0
        %4432 = vmatpush1.msra.mxu0 0.0
        %4433 = vmatprep.subr.mxu0 0.0
        %4434 = vmatpush1.msra.mxu0 0.0
        %4435 = vmatprep.subr.mxu0 0.0
        %4436 = vmatpush1.msra.mxu0 0.0
        %4437 = vmatprep.subr.mxu0 0.0
        %4438 = vmatpush1.msra.mxu0 0.0
        %4439 = vmatprep.subr.mxu0 0.0
        %4440 = vmatpush1.msra.mxu0 0.0
        %4441 = vmatprep.subr.mxu0 0.0
        %4442 = vmatpush1.msra.mxu0 0.0
        %4443 = vmatprep.subr.mxu0 0.0
        %4444 = vmatpush1.msra.mxu0 0.0
        %4445 = vmatprep.subr.mxu0 0.0
        %4446 = vmatpush1.msra.mxu0 0.0
        %4447 = vmatprep.subr.mxu0 0.0
        %4448 = vmatpush1.msra.mxu0 0.0
        %4449 = vmatprep.subr.mxu0 0.0
        %4450 = vmatpush1.msra.mxu0 0.0
        %4451 = vmatprep.subr.mxu0 0.0
        %4452 = vmatpush1.msra.mxu0 0.0
        %4453 = vmatprep.subr.mxu0 0.0
        %4454 = vmatpush1.msra.mxu0 0.0
        %4455 = vmatprep.subr.mxu0 0.0
        %4456 = vmatpush1.msra.mxu0 0.0
        %4457 = vmatprep.subr.mxu0 0.0
        %4458 = vmatpush1.msra.mxu0 0.0
        %4459 = vmatprep.subr.mxu0 0.0
        %4460 = vmatpush1.msra.mxu0 0.0
        %4461 = vmatprep.mubr.f32.mxu0 0.0
        %4462 = vmatmul.mubr.f32.gmra.mrb[0].mxu0 %v4312
        %v4463 = vpop.f32.mrb[0].mxu0
        %v4464 = vadd.f32 0.0, %v4463
        %v4465 = vpop.f32.mrb[0].mxu0
        %v4466 = vadd.f32 0.0, %v4465
        %4467 = vdwg.mxu0
        %4468 = vmatprep.subr.mxu0 %v4324
        %4469 = vmatpush1.msra.mxu0 %v4322
        %4470 = vmatprep.subr.mxu0 0.0
        %4471 = vmatpush1.msra.mxu0 0.0
        %4472 = vmatprep.subr.mxu0 0.0
        %4473 = vmatpush1.msra.mxu0 0.0
        %4474 = vmatprep.subr.mxu0 0.0
        %4475 = vmatpush1.msra.mxu0 0.0
        %4476 = vmatprep.subr.mxu0 0.0
        %4477 = vmatpush1.msra.mxu0 0.0
        %4478 = vmatprep.subr.mxu0 0.0
        %4479 = vmatpush1.msra.mxu0 0.0
        %4480 = vmatprep.subr.mxu0 0.0
        %4481 = vmatpush1.msra.mxu0 0.0
        %4482 = vmatprep.subr.mxu0 0.0
        %4483 = vmatpush1.msra.mxu0 0.0
        %4484 = vmatprep.subr.mxu0 0.0
        %4485 = vmatpush1.msra.mxu0 0.0
        %4486 = vmatprep.subr.mxu0 0.0
        %4487 = vmatpush1.msra.mxu0 0.0
        %4488 = vmatprep.subr.mxu0 0.0
        %4489 = vmatpush1.msra.mxu0 0.0
        %4490 = vmatprep.subr.mxu0 0.0
        %4491 = vmatpush1.msra.mxu0 0.0
        %4492 = vmatprep.subr.mxu0 0.0
        %4493 = vmatpush1.msra.mxu0 0.0
        %4494 = vmatprep.subr.mxu0 0.0
        %4495 = vmatpush1.msra.mxu0 0.0
        %4496 = vmatprep.subr.mxu0 0.0
        %4497 = vmatpush1.msra.mxu0 0.0
        %4498 = vmatprep.subr.mxu0 0.0
        %4499 = vmatpush1.msra.mxu0 0.0
        %4500 = vmatprep.subr.mxu0 0.0
        %4501 = vmatpush1.msra.mxu0 0.0
        %4502 = vmatprep.subr.mxu0 0.0
        %4503 = vmatpush1.msra.mxu0 0.0
        %4504 = vmatprep.subr.mxu0 0.0
        %4505 = vmatpush1.msra.mxu0 0.0
        %4506 = vmatprep.subr.mxu0 0.0
        %4507 = vmatpush1.msra.mxu0 0.0
        %4508 = vmatprep.subr.mxu0 0.0
        %4509 = vmatpush1.msra.mxu0 0.0
        %4510 = vmatprep.subr.mxu0 0.0
        %4511 = vmatpush1.msra.mxu0 0.0
        %4512 = vmatprep.subr.mxu0 0.0
        %4513 = vmatpush1.msra.mxu0 0.0
        %4514 = vmatprep.subr.mxu0 0.0
        %4515 = vmatpush1.msra.mxu0 0.0
        %4516 = vmatprep.subr.mxu0 0.0
        %4517 = vmatpush1.msra.mxu0 0.0
        %4518 = vmatprep.subr.mxu0 0.0
        %4519 = vmatpush1.msra.mxu0 0.0
        %4520 = vmatprep.subr.mxu0 0.0
        %4521 = vmatpush1.msra.mxu0 0.0
        %4522 = vmatprep.subr.mxu0 0.0
        %4523 = vmatpush1.msra.mxu0 0.0
        %4524 = vmatprep.subr.mxu0 0.0
        %4525 = vmatpush1.msra.mxu0 0.0
        %4526 = vmatprep.subr.mxu0 0.0
        %4527 = vmatpush1.msra.mxu0 0.0
        %4528 = vmatprep.subr.mxu0 0.0
        %4529 = vmatpush1.msra.mxu0 0.0
        %4530 = vmatprep.subr.mxu0 0.0
        %4531 = vmatpush1.msra.mxu0 0.0
        %4532 = vmatprep.mubr.f32.mxu0 0.0
        %4533 = vmatmul.mubr.f32.gmra.mrb[0].mxu0 %v4312
        %v4534 = vpop.f32.mrb[0].mxu0
        %v4535 = vadd.f32 0.0, %v4534
        %v4536 = vpop.f32.mrb[0].mxu0
        %v4537 = vadd.f32 0.0, %v4536
        %4538 = vdwg.mxu0
        %v4539 = vadd.f32 %v4271, %v4393
        %v4540 = vadd.f32 %v4272, %v4395
        %v4541 = vadd.f32 %v4273, %v4464
        %v4542 = vadd.f32 %v4274, %v4466
        %v4543 = vadd.f32 %v4275, %v4535
        %v4544 = vadd.f32 %v4276, %v4537
        %s4545 = scalar_lea.vmem %s298, 28
        %v4546 = vld [vmem:[%s4545] sm:$0xf]
        %v4547 = vld [vmem:[%s0] sm:$0xff]
        %v4548 = vld [vmem:[%s0 + $0x8] sm:$0xff]
        %v4549 = vld [vmem:[%s0 + $0x10] sm:$0xff]
        %v4550 = vld [vmem:[%s0 + $0x18] sm:$0xf]
        %v4555 = vcombine.high %v4547, %v4547
        %v4556 = vcombine.high %v4548, %v4548
        %v4557 = vcombine.high %v4549, %v4549
        %4558 = vrot.lane.b32.xlu0 %v4547, 17
        %v4559 = vpop.permute.xlu0 %4558
        %4560 = vrot.lane.b32.xlu0 %v4555, 17
        %v4561 = vpop.permute.xlu0 %4560
        %4562 = vrot.lane.b32.xlu0 %v4548, 17
        %v4563 = vpop.permute.xlu0 %4562
        %4564 = vrot.lane.b32.xlu0 %v4556, 17
        %v4565 = vpop.permute.xlu0 %4564
        %4566 = vrot.lane.b32.xlu0 %v4549, 17
        %v4567 = vpop.permute.xlu0 %4566
        %4568 = vrot.lane.b32.xlu0 %v4557, 17
        %v4569 = vpop.permute.xlu0 %4568
        %4570 = vrot.lane.b32.xlu0 %v4550, 17
        %v4571 = vpop.permute.xlu0 %4570
        %vm4572 = vcmask 138240
        %v4573 = vsel %vm4572, %v4559, %v4561
        %v4574 = vsel %vm4572, %v4561, %v4563
        %v4575 = vsel %vm4572, %v4563, %v4565
        %v4576 = vsel %vm4572, %v4565, %v4567
        %v4577 = vsel %vm4572, %v4567, %v4569
        %v4578 = vsel %vm4572, %v4569, %v4571
        %v4580 = vsel %vm2747, %v4546, 0
        %v4582 = vsel %vm2751, %v4573, 0
        %v4584 = vsel %vm2751, %v4574, 0
        %v4586 = vsel %vm2751, %v4575, 0
        %v4588 = vsel %vm2751, %v4576, 0
        %v4590 = vsel %vm2751, %v4577, 0
        %v4592 = vsel %vm2751, %v4578, 0
        %4594 = vmatprep.subr.mxu0 %v4584
        %4595 = vmatpush1.msra.mxu0 %v4582
        %4596 = vmatprep.subr.mxu0 0.0
        %4597 = vmatpush1.msra.mxu0 0.0
        %4598 = vmatprep.subr.mxu0 0.0
        %4599 = vmatpush1.msra.mxu0 0.0
        %4600 = vmatprep.subr.mxu0 0.0
        %4601 = vmatpush1.msra.mxu0 0.0
        %4602 = vmatprep.subr.mxu0 0.0
        %4603 = vmatpush1.msra.mxu0 0.0
        %4604 = vmatprep.subr.mxu0 0.0
        %4605 = vmatpush1.msra.mxu0 0.0
        %4606 = vmatprep.subr.mxu0 0.0
        %4607 = vmatpush1.msra.mxu0 0.0
        %4608 = vmatprep.subr.mxu0 0.0
        %4609 = vmatpush1.msra.mxu0 0.0
        %4610 = vmatprep.subr.mxu0 0.0
        %4611 = vmatpush1.msra.mxu0 0.0
        %4612 = vmatprep.subr.mxu0 0.0
        %4613 = vmatpush1.msra.mxu0 0.0
        %4614 = vmatprep.subr.mxu0 0.0
        %4615 = vmatpush1.msra.mxu0 0.0
        %4616 = vmatprep.subr.mxu0 0.0
        %4617 = vmatpush1.msra.mxu0 0.0
        %4618 = vmatprep.subr.mxu0 0.0
        %4619 = vmatpush1.msra.mxu0 0.0
        %4620 = vmatprep.subr.mxu0 0.0
        %4621 = vmatpush1.msra.mxu0 0.0
        %4622 = vmatprep.subr.mxu0 0.0
        %4623 = vmatpush1.msra.mxu0 0.0
        %4624 = vmatprep.subr.mxu0 0.0
        %4625 = vmatpush1.msra.mxu0 0.0
        %4626 = vmatprep.subr.mxu0 0.0
        %4627 = vmatpush1.msra.mxu0 0.0
        %4628 = vmatprep.subr.mxu0 0.0
        %4629 = vmatpush1.msra.mxu0 0.0
        %4630 = vmatprep.subr.mxu0 0.0
        %4631 = vmatpush1.msra.mxu0 0.0
        %4632 = vmatprep.subr.mxu0 0.0
        %4633 = vmatpush1.msra.mxu0 0.0
        %4634 = vmatprep.subr.mxu0 0.0
        %4635 = vmatpush1.msra.mxu0 0.0
        %4636 = vmatprep.subr.mxu0 0.0
        %4637 = vmatpush1.msra.mxu0 0.0
        %4638 = vmatprep.subr.mxu0 0.0
        %4639 = vmatpush1.msra.mxu0 0.0
        %4640 = vmatprep.subr.mxu0 0.0
        %4641 = vmatpush1.msra.mxu0 0.0
        %4642 = vmatprep.subr.mxu0 0.0
        %4643 = vmatpush1.msra.mxu0 0.0
        %4644 = vmatprep.subr.mxu0 0.0
        %4645 = vmatpush1.msra.mxu0 0.0
        %4646 = vmatprep.subr.mxu0 0.0
        %4647 = vmatpush1.msra.mxu0 0.0
        %4648 = vmatprep.subr.mxu0 0.0
        %4649 = vmatpush1.msra.mxu0 0.0
        %4650 = vmatprep.subr.mxu0 0.0
        %4651 = vmatpush1.msra.mxu0 0.0
        %4652 = vmatprep.subr.mxu0 0.0
        %4653 = vmatpush1.msra.mxu0 0.0
        %4654 = vmatprep.subr.mxu0 0.0
        %4655 = vmatpush1.msra.mxu0 0.0
        %4656 = vmatprep.subr.mxu0 0.0
        %4657 = vmatpush1.msra.mxu0 0.0
        %4658 = vmatprep.mubr.f32.mxu0 0.0
        %4659 = vmatmul.mubr.f32.gmra.mrb[0].mxu0 %v4580
        %v4660 = vpop.f32.mrb[0].mxu0
        %v4661 = vadd.f32 0.0, %v4660
        %v4662 = vpop.f32.mrb[0].mxu0
        %v4663 = vadd.f32 0.0, %v4662
        %4664 = vdwg.mxu0
        %4665 = vmatprep.subr.mxu0 %v4588
        %4666 = vmatpush1.msra.mxu0 %v4586
        %4667 = vmatprep.subr.mxu0 0.0
        %4668 = vmatpush1.msra.mxu0 0.0
        %4669 = vmatprep.subr.mxu0 0.0
        %4670 = vmatpush1.msra.mxu0 0.0
        %4671 = vmatprep.subr.mxu0 0.0
        %4672 = vmatpush1.msra.mxu0 0.0
        %4673 = vmatprep.subr.mxu0 0.0
        %4674 = vmatpush1.msra.mxu0 0.0
        %4675 = vmatprep.subr.mxu0 0.0
        %4676 = vmatpush1.msra.mxu0 0.0
        %4677 = vmatprep.subr.mxu0 0.0
        %4678 = vmatpush1.msra.mxu0 0.0
        %4679 = vmatprep.subr.mxu0 0.0
        %4680 = vmatpush1.msra.mxu0 0.0
        %4681 = vmatprep.subr.mxu0 0.0
        %4682 = vmatpush1.msra.mxu0 0.0
        %4683 = vmatprep.subr.mxu0 0.0
        %4684 = vmatpush1.msra.mxu0 0.0
        %4685 = vmatprep.subr.mxu0 0.0
        %4686 = vmatpush1.msra.mxu0 0.0
        %4687 = vmatprep.subr.mxu0 0.0
        %4688 = vmatpush1.msra.mxu0 0.0
        %4689 = vmatprep.subr.mxu0 0.0
        %4690 = vmatpush1.msra.mxu0 0.0
        %4691 = vmatprep.subr.mxu0 0.0
        %4692 = vmatpush1.msra.mxu0 0.0
        %4693 = vmatprep.subr.mxu0 0.0
        %4694 = vmatpush1.msra.mxu0 0.0
        %4695 = vmatprep.subr.mxu0 0.0
        %4696 = vmatpush1.msra.mxu0 0.0
        %4697 = vmatprep.subr.mxu0 0.0
        %4698 = vmatpush1.msra.mxu0 0.0
        %4699 = vmatprep.subr.mxu0 0.0
        %4700 = vmatpush1.msra.mxu0 0.0
        %4701 = vmatprep.subr.mxu0 0.0
        %4702 = vmatpush1.msra.mxu0 0.0
        %4703 = vmatprep.subr.mxu0 0.0
        %4704 = vmatpush1.msra.mxu0 0.0
        %4705 = vmatprep.subr.mxu0 0.0
        %4706 = vmatpush1.msra.mxu0 0.0
        %4707 = vmatprep.subr.mxu0 0.0
        %4708 = vmatpush1.msra.mxu0 0.0
        %4709 = vmatprep.subr.mxu0 0.0
        %4710 = vmatpush1.msra.mxu0 0.0
        %4711 = vmatprep.subr.mxu0 0.0
        %4712 = vmatpush1.msra.mxu0 0.0
        %4713 = vmatprep.subr.mxu0 0.0
        %4714 = vmatpush1.msra.mxu0 0.0
        %4715 = vmatprep.subr.mxu0 0.0
        %4716 = vmatpush1.msra.mxu0 0.0
        %4717 = vmatprep.subr.mxu0 0.0
        %4718 = vmatpush1.msra.mxu0 0.0
        %4719 = vmatprep.subr.mxu0 0.0
        %4720 = vmatpush1.msra.mxu0 0.0
        %4721 = vmatprep.subr.mxu0 0.0
        %4722 = vmatpush1.msra.mxu0 0.0
        %4723 = vmatprep.subr.mxu0 0.0
        %4724 = vmatpush1.msra.mxu0 0.0
        %4725 = vmatprep.subr.mxu0 0.0
        %4726 = vmatpush1.msra.mxu0 0.0
        %4727 = vmatprep.subr.mxu0 0.0
        %4728 = vmatpush1.msra.mxu0 0.0
        %4729 = vmatprep.mubr.f32.mxu0 0.0
        %4730 = vmatmul.mubr.f32.gmra.mrb[0].mxu0 %v4580
        %v4731 = vpop.f32.mrb[0].mxu0
        %v4732 = vadd.f32 0.0, %v4731
        %v4733 = vpop.f32.mrb[0].mxu0
        %v4734 = vadd.f32 0.0, %v4733
        %4735 = vdwg.mxu0
        %4736 = vmatprep.subr.mxu0 %v4592
        %4737 = vmatpush1.msra.mxu0 %v4590
        %4738 = vmatprep.subr.mxu0 0.0
        %4739 = vmatpush1.msra.mxu0 0.0
        %4740 = vmatprep.subr.mxu0 0.0
        %4741 = vmatpush1.msra.mxu0 0.0
        %4742 = vmatprep.subr.mxu0 0.0
        %4743 = vmatpush1.msra.mxu0 0.0
        %4744 = vmatprep.subr.mxu0 0.0
        %4745 = vmatpush1.msra.mxu0 0.0
        %4746 = vmatprep.subr.mxu0 0.0
        %4747 = vmatpush1.msra.mxu0 0.0
        %4748 = vmatprep.subr.mxu0 0.0
        %4749 = vmatpush1.msra.mxu0 0.0
        %4750 = vmatprep.subr.mxu0 0.0
        %4751 = vmatpush1.msra.mxu0 0.0
        %4752 = vmatprep.subr.mxu0 0.0
        %4753 = vmatpush1.msra.mxu0 0.0
        %4754 = vmatprep.subr.mxu0 0.0
        %4755 = vmatpush1.msra.mxu0 0.0
        %4756 = vmatprep.subr.mxu0 0.0
        %4757 = vmatpush1.msra.mxu0 0.0
        %4758 = vmatprep.subr.mxu0 0.0
        %4759 = vmatpush1.msra.mxu0 0.0
        %4760 = vmatprep.subr.mxu0 0.0
        %4761 = vmatpush1.msra.mxu0 0.0
        %4762 = vmatprep.subr.mxu0 0.0
        %4763 = vmatpush1.msra.mxu0 0.0
        %4764 = vmatprep.subr.mxu0 0.0
        %4765 = vmatpush1.msra.mxu0 0.0
        %4766 = vmatprep.subr.mxu0 0.0
        %4767 = vmatpush1.msra.mxu0 0.0
        %4768 = vmatprep.subr.mxu0 0.0
        %4769 = vmatpush1.msra.mxu0 0.0
        %4770 = vmatprep.subr.mxu0 0.0
        %4771 = vmatpush1.msra.mxu0 0.0
        %4772 = vmatprep.subr.mxu0 0.0
        %4773 = vmatpush1.msra.mxu0 0.0
        %4774 = vmatprep.subr.mxu0 0.0
        %4775 = vmatpush1.msra.mxu0 0.0
        %4776 = vmatprep.subr.mxu0 0.0
        %4777 = vmatpush1.msra.mxu0 0.0
        %4778 = vmatprep.subr.mxu0 0.0
        %4779 = vmatpush1.msra.mxu0 0.0
        %4780 = vmatprep.subr.mxu0 0.0
        %4781 = vmatpush1.msra.mxu0 0.0
        %4782 = vmatprep.subr.mxu0 0.0
        %4783 = vmatpush1.msra.mxu0 0.0
        %4784 = vmatprep.subr.mxu0 0.0
        %4785 = vmatpush1.msra.mxu0 0.0
        %4786 = vmatprep.subr.mxu0 0.0
        %4787 = vmatpush1.msra.mxu0 0.0
        %4788 = vmatprep.subr.mxu0 0.0
        %4789 = vmatpush1.msra.mxu0 0.0
        %4790 = vmatprep.subr.mxu0 0.0
        %4791 = vmatpush1.msra.mxu0 0.0
        %4792 = vmatprep.subr.mxu0 0.0
        %4793 = vmatpush1.msra.mxu0 0.0
        %4794 = vmatprep.subr.mxu0 0.0
        %4795 = vmatpush1.msra.mxu0 0.0
        %4796 = vmatprep.subr.mxu0 0.0
        %4797 = vmatpush1.msra.mxu0 0.0
        %4798 = vmatprep.subr.mxu0 0.0
        %4799 = vmatpush1.msra.mxu0 0.0
        %4800 = vmatprep.mubr.f32.mxu0 0.0
        %4801 = vmatmul.mubr.f32.gmra.mrb[0].mxu0 %v4580
        %v4802 = vpop.f32.mrb[0].mxu0
        %v4803 = vadd.f32 0.0, %v4802
        %v4804 = vpop.f32.mrb[0].mxu0
        %v4805 = vadd.f32 0.0, %v4804
        %4806 = vdwg.mxu0
        %v4807 = vadd.f32 %v4539, %v4661
        %v4808 = vadd.f32 %v4540, %v4663
        %v4809 = vadd.f32 %v4541, %v4732
        %v4810 = vadd.f32 %v4542, %v4734
        %v4811 = vadd.f32 %v4543, %v4803
        %v4812 = vadd.f32 %v4544, %v4805
        %s4813 = scalar_lea.vmem %s298, 32
        %v4814 = vld [vmem:[%s4813] sm:$0xf]
        %v4815 = vld [vmem:[%s0] sm:$0xff]
        %v4816 = vld [vmem:[%s0 + $0x8] sm:$0xff]
        %v4817 = vld [vmem:[%s0 + $0x10] sm:$0xff]
        %v4818 = vld [vmem:[%s0 + $0x18] sm:$0xf]
        %v4823 = vcombine.high %v4815, %v4815
        %v4824 = vcombine.high %v4816, %v4816
        %v4825 = vcombine.high %v4817, %v4817
        %4826 = vrot.lane.b32.xlu0 %v4815, 14
        %v4827 = vpop.permute.xlu0 %4826
        %4828 = vrot.lane.b32.xlu0 %v4823, 14
        %v4829 = vpop.permute.xlu0 %4828
        %4830 = vrot.lane.b32.xlu0 %v4816, 14
        %v4831 = vpop.permute.xlu0 %4830
        %4832 = vrot.lane.b32.xlu0 %v4824, 14
        %v4833 = vpop.permute.xlu0 %4832
        %4834 = vrot.lane.b32.xlu0 %v4817, 14
        %v4835 = vpop.permute.xlu0 %4834
        %4836 = vrot.lane.b32.xlu0 %v4825, 14
        %v4837 = vpop.permute.xlu0 %4836
        %4838 = vrot.lane.b32.xlu0 %v4818, 14
        %v4839 = vpop.permute.xlu0 %4838
        %vm4840 = vcmask 113664
        %v4841 = vsel %vm4840, %v4827, %v4829
        %v4842 = vsel %vm4840, %v4829, %v4831
        %v4843 = vsel %vm4840, %v4831, %v4833
        %v4844 = vsel %vm4840, %v4833, %v4835
        %v4845 = vsel %vm4840, %v4835, %v4837
        %v4846 = vsel %vm4840, %v4837, %v4839
        %v4848 = vsel %vm2747, %v4814, 0
        %v4850 = vsel %vm2751, %v4841, 0
        %v4852 = vsel %vm2751, %v4842, 0
        %v4854 = vsel %vm2751, %v4843, 0
        %v4856 = vsel %vm2751, %v4844, 0
        %v4858 = vsel %vm2751, %v4845, 0
        %v4860 = vsel %vm2751, %v4846, 0
        %4862 = vmatprep.subr.mxu0 %v4852
        %4863 = vmatpush1.msra.mxu0 %v4850
        %4864 = vmatprep.subr.mxu0 0.0
        %4865 = vmatpush1.msra.mxu0 0.0
        %4866 = vmatprep.subr.mxu0 0.0
        %4867 = vmatpush1.msra.mxu0 0.0
        %4868 = vmatprep.subr.mxu0 0.0
        %4869 = vmatpush1.msra.mxu0 0.0
        %4870 = vmatprep.subr.mxu0 0.0
        %4871 = vmatpush1.msra.mxu0 0.0
        %4872 = vmatprep.subr.mxu0 0.0
        %4873 = vmatpush1.msra.mxu0 0.0
        %4874 = vmatprep.subr.mxu0 0.0
        %4875 = vmatpush1.msra.mxu0 0.0
        %4876 = vmatprep.subr.mxu0 0.0
        %4877 = vmatpush1.msra.mxu0 0.0
        %4878 = vmatprep.subr.mxu0 0.0
        %4879 = vmatpush1.msra.mxu0 0.0
        %4880 = vmatprep.subr.mxu0 0.0
        %4881 = vmatpush1.msra.mxu0 0.0
        %4882 = vmatprep.subr.mxu0 0.0
        %4883 = vmatpush1.msra.mxu0 0.0
        %4884 = vmatprep.subr.mxu0 0.0
        %4885 = vmatpush1.msra.mxu0 0.0
        %4886 = vmatprep.subr.mxu0 0.0
        %4887 = vmatpush1.msra.mxu0 0.0
        %4888 = vmatprep.subr.mxu0 0.0
        %4889 = vmatpush1.msra.mxu0 0.0
        %4890 = vmatprep.subr.mxu0 0.0
        %4891 = vmatpush1.msra.mxu0 0.0
        %4892 = vmatprep.subr.mxu0 0.0
        %4893 = vmatpush1.msra.mxu0 0.0
        %4894 = vmatprep.subr.mxu0 0.0
        %4895 = vmatpush1.msra.mxu0 0.0
        %4896 = vmatprep.subr.mxu0 0.0
        %4897 = vmatpush1.msra.mxu0 0.0
        %4898 = vmatprep.subr.mxu0 0.0
        %4899 = vmatpush1.msra.mxu0 0.0
        %4900 = vmatprep.subr.mxu0 0.0
        %4901 = vmatpush1.msra.mxu0 0.0
        %4902 = vmatprep.subr.mxu0 0.0
        %4903 = vmatpush1.msra.mxu0 0.0
        %4904 = vmatprep.subr.mxu0 0.0
        %4905 = vmatpush1.msra.mxu0 0.0
        %4906 = vmatprep.subr.mxu0 0.0
        %4907 = vmatpush1.msra.mxu0 0.0
        %4908 = vmatprep.subr.mxu0 0.0
        %4909 = vmatpush1.msra.mxu0 0.0
        %4910 = vmatprep.subr.mxu0 0.0
        %4911 = vmatpush1.msra.mxu0 0.0
        %4912 = vmatprep.subr.mxu0 0.0
        %4913 = vmatpush1.msra.mxu0 0.0
        %4914 = vmatprep.subr.mxu0 0.0
        %4915 = vmatpush1.msra.mxu0 0.0
        %4916 = vmatprep.subr.mxu0 0.0
        %4917 = vmatpush1.msra.mxu0 0.0
        %4918 = vmatprep.subr.mxu0 0.0
        %4919 = vmatpush1.msra.mxu0 0.0
        %4920 = vmatprep.subr.mxu0 0.0
        %4921 = vmatpush1.msra.mxu0 0.0
        %4922 = vmatprep.subr.mxu0 0.0
        %4923 = vmatpush1.msra.mxu0 0.0
        %4924 = vmatprep.subr.mxu0 0.0
        %4925 = vmatpush1.msra.mxu0 0.0
        %4926 = vmatprep.mubr.f32.mxu0 0.0
        %4927 = vmatmul.mubr.f32.gmra.mrb[0].mxu0 %v4848
        %v4928 = vpop.f32.mrb[0].mxu0
        %v4929 = vadd.f32 0.0, %v4928
        %v4930 = vpop.f32.mrb[0].mxu0
        %v4931 = vadd.f32 0.0, %v4930
        %4932 = vdwg.mxu0
        %4933 = vmatprep.subr.mxu0 %v4856
        %4934 = vmatpush1.msra.mxu0 %v4854
        %4935 = vmatprep.subr.mxu0 0.0
        %4936 = vmatpush1.msra.mxu0 0.0
        %4937 = vmatprep.subr.mxu0 0.0
        %4938 = vmatpush1.msra.mxu0 0.0
        %4939 = vmatprep.subr.mxu0 0.0
        %4940 = vmatpush1.msra.mxu0 0.0
        %4941 = vmatprep.subr.mxu0 0.0
        %4942 = vmatpush1.msra.mxu0 0.0
        %4943 = vmatprep.subr.mxu0 0.0
        %4944 = vmatpush1.msra.mxu0 0.0
        %4945 = vmatprep.subr.mxu0 0.0
        %4946 = vmatpush1.msra.mxu0 0.0
        %4947 = vmatprep.subr.mxu0 0.0
        %4948 = vmatpush1.msra.mxu0 0.0
        %4949 = vmatprep.subr.mxu0 0.0
        %4950 = vmatpush1.msra.mxu0 0.0
        %4951 = vmatprep.subr.mxu0 0.0
        %4952 = vmatpush1.msra.mxu0 0.0
        %4953 = vmatprep.subr.mxu0 0.0
        %4954 = vmatpush1.msra.mxu0 0.0
        %4955 = vmatprep.subr.mxu0 0.0
        %4956 = vmatpush1.msra.mxu0 0.0
        %4957 = vmatprep.subr.mxu0 0.0
        %4958 = vmatpush1.msra.mxu0 0.0
        %4959 = vmatprep.subr.mxu0 0.0
        %4960 = vmatpush1.msra.mxu0 0.0
        %4961 = vmatprep.subr.mxu0 0.0
        %4962 = vmatpush1.msra.mxu0 0.0
        %4963 = vmatprep.subr.mxu0 0.0
        %4964 = vmatpush1.msra.mxu0 0.0
        %4965 = vmatprep.subr.mxu0 0.0
        %4966 = vmatpush1.msra.mxu0 0.0
        %4967 = vmatprep.subr.mxu0 0.0
        %4968 = vmatpush1.msra.mxu0 0.0
        %4969 = vmatprep.subr.mxu0 0.0
        %4970 = vmatpush1.msra.mxu0 0.0
        %4971 = vmatprep.subr.mxu0 0.0
        %4972 = vmatpush1.msra.mxu0 0.0
        %4973 = vmatprep.subr.mxu0 0.0
        %4974 = vmatpush1.msra.mxu0 0.0
        %4975 = vmatprep.subr.mxu0 0.0
        %4976 = vmatpush1.msra.mxu0 0.0
        %4977 = vmatprep.subr.mxu0 0.0
        %4978 = vmatpush1.msra.mxu0 0.0
        %4979 = vmatprep.subr.mxu0 0.0
        %4980 = vmatpush1.msra.mxu0 0.0
        %4981 = vmatprep.subr.mxu0 0.0
        %4982 = vmatpush1.msra.mxu0 0.0
        %4983 = vmatprep.subr.mxu0 0.0
        %4984 = vmatpush1.msra.mxu0 0.0
        %4985 = vmatprep.subr.mxu0 0.0
        %4986 = vmatpush1.msra.mxu0 0.0
        %4987 = vmatprep.subr.mxu0 0.0
        %4988 = vmatpush1.msra.mxu0 0.0
        %4989 = vmatprep.subr.mxu0 0.0
        %4990 = vmatpush1.msra.mxu0 0.0
        %4991 = vmatprep.subr.mxu0 0.0
        %4992 = vmatpush1.msra.mxu0 0.0
        %4993 = vmatprep.subr.mxu0 0.0
        %4994 = vmatpush1.msra.mxu0 0.0
        %4995 = vmatprep.subr.mxu0 0.0
        %4996 = vmatpush1.msra.mxu0 0.0
        %4997 = vmatprep.mubr.f32.mxu0 0.0
        %4998 = vmatmul.mubr.f32.gmra.mrb[0].mxu0 %v4848
        %v4999 = vpop.f32.mrb[0].mxu0
        %v5000 = vadd.f32 0.0, %v4999
        %v5001 = vpop.f32.mrb[0].mxu0
        %v5002 = vadd.f32 0.0, %v5001
        %5003 = vdwg.mxu0
        %5004 = vmatprep.subr.mxu0 %v4860
        %5005 = vmatpush1.msra.mxu0 %v4858
        %5006 = vmatprep.subr.mxu0 0.0
        %5007 = vmatpush1.msra.mxu0 0.0
        %5008 = vmatprep.subr.mxu0 0.0
        %5009 = vmatpush1.msra.mxu0 0.0
        %5010 = vmatprep.subr.mxu0 0.0
        %5011 = vmatpush1.msra.mxu0 0.0
        %5012 = vmatprep.subr.mxu0 0.0
        %5013 = vmatpush1.msra.mxu0 0.0
        %5014 = vmatprep.subr.mxu0 0.0
        %5015 = vmatpush1.msra.mxu0 0.0
        %5016 = vmatprep.subr.mxu0 0.0
        %5017 = vmatpush1.msra.mxu0 0.0
        %5018 = vmatprep.subr.mxu0 0.0
        %5019 = vmatpush1.msra.mxu0 0.0
        %5020 = vmatprep.subr.mxu0 0.0
        %5021 = vmatpush1.msra.mxu0 0.0
        %5022 = vmatprep.subr.mxu0 0.0
        %5023 = vmatpush1.msra.mxu0 0.0
        %5024 = vmatprep.subr.mxu0 0.0
        %5025 = vmatpush1.msra.mxu0 0.0
        %5026 = vmatprep.subr.mxu0 0.0
        %5027 = vmatpush1.msra.mxu0 0.0
        %5028 = vmatprep.subr.mxu0 0.0
        %5029 = vmatpush1.msra.mxu0 0.0
        %5030 = vmatprep.subr.mxu0 0.0
        %5031 = vmatpush1.msra.mxu0 0.0
        %5032 = vmatprep.subr.mxu0 0.0
        %5033 = vmatpush1.msra.mxu0 0.0
        %5034 = vmatprep.subr.mxu0 0.0
        %5035 = vmatpush1.msra.mxu0 0.0
        %5036 = vmatprep.subr.mxu0 0.0
        %5037 = vmatpush1.msra.mxu0 0.0
        %5038 = vmatprep.subr.mxu0 0.0
        %5039 = vmatpush1.msra.mxu0 0.0
        %5040 = vmatprep.subr.mxu0 0.0
        %5041 = vmatpush1.msra.mxu0 0.0
        %5042 = vmatprep.subr.mxu0 0.0
        %5043 = vmatpush1.msra.mxu0 0.0
        %5044 = vmatprep.subr.mxu0 0.0
        %5045 = vmatpush1.msra.mxu0 0.0
        %5046 = vmatprep.subr.mxu0 0.0
        %5047 = vmatpush1.msra.mxu0 0.0
        %5048 = vmatprep.subr.mxu0 0.0
        %5049 = vmatpush1.msra.mxu0 0.0
        %5050 = vmatprep.subr.mxu0 0.0
        %5051 = vmatpush1.msra.mxu0 0.0
        %5052 = vmatprep.subr.mxu0 0.0
        %5053 = vmatpush1.msra.mxu0 0.0
        %5054 = vmatprep.subr.mxu0 0.0
        %5055 = vmatpush1.msra.mxu0 0.0
        %5056 = vmatprep.subr.mxu0 0.0
        %5057 = vmatpush1.msra.mxu0 0.0
        %5058 = vmatprep.subr.mxu0 0.0
        %5059 = vmatpush1.msra.mxu0 0.0
        %5060 = vmatprep.subr.mxu0 0.0
        %5061 = vmatpush1.msra.mxu0 0.0
        %5062 = vmatprep.subr.mxu0 0.0
        %5063 = vmatpush1.msra.mxu0 0.0
        %5064 = vmatprep.subr.mxu0 0.0
        %5065 = vmatpush1.msra.mxu0 0.0
        %5066 = vmatprep.subr.mxu0 0.0
        %5067 = vmatpush1.msra.mxu0 0.0
        %5068 = vmatprep.mubr.f32.mxu0 0.0
        %5069 = vmatmul.mubr.f32.gmra.mrb[0].mxu0 %v4848
        %v5070 = vpop.f32.mrb[0].mxu0
        %v5071 = vadd.f32 0.0, %v5070
        %v5072 = vpop.f32.mrb[0].mxu0
        %v5073 = vadd.f32 0.0, %v5072
        %5074 = vdwg.mxu0
        %v5075 = vadd.f32 %v4807, %v4929
        %v5076 = vadd.f32 %v4808, %v4931
        %v5077 = vadd.f32 %v4809, %v5000
        %v5078 = vadd.f32 %v4810, %v5002
        %v5079 = vadd.f32 %v4811, %v5071
        %v5080 = vadd.f32 %v4812, %v5073
        %v5087 = vcombine.low %v5075, %v5076
        %v5088 = vcombine.low %v5077, %v5078
        %v5089 = vcombine.low %v5079, %v5080
        %5093 = vst [vmem:[#allocation2] sm:$0xff] %v5087
        %5094 = vst [vmem:[#allocation2 + $0x8] sm:$0xff] %v5088
        %5095 = vst [vmem:[#allocation2 + $0x10] sm:$0xff] %v5089
      $region52: #{spatial_attention.2} parent=43 // pred_fallthru
        _
      %p5096 = scmp.eq.s32.totalorder %s17, 2
      // Predicated region
      $region53: #{spatial_attention.2} parent=43 // pred_check
        %p5097 = pneg %p5096
      $region54: #{spatial_attention.2} parent=43 // pred_check_branch
        %5099 = sbr.rel (%p5097) target = $region56
      $region55: #{spatial_attention.2} parent=43 // pred_region
        %v5100 = vld [vmem:[%s298] sm:$0xf]
        %v5101 = vld [vmem:[%s0] sm:$0xff]
        %v5102 = vld [vmem:[%s0 + $0x8] sm:$0xff]
        %v5103 = vld [vmem:[%s0 + $0x10] sm:$0xff]
        %s5104 = scalar_lea.vmem %s298, 4
        %v5105 = vld [vmem:[%s5104] sm:$0xf]
        %v5106 = vld [vmem:[%s0 + $0x18] sm:$0xf]
        %v5111 = vcombine.high %v5101, %v5101
        %v5112 = vcombine.high %v5102, %v5102
        %v5113 = vcombine.high %v5103, %v5103
        %5114 = vrot.lane.b32.xlu0 %v5101, 123
        %v5115 = vpop.permute.xlu0 %5114
        %5116 = vrot.lane.b32.xlu0 %v5111, 123
        %v5117 = vpop.permute.xlu0 %5116
        %5118 = vrot.lane.b32.xlu0 %v5102, 123
        %v5119 = vpop.permute.xlu0 %5118
        %5120 = vrot.lane.b32.xlu0 %v5112, 123
        %v5121 = vpop.permute.xlu0 %5120
        %5122 = vrot.lane.b32.xlu0 %v5103, 123
        %v5123 = vpop.permute.xlu0 %5122
        %5124 = vrot.lane.b32.xlu0 %v5113, 123
        %v5125 = vpop.permute.xlu0 %5124
        %5126 = vrot.lane.b32.xlu0 %v5106, 123
        %v5127 = vpop.permute.xlu0 %5126
        %vm5128 = vcmask 1006592
        %v5129 = vsel %vm5128, %v5115, %v5117
        %v5130 = vsel %vm5128, %v5117, %v5119
        %v5131 = vsel %vm5128, %v5119, %v5121
        %v5132 = vsel %vm5128, %v5121, %v5123
        %v5133 = vsel %vm5128, %v5123, %v5125
        %v5134 = vsel %vm5128, %v5125, %v5127
        %vm5135 = vcmask 31744
        %v5137 = vsel %vm5135, %v5105, 0
        %vm5139 = vcmask 1043456
        %v5140 = vsel %vm5139, %v5129, 0
        %v5142 = vsel %vm5139, %v5130, 0
        %v5144 = vsel %vm5139, %v5131, 0
        %v5146 = vsel %vm5139, %v5132, 0
        %v5148 = vsel %vm5139, %v5133, 0
        %v5150 = vsel %vm5139, %v5134, 0
        %5152 = vmatprep.subr.mxu0 %v5142
        %5153 = vmatpush1.msra.mxu0 %v5140
        %5154 = vmatprep.subr.mxu0 0.0
        %5155 = vmatpush1.msra.mxu0 0.0
        %5156 = vmatprep.subr.mxu0 0.0
        %5157 = vmatpush1.msra.mxu0 0.0
        %5158 = vmatprep.subr.mxu0 0.0
        %5159 = vmatpush1.msra.mxu0 0.0
        %5160 = vmatprep.subr.mxu0 0.0
        %5161 = vmatpush1.msra.mxu0 0.0
        %5162 = vmatprep.subr.mxu0 0.0
        %5163 = vmatpush1.msra.mxu0 0.0
        %5164 = vmatprep.subr.mxu0 0.0
        %5165 = vmatpush1.msra.mxu0 0.0
        %5166 = vmatprep.subr.mxu0 0.0
        %5167 = vmatpush1.msra.mxu0 0.0
        %5168 = vmatprep.subr.mxu0 0.0
        %5169 = vmatpush1.msra.mxu0 0.0
        %5170 = vmatprep.subr.mxu0 0.0
        %5171 = vmatpush1.msra.mxu0 0.0
        %5172 = vmatprep.subr.mxu0 0.0
        %5173 = vmatpush1.msra.mxu0 0.0
        %5174 = vmatprep.subr.mxu0 0.0
        %5175 = vmatpush1.msra.mxu0 0.0
        %5176 = vmatprep.subr.mxu0 0.0
        %5177 = vmatpush1.msra.mxu0 0.0
        %5178 = vmatprep.subr.mxu0 0.0
        %5179 = vmatpush1.msra.mxu0 0.0
        %5180 = vmatprep.subr.mxu0 0.0
        %5181 = vmatpush1.msra.mxu0 0.0
        %5182 = vmatprep.subr.mxu0 0.0
        %5183 = vmatpush1.msra.mxu0 0.0
        %5184 = vmatprep.subr.mxu0 0.0
        %5185 = vmatpush1.msra.mxu0 0.0
        %5186 = vmatprep.subr.mxu0 0.0
        %5187 = vmatpush1.msra.mxu0 0.0
        %5188 = vmatprep.subr.mxu0 0.0
        %5189 = vmatpush1.msra.mxu0 0.0
        %5190 = vmatprep.subr.mxu0 0.0
        %5191 = vmatpush1.msra.mxu0 0.0
        %5192 = vmatprep.subr.mxu0 0.0
        %5193 = vmatpush1.msra.mxu0 0.0
        %5194 = vmatprep.subr.mxu0 0.0
        %5195 = vmatpush1.msra.mxu0 0.0
        %5196 = vmatprep.subr.mxu0 0.0
        %5197 = vmatpush1.msra.mxu0 0.0
        %5198 = vmatprep.subr.mxu0 0.0
        %5199 = vmatpush1.msra.mxu0 0.0
        %5200 = vmatprep.subr.mxu0 0.0
        %5201 = vmatpush1.msra.mxu0 0.0
        %5202 = vmatprep.subr.mxu0 0.0
        %5203 = vmatpush1.msra.mxu0 0.0
        %5204 = vmatprep.subr.mxu0 0.0
        %5205 = vmatpush1.msra.mxu0 0.0
        %5206 = vmatprep.subr.mxu0 0.0
        %5207 = vmatpush1.msra.mxu0 0.0
        %5208 = vmatprep.subr.mxu0 0.0
        %5209 = vmatpush1.msra.mxu0 0.0
        %5210 = vmatprep.subr.mxu0 0.0
        %5211 = vmatpush1.msra.mxu0 0.0
        %5212 = vmatprep.subr.mxu0 0.0
        %5213 = vmatpush1.msra.mxu0 0.0
        %5214 = vmatprep.subr.mxu0 0.0
        %5215 = vmatpush1.msra.mxu0 0.0
        %5216 = vmatprep.mubr.f32.mxu0 0.0
        %5217 = vmatmul.mubr.f32.gmra.mrb[0].mxu0 %v5137
        %v5218 = vpop.f32.mrb[0].mxu0
        %v5219 = vadd.f32 0.0, %v5218
        %v5220 = vpop.f32.mrb[0].mxu0
        %v5221 = vadd.f32 0.0, %v5220
        %5222 = vdwg.mxu0
        %5223 = vmatprep.subr.mxu0 %v5146
        %5224 = vmatpush1.msra.mxu0 %v5144
        %5225 = vmatprep.subr.mxu0 0.0
        %5226 = vmatpush1.msra.mxu0 0.0
        %5227 = vmatprep.subr.mxu0 0.0
        %5228 = vmatpush1.msra.mxu0 0.0
        %5229 = vmatprep.subr.mxu0 0.0
        %5230 = vmatpush1.msra.mxu0 0.0
        %5231 = vmatprep.subr.mxu0 0.0
        %5232 = vmatpush1.msra.mxu0 0.0
        %5233 = vmatprep.subr.mxu0 0.0
        %5234 = vmatpush1.msra.mxu0 0.0
        %5235 = vmatprep.subr.mxu0 0.0
        %5236 = vmatpush1.msra.mxu0 0.0
        %5237 = vmatprep.subr.mxu0 0.0
        %5238 = vmatpush1.msra.mxu0 0.0
        %5239 = vmatprep.subr.mxu0 0.0
        %5240 = vmatpush1.msra.mxu0 0.0
        %5241 = vmatprep.subr.mxu0 0.0
        %5242 = vmatpush1.msra.mxu0 0.0
        %5243 = vmatprep.subr.mxu0 0.0
        %5244 = vmatpush1.msra.mxu0 0.0
        %5245 = vmatprep.subr.mxu0 0.0
        %5246 = vmatpush1.msra.mxu0 0.0
        %5247 = vmatprep.subr.mxu0 0.0
        %5248 = vmatpush1.msra.mxu0 0.0
        %5249 = vmatprep.subr.mxu0 0.0
        %5250 = vmatpush1.msra.mxu0 0.0
        %5251 = vmatprep.subr.mxu0 0.0
        %5252 = vmatpush1.msra.mxu0 0.0
        %5253 = vmatprep.subr.mxu0 0.0
        %5254 = vmatpush1.msra.mxu0 0.0
        %5255 = vmatprep.subr.mxu0 0.0
        %5256 = vmatpush1.msra.mxu0 0.0
        %5257 = vmatprep.subr.mxu0 0.0
        %5258 = vmatpush1.msra.mxu0 0.0
        %5259 = vmatprep.subr.mxu0 0.0
        %5260 = vmatpush1.msra.mxu0 0.0
        %5261 = vmatprep.subr.mxu0 0.0
        %5262 = vmatpush1.msra.mxu0 0.0
        %5263 = vmatprep.subr.mxu0 0.0
        %5264 = vmatpush1.msra.mxu0 0.0
        %5265 = vmatprep.subr.mxu0 0.0
        %5266 = vmatpush1.msra.mxu0 0.0
        %5267 = vmatprep.subr.mxu0 0.0
        %5268 = vmatpush1.msra.mxu0 0.0
        %5269 = vmatprep.subr.mxu0 0.0
        %5270 = vmatpush1.msra.mxu0 0.0
        %5271 = vmatprep.subr.mxu0 0.0
        %5272 = vmatpush1.msra.mxu0 0.0
        %5273 = vmatprep.subr.mxu0 0.0
        %5274 = vmatpush1.msra.mxu0 0.0
        %5275 = vmatprep.subr.mxu0 0.0
        %5276 = vmatpush1.msra.mxu0 0.0
        %5277 = vmatprep.subr.mxu0 0.0
        %5278 = vmatpush1.msra.mxu0 0.0
        %5279 = vmatprep.subr.mxu0 0.0
        %5280 = vmatpush1.msra.mxu0 0.0
        %5281 = vmatprep.subr.mxu0 0.0
        %5282 = vmatpush1.msra.mxu0 0.0
        %5283 = vmatprep.subr.mxu0 0.0
        %5284 = vmatpush1.msra.mxu0 0.0
        %5285 = vmatprep.subr.mxu0 0.0
        %5286 = vmatpush1.msra.mxu0 0.0
        %5287 = vmatprep.mubr.f32.mxu0 0.0
        %5288 = vmatmul.mubr.f32.gmra.mrb[0].mxu0 %v5137
        %v5289 = vpop.f32.mrb[0].mxu0
        %v5290 = vadd.f32 0.0, %v5289
        %v5291 = vpop.f32.mrb[0].mxu0
        %v5292 = vadd.f32 0.0, %v5291
        %5293 = vdwg.mxu0
        %5294 = vmatprep.subr.mxu0 %v5150
        %5295 = vmatpush1.msra.mxu0 %v5148
        %5296 = vmatprep.subr.mxu0 0.0
        %5297 = vmatpush1.msra.mxu0 0.0
        %5298 = vmatprep.subr.mxu0 0.0
        %5299 = vmatpush1.msra.mxu0 0.0
        %5300 = vmatprep.subr.mxu0 0.0
        %5301 = vmatpush1.msra.mxu0 0.0
        %5302 = vmatprep.subr.mxu0 0.0
        %5303 = vmatpush1.msra.mxu0 0.0
        %5304 = vmatprep.subr.mxu0 0.0
        %5305 = vmatpush1.msra.mxu0 0.0
        %5306 = vmatprep.subr.mxu0 0.0
        %5307 = vmatpush1.msra.mxu0 0.0
        %5308 = vmatprep.subr.mxu0 0.0
        %5309 = vmatpush1.msra.mxu0 0.0
        %5310 = vmatprep.subr.mxu0 0.0
        %5311 = vmatpush1.msra.mxu0 0.0
        %5312 = vmatprep.subr.mxu0 0.0
        %5313 = vmatpush1.msra.mxu0 0.0
        %5314 = vmatprep.subr.mxu0 0.0
        %5315 = vmatpush1.msra.mxu0 0.0
        %5316 = vmatprep.subr.mxu0 0.0
        %5317 = vmatpush1.msra.mxu0 0.0
        %5318 = vmatprep.subr.mxu0 0.0
        %5319 = vmatpush1.msra.mxu0 0.0
        %5320 = vmatprep.subr.mxu0 0.0
        %5321 = vmatpush1.msra.mxu0 0.0
        %5322 = vmatprep.subr.mxu0 0.0
        %5323 = vmatpush1.msra.mxu0 0.0
        %5324 = vmatprep.subr.mxu0 0.0
        %5325 = vmatpush1.msra.mxu0 0.0
        %5326 = vmatprep.subr.mxu0 0.0
        %5327 = vmatpush1.msra.mxu0 0.0
        %5328 = vmatprep.subr.mxu0 0.0
        %5329 = vmatpush1.msra.mxu0 0.0
        %5330 = vmatprep.subr.mxu0 0.0
        %5331 = vmatpush1.msra.mxu0 0.0
        %5332 = vmatprep.subr.mxu0 0.0
        %5333 = vmatpush1.msra.mxu0 0.0
        %5334 = vmatprep.subr.mxu0 0.0
        %5335 = vmatpush1.msra.mxu0 0.0
        %5336 = vmatprep.subr.mxu0 0.0
        %5337 = vmatpush1.msra.mxu0 0.0
        %5338 = vmatprep.subr.mxu0 0.0
        %5339 = vmatpush1.msra.mxu0 0.0
        %5340 = vmatprep.subr.mxu0 0.0
        %5341 = vmatpush1.msra.mxu0 0.0
        %5342 = vmatprep.subr.mxu0 0.0
        %5343 = vmatpush1.msra.mxu0 0.0
        %5344 = vmatprep.subr.mxu0 0.0
        %5345 = vmatpush1.msra.mxu0 0.0
        %5346 = vmatprep.subr.mxu0 0.0
        %5347 = vmatpush1.msra.mxu0 0.0
        %5348 = vmatprep.subr.mxu0 0.0
        %5349 = vmatpush1.msra.mxu0 0.0
        %5350 = vmatprep.subr.mxu0 0.0
        %5351 = vmatpush1.msra.mxu0 0.0
        %5352 = vmatprep.subr.mxu0 0.0
        %5353 = vmatpush1.msra.mxu0 0.0
        %5354 = vmatprep.subr.mxu0 0.0
        %5355 = vmatpush1.msra.mxu0 0.0
        %5356 = vmatprep.subr.mxu0 0.0
        %5357 = vmatpush1.msra.mxu0 0.0
        %5358 = vmatprep.mubr.f32.mxu0 0.0
        %5359 = vmatmul.mubr.f32.gmra.mrb[0].mxu0 %v5137
        %v5360 = vpop.f32.mrb[0].mxu0
        %v5361 = vadd.f32 0.0, %v5360
        %v5362 = vpop.f32.mrb[0].mxu0
        %v5363 = vadd.f32 0.0, %v5362
        %5364 = vdwg.mxu0
        %v5366 = vsel %vm5135, %v5100, 0
        %v5368 = vsel %vm5139, %v5101, 0
        %v5370 = vsel %vm5139, %v5111, 0
        %v5372 = vsel %vm5139, %v5102, 0
        %v5374 = vsel %vm5139, %v5112, 0
        %v5376 = vsel %vm5139, %v5103, 0
        %v5378 = vsel %vm5139, %v5113, 0
        %5380 = vmatprep.subr.mxu0 %v5370
        %5381 = vmatpush1.msra.mxu0 %v5368
        %5382 = vmatprep.subr.mxu0 0.0
        %5383 = vmatpush1.msra.mxu0 0.0
        %5384 = vmatprep.subr.mxu0 0.0
        %5385 = vmatpush1.msra.mxu0 0.0
        %5386 = vmatprep.subr.mxu0 0.0
        %5387 = vmatpush1.msra.mxu0 0.0
        %5388 = vmatprep.subr.mxu0 0.0
        %5389 = vmatpush1.msra.mxu0 0.0
        %5390 = vmatprep.subr.mxu0 0.0
        %5391 = vmatpush1.msra.mxu0 0.0
        %5392 = vmatprep.subr.mxu0 0.0
        %5393 = vmatpush1.msra.mxu0 0.0
        %5394 = vmatprep.subr.mxu0 0.0
        %5395 = vmatpush1.msra.mxu0 0.0
        %5396 = vmatprep.subr.mxu0 0.0
        %5397 = vmatpush1.msra.mxu0 0.0
        %5398 = vmatprep.subr.mxu0 0.0
        %5399 = vmatpush1.msra.mxu0 0.0
        %5400 = vmatprep.subr.mxu0 0.0
        %5401 = vmatpush1.msra.mxu0 0.0
        %5402 = vmatprep.subr.mxu0 0.0
        %5403 = vmatpush1.msra.mxu0 0.0
        %5404 = vmatprep.subr.mxu0 0.0
        %5405 = vmatpush1.msra.mxu0 0.0
        %5406 = vmatprep.subr.mxu0 0.0
        %5407 = vmatpush1.msra.mxu0 0.0
        %5408 = vmatprep.subr.mxu0 0.0
        %5409 = vmatpush1.msra.mxu0 0.0
        %5410 = vmatprep.subr.mxu0 0.0
        %5411 = vmatpush1.msra.mxu0 0.0
        %5412 = vmatprep.subr.mxu0 0.0
        %5413 = vmatpush1.msra.mxu0 0.0
        %5414 = vmatprep.subr.mxu0 0.0
        %5415 = vmatpush1.msra.mxu0 0.0
        %5416 = vmatprep.subr.mxu0 0.0
        %5417 = vmatpush1.msra.mxu0 0.0
        %5418 = vmatprep.subr.mxu0 0.0
        %5419 = vmatpush1.msra.mxu0 0.0
        %5420 = vmatprep.subr.mxu0 0.0
        %5421 = vmatpush1.msra.mxu0 0.0
        %5422 = vmatprep.subr.mxu0 0.0
        %5423 = vmatpush1.msra.mxu0 0.0
        %5424 = vmatprep.subr.mxu0 0.0
        %5425 = vmatpush1.msra.mxu0 0.0
        %5426 = vmatprep.subr.mxu0 0.0
        %5427 = vmatpush1.msra.mxu0 0.0
        %5428 = vmatprep.subr.mxu0 0.0
        %5429 = vmatpush1.msra.mxu0 0.0
        %5430 = vmatprep.subr.mxu0 0.0
        %5431 = vmatpush1.msra.mxu0 0.0
        %5432 = vmatprep.subr.mxu0 0.0
        %5433 = vmatpush1.msra.mxu0 0.0
        %5434 = vmatprep.subr.mxu0 0.0
        %5435 = vmatpush1.msra.mxu0 0.0
        %5436 = vmatprep.subr.mxu0 0.0
        %5437 = vmatpush1.msra.mxu0 0.0
        %5438 = vmatprep.subr.mxu0 0.0
        %5439 = vmatpush1.msra.mxu0 0.0
        %5440 = vmatprep.subr.mxu0 0.0
        %5441 = vmatpush1.msra.mxu0 0.0
        %5442 = vmatprep.subr.mxu0 0.0
        %5443 = vmatpush1.msra.mxu0 0.0
        %5444 = vmatprep.mubr.f32.mxu0 0.0
        %5445 = vmatmul.mubr.f32.gmra.mrb[0].mxu0 %v5366
        %v5446 = vpop.f32.mrb[0].mxu0
        %v5447 = vadd.f32 %v5219, %v5446
        %v5448 = vpop.f32.mrb[0].mxu0
        %v5449 = vadd.f32 %v5221, %v5448
        %5450 = vdwg.mxu0
        %5451 = vmatprep.subr.mxu0 %v5374
        %5452 = vmatpush1.msra.mxu0 %v5372
        %5453 = vmatprep.subr.mxu0 0.0
        %5454 = vmatpush1.msra.mxu0 0.0
        %5455 = vmatprep.subr.mxu0 0.0
        %5456 = vmatpush1.msra.mxu0 0.0
        %5457 = vmatprep.subr.mxu0 0.0
        %5458 = vmatpush1.msra.mxu0 0.0
        %5459 = vmatprep.subr.mxu0 0.0
        %5460 = vmatpush1.msra.mxu0 0.0
        %5461 = vmatprep.subr.mxu0 0.0
        %5462 = vmatpush1.msra.mxu0 0.0
        %5463 = vmatprep.subr.mxu0 0.0
        %5464 = vmatpush1.msra.mxu0 0.0
        %5465 = vmatprep.subr.mxu0 0.0
        %5466 = vmatpush1.msra.mxu0 0.0
        %5467 = vmatprep.subr.mxu0 0.0
        %5468 = vmatpush1.msra.mxu0 0.0
        %5469 = vmatprep.subr.mxu0 0.0
        %5470 = vmatpush1.msra.mxu0 0.0
        %5471 = vmatprep.subr.mxu0 0.0
        %5472 = vmatpush1.msra.mxu0 0.0
        %5473 = vmatprep.subr.mxu0 0.0
        %5474 = vmatpush1.msra.mxu0 0.0
        %5475 = vmatprep.subr.mxu0 0.0
        %5476 = vmatpush1.msra.mxu0 0.0
        %5477 = vmatprep.subr.mxu0 0.0
        %5478 = vmatpush1.msra.mxu0 0.0
        %5479 = vmatprep.subr.mxu0 0.0
        %5480 = vmatpush1.msra.mxu0 0.0
        %5481 = vmatprep.subr.mxu0 0.0
        %5482 = vmatpush1.msra.mxu0 0.0
        %5483 = vmatprep.subr.mxu0 0.0
        %5484 = vmatpush1.msra.mxu0 0.0
        %5485 = vmatprep.subr.mxu0 0.0
        %5486 = vmatpush1.msra.mxu0 0.0
        %5487 = vmatprep.subr.mxu0 0.0
        %5488 = vmatpush1.msra.mxu0 0.0
        %5489 = vmatprep.subr.mxu0 0.0
        %5490 = vmatpush1.msra.mxu0 0.0
        %5491 = vmatprep.subr.mxu0 0.0
        %5492 = vmatpush1.msra.mxu0 0.0
        %5493 = vmatprep.subr.mxu0 0.0
        %5494 = vmatpush1.msra.mxu0 0.0
        %5495 = vmatprep.subr.mxu0 0.0
        %5496 = vmatpush1.msra.mxu0 0.0
        %5497 = vmatprep.subr.mxu0 0.0
        %5498 = vmatpush1.msra.mxu0 0.0
        %5499 = vmatprep.subr.mxu0 0.0
        %5500 = vmatpush1.msra.mxu0 0.0
        %5501 = vmatprep.subr.mxu0 0.0
        %5502 = vmatpush1.msra.mxu0 0.0
        %5503 = vmatprep.subr.mxu0 0.0
        %5504 = vmatpush1.msra.mxu0 0.0
        %5505 = vmatprep.subr.mxu0 0.0
        %5506 = vmatpush1.msra.mxu0 0.0
        %5507 = vmatprep.subr.mxu0 0.0
        %5508 = vmatpush1.msra.mxu0 0.0
        %5509 = vmatprep.subr.mxu0 0.0
        %5510 = vmatpush1.msra.mxu0 0.0
        %5511 = vmatprep.subr.mxu0 0.0
        %5512 = vmatpush1.msra.mxu0 0.0
        %5513 = vmatprep.subr.mxu0 0.0
        %5514 = vmatpush1.msra.mxu0 0.0
        %5515 = vmatprep.mubr.f32.mxu0 0.0
        %5516 = vmatmul.mubr.f32.gmra.mrb[0].mxu0 %v5366
        %v5517 = vpop.f32.mrb[0].mxu0
        %v5518 = vadd.f32 %v5290, %v5517
        %v5519 = vpop.f32.mrb[0].mxu0
        %v5520 = vadd.f32 %v5292, %v5519
        %5521 = vdwg.mxu0
        %5522 = vmatprep.subr.mxu0 %v5378
        %5523 = vmatpush1.msra.mxu0 %v5376
        %5524 = vmatprep.subr.mxu0 0.0
        %5525 = vmatpush1.msra.mxu0 0.0
        %5526 = vmatprep.subr.mxu0 0.0
        %5527 = vmatpush1.msra.mxu0 0.0
        %5528 = vmatprep.subr.mxu0 0.0
        %5529 = vmatpush1.msra.mxu0 0.0
        %5530 = vmatprep.subr.mxu0 0.0
        %5531 = vmatpush1.msra.mxu0 0.0
        %5532 = vmatprep.subr.mxu0 0.0
        %5533 = vmatpush1.msra.mxu0 0.0
        %5534 = vmatprep.subr.mxu0 0.0
        %5535 = vmatpush1.msra.mxu0 0.0
        %5536 = vmatprep.subr.mxu0 0.0
        %5537 = vmatpush1.msra.mxu0 0.0
        %5538 = vmatprep.subr.mxu0 0.0
        %5539 = vmatpush1.msra.mxu0 0.0
        %5540 = vmatprep.subr.mxu0 0.0
        %5541 = vmatpush1.msra.mxu0 0.0
        %5542 = vmatprep.subr.mxu0 0.0
        %5543 = vmatpush1.msra.mxu0 0.0
        %5544 = vmatprep.subr.mxu0 0.0
        %5545 = vmatpush1.msra.mxu0 0.0
        %5546 = vmatprep.subr.mxu0 0.0
        %5547 = vmatpush1.msra.mxu0 0.0
        %5548 = vmatprep.subr.mxu0 0.0
        %5549 = vmatpush1.msra.mxu0 0.0
        %5550 = vmatprep.subr.mxu0 0.0
        %5551 = vmatpush1.msra.mxu0 0.0
        %5552 = vmatprep.subr.mxu0 0.0
        %5553 = vmatpush1.msra.mxu0 0.0
        %5554 = vmatprep.subr.mxu0 0.0
        %5555 = vmatpush1.msra.mxu0 0.0
        %5556 = vmatprep.subr.mxu0 0.0
        %5557 = vmatpush1.msra.mxu0 0.0
        %5558 = vmatprep.subr.mxu0 0.0
        %5559 = vmatpush1.msra.mxu0 0.0
        %5560 = vmatprep.subr.mxu0 0.0
        %5561 = vmatpush1.msra.mxu0 0.0
        %5562 = vmatprep.subr.mxu0 0.0
        %5563 = vmatpush1.msra.mxu0 0.0
        %5564 = vmatprep.subr.mxu0 0.0
        %5565 = vmatpush1.msra.mxu0 0.0
        %5566 = vmatprep.subr.mxu0 0.0
        %5567 = vmatpush1.msra.mxu0 0.0
        %5568 = vmatprep.subr.mxu0 0.0
        %5569 = vmatpush1.msra.mxu0 0.0
        %5570 = vmatprep.subr.mxu0 0.0
        %5571 = vmatpush1.msra.mxu0 0.0
        %5572 = vmatprep.subr.mxu0 0.0
        %5573 = vmatpush1.msra.mxu0 0.0
        %5574 = vmatprep.subr.mxu0 0.0
        %5575 = vmatpush1.msra.mxu0 0.0
        %5576 = vmatprep.subr.mxu0 0.0
        %5577 = vmatpush1.msra.mxu0 0.0
        %5578 = vmatprep.subr.mxu0 0.0
        %5579 = vmatpush1.msra.mxu0 0.0
        %5580 = vmatprep.subr.mxu0 0.0
        %5581 = vmatpush1.msra.mxu0 0.0
        %5582 = vmatprep.subr.mxu0 0.0
        %5583 = vmatpush1.msra.mxu0 0.0
        %5584 = vmatprep.subr.mxu0 0.0
        %5585 = vmatpush1.msra.mxu0 0.0
        %5586 = vmatprep.mubr.f32.mxu0 0.0
        %5587 = vmatmul.mubr.f32.gmra.mrb[0].mxu0 %v5366
        %v5588 = vpop.f32.mrb[0].mxu0
        %v5589 = vadd.f32 %v5361, %v5588
        %v5590 = vpop.f32.mrb[0].mxu0
        %v5591 = vadd.f32 %v5363, %v5590
        %5592 = vdwg.mxu0
        %s5593 = scalar_lea.vmem %s298, 8
        %v5594 = vld [vmem:[%s5593] sm:$0xf]
        %v5595 = vld [vmem:[%s0] sm:$0xff]
        %v5596 = vld [vmem:[%s0 + $0x8] sm:$0xff]
        %v5597 = vld [vmem:[%s0 + $0x10] sm:$0xff]
        %v5598 = vld [vmem:[%s0 + $0x18] sm:$0xf]
        %v5603 = vcombine.high %v5595, %v5595
        %v5604 = vcombine.high %v5596, %v5596
        %v5605 = vcombine.high %v5597, %v5597
        %5606 = vrot.lane.b32.xlu0 %v5595, 118
        %v5607 = vpop.permute.xlu0 %5606
        %5608 = vrot.lane.b32.xlu0 %v5603, 118
        %v5609 = vpop.permute.xlu0 %5608
        %5610 = vrot.lane.b32.xlu0 %v5596, 118
        %v5611 = vpop.permute.xlu0 %5610
        %5612 = vrot.lane.b32.xlu0 %v5604, 118
        %v5613 = vpop.permute.xlu0 %5612
        %5614 = vrot.lane.b32.xlu0 %v5597, 118
        %v5615 = vpop.permute.xlu0 %5614
        %5616 = vrot.lane.b32.xlu0 %v5605, 118
        %v5617 = vpop.permute.xlu0 %5616
        %5618 = vrot.lane.b32.xlu0 %v5598, 118
        %v5619 = vpop.permute.xlu0 %5618
        %vm5620 = vcmask 965632
        %v5621 = vsel %vm5620, %v5607, %v5609
        %v5622 = vsel %vm5620, %v5609, %v5611
        %v5623 = vsel %vm5620, %v5611, %v5613
        %v5624 = vsel %vm5620, %v5613, %v5615
        %v5625 = vsel %vm5620, %v5615, %v5617
        %v5626 = vsel %vm5620, %v5617, %v5619
        %v5628 = vsel %vm5135, %v5594, 0
        %v5630 = vsel %vm5139, %v5621, 0
        %v5632 = vsel %vm5139, %v5622, 0
        %v5634 = vsel %vm5139, %v5623, 0
        %v5636 = vsel %vm5139, %v5624, 0
        %v5638 = vsel %vm5139, %v5625, 0
        %v5640 = vsel %vm5139, %v5626, 0
        %5642 = vmatprep.subr.mxu0 %v5632
        %5643 = vmatpush1.msra.mxu0 %v5630
        %5644 = vmatprep.subr.mxu0 0.0
        %5645 = vmatpush1.msra.mxu0 0.0
        %5646 = vmatprep.subr.mxu0 0.0
        %5647 = vmatpush1.msra.mxu0 0.0
        %5648 = vmatprep.subr.mxu0 0.0
        %5649 = vmatpush1.msra.mxu0 0.0
        %5650 = vmatprep.subr.mxu0 0.0
        %5651 = vmatpush1.msra.mxu0 0.0
        %5652 = vmatprep.subr.mxu0 0.0
        %5653 = vmatpush1.msra.mxu0 0.0
        %5654 = vmatprep.subr.mxu0 0.0
        %5655 = vmatpush1.msra.mxu0 0.0
        %5656 = vmatprep.subr.mxu0 0.0
        %5657 = vmatpush1.msra.mxu0 0.0
        %5658 = vmatprep.subr.mxu0 0.0
        %5659 = vmatpush1.msra.mxu0 0.0
        %5660 = vmatprep.subr.mxu0 0.0
        %5661 = vmatpush1.msra.mxu0 0.0
        %5662 = vmatprep.subr.mxu0 0.0
        %5663 = vmatpush1.msra.mxu0 0.0
        %5664 = vmatprep.subr.mxu0 0.0
        %5665 = vmatpush1.msra.mxu0 0.0
        %5666 = vmatprep.subr.mxu0 0.0
        %5667 = vmatpush1.msra.mxu0 0.0
        %5668 = vmatprep.subr.mxu0 0.0
        %5669 = vmatpush1.msra.mxu0 0.0
        %5670 = vmatprep.subr.mxu0 0.0
        %5671 = vmatpush1.msra.mxu0 0.0
        %5672 = vmatprep.subr.mxu0 0.0
        %5673 = vmatpush1.msra.mxu0 0.0
        %5674 = vmatprep.subr.mxu0 0.0
        %5675 = vmatpush1.msra.mxu0 0.0
        %5676 = vmatprep.subr.mxu0 0.0
        %5677 = vmatpush1.msra.mxu0 0.0
        %5678 = vmatprep.subr.mxu0 0.0
        %5679 = vmatpush1.msra.mxu0 0.0
        %5680 = vmatprep.subr.mxu0 0.0
        %5681 = vmatpush1.msra.mxu0 0.0
        %5682 = vmatprep.subr.mxu0 0.0
        %5683 = vmatpush1.msra.mxu0 0.0
        %5684 = vmatprep.subr.mxu0 0.0
        %5685 = vmatpush1.msra.mxu0 0.0
        %5686 = vmatprep.subr.mxu0 0.0
        %5687 = vmatpush1.msra.mxu0 0.0
        %5688 = vmatprep.subr.mxu0 0.0
        %5689 = vmatpush1.msra.mxu0 0.0
        %5690 = vmatprep.subr.mxu0 0.0
        %5691 = vmatpush1.msra.mxu0 0.0
        %5692 = vmatprep.subr.mxu0 0.0
        %5693 = vmatpush1.msra.mxu0 0.0
        %5694 = vmatprep.subr.mxu0 0.0
        %5695 = vmatpush1.msra.mxu0 0.0
        %5696 = vmatprep.subr.mxu0 0.0
        %5697 = vmatpush1.msra.mxu0 0.0
        %5698 = vmatprep.subr.mxu0 0.0
        %5699 = vmatpush1.msra.mxu0 0.0
        %5700 = vmatprep.subr.mxu0 0.0
        %5701 = vmatpush1.msra.mxu0 0.0
        %5702 = vmatprep.subr.mxu0 0.0
        %5703 = vmatpush1.msra.mxu0 0.0
        %5704 = vmatprep.subr.mxu0 0.0
        %5705 = vmatpush1.msra.mxu0 0.0
        %5706 = vmatprep.mubr.f32.mxu0 0.0
        %5707 = vmatmul.mubr.f32.gmra.mrb[0].mxu0 %v5628
        %v5708 = vpop.f32.mrb[0].mxu0
        %v5709 = vadd.f32 0.0, %v5708
        %v5710 = vpop.f32.mrb[0].mxu0
        %v5711 = vadd.f32 0.0, %v5710
        %5712 = vdwg.mxu0
        %5713 = vmatprep.subr.mxu0 %v5636
        %5714 = vmatpush1.msra.mxu0 %v5634
        %5715 = vmatprep.subr.mxu0 0.0
        %5716 = vmatpush1.msra.mxu0 0.0
        %5717 = vmatprep.subr.mxu0 0.0
        %5718 = vmatpush1.msra.mxu0 0.0
        %5719 = vmatprep.subr.mxu0 0.0
        %5720 = vmatpush1.msra.mxu0 0.0
        %5721 = vmatprep.subr.mxu0 0.0
        %5722 = vmatpush1.msra.mxu0 0.0
        %5723 = vmatprep.subr.mxu0 0.0
        %5724 = vmatpush1.msra.mxu0 0.0
        %5725 = vmatprep.subr.mxu0 0.0
        %5726 = vmatpush1.msra.mxu0 0.0
        %5727 = vmatprep.subr.mxu0 0.0
        %5728 = vmatpush1.msra.mxu0 0.0
        %5729 = vmatprep.subr.mxu0 0.0
        %5730 = vmatpush1.msra.mxu0 0.0
        %5731 = vmatprep.subr.mxu0 0.0
        %5732 = vmatpush1.msra.mxu0 0.0
        %5733 = vmatprep.subr.mxu0 0.0
        %5734 = vmatpush1.msra.mxu0 0.0
        %5735 = vmatprep.subr.mxu0 0.0
        %5736 = vmatpush1.msra.mxu0 0.0
        %5737 = vmatprep.subr.mxu0 0.0
        %5738 = vmatpush1.msra.mxu0 0.0
        %5739 = vmatprep.subr.mxu0 0.0
        %5740 = vmatpush1.msra.mxu0 0.0
        %5741 = vmatprep.subr.mxu0 0.0
        %5742 = vmatpush1.msra.mxu0 0.0
        %5743 = vmatprep.subr.mxu0 0.0
        %5744 = vmatpush1.msra.mxu0 0.0
        %5745 = vmatprep.subr.mxu0 0.0
        %5746 = vmatpush1.msra.mxu0 0.0
        %5747 = vmatprep.subr.mxu0 0.0
        %5748 = vmatpush1.msra.mxu0 0.0
        %5749 = vmatprep.subr.mxu0 0.0
        %5750 = vmatpush1.msra.mxu0 0.0
        %5751 = vmatprep.subr.mxu0 0.0
        %5752 = vmatpush1.msra.mxu0 0.0
        %5753 = vmatprep.subr.mxu0 0.0
        %5754 = vmatpush1.msra.mxu0 0.0
        %5755 = vmatprep.subr.mxu0 0.0
        %5756 = vmatpush1.msra.mxu0 0.0
        %5757 = vmatprep.subr.mxu0 0.0
        %5758 = vmatpush1.msra.mxu0 0.0
        %5759 = vmatprep.subr.mxu0 0.0
        %5760 = vmatpush1.msra.mxu0 0.0
        %5761 = vmatprep.subr.mxu0 0.0
        %5762 = vmatpush1.msra.mxu0 0.0
        %5763 = vmatprep.subr.mxu0 0.0
        %5764 = vmatpush1.msra.mxu0 0.0
        %5765 = vmatprep.subr.mxu0 0.0
        %5766 = vmatpush1.msra.mxu0 0.0
        %5767 = vmatprep.subr.mxu0 0.0
        %5768 = vmatpush1.msra.mxu0 0.0
        %5769 = vmatprep.subr.mxu0 0.0
        %5770 = vmatpush1.msra.mxu0 0.0
        %5771 = vmatprep.subr.mxu0 0.0
        %5772 = vmatpush1.msra.mxu0 0.0
        %5773 = vmatprep.subr.mxu0 0.0
        %5774 = vmatpush1.msra.mxu0 0.0
        %5775 = vmatprep.subr.mxu0 0.0
        %5776 = vmatpush1.msra.mxu0 0.0
        %5777 = vmatprep.mubr.f32.mxu0 0.0
        %5778 = vmatmul.mubr.f32.gmra.mrb[0].mxu0 %v5628
        %v5779 = vpop.f32.mrb[0].mxu0
        %v5780 = vadd.f32 0.0, %v5779
        %v5781 = vpop.f32.mrb[0].mxu0
        %v5782 = vadd.f32 0.0, %v5781
        %5783 = vdwg.mxu0
        %5784 = vmatprep.subr.mxu0 %v5640
        %5785 = vmatpush1.msra.mxu0 %v5638
        %5786 = vmatprep.subr.mxu0 0.0
        %5787 = vmatpush1.msra.mxu0 0.0
        %5788 = vmatprep.subr.mxu0 0.0
        %5789 = vmatpush1.msra.mxu0 0.0
        %5790 = vmatprep.subr.mxu0 0.0
        %5791 = vmatpush1.msra.mxu0 0.0
        %5792 = vmatprep.subr.mxu0 0.0
        %5793 = vmatpush1.msra.mxu0 0.0
        %5794 = vmatprep.subr.mxu0 0.0
        %5795 = vmatpush1.msra.mxu0 0.0
        %5796 = vmatprep.subr.mxu0 0.0
        %5797 = vmatpush1.msra.mxu0 0.0
        %5798 = vmatprep.subr.mxu0 0.0
        %5799 = vmatpush1.msra.mxu0 0.0
        %5800 = vmatprep.subr.mxu0 0.0
        %5801 = vmatpush1.msra.mxu0 0.0
        %5802 = vmatprep.subr.mxu0 0.0
        %5803 = vmatpush1.msra.mxu0 0.0
        %5804 = vmatprep.subr.mxu0 0.0
        %5805 = vmatpush1.msra.mxu0 0.0
        %5806 = vmatprep.subr.mxu0 0.0
        %5807 = vmatpush1.msra.mxu0 0.0
        %5808 = vmatprep.subr.mxu0 0.0
        %5809 = vmatpush1.msra.mxu0 0.0
        %5810 = vmatprep.subr.mxu0 0.0
        %5811 = vmatpush1.msra.mxu0 0.0
        %5812 = vmatprep.subr.mxu0 0.0
        %5813 = vmatpush1.msra.mxu0 0.0
        %5814 = vmatprep.subr.mxu0 0.0
        %5815 = vmatpush1.msra.mxu0 0.0
        %5816 = vmatprep.subr.mxu0 0.0
        %5817 = vmatpush1.msra.mxu0 0.0
        %5818 = vmatprep.subr.mxu0 0.0
        %5819 = vmatpush1.msra.mxu0 0.0
        %5820 = vmatprep.subr.mxu0 0.0
        %5821 = vmatpush1.msra.mxu0 0.0
        %5822 = vmatprep.subr.mxu0 0.0
        %5823 = vmatpush1.msra.mxu0 0.0
        %5824 = vmatprep.subr.mxu0 0.0
        %5825 = vmatpush1.msra.mxu0 0.0
        %5826 = vmatprep.subr.mxu0 0.0
        %5827 = vmatpush1.msra.mxu0 0.0
        %5828 = vmatprep.subr.mxu0 0.0
        %5829 = vmatpush1.msra.mxu0 0.0
        %5830 = vmatprep.subr.mxu0 0.0
        %5831 = vmatpush1.msra.mxu0 0.0
        %5832 = vmatprep.subr.mxu0 0.0
        %5833 = vmatpush1.msra.mxu0 0.0
        %5834 = vmatprep.subr.mxu0 0.0
        %5835 = vmatpush1.msra.mxu0 0.0
        %5836 = vmatprep.subr.mxu0 0.0
        %5837 = vmatpush1.msra.mxu0 0.0
        %5838 = vmatprep.subr.mxu0 0.0
        %5839 = vmatpush1.msra.mxu0 0.0
        %5840 = vmatprep.subr.mxu0 0.0
        %5841 = vmatpush1.msra.mxu0 0.0
        %5842 = vmatprep.subr.mxu0 0.0
        %5843 = vmatpush1.msra.mxu0 0.0
        %5844 = vmatprep.subr.mxu0 0.0
        %5845 = vmatpush1.msra.mxu0 0.0
        %5846 = vmatprep.subr.mxu0 0.0
        %5847 = vmatpush1.msra.mxu0 0.0
        %5848 = vmatprep.mubr.f32.mxu0 0.0
        %5849 = vmatmul.mubr.f32.gmra.mrb[0].mxu0 %v5628
        %v5850 = vpop.f32.mrb[0].mxu0
        %v5851 = vadd.f32 0.0, %v5850
        %v5852 = vpop.f32.mrb[0].mxu0
        %v5853 = vadd.f32 0.0, %v5852
        %5854 = vdwg.mxu0
        %v5855 = vadd.f32 %v5447, %v5709
        %v5856 = vadd.f32 %v5449, %v5711
        %v5857 = vadd.f32 %v5518, %v5780
        %v5858 = vadd.f32 %v5520, %v5782
        %v5859 = vadd.f32 %v5589, %v5851
        %v5860 = vadd.f32 %v5591, %v5853
        %s5861 = scalar_lea.vmem %s298, 12
        %v5862 = vld [vmem:[%s5861] sm:$0xf]
        %v5863 = vld [vmem:[%s0] sm:$0xff]
        %v5864 = vld [vmem:[%s0 + $0x8] sm:$0xff]
        %v5865 = vld [vmem:[%s0 + $0x10] sm:$0xff]
        %v5866 = vld [vmem:[%s0 + $0x18] sm:$0xf]
        %v5871 = vcombine.high %v5863, %v5863
        %v5872 = vcombine.high %v5864, %v5864
        %v5873 = vcombine.high %v5865, %v5865
        %5874 = vrot.lane.b32.xlu0 %v5863, 38
        %v5875 = vpop.permute.xlu0 %5874
        %5876 = vrot.lane.b32.xlu0 %v5871, 38
        %v5877 = vpop.permute.xlu0 %5876
        %5878 = vrot.lane.b32.xlu0 %v5864, 38
        %v5879 = vpop.permute.xlu0 %5878
        %5880 = vrot.lane.b32.xlu0 %v5872, 38
        %v5881 = vpop.permute.xlu0 %5880
        %5882 = vrot.lane.b32.xlu0 %v5865, 38
        %v5883 = vpop.permute.xlu0 %5882
        %5884 = vrot.lane.b32.xlu0 %v5873, 38
        %v5885 = vpop.permute.xlu0 %5884
        %5886 = vrot.lane.b32.xlu0 %v5866, 38
        %v5887 = vpop.permute.xlu0 %5886
        %vm5888 = vcmask 310272
        %v5889 = vsel %vm5888, %v5875, %v5877
        %v5890 = vsel %vm5888, %v5877, %v5879
        %v5891 = vsel %vm5888, %v5879, %v5881
        %v5892 = vsel %vm5888, %v5881, %v5883
        %v5893 = vsel %vm5888, %v5883, %v5885
        %v5894 = vsel %vm5888, %v5885, %v5887
        %v5896 = vsel %vm5135, %v5862, 0
        %v5898 = vsel %vm5139, %v5889, 0
        %v5900 = vsel %vm5139, %v5890, 0
        %v5902 = vsel %vm5139, %v5891, 0
        %v5904 = vsel %vm5139, %v5892, 0
        %v5906 = vsel %vm5139, %v5893, 0
        %v5908 = vsel %vm5139, %v5894, 0
        %5910 = vmatprep.subr.mxu0 %v5900
        %5911 = vmatpush1.msra.mxu0 %v5898
        %5912 = vmatprep.subr.mxu0 0.0
        %5913 = vmatpush1.msra.mxu0 0.0
        %5914 = vmatprep.subr.mxu0 0.0
        %5915 = vmatpush1.msra.mxu0 0.0
        %5916 = vmatprep.subr.mxu0 0.0
        %5917 = vmatpush1.msra.mxu0 0.0
        %5918 = vmatprep.subr.mxu0 0.0
        %5919 = vmatpush1.msra.mxu0 0.0
        %5920 = vmatprep.subr.mxu0 0.0
        %5921 = vmatpush1.msra.mxu0 0.0
        %5922 = vmatprep.subr.mxu0 0.0
        %5923 = vmatpush1.msra.mxu0 0.0
        %5924 = vmatprep.subr.mxu0 0.0
        %5925 = vmatpush1.msra.mxu0 0.0
        %5926 = vmatprep.subr.mxu0 0.0
        %5927 = vmatpush1.msra.mxu0 0.0
        %5928 = vmatprep.subr.mxu0 0.0
        %5929 = vmatpush1.msra.mxu0 0.0
        %5930 = vmatprep.subr.mxu0 0.0
        %5931 = vmatpush1.msra.mxu0 0.0
        %5932 = vmatprep.subr.mxu0 0.0
        %5933 = vmatpush1.msra.mxu0 0.0
        %5934 = vmatprep.subr.mxu0 0.0
        %5935 = vmatpush1.msra.mxu0 0.0
        %5936 = vmatprep.subr.mxu0 0.0
        %5937 = vmatpush1.msra.mxu0 0.0
        %5938 = vmatprep.subr.mxu0 0.0
        %5939 = vmatpush1.msra.mxu0 0.0
        %5940 = vmatprep.subr.mxu0 0.0
        %5941 = vmatpush1.msra.mxu0 0.0
        %5942 = vmatprep.subr.mxu0 0.0
        %5943 = vmatpush1.msra.mxu0 0.0
        %5944 = vmatprep.subr.mxu0 0.0
        %5945 = vmatpush1.msra.mxu0 0.0
        %5946 = vmatprep.subr.mxu0 0.0
        %5947 = vmatpush1.msra.mxu0 0.0
        %5948 = vmatprep.subr.mxu0 0.0
        %5949 = vmatpush1.msra.mxu0 0.0
        %5950 = vmatprep.subr.mxu0 0.0
        %5951 = vmatpush1.msra.mxu0 0.0
        %5952 = vmatprep.subr.mxu0 0.0
        %5953 = vmatpush1.msra.mxu0 0.0
        %5954 = vmatprep.subr.mxu0 0.0
        %5955 = vmatpush1.msra.mxu0 0.0
        %5956 = vmatprep.subr.mxu0 0.0
        %5957 = vmatpush1.msra.mxu0 0.0
        %5958 = vmatprep.subr.mxu0 0.0
        %5959 = vmatpush1.msra.mxu0 0.0
        %5960 = vmatprep.subr.mxu0 0.0
        %5961 = vmatpush1.msra.mxu0 0.0
        %5962 = vmatprep.subr.mxu0 0.0
        %5963 = vmatpush1.msra.mxu0 0.0
        %5964 = vmatprep.subr.mxu0 0.0
        %5965 = vmatpush1.msra.mxu0 0.0
        %5966 = vmatprep.subr.mxu0 0.0
        %5967 = vmatpush1.msra.mxu0 0.0
        %5968 = vmatprep.subr.mxu0 0.0
        %5969 = vmatpush1.msra.mxu0 0.0
        %5970 = vmatprep.subr.mxu0 0.0
        %5971 = vmatpush1.msra.mxu0 0.0
        %5972 = vmatprep.subr.mxu0 0.0
        %5973 = vmatpush1.msra.mxu0 0.0
        %5974 = vmatprep.mubr.f32.mxu0 0.0
        %5975 = vmatmul.mubr.f32.gmra.mrb[0].mxu0 %v5896
        %v5976 = vpop.f32.mrb[0].mxu0
        %v5977 = vadd.f32 0.0, %v5976
        %v5978 = vpop.f32.mrb[0].mxu0
        %v5979 = vadd.f32 0.0, %v5978
        %5980 = vdwg.mxu0
        %5981 = vmatprep.subr.mxu0 %v5904
        %5982 = vmatpush1.msra.mxu0 %v5902
        %5983 = vmatprep.subr.mxu0 0.0
        %5984 = vmatpush1.msra.mxu0 0.0
        %5985 = vmatprep.subr.mxu0 0.0
        %5986 = vmatpush1.msra.mxu0 0.0
        %5987 = vmatprep.subr.mxu0 0.0
        %5988 = vmatpush1.msra.mxu0 0.0
        %5989 = vmatprep.subr.mxu0 0.0
        %5990 = vmatpush1.msra.mxu0 0.0
        %5991 = vmatprep.subr.mxu0 0.0
        %5992 = vmatpush1.msra.mxu0 0.0
        %5993 = vmatprep.subr.mxu0 0.0
        %5994 = vmatpush1.msra.mxu0 0.0
        %5995 = vmatprep.subr.mxu0 0.0
        %5996 = vmatpush1.msra.mxu0 0.0
        %5997 = vmatprep.subr.mxu0 0.0
        %5998 = vmatpush1.msra.mxu0 0.0
        %5999 = vmatprep.subr.mxu0 0.0
        %6000 = vmatpush1.msra.mxu0 0.0
        %6001 = vmatprep.subr.mxu0 0.0
        %6002 = vmatpush1.msra.mxu0 0.0
        %6003 = vmatprep.subr.mxu0 0.0
        %6004 = vmatpush1.msra.mxu0 0.0
        %6005 = vmatprep.subr.mxu0 0.0
        %6006 = vmatpush1.msra.mxu0 0.0
        %6007 = vmatprep.subr.mxu0 0.0
        %6008 = vmatpush1.msra.mxu0 0.0
        %6009 = vmatprep.subr.mxu0 0.0
        %6010 = vmatpush1.msra.mxu0 0.0
        %6011 = vmatprep.subr.mxu0 0.0
        %6012 = vmatpush1.msra.mxu0 0.0
        %6013 = vmatprep.subr.mxu0 0.0
        %6014 = vmatpush1.msra.mxu0 0.0
        %6015 = vmatprep.subr.mxu0 0.0
        %6016 = vmatpush1.msra.mxu0 0.0
        %6017 = vmatprep.subr.mxu0 0.0
        %6018 = vmatpush1.msra.mxu0 0.0
        %6019 = vmatprep.subr.mxu0 0.0
        %6020 = vmatpush1.msra.mxu0 0.0
        %6021 = vmatprep.subr.mxu0 0.0
        %6022 = vmatpush1.msra.mxu0 0.0
        %6023 = vmatprep.subr.mxu0 0.0
        %6024 = vmatpush1.msra.mxu0 0.0
        %6025 = vmatprep.subr.mxu0 0.0
        %6026 = vmatpush1.msra.mxu0 0.0
        %6027 = vmatprep.subr.mxu0 0.0
        %6028 = vmatpush1.msra.mxu0 0.0
        %6029 = vmatprep.subr.mxu0 0.0
        %6030 = vmatpush1.msra.mxu0 0.0
        %6031 = vmatprep.subr.mxu0 0.0
        %6032 = vmatpush1.msra.mxu0 0.0
        %6033 = vmatprep.subr.mxu0 0.0
        %6034 = vmatpush1.msra.mxu0 0.0
        %6035 = vmatprep.subr.mxu0 0.0
        %6036 = vmatpush1.msra.mxu0 0.0
        %6037 = vmatprep.subr.mxu0 0.0
        %6038 = vmatpush1.msra.mxu0 0.0
        %6039 = vmatprep.subr.mxu0 0.0
        %6040 = vmatpush1.msra.mxu0 0.0
        %6041 = vmatprep.subr.mxu0 0.0
        %6042 = vmatpush1.msra.mxu0 0.0
        %6043 = vmatprep.subr.mxu0 0.0
        %6044 = vmatpush1.msra.mxu0 0.0
        %6045 = vmatprep.mubr.f32.mxu0 0.0
        %6046 = vmatmul.mubr.f32.gmra.mrb[0].mxu0 %v5896
        %v6047 = vpop.f32.mrb[0].mxu0
        %v6048 = vadd.f32 0.0, %v6047
        %v6049 = vpop.f32.mrb[0].mxu0
        %v6050 = vadd.f32 0.0, %v6049
        %6051 = vdwg.mxu0
        %6052 = vmatprep.subr.mxu0 %v5908
        %6053 = vmatpush1.msra.mxu0 %v5906
        %6054 = vmatprep.subr.mxu0 0.0
        %6055 = vmatpush1.msra.mxu0 0.0
        %6056 = vmatprep.subr.mxu0 0.0
        %6057 = vmatpush1.msra.mxu0 0.0
        %6058 = vmatprep.subr.mxu0 0.0
        %6059 = vmatpush1.msra.mxu0 0.0
        %6060 = vmatprep.subr.mxu0 0.0
        %6061 = vmatpush1.msra.mxu0 0.0
        %6062 = vmatprep.subr.mxu0 0.0
        %6063 = vmatpush1.msra.mxu0 0.0
        %6064 = vmatprep.subr.mxu0 0.0
        %6065 = vmatpush1.msra.mxu0 0.0
        %6066 = vmatprep.subr.mxu0 0.0
        %6067 = vmatpush1.msra.mxu0 0.0
        %6068 = vmatprep.subr.mxu0 0.0
        %6069 = vmatpush1.msra.mxu0 0.0
        %6070 = vmatprep.subr.mxu0 0.0
        %6071 = vmatpush1.msra.mxu0 0.0
        %6072 = vmatprep.subr.mxu0 0.0
        %6073 = vmatpush1.msra.mxu0 0.0
        %6074 = vmatprep.subr.mxu0 0.0
        %6075 = vmatpush1.msra.mxu0 0.0
        %6076 = vmatprep.subr.mxu0 0.0
        %6077 = vmatpush1.msra.mxu0 0.0
        %6078 = vmatprep.subr.mxu0 0.0
        %6079 = vmatpush1.msra.mxu0 0.0
        %6080 = vmatprep.subr.mxu0 0.0
        %6081 = vmatpush1.msra.mxu0 0.0
        %6082 = vmatprep.subr.mxu0 0.0
        %6083 = vmatpush1.msra.mxu0 0.0
        %6084 = vmatprep.subr.mxu0 0.0
        %6085 = vmatpush1.msra.mxu0 0.0
        %6086 = vmatprep.subr.mxu0 0.0
        %6087 = vmatpush1.msra.mxu0 0.0
        %6088 = vmatprep.subr.mxu0 0.0
        %6089 = vmatpush1.msra.mxu0 0.0
        %6090 = vmatprep.subr.mxu0 0.0
        %6091 = vmatpush1.msra.mxu0 0.0
        %6092 = vmatprep.subr.mxu0 0.0
        %6093 = vmatpush1.msra.mxu0 0.0
        %6094 = vmatprep.subr.mxu0 0.0
        %6095 = vmatpush1.msra.mxu0 0.0
        %6096 = vmatprep.subr.mxu0 0.0
        %6097 = vmatpush1.msra.mxu0 0.0
        %6098 = vmatprep.subr.mxu0 0.0
        %6099 = vmatpush1.msra.mxu0 0.0
        %6100 = vmatprep.subr.mxu0 0.0
        %6101 = vmatpush1.msra.mxu0 0.0
        %6102 = vmatprep.subr.mxu0 0.0
        %6103 = vmatpush1.msra.mxu0 0.0
        %6104 = vmatprep.subr.mxu0 0.0
        %6105 = vmatpush1.msra.mxu0 0.0
        %6106 = vmatprep.subr.mxu0 0.0
        %6107 = vmatpush1.msra.mxu0 0.0
        %6108 = vmatprep.subr.mxu0 0.0
        %6109 = vmatpush1.msra.mxu0 0.0
        %6110 = vmatprep.subr.mxu0 0.0
        %6111 = vmatpush1.msra.mxu0 0.0
        %6112 = vmatprep.subr.mxu0 0.0
        %6113 = vmatpush1.msra.mxu0 0.0
        %6114 = vmatprep.subr.mxu0 0.0
        %6115 = vmatpush1.msra.mxu0 0.0
        %6116 = vmatprep.mubr.f32.mxu0 0.0
        %6117 = vmatmul.mubr.f32.gmra.mrb[0].mxu0 %v5896
        %v6118 = vpop.f32.mrb[0].mxu0
        %v6119 = vadd.f32 0.0, %v6118
        %v6120 = vpop.f32.mrb[0].mxu0
        %v6121 = vadd.f32 0.0, %v6120
        %6122 = vdwg.mxu0
        %v6123 = vadd.f32 %v5855, %v5977
        %v6124 = vadd.f32 %v5856, %v5979
        %v6125 = vadd.f32 %v5857, %v6048
        %v6126 = vadd.f32 %v5858, %v6050
        %v6127 = vadd.f32 %v5859, %v6119
        %v6128 = vadd.f32 %v5860, %v6121
        %s6129 = scalar_lea.vmem %s298, 16
        %v6130 = vld [vmem:[%s6129] sm:$0xf]
        %v6131 = vld [vmem:[%s0] sm:$0xff]
        %v6132 = vld [vmem:[%s0 + $0x8] sm:$0xff]
        %v6133 = vld [vmem:[%s0 + $0x10] sm:$0xff]
        %v6134 = vld [vmem:[%s0 + $0x18] sm:$0xf]
        %v6139 = vcombine.high %v6131, %v6131
        %v6140 = vcombine.high %v6132, %v6132
        %v6141 = vcombine.high %v6133, %v6133
        %6142 = vrot.lane.b32.xlu0 %v6131, 33
        %v6143 = vpop.permute.xlu0 %6142
        %6144 = vrot.lane.b32.xlu0 %v6139, 33
        %v6145 = vpop.permute.xlu0 %6144
        %6146 = vrot.lane.b32.xlu0 %v6132, 33
        %v6147 = vpop.permute.xlu0 %6146
        %6148 = vrot.lane.b32.xlu0 %v6140, 33
        %v6149 = vpop.permute.xlu0 %6148
        %6150 = vrot.lane.b32.xlu0 %v6133, 33
        %v6151 = vpop.permute.xlu0 %6150
        %6152 = vrot.lane.b32.xlu0 %v6141, 33
        %v6153 = vpop.permute.xlu0 %6152
        %6154 = vrot.lane.b32.xlu0 %v6134, 33
        %v6155 = vpop.permute.xlu0 %6154
        %vm6156 = vcmask 269312
        %v6157 = vsel %vm6156, %v6143, %v6145
        %v6158 = vsel %vm6156, %v6145, %v6147
        %v6159 = vsel %vm6156, %v6147, %v6149
        %v6160 = vsel %vm6156, %v6149, %v6151
        %v6161 = vsel %vm6156, %v6151, %v6153
        %v6162 = vsel %vm6156, %v6153, %v6155
        %v6164 = vsel %vm5135, %v6130, 0
        %v6166 = vsel %vm5139, %v6157, 0
        %v6168 = vsel %vm5139, %v6158, 0
        %v6170 = vsel %vm5139, %v6159, 0
        %v6172 = vsel %vm5139, %v6160, 0
        %v6174 = vsel %vm5139, %v6161, 0
        %v6176 = vsel %vm5139, %v6162, 0
        %6178 = vmatprep.subr.mxu0 %v6168
        %6179 = vmatpush1.msra.mxu0 %v6166
        %6180 = vmatprep.subr.mxu0 0.0
        %6181 = vmatpush1.msra.mxu0 0.0
        %6182 = vmatprep.subr.mxu0 0.0
        %6183 = vmatpush1.msra.mxu0 0.0
        %6184 = vmatprep.subr.mxu0 0.0
        %6185 = vmatpush1.msra.mxu0 0.0
        %6186 = vmatprep.subr.mxu0 0.0
        %6187 = vmatpush1.msra.mxu0 0.0
        %6188 = vmatprep.subr.mxu0 0.0
        %6189 = vmatpush1.msra.mxu0 0.0
        %6190 = vmatprep.subr.mxu0 0.0
        %6191 = vmatpush1.msra.mxu0 0.0
        %6192 = vmatprep.subr.mxu0 0.0
        %6193 = vmatpush1.msra.mxu0 0.0
        %6194 = vmatprep.subr.mxu0 0.0
        %6195 = vmatpush1.msra.mxu0 0.0
        %6196 = vmatprep.subr.mxu0 0.0
        %6197 = vmatpush1.msra.mxu0 0.0
        %6198 = vmatprep.subr.mxu0 0.0
        %6199 = vmatpush1.msra.mxu0 0.0
        %6200 = vmatprep.subr.mxu0 0.0
        %6201 = vmatpush1.msra.mxu0 0.0
        %6202 = vmatprep.subr.mxu0 0.0
        %6203 = vmatpush1.msra.mxu0 0.0
        %6204 = vmatprep.subr.mxu0 0.0
        %6205 = vmatpush1.msra.mxu0 0.0
        %6206 = vmatprep.subr.mxu0 0.0
        %6207 = vmatpush1.msra.mxu0 0.0
        %6208 = vmatprep.subr.mxu0 0.0
        %6209 = vmatpush1.msra.mxu0 0.0
        %6210 = vmatprep.subr.mxu0 0.0
        %6211 = vmatpush1.msra.mxu0 0.0
        %6212 = vmatprep.subr.mxu0 0.0
        %6213 = vmatpush1.msra.mxu0 0.0
        %6214 = vmatprep.subr.mxu0 0.0
        %6215 = vmatpush1.msra.mxu0 0.0
        %6216 = vmatprep.subr.mxu0 0.0
        %6217 = vmatpush1.msra.mxu0 0.0
        %6218 = vmatprep.subr.mxu0 0.0
        %6219 = vmatpush1.msra.mxu0 0.0
        %6220 = vmatprep.subr.mxu0 0.0
        %6221 = vmatpush1.msra.mxu0 0.0
        %6222 = vmatprep.subr.mxu0 0.0
        %6223 = vmatpush1.msra.mxu0 0.0
        %6224 = vmatprep.subr.mxu0 0.0
        %6225 = vmatpush1.msra.mxu0 0.0
        %6226 = vmatprep.subr.mxu0 0.0
        %6227 = vmatpush1.msra.mxu0 0.0
        %6228 = vmatprep.subr.mxu0 0.0
        %6229 = vmatpush1.msra.mxu0 0.0
        %6230 = vmatprep.subr.mxu0 0.0
        %6231 = vmatpush1.msra.mxu0 0.0
        %6232 = vmatprep.subr.mxu0 0.0
        %6233 = vmatpush1.msra.mxu0 0.0
        %6234 = vmatprep.subr.mxu0 0.0
        %6235 = vmatpush1.msra.mxu0 0.0
        %6236 = vmatprep.subr.mxu0 0.0
        %6237 = vmatpush1.msra.mxu0 0.0
        %6238 = vmatprep.subr.mxu0 0.0
        %6239 = vmatpush1.msra.mxu0 0.0
        %6240 = vmatprep.subr.mxu0 0.0
        %6241 = vmatpush1.msra.mxu0 0.0
        %6242 = vmatprep.mubr.f32.mxu0 0.0
        %6243 = vmatmul.mubr.f32.gmra.mrb[0].mxu0 %v6164
        %v6244 = vpop.f32.mrb[0].mxu0
        %v6245 = vadd.f32 0.0, %v6244
        %v6246 = vpop.f32.mrb[0].mxu0
        %v6247 = vadd.f32 0.0, %v6246
        %6248 = vdwg.mxu0
        %6249 = vmatprep.subr.mxu0 %v6172
        %6250 = vmatpush1.msra.mxu0 %v6170
        %6251 = vmatprep.subr.mxu0 0.0
        %6252 = vmatpush1.msra.mxu0 0.0
        %6253 = vmatprep.subr.mxu0 0.0
        %6254 = vmatpush1.msra.mxu0 0.0
        %6255 = vmatprep.subr.mxu0 0.0
        %6256 = vmatpush1.msra.mxu0 0.0
        %6257 = vmatprep.subr.mxu0 0.0
        %6258 = vmatpush1.msra.mxu0 0.0
        %6259 = vmatprep.subr.mxu0 0.0
        %6260 = vmatpush1.msra.mxu0 0.0
        %6261 = vmatprep.subr.mxu0 0.0
        %6262 = vmatpush1.msra.mxu0 0.0
        %6263 = vmatprep.subr.mxu0 0.0
        %6264 = vmatpush1.msra.mxu0 0.0
        %6265 = vmatprep.subr.mxu0 0.0
        %6266 = vmatpush1.msra.mxu0 0.0
        %6267 = vmatprep.subr.mxu0 0.0
        %6268 = vmatpush1.msra.mxu0 0.0
        %6269 = vmatprep.subr.mxu0 0.0
        %6270 = vmatpush1.msra.mxu0 0.0
        %6271 = vmatprep.subr.mxu0 0.0
        %6272 = vmatpush1.msra.mxu0 0.0
        %6273 = vmatprep.subr.mxu0 0.0
        %6274 = vmatpush1.msra.mxu0 0.0
        %6275 = vmatprep.subr.mxu0 0.0
        %6276 = vmatpush1.msra.mxu0 0.0
        %6277 = vmatprep.subr.mxu0 0.0
        %6278 = vmatpush1.msra.mxu0 0.0
        %6279 = vmatprep.subr.mxu0 0.0
        %6280 = vmatpush1.msra.mxu0 0.0
        %6281 = vmatprep.subr.mxu0 0.0
        %6282 = vmatpush1.msra.mxu0 0.0
        %6283 = vmatprep.subr.mxu0 0.0
        %6284 = vmatpush1.msra.mxu0 0.0
        %6285 = vmatprep.subr.mxu0 0.0
        %6286 = vmatpush1.msra.mxu0 0.0
        %6287 = vmatprep.subr.mxu0 0.0
        %6288 = vmatpush1.msra.mxu0 0.0
        %6289 = vmatprep.subr.mxu0 0.0
        %6290 = vmatpush1.msra.mxu0 0.0
        %6291 = vmatprep.subr.mxu0 0.0
        %6292 = vmatpush1.msra.mxu0 0.0
        %6293 = vmatprep.subr.mxu0 0.0
        %6294 = vmatpush1.msra.mxu0 0.0
        %6295 = vmatprep.subr.mxu0 0.0
        %6296 = vmatpush1.msra.mxu0 0.0
        %6297 = vmatprep.subr.mxu0 0.0
        %6298 = vmatpush1.msra.mxu0 0.0
        %6299 = vmatprep.subr.mxu0 0.0
        %6300 = vmatpush1.msra.mxu0 0.0
        %6301 = vmatprep.subr.mxu0 0.0
        %6302 = vmatpush1.msra.mxu0 0.0
        %6303 = vmatprep.subr.mxu0 0.0
        %6304 = vmatpush1.msra.mxu0 0.0
        %6305 = vmatprep.subr.mxu0 0.0
        %6306 = vmatpush1.msra.mxu0 0.0
        %6307 = vmatprep.subr.mxu0 0.0
        %6308 = vmatpush1.msra.mxu0 0.0
        %6309 = vmatprep.subr.mxu0 0.0
        %6310 = vmatpush1.msra.mxu0 0.0
        %6311 = vmatprep.subr.mxu0 0.0
        %6312 = vmatpush1.msra.mxu0 0.0
        %6313 = vmatprep.mubr.f32.mxu0 0.0
        %6314 = vmatmul.mubr.f32.gmra.mrb[0].mxu0 %v6164
        %v6315 = vpop.f32.mrb[0].mxu0
        %v6316 = vadd.f32 0.0, %v6315
        %v6317 = vpop.f32.mrb[0].mxu0
        %v6318 = vadd.f32 0.0, %v6317
        %6319 = vdwg.mxu0
        %6320 = vmatprep.subr.mxu0 %v6176
        %6321 = vmatpush1.msra.mxu0 %v6174
        %6322 = vmatprep.subr.mxu0 0.0
        %6323 = vmatpush1.msra.mxu0 0.0
        %6324 = vmatprep.subr.mxu0 0.0
        %6325 = vmatpush1.msra.mxu0 0.0
        %6326 = vmatprep.subr.mxu0 0.0
        %6327 = vmatpush1.msra.mxu0 0.0
        %6328 = vmatprep.subr.mxu0 0.0
        %6329 = vmatpush1.msra.mxu0 0.0
        %6330 = vmatprep.subr.mxu0 0.0
        %6331 = vmatpush1.msra.mxu0 0.0
        %6332 = vmatprep.subr.mxu0 0.0
        %6333 = vmatpush1.msra.mxu0 0.0
        %6334 = vmatprep.subr.mxu0 0.0
        %6335 = vmatpush1.msra.mxu0 0.0
        %6336 = vmatprep.subr.mxu0 0.0
        %6337 = vmatpush1.msra.mxu0 0.0
        %6338 = vmatprep.subr.mxu0 0.0
        %6339 = vmatpush1.msra.mxu0 0.0
        %6340 = vmatprep.subr.mxu0 0.0
        %6341 = vmatpush1.msra.mxu0 0.0
        %6342 = vmatprep.subr.mxu0 0.0
        %6343 = vmatpush1.msra.mxu0 0.0
        %6344 = vmatprep.subr.mxu0 0.0
        %6345 = vmatpush1.msra.mxu0 0.0
        %6346 = vmatprep.subr.mxu0 0.0
        %6347 = vmatpush1.msra.mxu0 0.0
        %6348 = vmatprep.subr.mxu0 0.0
        %6349 = vmatpush1.msra.mxu0 0.0
        %6350 = vmatprep.subr.mxu0 0.0
        %6351 = vmatpush1.msra.mxu0 0.0
        %6352 = vmatprep.subr.mxu0 0.0
        %6353 = vmatpush1.msra.mxu0 0.0
        %6354 = vmatprep.subr.mxu0 0.0
        %6355 = vmatpush1.msra.mxu0 0.0
        %6356 = vmatprep.subr.mxu0 0.0
        %6357 = vmatpush1.msra.mxu0 0.0
        %6358 = vmatprep.subr.mxu0 0.0
        %6359 = vmatpush1.msra.mxu0 0.0
        %6360 = vmatprep.subr.mxu0 0.0
        %6361 = vmatpush1.msra.mxu0 0.0
        %6362 = vmatprep.subr.mxu0 0.0
        %6363 = vmatpush1.msra.mxu0 0.0
        %6364 = vmatprep.subr.mxu0 0.0
        %6365 = vmatpush1.msra.mxu0 0.0
        %6366 = vmatprep.subr.mxu0 0.0
        %6367 = vmatpush1.msra.mxu0 0.0
        %6368 = vmatprep.subr.mxu0 0.0
        %6369 = vmatpush1.msra.mxu0 0.0
        %6370 = vmatprep.subr.mxu0 0.0
        %6371 = vmatpush1.msra.mxu0 0.0
        %6372 = vmatprep.subr.mxu0 0.0
        %6373 = vmatpush1.msra.mxu0 0.0
        %6374 = vmatprep.subr.mxu0 0.0
        %6375 = vmatpush1.msra.mxu0 0.0
        %6376 = vmatprep.subr.mxu0 0.0
        %6377 = vmatpush1.msra.mxu0 0.0
        %6378 = vmatprep.subr.mxu0 0.0
        %6379 = vmatpush1.msra.mxu0 0.0
        %6380 = vmatprep.subr.mxu0 0.0
        %6381 = vmatpush1.msra.mxu0 0.0
        %6382 = vmatprep.subr.mxu0 0.0
        %6383 = vmatpush1.msra.mxu0 0.0
        %6384 = vmatprep.mubr.f32.mxu0 0.0
        %6385 = vmatmul.mubr.f32.gmra.mrb[0].mxu0 %v6164
        %v6386 = vpop.f32.mrb[0].mxu0
        %v6387 = vadd.f32 0.0, %v6386
        %v6388 = vpop.f32.mrb[0].mxu0
        %v6389 = vadd.f32 0.0, %v6388
        %6390 = vdwg.mxu0
        %v6391 = vadd.f32 %v6123, %v6245
        %v6392 = vadd.f32 %v6124, %v6247
        %v6393 = vadd.f32 %v6125, %v6316
        %v6394 = vadd.f32 %v6126, %v6318
        %v6395 = vadd.f32 %v6127, %v6387
        %v6396 = vadd.f32 %v6128, %v6389
        %s6397 = scalar_lea.vmem %s298, 20
        %v6398 = vld [vmem:[%s6397] sm:$0xf]
        %v6399 = vld [vmem:[%s0] sm:$0xff]
        %v6400 = vld [vmem:[%s0 + $0x8] sm:$0xff]
        %v6401 = vld [vmem:[%s0 + $0x10] sm:$0xff]
        %v6402 = vld [vmem:[%s0 + $0x18] sm:$0xf]
        %v6407 = vcombine.high %v6399, %v6399
        %v6408 = vcombine.high %v6400, %v6400
        %v6409 = vcombine.high %v6401, %v6401
        %6410 = vrot.lane.b32.xlu0 %v6399, 28
        %v6411 = vpop.permute.xlu0 %6410
        %6412 = vrot.lane.b32.xlu0 %v6407, 28
        %v6413 = vpop.permute.xlu0 %6412
        %6414 = vrot.lane.b32.xlu0 %v6400, 28
        %v6415 = vpop.permute.xlu0 %6414
        %6416 = vrot.lane.b32.xlu0 %v6408, 28
        %v6417 = vpop.permute.xlu0 %6416
        %6418 = vrot.lane.b32.xlu0 %v6401, 28
        %v6419 = vpop.permute.xlu0 %6418
        %6420 = vrot.lane.b32.xlu0 %v6409, 28
        %v6421 = vpop.permute.xlu0 %6420
        %6422 = vrot.lane.b32.xlu0 %v6402, 28
        %v6423 = vpop.permute.xlu0 %6422
        %vm6424 = vcmask 228352
        %v6425 = vsel %vm6424, %v6411, %v6413
        %v6426 = vsel %vm6424, %v6413, %v6415
        %v6427 = vsel %vm6424, %v6415, %v6417
        %v6428 = vsel %vm6424, %v6417, %v6419
        %v6429 = vsel %vm6424, %v6419, %v6421
        %v6430 = vsel %vm6424, %v6421, %v6423
        %v6432 = vsel %vm5135, %v6398, 0
        %v6434 = vsel %vm5139, %v6425, 0
        %v6436 = vsel %vm5139, %v6426, 0
        %v6438 = vsel %vm5139, %v6427, 0
        %v6440 = vsel %vm5139, %v6428, 0
        %v6442 = vsel %vm5139, %v6429, 0
        %v6444 = vsel %vm5139, %v6430, 0
        %6446 = vmatprep.subr.mxu0 %v6436
        %6447 = vmatpush1.msra.mxu0 %v6434
        %6448 = vmatprep.subr.mxu0 0.0
        %6449 = vmatpush1.msra.mxu0 0.0
        %6450 = vmatprep.subr.mxu0 0.0
        %6451 = vmatpush1.msra.mxu0 0.0
        %6452 = vmatprep.subr.mxu0 0.0
        %6453 = vmatpush1.msra.mxu0 0.0
        %6454 = vmatprep.subr.mxu0 0.0
        %6455 = vmatpush1.msra.mxu0 0.0
        %6456 = vmatprep.subr.mxu0 0.0
        %6457 = vmatpush1.msra.mxu0 0.0
        %6458 = vmatprep.subr.mxu0 0.0
        %6459 = vmatpush1.msra.mxu0 0.0
        %6460 = vmatprep.subr.mxu0 0.0
        %6461 = vmatpush1.msra.mxu0 0.0
        %6462 = vmatprep.subr.mxu0 0.0
        %6463 = vmatpush1.msra.mxu0 0.0
        %6464 = vmatprep.subr.mxu0 0.0
        %6465 = vmatpush1.msra.mxu0 0.0
        %6466 = vmatprep.subr.mxu0 0.0
        %6467 = vmatpush1.msra.mxu0 0.0
        %6468 = vmatprep.subr.mxu0 0.0
        %6469 = vmatpush1.msra.mxu0 0.0
        %6470 = vmatprep.subr.mxu0 0.0
        %6471 = vmatpush1.msra.mxu0 0.0
        %6472 = vmatprep.subr.mxu0 0.0
        %6473 = vmatpush1.msra.mxu0 0.0
        %6474 = vmatprep.subr.mxu0 0.0
        %6475 = vmatpush1.msra.mxu0 0.0
        %6476 = vmatprep.subr.mxu0 0.0
        %6477 = vmatpush1.msra.mxu0 0.0
        %6478 = vmatprep.subr.mxu0 0.0
        %6479 = vmatpush1.msra.mxu0 0.0
        %6480 = vmatprep.subr.mxu0 0.0
        %6481 = vmatpush1.msra.mxu0 0.0
        %6482 = vmatprep.subr.mxu0 0.0
        %6483 = vmatpush1.msra.mxu0 0.0
        %6484 = vmatprep.subr.mxu0 0.0
        %6485 = vmatpush1.msra.mxu0 0.0
        %6486 = vmatprep.subr.mxu0 0.0
        %6487 = vmatpush1.msra.mxu0 0.0
        %6488 = vmatprep.subr.mxu0 0.0
        %6489 = vmatpush1.msra.mxu0 0.0
        %6490 = vmatprep.subr.mxu0 0.0
        %6491 = vmatpush1.msra.mxu0 0.0
        %6492 = vmatprep.subr.mxu0 0.0
        %6493 = vmatpush1.msra.mxu0 0.0
        %6494 = vmatprep.subr.mxu0 0.0
        %6495 = vmatpush1.msra.mxu0 0.0
        %6496 = vmatprep.subr.mxu0 0.0
        %6497 = vmatpush1.msra.mxu0 0.0
        %6498 = vmatprep.subr.mxu0 0.0
        %6499 = vmatpush1.msra.mxu0 0.0
        %6500 = vmatprep.subr.mxu0 0.0
        %6501 = vmatpush1.msra.mxu0 0.0
        %6502 = vmatprep.subr.mxu0 0.0
        %6503 = vmatpush1.msra.mxu0 0.0
        %6504 = vmatprep.subr.mxu0 0.0
        %6505 = vmatpush1.msra.mxu0 0.0
        %6506 = vmatprep.subr.mxu0 0.0
        %6507 = vmatpush1.msra.mxu0 0.0
        %6508 = vmatprep.subr.mxu0 0.0
        %6509 = vmatpush1.msra.mxu0 0.0
        %6510 = vmatprep.mubr.f32.mxu0 0.0
        %6511 = vmatmul.mubr.f32.gmra.mrb[0].mxu0 %v6432
        %v6512 = vpop.f32.mrb[0].mxu0
        %v6513 = vadd.f32 0.0, %v6512
        %v6514 = vpop.f32.mrb[0].mxu0
        %v6515 = vadd.f32 0.0, %v6514
        %6516 = vdwg.mxu0
        %6517 = vmatprep.subr.mxu0 %v6440
        %6518 = vmatpush1.msra.mxu0 %v6438
        %6519 = vmatprep.subr.mxu0 0.0
        %6520 = vmatpush1.msra.mxu0 0.0
        %6521 = vmatprep.subr.mxu0 0.0
        %6522 = vmatpush1.msra.mxu0 0.0
        %6523 = vmatprep.subr.mxu0 0.0
        %6524 = vmatpush1.msra.mxu0 0.0
        %6525 = vmatprep.subr.mxu0 0.0
        %6526 = vmatpush1.msra.mxu0 0.0
        %6527 = vmatprep.subr.mxu0 0.0
        %6528 = vmatpush1.msra.mxu0 0.0
        %6529 = vmatprep.subr.mxu0 0.0
        %6530 = vmatpush1.msra.mxu0 0.0
        %6531 = vmatprep.subr.mxu0 0.0
        %6532 = vmatpush1.msra.mxu0 0.0
        %6533 = vmatprep.subr.mxu0 0.0
        %6534 = vmatpush1.msra.mxu0 0.0
        %6535 = vmatprep.subr.mxu0 0.0
        %6536 = vmatpush1.msra.mxu0 0.0
        %6537 = vmatprep.subr.mxu0 0.0
        %6538 = vmatpush1.msra.mxu0 0.0
        %6539 = vmatprep.subr.mxu0 0.0
        %6540 = vmatpush1.msra.mxu0 0.0
        %6541 = vmatprep.subr.mxu0 0.0
        %6542 = vmatpush1.msra.mxu0 0.0
        %6543 = vmatprep.subr.mxu0 0.0
        %6544 = vmatpush1.msra.mxu0 0.0
        %6545 = vmatprep.subr.mxu0 0.0
        %6546 = vmatpush1.msra.mxu0 0.0
        %6547 = vmatprep.subr.mxu0 0.0
        %6548 = vmatpush1.msra.mxu0 0.0
        %6549 = vmatprep.subr.mxu0 0.0
        %6550 = vmatpush1.msra.mxu0 0.0
        %6551 = vmatprep.subr.mxu0 0.0
        %6552 = vmatpush1.msra.mxu0 0.0
        %6553 = vmatprep.subr.mxu0 0.0
        %6554 = vmatpush1.msra.mxu0 0.0
        %6555 = vmatprep.subr.mxu0 0.0
        %6556 = vmatpush1.msra.mxu0 0.0
        %6557 = vmatprep.subr.mxu0 0.0
        %6558 = vmatpush1.msra.mxu0 0.0
        %6559 = vmatprep.subr.mxu0 0.0
        %6560 = vmatpush1.msra.mxu0 0.0
        %6561 = vmatprep.subr.mxu0 0.0
        %6562 = vmatpush1.msra.mxu0 0.0
        %6563 = vmatprep.subr.mxu0 0.0
        %6564 = vmatpush1.msra.mxu0 0.0
        %6565 = vmatprep.subr.mxu0 0.0
        %6566 = vmatpush1.msra.mxu0 0.0
        %6567 = vmatprep.subr.mxu0 0.0
        %6568 = vmatpush1.msra.mxu0 0.0
        %6569 = vmatprep.subr.mxu0 0.0
        %6570 = vmatpush1.msra.mxu0 0.0
        %6571 = vmatprep.subr.mxu0 0.0
        %6572 = vmatpush1.msra.mxu0 0.0
        %6573 = vmatprep.subr.mxu0 0.0
        %6574 = vmatpush1.msra.mxu0 0.0
        %6575 = vmatprep.subr.mxu0 0.0
        %6576 = vmatpush1.msra.mxu0 0.0
        %6577 = vmatprep.subr.mxu0 0.0
        %6578 = vmatpush1.msra.mxu0 0.0
        %6579 = vmatprep.subr.mxu0 0.0
        %6580 = vmatpush1.msra.mxu0 0.0
        %6581 = vmatprep.mubr.f32.mxu0 0.0
        %6582 = vmatmul.mubr.f32.gmra.mrb[0].mxu0 %v6432
        %v6583 = vpop.f32.mrb[0].mxu0
        %v6584 = vadd.f32 0.0, %v6583
        %v6585 = vpop.f32.mrb[0].mxu0
        %v6586 = vadd.f32 0.0, %v6585
        %6587 = vdwg.mxu0
        %6588 = vmatprep.subr.mxu0 %v6444
        %6589 = vmatpush1.msra.mxu0 %v6442
        %6590 = vmatprep.subr.mxu0 0.0
        %6591 = vmatpush1.msra.mxu0 0.0
        %6592 = vmatprep.subr.mxu0 0.0
        %6593 = vmatpush1.msra.mxu0 0.0
        %6594 = vmatprep.subr.mxu0 0.0
        %6595 = vmatpush1.msra.mxu0 0.0
        %6596 = vmatprep.subr.mxu0 0.0
        %6597 = vmatpush1.msra.mxu0 0.0
        %6598 = vmatprep.subr.mxu0 0.0
        %6599 = vmatpush1.msra.mxu0 0.0
        %6600 = vmatprep.subr.mxu0 0.0
        %6601 = vmatpush1.msra.mxu0 0.0
        %6602 = vmatprep.subr.mxu0 0.0
        %6603 = vmatpush1.msra.mxu0 0.0
        %6604 = vmatprep.subr.mxu0 0.0
        %6605 = vmatpush1.msra.mxu0 0.0
        %6606 = vmatprep.subr.mxu0 0.0
        %6607 = vmatpush1.msra.mxu0 0.0
        %6608 = vmatprep.subr.mxu0 0.0
        %6609 = vmatpush1.msra.mxu0 0.0
        %6610 = vmatprep.subr.mxu0 0.0
        %6611 = vmatpush1.msra.mxu0 0.0
        %6612 = vmatprep.subr.mxu0 0.0
        %6613 = vmatpush1.msra.mxu0 0.0
        %6614 = vmatprep.subr.mxu0 0.0
        %6615 = vmatpush1.msra.mxu0 0.0
        %6616 = vmatprep.subr.mxu0 0.0
        %6617 = vmatpush1.msra.mxu0 0.0
        %6618 = vmatprep.subr.mxu0 0.0
        %6619 = vmatpush1.msra.mxu0 0.0
        %6620 = vmatprep.subr.mxu0 0.0
        %6621 = vmatpush1.msra.mxu0 0.0
        %6622 = vmatprep.subr.mxu0 0.0
        %6623 = vmatpush1.msra.mxu0 0.0
        %6624 = vmatprep.subr.mxu0 0.0
        %6625 = vmatpush1.msra.mxu0 0.0
        %6626 = vmatprep.subr.mxu0 0.0
        %6627 = vmatpush1.msra.mxu0 0.0
        %6628 = vmatprep.subr.mxu0 0.0
        %6629 = vmatpush1.msra.mxu0 0.0
        %6630 = vmatprep.subr.mxu0 0.0
        %6631 = vmatpush1.msra.mxu0 0.0
        %6632 = vmatprep.subr.mxu0 0.0
        %6633 = vmatpush1.msra.mxu0 0.0
        %6634 = vmatprep.subr.mxu0 0.0
        %6635 = vmatpush1.msra.mxu0 0.0
        %6636 = vmatprep.subr.mxu0 0.0
        %6637 = vmatpush1.msra.mxu0 0.0
        %6638 = vmatprep.subr.mxu0 0.0
        %6639 = vmatpush1.msra.mxu0 0.0
        %6640 = vmatprep.subr.mxu0 0.0
        %6641 = vmatpush1.msra.mxu0 0.0
        %6642 = vmatprep.subr.mxu0 0.0
        %6643 = vmatpush1.msra.mxu0 0.0
        %6644 = vmatprep.subr.mxu0 0.0
        %6645 = vmatpush1.msra.mxu0 0.0
        %6646 = vmatprep.subr.mxu0 0.0
        %6647 = vmatpush1.msra.mxu0 0.0
        %6648 = vmatprep.subr.mxu0 0.0
        %6649 = vmatpush1.msra.mxu0 0.0
        %6650 = vmatprep.subr.mxu0 0.0
        %6651 = vmatpush1.msra.mxu0 0.0
        %6652 = vmatprep.mubr.f32.mxu0 0.0
        %6653 = vmatmul.mubr.f32.gmra.mrb[0].mxu0 %v6432
        %v6654 = vpop.f32.mrb[0].mxu0
        %v6655 = vadd.f32 0.0, %v6654
        %v6656 = vpop.f32.mrb[0].mxu0
        %v6657 = vadd.f32 0.0, %v6656
        %6658 = vdwg.mxu0
        %v6659 = vadd.f32 %v6391, %v6513
        %v6660 = vadd.f32 %v6392, %v6515
        %v6661 = vadd.f32 %v6393, %v6584
        %v6662 = vadd.f32 %v6394, %v6586
        %v6663 = vadd.f32 %v6395, %v6655
        %v6664 = vadd.f32 %v6396, %v6657
        %s6665 = scalar_lea.vmem %s298, 24
        %v6666 = vld [vmem:[%s6665] sm:$0xf]
        %v6667 = vld [vmem:[%s0 + $0x4] sm:$0xff]
        %v6668 = vld [vmem:[%s0 + $0xc] sm:$0xff]
        %v6669 = vld [vmem:[%s0 + $0x14] sm:$0xff]
        %v6670 = vld [vmem:[%s0 + $0x1c] sm:$0xf]
        %v6675 = vcombine.high %v6667, %v6667
        %v6676 = vcombine.high %v6668, %v6668
        %v6677 = vcombine.high %v6669, %v6669
        %6678 = vrot.lane.b32.xlu0 %v6667, 76
        %v6679 = vpop.permute.xlu0 %6678
        %6680 = vrot.lane.b32.xlu0 %v6675, 76
        %v6681 = vpop.permute.xlu0 %6680
        %6682 = vrot.lane.b32.xlu0 %v6668, 76
        %v6683 = vpop.permute.xlu0 %6682
        %6684 = vrot.lane.b32.xlu0 %v6676, 76
        %v6685 = vpop.permute.xlu0 %6684
        %6686 = vrot.lane.b32.xlu0 %v6669, 76
        %v6687 = vpop.permute.xlu0 %6686
        %6688 = vrot.lane.b32.xlu0 %v6677, 76
        %v6689 = vpop.permute.xlu0 %6688
        %6690 = vrot.lane.b32.xlu0 %v6670, 76
        %v6691 = vpop.permute.xlu0 %6690
        %vm6692 = vcmask 621568
        %v6693 = vsel %vm6692, %v6679, %v6681
        %v6694 = vsel %vm6692, %v6681, %v6683
        %v6695 = vsel %vm6692, %v6683, %v6685
        %v6696 = vsel %vm6692, %v6685, %v6687
        %v6697 = vsel %vm6692, %v6687, %v6689
        %v6698 = vsel %vm6692, %v6689, %v6691
        %v6700 = vsel %vm5135, %v6666, 0
        %v6702 = vsel %vm5139, %v6693, 0
        %v6704 = vsel %vm5139, %v6694, 0
        %v6706 = vsel %vm5139, %v6695, 0
        %v6708 = vsel %vm5139, %v6696, 0
        %v6710 = vsel %vm5139, %v6697, 0
        %v6712 = vsel %vm5139, %v6698, 0
        %6714 = vmatprep.subr.mxu0 %v6704
        %6715 = vmatpush1.msra.mxu0 %v6702
        %6716 = vmatprep.subr.mxu0 0.0
        %6717 = vmatpush1.msra.mxu0 0.0
        %6718 = vmatprep.subr.mxu0 0.0
        %6719 = vmatpush1.msra.mxu0 0.0
        %6720 = vmatprep.subr.mxu0 0.0
        %6721 = vmatpush1.msra.mxu0 0.0
        %6722 = vmatprep.subr.mxu0 0.0
        %6723 = vmatpush1.msra.mxu0 0.0
        %6724 = vmatprep.subr.mxu0 0.0
        %6725 = vmatpush1.msra.mxu0 0.0
        %6726 = vmatprep.subr.mxu0 0.0
        %6727 = vmatpush1.msra.mxu0 0.0
        %6728 = vmatprep.subr.mxu0 0.0
        %6729 = vmatpush1.msra.mxu0 0.0
        %6730 = vmatprep.subr.mxu0 0.0
        %6731 = vmatpush1.msra.mxu0 0.0
        %6732 = vmatprep.subr.mxu0 0.0
        %6733 = vmatpush1.msra.mxu0 0.0
        %6734 = vmatprep.subr.mxu0 0.0
        %6735 = vmatpush1.msra.mxu0 0.0
        %6736 = vmatprep.subr.mxu0 0.0
        %6737 = vmatpush1.msra.mxu0 0.0
        %6738 = vmatprep.subr.mxu0 0.0
        %6739 = vmatpush1.msra.mxu0 0.0
        %6740 = vmatprep.subr.mxu0 0.0
        %6741 = vmatpush1.msra.mxu0 0.0
        %6742 = vmatprep.subr.mxu0 0.0
        %6743 = vmatpush1.msra.mxu0 0.0
        %6744 = vmatprep.subr.mxu0 0.0
        %6745 = vmatpush1.msra.mxu0 0.0
        %6746 = vmatprep.subr.mxu0 0.0
        %6747 = vmatpush1.msra.mxu0 0.0
        %6748 = vmatprep.subr.mxu0 0.0
        %6749 = vmatpush1.msra.mxu0 0.0
        %6750 = vmatprep.subr.mxu0 0.0
        %6751 = vmatpush1.msra.mxu0 0.0
        %6752 = vmatprep.subr.mxu0 0.0
        %6753 = vmatpush1.msra.mxu0 0.0
        %6754 = vmatprep.subr.mxu0 0.0
        %6755 = vmatpush1.msra.mxu0 0.0
        %6756 = vmatprep.subr.mxu0 0.0
        %6757 = vmatpush1.msra.mxu0 0.0
        %6758 = vmatprep.subr.mxu0 0.0
        %6759 = vmatpush1.msra.mxu0 0.0
        %6760 = vmatprep.subr.mxu0 0.0
        %6761 = vmatpush1.msra.mxu0 0.0
        %6762 = vmatprep.subr.mxu0 0.0
        %6763 = vmatpush1.msra.mxu0 0.0
        %6764 = vmatprep.subr.mxu0 0.0
        %6765 = vmatpush1.msra.mxu0 0.0
        %6766 = vmatprep.subr.mxu0 0.0
        %6767 = vmatpush1.msra.mxu0 0.0
        %6768 = vmatprep.subr.mxu0 0.0
        %6769 = vmatpush1.msra.mxu0 0.0
        %6770 = vmatprep.subr.mxu0 0.0
        %6771 = vmatpush1.msra.mxu0 0.0
        %6772 = vmatprep.subr.mxu0 0.0
        %6773 = vmatpush1.msra.mxu0 0.0
        %6774 = vmatprep.subr.mxu0 0.0
        %6775 = vmatpush1.msra.mxu0 0.0
        %6776 = vmatprep.subr.mxu0 0.0
        %6777 = vmatpush1.msra.mxu0 0.0
        %6778 = vmatprep.mubr.f32.mxu0 0.0
        %6779 = vmatmul.mubr.f32.gmra.mrb[0].mxu0 %v6700
        %v6780 = vpop.f32.mrb[0].mxu0
        %v6781 = vadd.f32 0.0, %v6780
        %v6782 = vpop.f32.mrb[0].mxu0
        %v6783 = vadd.f32 0.0, %v6782
        %6784 = vdwg.mxu0
        %6785 = vmatprep.subr.mxu0 %v6708
        %6786 = vmatpush1.msra.mxu0 %v6706
        %6787 = vmatprep.subr.mxu0 0.0
        %6788 = vmatpush1.msra.mxu0 0.0
        %6789 = vmatprep.subr.mxu0 0.0
        %6790 = vmatpush1.msra.mxu0 0.0
        %6791 = vmatprep.subr.mxu0 0.0
        %6792 = vmatpush1.msra.mxu0 0.0
        %6793 = vmatprep.subr.mxu0 0.0
        %6794 = vmatpush1.msra.mxu0 0.0
        %6795 = vmatprep.subr.mxu0 0.0
        %6796 = vmatpush1.msra.mxu0 0.0
        %6797 = vmatprep.subr.mxu0 0.0
        %6798 = vmatpush1.msra.mxu0 0.0
        %6799 = vmatprep.subr.mxu0 0.0
        %6800 = vmatpush1.msra.mxu0 0.0
        %6801 = vmatprep.subr.mxu0 0.0
        %6802 = vmatpush1.msra.mxu0 0.0
        %6803 = vmatprep.subr.mxu0 0.0
        %6804 = vmatpush1.msra.mxu0 0.0
        %6805 = vmatprep.subr.mxu0 0.0
        %6806 = vmatpush1.msra.mxu0 0.0
        %6807 = vmatprep.subr.mxu0 0.0
        %6808 = vmatpush1.msra.mxu0 0.0
        %6809 = vmatprep.subr.mxu0 0.0
        %6810 = vmatpush1.msra.mxu0 0.0
        %6811 = vmatprep.subr.mxu0 0.0
        %6812 = vmatpush1.msra.mxu0 0.0
        %6813 = vmatprep.subr.mxu0 0.0
        %6814 = vmatpush1.msra.mxu0 0.0
        %6815 = vmatprep.subr.mxu0 0.0
        %6816 = vmatpush1.msra.mxu0 0.0
        %6817 = vmatprep.subr.mxu0 0.0
        %6818 = vmatpush1.msra.mxu0 0.0
        %6819 = vmatprep.subr.mxu0 0.0
        %6820 = vmatpush1.msra.mxu0 0.0
        %6821 = vmatprep.subr.mxu0 0.0
        %6822 = vmatpush1.msra.mxu0 0.0
        %6823 = vmatprep.subr.mxu0 0.0
        %6824 = vmatpush1.msra.mxu0 0.0
        %6825 = vmatprep.subr.mxu0 0.0
        %6826 = vmatpush1.msra.mxu0 0.0
        %6827 = vmatprep.subr.mxu0 0.0
        %6828 = vmatpush1.msra.mxu0 0.0
        %6829 = vmatprep.subr.mxu0 0.0
        %6830 = vmatpush1.msra.mxu0 0.0
        %6831 = vmatprep.subr.mxu0 0.0
        %6832 = vmatpush1.msra.mxu0 0.0
        %6833 = vmatprep.subr.mxu0 0.0
        %6834 = vmatpush1.msra.mxu0 0.0
        %6835 = vmatprep.subr.mxu0 0.0
        %6836 = vmatpush1.msra.mxu0 0.0
        %6837 = vmatprep.subr.mxu0 0.0
        %6838 = vmatpush1.msra.mxu0 0.0
        %6839 = vmatprep.subr.mxu0 0.0
        %6840 = vmatpush1.msra.mxu0 0.0
        %6841 = vmatprep.subr.mxu0 0.0
        %6842 = vmatpush1.msra.mxu0 0.0
        %6843 = vmatprep.subr.mxu0 0.0
        %6844 = vmatpush1.msra.mxu0 0.0
        %6845 = vmatprep.subr.mxu0 0.0
        %6846 = vmatpush1.msra.mxu0 0.0
        %6847 = vmatprep.subr.mxu0 0.0
        %6848 = vmatpush1.msra.mxu0 0.0
        %6849 = vmatprep.mubr.f32.mxu0 0.0
        %6850 = vmatmul.mubr.f32.gmra.mrb[0].mxu0 %v6700
        %v6851 = vpop.f32.mrb[0].mxu0
        %v6852 = vadd.f32 0.0, %v6851
        %v6853 = vpop.f32.mrb[0].mxu0
        %v6854 = vadd.f32 0.0, %v6853
        %6855 = vdwg.mxu0
        %6856 = vmatprep.subr.mxu0 %v6712
        %6857 = vmatpush1.msra.mxu0 %v6710
        %6858 = vmatprep.subr.mxu0 0.0
        %6859 = vmatpush1.msra.mxu0 0.0
        %6860 = vmatprep.subr.mxu0 0.0
        %6861 = vmatpush1.msra.mxu0 0.0
        %6862 = vmatprep.subr.mxu0 0.0
        %6863 = vmatpush1.msra.mxu0 0.0
        %6864 = vmatprep.subr.mxu0 0.0
        %6865 = vmatpush1.msra.mxu0 0.0
        %6866 = vmatprep.subr.mxu0 0.0
        %6867 = vmatpush1.msra.mxu0 0.0
        %6868 = vmatprep.subr.mxu0 0.0
        %6869 = vmatpush1.msra.mxu0 0.0
        %6870 = vmatprep.subr.mxu0 0.0
        %6871 = vmatpush1.msra.mxu0 0.0
        %6872 = vmatprep.subr.mxu0 0.0
        %6873 = vmatpush1.msra.mxu0 0.0
        %6874 = vmatprep.subr.mxu0 0.0
        %6875 = vmatpush1.msra.mxu0 0.0
        %6876 = vmatprep.subr.mxu0 0.0
        %6877 = vmatpush1.msra.mxu0 0.0
        %6878 = vmatprep.subr.mxu0 0.0
        %6879 = vmatpush1.msra.mxu0 0.0
        %6880 = vmatprep.subr.mxu0 0.0
        %6881 = vmatpush1.msra.mxu0 0.0
        %6882 = vmatprep.subr.mxu0 0.0
        %6883 = vmatpush1.msra.mxu0 0.0
        %6884 = vmatprep.subr.mxu0 0.0
        %6885 = vmatpush1.msra.mxu0 0.0
        %6886 = vmatprep.subr.mxu0 0.0
        %6887 = vmatpush1.msra.mxu0 0.0
        %6888 = vmatprep.subr.mxu0 0.0
        %6889 = vmatpush1.msra.mxu0 0.0
        %6890 = vmatprep.subr.mxu0 0.0
        %6891 = vmatpush1.msra.mxu0 0.0
        %6892 = vmatprep.subr.mxu0 0.0
        %6893 = vmatpush1.msra.mxu0 0.0
        %6894 = vmatprep.subr.mxu0 0.0
        %6895 = vmatpush1.msra.mxu0 0.0
        %6896 = vmatprep.subr.mxu0 0.0
        %6897 = vmatpush1.msra.mxu0 0.0
        %6898 = vmatprep.subr.mxu0 0.0
        %6899 = vmatpush1.msra.mxu0 0.0
        %6900 = vmatprep.subr.mxu0 0.0
        %6901 = vmatpush1.msra.mxu0 0.0
        %6902 = vmatprep.subr.mxu0 0.0
        %6903 = vmatpush1.msra.mxu0 0.0
        %6904 = vmatprep.subr.mxu0 0.0
        %6905 = vmatpush1.msra.mxu0 0.0
        %6906 = vmatprep.subr.mxu0 0.0
        %6907 = vmatpush1.msra.mxu0 0.0
        %6908 = vmatprep.subr.mxu0 0.0
        %6909 = vmatpush1.msra.mxu0 0.0
        %6910 = vmatprep.subr.mxu0 0.0
        %6911 = vmatpush1.msra.mxu0 0.0
        %6912 = vmatprep.subr.mxu0 0.0
        %6913 = vmatpush1.msra.mxu0 0.0
        %6914 = vmatprep.subr.mxu0 0.0
        %6915 = vmatpush1.msra.mxu0 0.0
        %6916 = vmatprep.subr.mxu0 0.0
        %6917 = vmatpush1.msra.mxu0 0.0
        %6918 = vmatprep.subr.mxu0 0.0
        %6919 = vmatpush1.msra.mxu0 0.0
        %6920 = vmatprep.mubr.f32.mxu0 0.0
        %6921 = vmatmul.mubr.f32.gmra.mrb[0].mxu0 %v6700
        %v6922 = vpop.f32.mrb[0].mxu0
        %v6923 = vadd.f32 0.0, %v6922
        %v6924 = vpop.f32.mrb[0].mxu0
        %v6925 = vadd.f32 0.0, %v6924
        %6926 = vdwg.mxu0
        %v6927 = vadd.f32 %v6659, %v6781
        %v6928 = vadd.f32 %v6660, %v6783
        %v6929 = vadd.f32 %v6661, %v6852
        %v6930 = vadd.f32 %v6662, %v6854
        %v6931 = vadd.f32 %v6663, %v6923
        %v6932 = vadd.f32 %v6664, %v6925
        %s6933 = scalar_lea.vmem %s298, 28
        %v6934 = vld [vmem:[%s6933] sm:$0xf]
        %v6935 = vld [vmem:[%s0 + $0x4] sm:$0xff]
        %v6936 = vld [vmem:[%s0 + $0xc] sm:$0xff]
        %v6937 = vld [vmem:[%s0 + $0x14] sm:$0xff]
        %v6938 = vld [vmem:[%s0 + $0x1c] sm:$0xf]
        %v6943 = vcombine.high %v6935, %v6935
        %v6944 = vcombine.high %v6936, %v6936
        %v6945 = vcombine.high %v6937, %v6937
        %6946 = vrot.lane.b32.xlu0 %v6935, 71
        %v6947 = vpop.permute.xlu0 %6946
        %6948 = vrot.lane.b32.xlu0 %v6943, 71
        %v6949 = vpop.permute.xlu0 %6948
        %6950 = vrot.lane.b32.xlu0 %v6936, 71
        %v6951 = vpop.permute.xlu0 %6950
        %6952 = vrot.lane.b32.xlu0 %v6944, 71
        %v6953 = vpop.permute.xlu0 %6952
        %6954 = vrot.lane.b32.xlu0 %v6937, 71
        %v6955 = vpop.permute.xlu0 %6954
        %6956 = vrot.lane.b32.xlu0 %v6945, 71
        %v6957 = vpop.permute.xlu0 %6956
        %6958 = vrot.lane.b32.xlu0 %v6938, 71
        %v6959 = vpop.permute.xlu0 %6958
        %vm6960 = vcmask 580608
        %v6961 = vsel %vm6960, %v6947, %v6949
        %v6962 = vsel %vm6960, %v6949, %v6951
        %v6963 = vsel %vm6960, %v6951, %v6953
        %v6964 = vsel %vm6960, %v6953, %v6955
        %v6965 = vsel %vm6960, %v6955, %v6957
        %v6966 = vsel %vm6960, %v6957, %v6959
        %v6968 = vsel %vm5135, %v6934, 0
        %v6970 = vsel %vm5139, %v6961, 0
        %v6972 = vsel %vm5139, %v6962, 0
        %v6974 = vsel %vm5139, %v6963, 0
        %v6976 = vsel %vm5139, %v6964, 0
        %v6978 = vsel %vm5139, %v6965, 0
        %v6980 = vsel %vm5139, %v6966, 0
        %6982 = vmatprep.subr.mxu0 %v6972
        %6983 = vmatpush1.msra.mxu0 %v6970
        %6984 = vmatprep.subr.mxu0 0.0
        %6985 = vmatpush1.msra.mxu0 0.0
        %6986 = vmatprep.subr.mxu0 0.0
        %6987 = vmatpush1.msra.mxu0 0.0
        %6988 = vmatprep.subr.mxu0 0.0
        %6989 = vmatpush1.msra.mxu0 0.0
        %6990 = vmatprep.subr.mxu0 0.0
        %6991 = vmatpush1.msra.mxu0 0.0
        %6992 = vmatprep.subr.mxu0 0.0
        %6993 = vmatpush1.msra.mxu0 0.0
        %6994 = vmatprep.subr.mxu0 0.0
        %6995 = vmatpush1.msra.mxu0 0.0
        %6996 = vmatprep.subr.mxu0 0.0
        %6997 = vmatpush1.msra.mxu0 0.0
        %6998 = vmatprep.subr.mxu0 0.0
        %6999 = vmatpush1.msra.mxu0 0.0
        %7000 = vmatprep.subr.mxu0 0.0
        %7001 = vmatpush1.msra.mxu0 0.0
        %7002 = vmatprep.subr.mxu0 0.0
        %7003 = vmatpush1.msra.mxu0 0.0
        %7004 = vmatprep.subr.mxu0 0.0
        %7005 = vmatpush1.msra.mxu0 0.0
        %7006 = vmatprep.subr.mxu0 0.0
        %7007 = vmatpush1.msra.mxu0 0.0
        %7008 = vmatprep.subr.mxu0 0.0
        %7009 = vmatpush1.msra.mxu0 0.0
        %7010 = vmatprep.subr.mxu0 0.0
        %7011 = vmatpush1.msra.mxu0 0.0
        %7012 = vmatprep.subr.mxu0 0.0
        %7013 = vmatpush1.msra.mxu0 0.0
        %7014 = vmatprep.subr.mxu0 0.0
        %7015 = vmatpush1.msra.mxu0 0.0
        %7016 = vmatprep.subr.mxu0 0.0
        %7017 = vmatpush1.msra.mxu0 0.0
        %7018 = vmatprep.subr.mxu0 0.0
        %7019 = vmatpush1.msra.mxu0 0.0
        %7020 = vmatprep.subr.mxu0 0.0
        %7021 = vmatpush1.msra.mxu0 0.0
        %7022 = vmatprep.subr.mxu0 0.0
        %7023 = vmatpush1.msra.mxu0 0.0
        %7024 = vmatprep.subr.mxu0 0.0
        %7025 = vmatpush1.msra.mxu0 0.0
        %7026 = vmatprep.subr.mxu0 0.0
        %7027 = vmatpush1.msra.mxu0 0.0
        %7028 = vmatprep.subr.mxu0 0.0
        %7029 = vmatpush1.msra.mxu0 0.0
        %7030 = vmatprep.subr.mxu0 0.0
        %7031 = vmatpush1.msra.mxu0 0.0
        %7032 = vmatprep.subr.mxu0 0.0
        %7033 = vmatpush1.msra.mxu0 0.0
        %7034 = vmatprep.subr.mxu0 0.0
        %7035 = vmatpush1.msra.mxu0 0.0
        %7036 = vmatprep.subr.mxu0 0.0
        %7037 = vmatpush1.msra.mxu0 0.0
        %7038 = vmatprep.subr.mxu0 0.0
        %7039 = vmatpush1.msra.mxu0 0.0
        %7040 = vmatprep.subr.mxu0 0.0
        %7041 = vmatpush1.msra.mxu0 0.0
        %7042 = vmatprep.subr.mxu0 0.0
        %7043 = vmatpush1.msra.mxu0 0.0
        %7044 = vmatprep.subr.mxu0 0.0
        %7045 = vmatpush1.msra.mxu0 0.0
        %7046 = vmatprep.mubr.f32.mxu0 0.0
        %7047 = vmatmul.mubr.f32.gmra.mrb[0].mxu0 %v6968
        %v7048 = vpop.f32.mrb[0].mxu0
        %v7049 = vadd.f32 0.0, %v7048
        %v7050 = vpop.f32.mrb[0].mxu0
        %v7051 = vadd.f32 0.0, %v7050
        %7052 = vdwg.mxu0
        %7053 = vmatprep.subr.mxu0 %v6976
        %7054 = vmatpush1.msra.mxu0 %v6974
        %7055 = vmatprep.subr.mxu0 0.0
        %7056 = vmatpush1.msra.mxu0 0.0
        %7057 = vmatprep.subr.mxu0 0.0
        %7058 = vmatpush1.msra.mxu0 0.0
        %7059 = vmatprep.subr.mxu0 0.0
        %7060 = vmatpush1.msra.mxu0 0.0
        %7061 = vmatprep.subr.mxu0 0.0
        %7062 = vmatpush1.msra.mxu0 0.0
        %7063 = vmatprep.subr.mxu0 0.0
        %7064 = vmatpush1.msra.mxu0 0.0
        %7065 = vmatprep.subr.mxu0 0.0
        %7066 = vmatpush1.msra.mxu0 0.0
        %7067 = vmatprep.subr.mxu0 0.0
        %7068 = vmatpush1.msra.mxu0 0.0
        %7069 = vmatprep.subr.mxu0 0.0
        %7070 = vmatpush1.msra.mxu0 0.0
        %7071 = vmatprep.subr.mxu0 0.0
        %7072 = vmatpush1.msra.mxu0 0.0
        %7073 = vmatprep.subr.mxu0 0.0
        %7074 = vmatpush1.msra.mxu0 0.0
        %7075 = vmatprep.subr.mxu0 0.0
        %7076 = vmatpush1.msra.mxu0 0.0
        %7077 = vmatprep.subr.mxu0 0.0
        %7078 = vmatpush1.msra.mxu0 0.0
        %7079 = vmatprep.subr.mxu0 0.0
        %7080 = vmatpush1.msra.mxu0 0.0
        %7081 = vmatprep.subr.mxu0 0.0
        %7082 = vmatpush1.msra.mxu0 0.0
        %7083 = vmatprep.subr.mxu0 0.0
        %7084 = vmatpush1.msra.mxu0 0.0
        %7085 = vmatprep.subr.mxu0 0.0
        %7086 = vmatpush1.msra.mxu0 0.0
        %7087 = vmatprep.subr.mxu0 0.0
        %7088 = vmatpush1.msra.mxu0 0.0
        %7089 = vmatprep.subr.mxu0 0.0
        %7090 = vmatpush1.msra.mxu0 0.0
        %7091 = vmatprep.subr.mxu0 0.0
        %7092 = vmatpush1.msra.mxu0 0.0
        %7093 = vmatprep.subr.mxu0 0.0
        %7094 = vmatpush1.msra.mxu0 0.0
        %7095 = vmatprep.subr.mxu0 0.0
        %7096 = vmatpush1.msra.mxu0 0.0
        %7097 = vmatprep.subr.mxu0 0.0
        %7098 = vmatpush1.msra.mxu0 0.0
        %7099 = vmatprep.subr.mxu0 0.0
        %7100 = vmatpush1.msra.mxu0 0.0
        %7101 = vmatprep.subr.mxu0 0.0
        %7102 = vmatpush1.msra.mxu0 0.0
        %7103 = vmatprep.subr.mxu0 0.0
        %7104 = vmatpush1.msra.mxu0 0.0
        %7105 = vmatprep.subr.mxu0 0.0
        %7106 = vmatpush1.msra.mxu0 0.0
        %7107 = vmatprep.subr.mxu0 0.0
        %7108 = vmatpush1.msra.mxu0 0.0
        %7109 = vmatprep.subr.mxu0 0.0
        %7110 = vmatpush1.msra.mxu0 0.0
        %7111 = vmatprep.subr.mxu0 0.0
        %7112 = vmatpush1.msra.mxu0 0.0
        %7113 = vmatprep.subr.mxu0 0.0
        %7114 = vmatpush1.msra.mxu0 0.0
        %7115 = vmatprep.subr.mxu0 0.0
        %7116 = vmatpush1.msra.mxu0 0.0
        %7117 = vmatprep.mubr.f32.mxu0 0.0
        %7118 = vmatmul.mubr.f32.gmra.mrb[0].mxu0 %v6968
        %v7119 = vpop.f32.mrb[0].mxu0
        %v7120 = vadd.f32 0.0, %v7119
        %v7121 = vpop.f32.mrb[0].mxu0
        %v7122 = vadd.f32 0.0, %v7121
        %7123 = vdwg.mxu0
        %7124 = vmatprep.subr.mxu0 %v6980
        %7125 = vmatpush1.msra.mxu0 %v6978
        %7126 = vmatprep.subr.mxu0 0.0
        %7127 = vmatpush1.msra.mxu0 0.0
        %7128 = vmatprep.subr.mxu0 0.0
        %7129 = vmatpush1.msra.mxu0 0.0
        %7130 = vmatprep.subr.mxu0 0.0
        %7131 = vmatpush1.msra.mxu0 0.0
        %7132 = vmatprep.subr.mxu0 0.0
        %7133 = vmatpush1.msra.mxu0 0.0
        %7134 = vmatprep.subr.mxu0 0.0
        %7135 = vmatpush1.msra.mxu0 0.0
        %7136 = vmatprep.subr.mxu0 0.0
        %7137 = vmatpush1.msra.mxu0 0.0
        %7138 = vmatprep.subr.mxu0 0.0
        %7139 = vmatpush1.msra.mxu0 0.0
        %7140 = vmatprep.subr.mxu0 0.0
        %7141 = vmatpush1.msra.mxu0 0.0
        %7142 = vmatprep.subr.mxu0 0.0
        %7143 = vmatpush1.msra.mxu0 0.0
        %7144 = vmatprep.subr.mxu0 0.0
        %7145 = vmatpush1.msra.mxu0 0.0
        %7146 = vmatprep.subr.mxu0 0.0
        %7147 = vmatpush1.msra.mxu0 0.0
        %7148 = vmatprep.subr.mxu0 0.0
        %7149 = vmatpush1.msra.mxu0 0.0
        %7150 = vmatprep.subr.mxu0 0.0
        %7151 = vmatpush1.msra.mxu0 0.0
        %7152 = vmatprep.subr.mxu0 0.0
        %7153 = vmatpush1.msra.mxu0 0.0
        %7154 = vmatprep.subr.mxu0 0.0
        %7155 = vmatpush1.msra.mxu0 0.0
        %7156 = vmatprep.subr.mxu0 0.0
        %7157 = vmatpush1.msra.mxu0 0.0
        %7158 = vmatprep.subr.mxu0 0.0
        %7159 = vmatpush1.msra.mxu0 0.0
        %7160 = vmatprep.subr.mxu0 0.0
        %7161 = vmatpush1.msra.mxu0 0.0
        %7162 = vmatprep.subr.mxu0 0.0
        %7163 = vmatpush1.msra.mxu0 0.0
        %7164 = vmatprep.subr.mxu0 0.0
        %7165 = vmatpush1.msra.mxu0 0.0
        %7166 = vmatprep.subr.mxu0 0.0
        %7167 = vmatpush1.msra.mxu0 0.0
        %7168 = vmatprep.subr.mxu0 0.0
        %7169 = vmatpush1.msra.mxu0 0.0
        %7170 = vmatprep.subr.mxu0 0.0
        %7171 = vmatpush1.msra.mxu0 0.0
        %7172 = vmatprep.subr.mxu0 0.0
        %7173 = vmatpush1.msra.mxu0 0.0
        %7174 = vmatprep.subr.mxu0 0.0
        %7175 = vmatpush1.msra.mxu0 0.0
        %7176 = vmatprep.subr.mxu0 0.0
        %7177 = vmatpush1.msra.mxu0 0.0
        %7178 = vmatprep.subr.mxu0 0.0
        %7179 = vmatpush1.msra.mxu0 0.0
        %7180 = vmatprep.subr.mxu0 0.0
        %7181 = vmatpush1.msra.mxu0 0.0
        %7182 = vmatprep.subr.mxu0 0.0
        %7183 = vmatpush1.msra.mxu0 0.0
        %7184 = vmatprep.subr.mxu0 0.0
        %7185 = vmatpush1.msra.mxu0 0.0
        %7186 = vmatprep.subr.mxu0 0.0
        %7187 = vmatpush1.msra.mxu0 0.0
        %7188 = vmatprep.mubr.f32.mxu0 0.0
        %7189 = vmatmul.mubr.f32.gmra.mrb[0].mxu0 %v6968
        %v7190 = vpop.f32.mrb[0].mxu0
        %v7191 = vadd.f32 0.0, %v7190
        %v7192 = vpop.f32.mrb[0].mxu0
        %v7193 = vadd.f32 0.0, %v7192
        %7194 = vdwg.mxu0
        %v7195 = vadd.f32 %v6927, %v7049
        %v7196 = vadd.f32 %v6928, %v7051
        %v7197 = vadd.f32 %v6929, %v7120
        %v7198 = vadd.f32 %v6930, %v7122
        %v7199 = vadd.f32 %v6931, %v7191
        %v7200 = vadd.f32 %v6932, %v7193
        %s7201 = scalar_lea.vmem %s298, 32
        %v7202 = vld [vmem:[%s7201] sm:$0xf]
        %v7203 = vld [vmem:[%s0 + $0x4] sm:$0xff]
        %v7204 = vld [vmem:[%s0 + $0xc] sm:$0xff]
        %v7205 = vld [vmem:[%s0 + $0x14] sm:$0xff]
        %v7206 = vld [vmem:[%s0 + $0x1c] sm:$0xf]
        %v7211 = vcombine.high %v7203, %v7203
        %v7212 = vcombine.high %v7204, %v7204
        %v7213 = vcombine.high %v7205, %v7205
        %7214 = vrot.lane.b32.xlu0 %v7203, 66
        %v7215 = vpop.permute.xlu0 %7214
        %7216 = vrot.lane.b32.xlu0 %v7211, 66
        %v7217 = vpop.permute.xlu0 %7216
        %7218 = vrot.lane.b32.xlu0 %v7204, 66
        %v7219 = vpop.permute.xlu0 %7218
        %7220 = vrot.lane.b32.xlu0 %v7212, 66
        %v7221 = vpop.permute.xlu0 %7220
        %7222 = vrot.lane.b32.xlu0 %v7205, 66
        %v7223 = vpop.permute.xlu0 %7222
        %7224 = vrot.lane.b32.xlu0 %v7213, 66
        %v7225 = vpop.permute.xlu0 %7224
        %7226 = vrot.lane.b32.xlu0 %v7206, 66
        %v7227 = vpop.permute.xlu0 %7226
        %vm7228 = vcmask 539648
        %v7229 = vsel %vm7228, %v7215, %v7217
        %v7230 = vsel %vm7228, %v7217, %v7219
        %v7231 = vsel %vm7228, %v7219, %v7221
        %v7232 = vsel %vm7228, %v7221, %v7223
        %v7233 = vsel %vm7228, %v7223, %v7225
        %v7234 = vsel %vm7228, %v7225, %v7227
        %v7236 = vsel %vm5135, %v7202, 0
        %v7238 = vsel %vm5139, %v7229, 0
        %v7240 = vsel %vm5139, %v7230, 0
        %v7242 = vsel %vm5139, %v7231, 0
        %v7244 = vsel %vm5139, %v7232, 0
        %v7246 = vsel %vm5139, %v7233, 0
        %v7248 = vsel %vm5139, %v7234, 0
        %7250 = vmatprep.subr.mxu0 %v7240
        %7251 = vmatpush1.msra.mxu0 %v7238
        %7252 = vmatprep.subr.mxu0 0.0
        %7253 = vmatpush1.msra.mxu0 0.0
        %7254 = vmatprep.subr.mxu0 0.0
        %7255 = vmatpush1.msra.mxu0 0.0
        %7256 = vmatprep.subr.mxu0 0.0
        %7257 = vmatpush1.msra.mxu0 0.0
        %7258 = vmatprep.subr.mxu0 0.0
        %7259 = vmatpush1.msra.mxu0 0.0
        %7260 = vmatprep.subr.mxu0 0.0
        %7261 = vmatpush1.msra.mxu0 0.0
        %7262 = vmatprep.subr.mxu0 0.0
        %7263 = vmatpush1.msra.mxu0 0.0
        %7264 = vmatprep.subr.mxu0 0.0
        %7265 = vmatpush1.msra.mxu0 0.0
        %7266 = vmatprep.subr.mxu0 0.0
        %7267 = vmatpush1.msra.mxu0 0.0
        %7268 = vmatprep.subr.mxu0 0.0
        %7269 = vmatpush1.msra.mxu0 0.0
        %7270 = vmatprep.subr.mxu0 0.0
        %7271 = vmatpush1.msra.mxu0 0.0
        %7272 = vmatprep.subr.mxu0 0.0
        %7273 = vmatpush1.msra.mxu0 0.0
        %7274 = vmatprep.subr.mxu0 0.0
        %7275 = vmatpush1.msra.mxu0 0.0
        %7276 = vmatprep.subr.mxu0 0.0
        %7277 = vmatpush1.msra.mxu0 0.0
        %7278 = vmatprep.subr.mxu0 0.0
        %7279 = vmatpush1.msra.mxu0 0.0
        %7280 = vmatprep.subr.mxu0 0.0
        %7281 = vmatpush1.msra.mxu0 0.0
        %7282 = vmatprep.subr.mxu0 0.0
        %7283 = vmatpush1.msra.mxu0 0.0
        %7284 = vmatprep.subr.mxu0 0.0
        %7285 = vmatpush1.msra.mxu0 0.0
        %7286 = vmatprep.subr.mxu0 0.0
        %7287 = vmatpush1.msra.mxu0 0.0
        %7288 = vmatprep.subr.mxu0 0.0
        %7289 = vmatpush1.msra.mxu0 0.0
        %7290 = vmatprep.subr.mxu0 0.0
        %7291 = vmatpush1.msra.mxu0 0.0
        %7292 = vmatprep.subr.mxu0 0.0
        %7293 = vmatpush1.msra.mxu0 0.0
        %7294 = vmatprep.subr.mxu0 0.0
        %7295 = vmatpush1.msra.mxu0 0.0
        %7296 = vmatprep.subr.mxu0 0.0
        %7297 = vmatpush1.msra.mxu0 0.0
        %7298 = vmatprep.subr.mxu0 0.0
        %7299 = vmatpush1.msra.mxu0 0.0
        %7300 = vmatprep.subr.mxu0 0.0
        %7301 = vmatpush1.msra.mxu0 0.0
        %7302 = vmatprep.subr.mxu0 0.0
        %7303 = vmatpush1.msra.mxu0 0.0
        %7304 = vmatprep.subr.mxu0 0.0
        %7305 = vmatpush1.msra.mxu0 0.0
        %7306 = vmatprep.subr.mxu0 0.0
        %7307 = vmatpush1.msra.mxu0 0.0
        %7308 = vmatprep.subr.mxu0 0.0
        %7309 = vmatpush1.msra.mxu0 0.0
        %7310 = vmatprep.subr.mxu0 0.0
        %7311 = vmatpush1.msra.mxu0 0.0
        %7312 = vmatprep.subr.mxu0 0.0
        %7313 = vmatpush1.msra.mxu0 0.0
        %7314 = vmatprep.mubr.f32.mxu0 0.0
        %7315 = vmatmul.mubr.f32.gmra.mrb[0].mxu0 %v7236
        %v7316 = vpop.f32.mrb[0].mxu0
        %v7317 = vadd.f32 0.0, %v7316
        %v7318 = vpop.f32.mrb[0].mxu0
        %v7319 = vadd.f32 0.0, %v7318
        %7320 = vdwg.mxu0
        %7321 = vmatprep.subr.mxu0 %v7244
        %7322 = vmatpush1.msra.mxu0 %v7242
        %7323 = vmatprep.subr.mxu0 0.0
        %7324 = vmatpush1.msra.mxu0 0.0
        %7325 = vmatprep.subr.mxu0 0.0
        %7326 = vmatpush1.msra.mxu0 0.0
        %7327 = vmatprep.subr.mxu0 0.0
        %7328 = vmatpush1.msra.mxu0 0.0
        %7329 = vmatprep.subr.mxu0 0.0
        %7330 = vmatpush1.msra.mxu0 0.0
        %7331 = vmatprep.subr.mxu0 0.0
        %7332 = vmatpush1.msra.mxu0 0.0
        %7333 = vmatprep.subr.mxu0 0.0
        %7334 = vmatpush1.msra.mxu0 0.0
        %7335 = vmatprep.subr.mxu0 0.0
        %7336 = vmatpush1.msra.mxu0 0.0
        %7337 = vmatprep.subr.mxu0 0.0
        %7338 = vmatpush1.msra.mxu0 0.0
        %7339 = vmatprep.subr.mxu0 0.0
        %7340 = vmatpush1.msra.mxu0 0.0
        %7341 = vmatprep.subr.mxu0 0.0
        %7342 = vmatpush1.msra.mxu0 0.0
        %7343 = vmatprep.subr.mxu0 0.0
        %7344 = vmatpush1.msra.mxu0 0.0
        %7345 = vmatprep.subr.mxu0 0.0
        %7346 = vmatpush1.msra.mxu0 0.0
        %7347 = vmatprep.subr.mxu0 0.0
        %7348 = vmatpush1.msra.mxu0 0.0
        %7349 = vmatprep.subr.mxu0 0.0
        %7350 = vmatpush1.msra.mxu0 0.0
        %7351 = vmatprep.subr.mxu0 0.0
        %7352 = vmatpush1.msra.mxu0 0.0
        %7353 = vmatprep.subr.mxu0 0.0
        %7354 = vmatpush1.msra.mxu0 0.0
        %7355 = vmatprep.subr.mxu0 0.0
        %7356 = vmatpush1.msra.mxu0 0.0
        %7357 = vmatprep.subr.mxu0 0.0
        %7358 = vmatpush1.msra.mxu0 0.0
        %7359 = vmatprep.subr.mxu0 0.0
        %7360 = vmatpush1.msra.mxu0 0.0
        %7361 = vmatprep.subr.mxu0 0.0
        %7362 = vmatpush1.msra.mxu0 0.0
        %7363 = vmatprep.subr.mxu0 0.0
        %7364 = vmatpush1.msra.mxu0 0.0
        %7365 = vmatprep.subr.mxu0 0.0
        %7366 = vmatpush1.msra.mxu0 0.0
        %7367 = vmatprep.subr.mxu0 0.0
        %7368 = vmatpush1.msra.mxu0 0.0
        %7369 = vmatprep.subr.mxu0 0.0
        %7370 = vmatpush1.msra.mxu0 0.0
        %7371 = vmatprep.subr.mxu0 0.0
        %7372 = vmatpush1.msra.mxu0 0.0
        %7373 = vmatprep.subr.mxu0 0.0
        %7374 = vmatpush1.msra.mxu0 0.0
        %7375 = vmatprep.subr.mxu0 0.0
        %7376 = vmatpush1.msra.mxu0 0.0
        %7377 = vmatprep.subr.mxu0 0.0
        %7378 = vmatpush1.msra.mxu0 0.0
        %7379 = vmatprep.subr.mxu0 0.0
        %7380 = vmatpush1.msra.mxu0 0.0
        %7381 = vmatprep.subr.mxu0 0.0
        %7382 = vmatpush1.msra.mxu0 0.0
        %7383 = vmatprep.subr.mxu0 0.0
        %7384 = vmatpush1.msra.mxu0 0.0
        %7385 = vmatprep.mubr.f32.mxu0 0.0
        %7386 = vmatmul.mubr.f32.gmra.mrb[0].mxu0 %v7236
        %v7387 = vpop.f32.mrb[0].mxu0
        %v7388 = vadd.f32 0.0, %v7387
        %v7389 = vpop.f32.mrb[0].mxu0
        %v7390 = vadd.f32 0.0, %v7389
        %7391 = vdwg.mxu0
        %7392 = vmatprep.subr.mxu0 %v7248
        %7393 = vmatpush1.msra.mxu0 %v7246
        %7394 = vmatprep.subr.mxu0 0.0
        %7395 = vmatpush1.msra.mxu0 0.0
        %7396 = vmatprep.subr.mxu0 0.0
        %7397 = vmatpush1.msra.mxu0 0.0
        %7398 = vmatprep.subr.mxu0 0.0
        %7399 = vmatpush1.msra.mxu0 0.0
        %7400 = vmatprep.subr.mxu0 0.0
        %7401 = vmatpush1.msra.mxu0 0.0
        %7402 = vmatprep.subr.mxu0 0.0
        %7403 = vmatpush1.msra.mxu0 0.0
        %7404 = vmatprep.subr.mxu0 0.0
        %7405 = vmatpush1.msra.mxu0 0.0
        %7406 = vmatprep.subr.mxu0 0.0
        %7407 = vmatpush1.msra.mxu0 0.0
        %7408 = vmatprep.subr.mxu0 0.0
        %7409 = vmatpush1.msra.mxu0 0.0
        %7410 = vmatprep.subr.mxu0 0.0
        %7411 = vmatpush1.msra.mxu0 0.0
        %7412 = vmatprep.subr.mxu0 0.0
        %7413 = vmatpush1.msra.mxu0 0.0
        %7414 = vmatprep.subr.mxu0 0.0
        %7415 = vmatpush1.msra.mxu0 0.0
        %7416 = vmatprep.subr.mxu0 0.0
        %7417 = vmatpush1.msra.mxu0 0.0
        %7418 = vmatprep.subr.mxu0 0.0
        %7419 = vmatpush1.msra.mxu0 0.0
        %7420 = vmatprep.subr.mxu0 0.0
        %7421 = vmatpush1.msra.mxu0 0.0
        %7422 = vmatprep.subr.mxu0 0.0
        %7423 = vmatpush1.msra.mxu0 0.0
        %7424 = vmatprep.subr.mxu0 0.0
        %7425 = vmatpush1.msra.mxu0 0.0
        %7426 = vmatprep.subr.mxu0 0.0
        %7427 = vmatpush1.msra.mxu0 0.0
        %7428 = vmatprep.subr.mxu0 0.0
        %7429 = vmatpush1.msra.mxu0 0.0
        %7430 = vmatprep.subr.mxu0 0.0
        %7431 = vmatpush1.msra.mxu0 0.0
        %7432 = vmatprep.subr.mxu0 0.0
        %7433 = vmatpush1.msra.mxu0 0.0
        %7434 = vmatprep.subr.mxu0 0.0
        %7435 = vmatpush1.msra.mxu0 0.0
        %7436 = vmatprep.subr.mxu0 0.0
        %7437 = vmatpush1.msra.mxu0 0.0
        %7438 = vmatprep.subr.mxu0 0.0
        %7439 = vmatpush1.msra.mxu0 0.0
        %7440 = vmatprep.subr.mxu0 0.0
        %7441 = vmatpush1.msra.mxu0 0.0
        %7442 = vmatprep.subr.mxu0 0.0
        %7443 = vmatpush1.msra.mxu0 0.0
        %7444 = vmatprep.subr.mxu0 0.0
        %7445 = vmatpush1.msra.mxu0 0.0
        %7446 = vmatprep.subr.mxu0 0.0
        %7447 = vmatpush1.msra.mxu0 0.0
        %7448 = vmatprep.subr.mxu0 0.0
        %7449 = vmatpush1.msra.mxu0 0.0
        %7450 = vmatprep.subr.mxu0 0.0
        %7451 = vmatpush1.msra.mxu0 0.0
        %7452 = vmatprep.subr.mxu0 0.0
        %7453 = vmatpush1.msra.mxu0 0.0
        %7454 = vmatprep.subr.mxu0 0.0
        %7455 = vmatpush1.msra.mxu0 0.0
        %7456 = vmatprep.mubr.f32.mxu0 0.0
        %7457 = vmatmul.mubr.f32.gmra.mrb[0].mxu0 %v7236
        %v7458 = vpop.f32.mrb[0].mxu0
        %v7459 = vadd.f32 0.0, %v7458
        %v7460 = vpop.f32.mrb[0].mxu0
        %v7461 = vadd.f32 0.0, %v7460
        %7462 = vdwg.mxu0
        %v7463 = vadd.f32 %v7195, %v7317
        %v7464 = vadd.f32 %v7196, %v7319
        %v7465 = vadd.f32 %v7197, %v7388
        %v7466 = vadd.f32 %v7198, %v7390
        %v7467 = vadd.f32 %v7199, %v7459
        %v7468 = vadd.f32 %v7200, %v7461
        %v7475 = vcombine.low %v7463, %v7464
        %v7476 = vcombine.low %v7465, %v7466
        %v7477 = vcombine.low %v7467, %v7468
        %7481 = vst [vmem:[#allocation2] sm:$0xff] %v7475
        %7482 = vst [vmem:[#allocation2 + $0x8] sm:$0xff] %v7476
        %7483 = vst [vmem:[#allocation2 + $0x10] sm:$0xff] %v7477
      $region56: #{spatial_attention.2} parent=43 // pred_fallthru
        _
      %p7484 = scmp.eq.s32.totalorder %s17, 3
      // Predicated region
      $region57: #{spatial_attention.2} parent=43 // pred_check
        %p7485 = pneg %p7484
      $region58: #{spatial_attention.2} parent=43 // pred_check_branch
        %7487 = sbr.rel (%p7485) target = $region60
      $region59: #{spatial_attention.2} parent=43 // pred_region
        %v7488 = vld [vmem:[%s298] sm:$0xf]
        %v7489 = vld [vmem:[%s0] sm:$0xff]
        %v7490 = vld [vmem:[%s0 + $0x8] sm:$0xff]
        %v7491 = vld [vmem:[%s0 + $0x10] sm:$0xff]
        %s7492 = scalar_lea.vmem %s298, 4
        %v7493 = vld [vmem:[%s7492] sm:$0xf]
        %v7494 = vld [vmem:[%s0 + $0x18] sm:$0xf]
        %v7499 = vcombine.high %v7489, %v7489
        %v7500 = vcombine.high %v7490, %v7490
        %v7501 = vcombine.high %v7491, %v7491
        %7502 = vrot.lane.b32.xlu0 %v7489, 121
        %v7503 = vpop.permute.xlu0 %7502
        %7504 = vrot.lane.b32.xlu0 %v7499, 121
        %v7505 = vpop.permute.xlu0 %7504
        %7506 = vrot.lane.b32.xlu0 %v7490, 121
        %v7507 = vpop.permute.xlu0 %7506
        %7508 = vrot.lane.b32.xlu0 %v7500, 121
        %v7509 = vpop.permute.xlu0 %7508
        %7510 = vrot.lane.b32.xlu0 %v7491, 121
        %v7511 = vpop.permute.xlu0 %7510
        %7512 = vrot.lane.b32.xlu0 %v7501, 121
        %v7513 = vpop.permute.xlu0 %7512
        %7514 = vrot.lane.b32.xlu0 %v7494, 121
        %v7515 = vpop.permute.xlu0 %7514
        %vm7516 = vcmask 990208
        %v7517 = vsel %vm7516, %v7503, %v7505
        %v7518 = vsel %vm7516, %v7505, %v7507
        %v7519 = vsel %vm7516, %v7507, %v7509
        %v7520 = vsel %vm7516, %v7509, %v7511
        %v7521 = vsel %vm7516, %v7511, %v7513
        %v7522 = vsel %vm7516, %v7513, %v7515
        %vm7523 = vcmask 31744
        %v7525 = vsel %vm7523, %v7493, 0
        %vm7527 = vcmask 1043456
        %v7528 = vsel %vm7527, %v7517, 0
        %v7530 = vsel %vm7527, %v7518, 0
        %v7532 = vsel %vm7527, %v7519, 0
        %v7534 = vsel %vm7527, %v7520, 0
        %v7536 = vsel %vm7527, %v7521, 0
        %v7538 = vsel %vm7527, %v7522, 0
        %7540 = vmatprep.subr.mxu0 %v7530
        %7541 = vmatpush1.msra.mxu0 %v7528
        %7542 = vmatprep.subr.mxu0 0.0
        %7543 = vmatpush1.msra.mxu0 0.0
        %7544 = vmatprep.subr.mxu0 0.0
        %7545 = vmatpush1.msra.mxu0 0.0
        %7546 = vmatprep.subr.mxu0 0.0
        %7547 = vmatpush1.msra.mxu0 0.0
        %7548 = vmatprep.subr.mxu0 0.0
        %7549 = vmatpush1.msra.mxu0 0.0
        %7550 = vmatprep.subr.mxu0 0.0
        %7551 = vmatpush1.msra.mxu0 0.0
        %7552 = vmatprep.subr.mxu0 0.0
        %7553 = vmatpush1.msra.mxu0 0.0
        %7554 = vmatprep.subr.mxu0 0.0
        %7555 = vmatpush1.msra.mxu0 0.0
        %7556 = vmatprep.subr.mxu0 0.0
        %7557 = vmatpush1.msra.mxu0 0.0
        %7558 = vmatprep.subr.mxu0 0.0
        %7559 = vmatpush1.msra.mxu0 0.0
        %7560 = vmatprep.subr.mxu0 0.0
        %7561 = vmatpush1.msra.mxu0 0.0
        %7562 = vmatprep.subr.mxu0 0.0
        %7563 = vmatpush1.msra.mxu0 0.0
        %7564 = vmatprep.subr.mxu0 0.0
        %7565 = vmatpush1.msra.mxu0 0.0
        %7566 = vmatprep.subr.mxu0 0.0
        %7567 = vmatpush1.msra.mxu0 0.0
        %7568 = vmatprep.subr.mxu0 0.0
        %7569 = vmatpush1.msra.mxu0 0.0
        %7570 = vmatprep.subr.mxu0 0.0
        %7571 = vmatpush1.msra.mxu0 0.0
        %7572 = vmatprep.subr.mxu0 0.0
        %7573 = vmatpush1.msra.mxu0 0.0
        %7574 = vmatprep.subr.mxu0 0.0
        %7575 = vmatpush1.msra.mxu0 0.0
        %7576 = vmatprep.subr.mxu0 0.0
        %7577 = vmatpush1.msra.mxu0 0.0
        %7578 = vmatprep.subr.mxu0 0.0
        %7579 = vmatpush1.msra.mxu0 0.0
        %7580 = vmatprep.subr.mxu0 0.0
        %7581 = vmatpush1.msra.mxu0 0.0
        %7582 = vmatprep.subr.mxu0 0.0
        %7583 = vmatpush1.msra.mxu0 0.0
        %7584 = vmatprep.subr.mxu0 0.0
        %7585 = vmatpush1.msra.mxu0 0.0
        %7586 = vmatprep.subr.mxu0 0.0
        %7587 = vmatpush1.msra.mxu0 0.0
        %7588 = vmatprep.subr.mxu0 0.0
        %7589 = vmatpush1.msra.mxu0 0.0
        %7590 = vmatprep.subr.mxu0 0.0
        %7591 = vmatpush1.msra.mxu0 0.0
        %7592 = vmatprep.subr.mxu0 0.0
        %7593 = vmatpush1.msra.mxu0 0.0
        %7594 = vmatprep.subr.mxu0 0.0
        %7595 = vmatpush1.msra.mxu0 0.0
        %7596 = vmatprep.subr.mxu0 0.0
        %7597 = vmatpush1.msra.mxu0 0.0
        %7598 = vmatprep.subr.mxu0 0.0
        %7599 = vmatpush1.msra.mxu0 0.0
        %7600 = vmatprep.subr.mxu0 0.0
        %7601 = vmatpush1.msra.mxu0 0.0
        %7602 = vmatprep.subr.mxu0 0.0
        %7603 = vmatpush1.msra.mxu0 0.0
        %7604 = vmatprep.mubr.f32.mxu0 0.0
        %7605 = vmatmul.mubr.f32.gmra.mrb[0].mxu0 %v7525
        %v7606 = vpop.f32.mrb[0].mxu0
        %v7607 = vadd.f32 0.0, %v7606
        %v7608 = vpop.f32.mrb[0].mxu0
        %v7609 = vadd.f32 0.0, %v7608
        %7610 = vdwg.mxu0
        %7611 = vmatprep.subr.mxu0 %v7534
        %7612 = vmatpush1.msra.mxu0 %v7532
        %7613 = vmatprep.subr.mxu0 0.0
        %7614 = vmatpush1.msra.mxu0 0.0
        %7615 = vmatprep.subr.mxu0 0.0
        %7616 = vmatpush1.msra.mxu0 0.0
        %7617 = vmatprep.subr.mxu0 0.0
        %7618 = vmatpush1.msra.mxu0 0.0
        %7619 = vmatprep.subr.mxu0 0.0
        %7620 = vmatpush1.msra.mxu0 0.0
        %7621 = vmatprep.subr.mxu0 0.0
        %7622 = vmatpush1.msra.mxu0 0.0
        %7623 = vmatprep.subr.mxu0 0.0
        %7624 = vmatpush1.msra.mxu0 0.0
        %7625 = vmatprep.subr.mxu0 0.0
        %7626 = vmatpush1.msra.mxu0 0.0
        %7627 = vmatprep.subr.mxu0 0.0
        %7628 = vmatpush1.msra.mxu0 0.0
        %7629 = vmatprep.subr.mxu0 0.0
        %7630 = vmatpush1.msra.mxu0 0.0
        %7631 = vmatprep.subr.mxu0 0.0
        %7632 = vmatpush1.msra.mxu0 0.0
        %7633 = vmatprep.subr.mxu0 0.0
        %7634 = vmatpush1.msra.mxu0 0.0
        %7635 = vmatprep.subr.mxu0 0.0
        %7636 = vmatpush1.msra.mxu0 0.0
        %7637 = vmatprep.subr.mxu0 0.0
        %7638 = vmatpush1.msra.mxu0 0.0
        %7639 = vmatprep.subr.mxu0 0.0
        %7640 = vmatpush1.msra.mxu0 0.0
        %7641 = vmatprep.subr.mxu0 0.0
        %7642 = vmatpush1.msra.mxu0 0.0
        %7643 = vmatprep.subr.mxu0 0.0
        %7644 = vmatpush1.msra.mxu0 0.0
        %7645 = vmatprep.subr.mxu0 0.0
        %7646 = vmatpush1.msra.mxu0 0.0
        %7647 = vmatprep.subr.mxu0 0.0
        %7648 = vmatpush1.msra.mxu0 0.0
        %7649 = vmatprep.subr.mxu0 0.0
        %7650 = vmatpush1.msra.mxu0 0.0
        %7651 = vmatprep.subr.mxu0 0.0
        %7652 = vmatpush1.msra.mxu0 0.0
        %7653 = vmatprep.subr.mxu0 0.0
        %7654 = vmatpush1.msra.mxu0 0.0
        %7655 = vmatprep.subr.mxu0 0.0
        %7656 = vmatpush1.msra.mxu0 0.0
        %7657 = vmatprep.subr.mxu0 0.0
        %7658 = vmatpush1.msra.mxu0 0.0
        %7659 = vmatprep.subr.mxu0 0.0
        %7660 = vmatpush1.msra.mxu0 0.0
        %7661 = vmatprep.subr.mxu0 0.0
        %7662 = vmatpush1.msra.mxu0 0.0
        %7663 = vmatprep.subr.mxu0 0.0
        %7664 = vmatpush1.msra.mxu0 0.0
        %7665 = vmatprep.subr.mxu0 0.0
        %7666 = vmatpush1.msra.mxu0 0.0
        %7667 = vmatprep.subr.mxu0 0.0
        %7668 = vmatpush1.msra.mxu0 0.0
        %7669 = vmatprep.subr.mxu0 0.0
        %7670 = vmatpush1.msra.mxu0 0.0
        %7671 = vmatprep.subr.mxu0 0.0
        %7672 = vmatpush1.msra.mxu0 0.0
        %7673 = vmatprep.subr.mxu0 0.0
        %7674 = vmatpush1.msra.mxu0 0.0
        %7675 = vmatprep.mubr.f32.mxu0 0.0
        %7676 = vmatmul.mubr.f32.gmra.mrb[0].mxu0 %v7525
        %v7677 = vpop.f32.mrb[0].mxu0
        %v7678 = vadd.f32 0.0, %v7677
        %v7679 = vpop.f32.mrb[0].mxu0
        %v7680 = vadd.f32 0.0, %v7679
        %7681 = vdwg.mxu0
        %7682 = vmatprep.subr.mxu0 %v7538
        %7683 = vmatpush1.msra.mxu0 %v7536
        %7684 = vmatprep.subr.mxu0 0.0
        %7685 = vmatpush1.msra.mxu0 0.0
        %7686 = vmatprep.subr.mxu0 0.0
        %7687 = vmatpush1.msra.mxu0 0.0
        %7688 = vmatprep.subr.mxu0 0.0
        %7689 = vmatpush1.msra.mxu0 0.0
        %7690 = vmatprep.subr.mxu0 0.0
        %7691 = vmatpush1.msra.mxu0 0.0
        %7692 = vmatprep.subr.mxu0 0.0
        %7693 = vmatpush1.msra.mxu0 0.0
        %7694 = vmatprep.subr.mxu0 0.0
        %7695 = vmatpush1.msra.mxu0 0.0
        %7696 = vmatprep.subr.mxu0 0.0
        %7697 = vmatpush1.msra.mxu0 0.0
        %7698 = vmatprep.subr.mxu0 0.0
        %7699 = vmatpush1.msra.mxu0 0.0
        %7700 = vmatprep.subr.mxu0 0.0
        %7701 = vmatpush1.msra.mxu0 0.0
        %7702 = vmatprep.subr.mxu0 0.0
        %7703 = vmatpush1.msra.mxu0 0.0
        %7704 = vmatprep.subr.mxu0 0.0
        %7705 = vmatpush1.msra.mxu0 0.0
        %7706 = vmatprep.subr.mxu0 0.0
        %7707 = vmatpush1.msra.mxu0 0.0
        %7708 = vmatprep.subr.mxu0 0.0
        %7709 = vmatpush1.msra.mxu0 0.0
        %7710 = vmatprep.subr.mxu0 0.0
        %7711 = vmatpush1.msra.mxu0 0.0
        %7712 = vmatprep.subr.mxu0 0.0
        %7713 = vmatpush1.msra.mxu0 0.0
        %7714 = vmatprep.subr.mxu0 0.0
        %7715 = vmatpush1.msra.mxu0 0.0
        %7716 = vmatprep.subr.mxu0 0.0
        %7717 = vmatpush1.msra.mxu0 0.0
        %7718 = vmatprep.subr.mxu0 0.0
        %7719 = vmatpush1.msra.mxu0 0.0
        %7720 = vmatprep.subr.mxu0 0.0
        %7721 = vmatpush1.msra.mxu0 0.0
        %7722 = vmatprep.subr.mxu0 0.0
        %7723 = vmatpush1.msra.mxu0 0.0
        %7724 = vmatprep.subr.mxu0 0.0
        %7725 = vmatpush1.msra.mxu0 0.0
        %7726 = vmatprep.subr.mxu0 0.0
        %7727 = vmatpush1.msra.mxu0 0.0
        %7728 = vmatprep.subr.mxu0 0.0
        %7729 = vmatpush1.msra.mxu0 0.0
        %7730 = vmatprep.subr.mxu0 0.0
        %7731 = vmatpush1.msra.mxu0 0.0
        %7732 = vmatprep.subr.mxu0 0.0
        %7733 = vmatpush1.msra.mxu0 0.0
        %7734 = vmatprep.subr.mxu0 0.0
        %7735 = vmatpush1.msra.mxu0 0.0
        %7736 = vmatprep.subr.mxu0 0.0
        %7737 = vmatpush1.msra.mxu0 0.0
        %7738 = vmatprep.subr.mxu0 0.0
        %7739 = vmatpush1.msra.mxu0 0.0
        %7740 = vmatprep.subr.mxu0 0.0
        %7741 = vmatpush1.msra.mxu0 0.0
        %7742 = vmatprep.subr.mxu0 0.0
        %7743 = vmatpush1.msra.mxu0 0.0
        %7744 = vmatprep.subr.mxu0 0.0
        %7745 = vmatpush1.msra.mxu0 0.0
        %7746 = vmatprep.mubr.f32.mxu0 0.0
        %7747 = vmatmul.mubr.f32.gmra.mrb[0].mxu0 %v7525
        %v7748 = vpop.f32.mrb[0].mxu0
        %v7749 = vadd.f32 0.0, %v7748
        %v7750 = vpop.f32.mrb[0].mxu0
        %v7751 = vadd.f32 0.0, %v7750
        %7752 = vdwg.mxu0
        %v7754 = vsel %vm7523, %v7488, 0
        %v7756 = vsel %vm7527, %v7489, 0
        %v7758 = vsel %vm7527, %v7499, 0
        %v7760 = vsel %vm7527, %v7490, 0
        %v7762 = vsel %vm7527, %v7500, 0
        %v7764 = vsel %vm7527, %v7491, 0
        %v7766 = vsel %vm7527, %v7501, 0
        %7768 = vmatprep.subr.mxu0 %v7758
        %7769 = vmatpush1.msra.mxu0 %v7756
        %7770 = vmatprep.subr.mxu0 0.0
        %7771 = vmatpush1.msra.mxu0 0.0
        %7772 = vmatprep.subr.mxu0 0.0
        %7773 = vmatpush1.msra.mxu0 0.0
        %7774 = vmatprep.subr.mxu0 0.0
        %7775 = vmatpush1.msra.mxu0 0.0
        %7776 = vmatprep.subr.mxu0 0.0
        %7777 = vmatpush1.msra.mxu0 0.0
        %7778 = vmatprep.subr.mxu0 0.0
        %7779 = vmatpush1.msra.mxu0 0.0
        %7780 = vmatprep.subr.mxu0 0.0
        %7781 = vmatpush1.msra.mxu0 0.0
        %7782 = vmatprep.subr.mxu0 0.0
        %7783 = vmatpush1.msra.mxu0 0.0
        %7784 = vmatprep.subr.mxu0 0.0
        %7785 = vmatpush1.msra.mxu0 0.0
        %7786 = vmatprep.subr.mxu0 0.0
        %7787 = vmatpush1.msra.mxu0 0.0
        %7788 = vmatprep.subr.mxu0 0.0
        %7789 = vmatpush1.msra.mxu0 0.0
        %7790 = vmatprep.subr.mxu0 0.0
        %7791 = vmatpush1.msra.mxu0 0.0
        %7792 = vmatprep.subr.mxu0 0.0
        %7793 = vmatpush1.msra.mxu0 0.0
        %7794 = vmatprep.subr.mxu0 0.0
        %7795 = vmatpush1.msra.mxu0 0.0
        %7796 = vmatprep.subr.mxu0 0.0
        %7797 = vmatpush1.msra.mxu0 0.0
        %7798 = vmatprep.subr.mxu0 0.0
        %7799 = vmatpush1.msra.mxu0 0.0
        %7800 = vmatprep.subr.mxu0 0.0
        %7801 = vmatpush1.msra.mxu0 0.0
        %7802 = vmatprep.subr.mxu0 0.0
        %7803 = vmatpush1.msra.mxu0 0.0
        %7804 = vmatprep.subr.mxu0 0.0
        %7805 = vmatpush1.msra.mxu0 0.0
        %7806 = vmatprep.subr.mxu0 0.0
        %7807 = vmatpush1.msra.mxu0 0.0
        %7808 = vmatprep.subr.mxu0 0.0
        %7809 = vmatpush1.msra.mxu0 0.0
        %7810 = vmatprep.subr.mxu0 0.0
        %7811 = vmatpush1.msra.mxu0 0.0
        %7812 = vmatprep.subr.mxu0 0.0
        %7813 = vmatpush1.msra.mxu0 0.0
        %7814 = vmatprep.subr.mxu0 0.0
        %7815 = vmatpush1.msra.mxu0 0.0
        %7816 = vmatprep.subr.mxu0 0.0
        %7817 = vmatpush1.msra.mxu0 0.0
        %7818 = vmatprep.subr.mxu0 0.0
        %7819 = vmatpush1.msra.mxu0 0.0
        %7820 = vmatprep.subr.mxu0 0.0
        %7821 = vmatpush1.msra.mxu0 0.0
        %7822 = vmatprep.subr.mxu0 0.0
        %7823 = vmatpush1.msra.mxu0 0.0
        %7824 = vmatprep.subr.mxu0 0.0
        %7825 = vmatpush1.msra.mxu0 0.0
        %7826 = vmatprep.subr.mxu0 0.0
        %7827 = vmatpush1.msra.mxu0 0.0
        %7828 = vmatprep.subr.mxu0 0.0
        %7829 = vmatpush1.msra.mxu0 0.0
        %7830 = vmatprep.subr.mxu0 0.0
        %7831 = vmatpush1.msra.mxu0 0.0
        %7832 = vmatprep.mubr.f32.mxu0 0.0
        %7833 = vmatmul.mubr.f32.gmra.mrb[0].mxu0 %v7754
        %v7834 = vpop.f32.mrb[0].mxu0
        %v7835 = vadd.f32 %v7607, %v7834
        %v7836 = vpop.f32.mrb[0].mxu0
        %v7837 = vadd.f32 %v7609, %v7836
        %7838 = vdwg.mxu0
        %7839 = vmatprep.subr.mxu0 %v7762
        %7840 = vmatpush1.msra.mxu0 %v7760
        %7841 = vmatprep.subr.mxu0 0.0
        %7842 = vmatpush1.msra.mxu0 0.0
        %7843 = vmatprep.subr.mxu0 0.0
        %7844 = vmatpush1.msra.mxu0 0.0
        %7845 = vmatprep.subr.mxu0 0.0
        %7846 = vmatpush1.msra.mxu0 0.0
        %7847 = vmatprep.subr.mxu0 0.0
        %7848 = vmatpush1.msra.mxu0 0.0
        %7849 = vmatprep.subr.mxu0 0.0
        %7850 = vmatpush1.msra.mxu0 0.0
        %7851 = vmatprep.subr.mxu0 0.0
        %7852 = vmatpush1.msra.mxu0 0.0
        %7853 = vmatprep.subr.mxu0 0.0
        %7854 = vmatpush1.msra.mxu0 0.0
        %7855 = vmatprep.subr.mxu0 0.0
        %7856 = vmatpush1.msra.mxu0 0.0
        %7857 = vmatprep.subr.mxu0 0.0
        %7858 = vmatpush1.msra.mxu0 0.0
        %7859 = vmatprep.subr.mxu0 0.0
        %7860 = vmatpush1.msra.mxu0 0.0
        %7861 = vmatprep.subr.mxu0 0.0
        %7862 = vmatpush1.msra.mxu0 0.0
        %7863 = vmatprep.subr.mxu0 0.0
        %7864 = vmatpush1.msra.mxu0 0.0
        %7865 = vmatprep.subr.mxu0 0.0
        %7866 = vmatpush1.msra.mxu0 0.0
        %7867 = vmatprep.subr.mxu0 0.0
        %7868 = vmatpush1.msra.mxu0 0.0
        %7869 = vmatprep.subr.mxu0 0.0
        %7870 = vmatpush1.msra.mxu0 0.0
        %7871 = vmatprep.subr.mxu0 0.0
        %7872 = vmatpush1.msra.mxu0 0.0
        %7873 = vmatprep.subr.mxu0 0.0
        %7874 = vmatpush1.msra.mxu0 0.0
        %7875 = vmatprep.subr.mxu0 0.0
        %7876 = vmatpush1.msra.mxu0 0.0
        %7877 = vmatprep.subr.mxu0 0.0
        %7878 = vmatpush1.msra.mxu0 0.0
        %7879 = vmatprep.subr.mxu0 0.0
        %7880 = vmatpush1.msra.mxu0 0.0
        %7881 = vmatprep.subr.mxu0 0.0
        %7882 = vmatpush1.msra.mxu0 0.0
        %7883 = vmatprep.subr.mxu0 0.0
        %7884 = vmatpush1.msra.mxu0 0.0
        %7885 = vmatprep.subr.mxu0 0.0
        %7886 = vmatpush1.msra.mxu0 0.0
        %7887 = vmatprep.subr.mxu0 0.0
        %7888 = vmatpush1.msra.mxu0 0.0
        %7889 = vmatprep.subr.mxu0 0.0
        %7890 = vmatpush1.msra.mxu0 0.0
        %7891 = vmatprep.subr.mxu0 0.0
        %7892 = vmatpush1.msra.mxu0 0.0
        %7893 = vmatprep.subr.mxu0 0.0
        %7894 = vmatpush1.msra.mxu0 0.0
        %7895 = vmatprep.subr.mxu0 0.0
        %7896 = vmatpush1.msra.mxu0 0.0
        %7897 = vmatprep.subr.mxu0 0.0
        %7898 = vmatpush1.msra.mxu0 0.0
        %7899 = vmatprep.subr.mxu0 0.0
        %7900 = vmatpush1.msra.mxu0 0.0
        %7901 = vmatprep.subr.mxu0 0.0
        %7902 = vmatpush1.msra.mxu0 0.0
        %7903 = vmatprep.mubr.f32.mxu0 0.0
        %7904 = vmatmul.mubr.f32.gmra.mrb[0].mxu0 %v7754
        %v7905 = vpop.f32.mrb[0].mxu0
        %v7906 = vadd.f32 %v7678, %v7905
        %v7907 = vpop.f32.mrb[0].mxu0
        %v7908 = vadd.f32 %v7680, %v7907
        %7909 = vdwg.mxu0
        %7910 = vmatprep.subr.mxu0 %v7766
        %7911 = vmatpush1.msra.mxu0 %v7764
        %7912 = vmatprep.subr.mxu0 0.0
        %7913 = vmatpush1.msra.mxu0 0.0
        %7914 = vmatprep.subr.mxu0 0.0
        %7915 = vmatpush1.msra.mxu0 0.0
        %7916 = vmatprep.subr.mxu0 0.0
        %7917 = vmatpush1.msra.mxu0 0.0
        %7918 = vmatprep.subr.mxu0 0.0
        %7919 = vmatpush1.msra.mxu0 0.0
        %7920 = vmatprep.subr.mxu0 0.0
        %7921 = vmatpush1.msra.mxu0 0.0
        %7922 = vmatprep.subr.mxu0 0.0
        %7923 = vmatpush1.msra.mxu0 0.0
        %7924 = vmatprep.subr.mxu0 0.0
        %7925 = vmatpush1.msra.mxu0 0.0
        %7926 = vmatprep.subr.mxu0 0.0
        %7927 = vmatpush1.msra.mxu0 0.0
        %7928 = vmatprep.subr.mxu0 0.0
        %7929 = vmatpush1.msra.mxu0 0.0
        %7930 = vmatprep.subr.mxu0 0.0
        %7931 = vmatpush1.msra.mxu0 0.0
        %7932 = vmatprep.subr.mxu0 0.0
        %7933 = vmatpush1.msra.mxu0 0.0
        %7934 = vmatprep.subr.mxu0 0.0
        %7935 = vmatpush1.msra.mxu0 0.0
        %7936 = vmatprep.subr.mxu0 0.0
        %7937 = vmatpush1.msra.mxu0 0.0
        %7938 = vmatprep.subr.mxu0 0.0
        %7939 = vmatpush1.msra.mxu0 0.0
        %7940 = vmatprep.subr.mxu0 0.0
        %7941 = vmatpush1.msra.mxu0 0.0
        %7942 = vmatprep.subr.mxu0 0.0
        %7943 = vmatpush1.msra.mxu0 0.0
        %7944 = vmatprep.subr.mxu0 0.0
        %7945 = vmatpush1.msra.mxu0 0.0
        %7946 = vmatprep.subr.mxu0 0.0
        %7947 = vmatpush1.msra.mxu0 0.0
        %7948 = vmatprep.subr.mxu0 0.0
        %7949 = vmatpush1.msra.mxu0 0.0
        %7950 = vmatprep.subr.mxu0 0.0
        %7951 = vmatpush1.msra.mxu0 0.0
        %7952 = vmatprep.subr.mxu0 0.0
        %7953 = vmatpush1.msra.mxu0 0.0
        %7954 = vmatprep.subr.mxu0 0.0
        %7955 = vmatpush1.msra.mxu0 0.0
        %7956 = vmatprep.subr.mxu0 0.0
        %7957 = vmatpush1.msra.mxu0 0.0
        %7958 = vmatprep.subr.mxu0 0.0
        %7959 = vmatpush1.msra.mxu0 0.0
        %7960 = vmatprep.subr.mxu0 0.0
        %7961 = vmatpush1.msra.mxu0 0.0
        %7962 = vmatprep.subr.mxu0 0.0
        %7963 = vmatpush1.msra.mxu0 0.0
        %7964 = vmatprep.subr.mxu0 0.0
        %7965 = vmatpush1.msra.mxu0 0.0
        %7966 = vmatprep.subr.mxu0 0.0
        %7967 = vmatpush1.msra.mxu0 0.0
        %7968 = vmatprep.subr.mxu0 0.0
        %7969 = vmatpush1.msra.mxu0 0.0
        %7970 = vmatprep.subr.mxu0 0.0
        %7971 = vmatpush1.msra.mxu0 0.0
        %7972 = vmatprep.subr.mxu0 0.0
        %7973 = vmatpush1.msra.mxu0 0.0
        %7974 = vmatprep.mubr.f32.mxu0 0.0
        %7975 = vmatmul.mubr.f32.gmra.mrb[0].mxu0 %v7754
        %v7976 = vpop.f32.mrb[0].mxu0
        %v7977 = vadd.f32 %v7749, %v7976
        %v7978 = vpop.f32.mrb[0].mxu0
        %v7979 = vadd.f32 %v7751, %v7978
        %7980 = vdwg.mxu0
        %s7981 = scalar_lea.vmem %s298, 8
        %v7982 = vld [vmem:[%s7981] sm:$0xf]
        %v7983 = vld [vmem:[%s0] sm:$0xff]
        %v7984 = vld [vmem:[%s0 + $0x8] sm:$0xff]
        %v7985 = vld [vmem:[%s0 + $0x10] sm:$0xff]
        %v7986 = vld [vmem:[%s0 + $0x18] sm:$0xf]
        %v7991 = vcombine.high %v7983, %v7983
        %v7992 = vcombine.high %v7984, %v7984
        %v7993 = vcombine.high %v7985, %v7985
        %7994 = vrot.lane.b32.xlu0 %v7983, 114
        %v7995 = vpop.permute.xlu0 %7994
        %7996 = vrot.lane.b32.xlu0 %v7991, 114
        %v7997 = vpop.permute.xlu0 %7996
        %7998 = vrot.lane.b32.xlu0 %v7984, 114
        %v7999 = vpop.permute.xlu0 %7998
        %8000 = vrot.lane.b32.xlu0 %v7992, 114
        %v8001 = vpop.permute.xlu0 %8000
        %8002 = vrot.lane.b32.xlu0 %v7985, 114
        %v8003 = vpop.permute.xlu0 %8002
        %8004 = vrot.lane.b32.xlu0 %v7993, 114
        %v8005 = vpop.permute.xlu0 %8004
        %8006 = vrot.lane.b32.xlu0 %v7986, 114
        %v8007 = vpop.permute.xlu0 %8006
        %vm8008 = vcmask 932864
        %v8009 = vsel %vm8008, %v7995, %v7997
        %v8010 = vsel %vm8008, %v7997, %v7999
        %v8011 = vsel %vm8008, %v7999, %v8001
        %v8012 = vsel %vm8008, %v8001, %v8003
        %v8013 = vsel %vm8008, %v8003, %v8005
        %v8014 = vsel %vm8008, %v8005, %v8007
        %v8016 = vsel %vm7523, %v7982, 0
        %v8018 = vsel %vm7527, %v8009, 0
        %v8020 = vsel %vm7527, %v8010, 0
        %v8022 = vsel %vm7527, %v8011, 0
        %v8024 = vsel %vm7527, %v8012, 0
        %v8026 = vsel %vm7527, %v8013, 0
        %v8028 = vsel %vm7527, %v8014, 0
        %8030 = vmatprep.subr.mxu0 %v8020
        %8031 = vmatpush1.msra.mxu0 %v8018
        %8032 = vmatprep.subr.mxu0 0.0
        %8033 = vmatpush1.msra.mxu0 0.0
        %8034 = vmatprep.subr.mxu0 0.0
        %8035 = vmatpush1.msra.mxu0 0.0
        %8036 = vmatprep.subr.mxu0 0.0
        %8037 = vmatpush1.msra.mxu0 0.0
        %8038 = vmatprep.subr.mxu0 0.0
        %8039 = vmatpush1.msra.mxu0 0.0
        %8040 = vmatprep.subr.mxu0 0.0
        %8041 = vmatpush1.msra.mxu0 0.0
        %8042 = vmatprep.subr.mxu0 0.0
        %8043 = vmatpush1.msra.mxu0 0.0
        %8044 = vmatprep.subr.mxu0 0.0
        %8045 = vmatpush1.msra.mxu0 0.0
        %8046 = vmatprep.subr.mxu0 0.0
        %8047 = vmatpush1.msra.mxu0 0.0
        %8048 = vmatprep.subr.mxu0 0.0
        %8049 = vmatpush1.msra.mxu0 0.0
        %8050 = vmatprep.subr.mxu0 0.0
        %8051 = vmatpush1.msra.mxu0 0.0
        %8052 = vmatprep.subr.mxu0 0.0
        %8053 = vmatpush1.msra.mxu0 0.0
        %8054 = vmatprep.subr.mxu0 0.0
        %8055 = vmatpush1.msra.mxu0 0.0
        %8056 = vmatprep.subr.mxu0 0.0
        %8057 = vmatpush1.msra.mxu0 0.0
        %8058 = vmatprep.subr.mxu0 0.0
        %8059 = vmatpush1.msra.mxu0 0.0
        %8060 = vmatprep.subr.mxu0 0.0
        %8061 = vmatpush1.msra.mxu0 0.0
        %8062 = vmatprep.subr.mxu0 0.0
        %8063 = vmatpush1.msra.mxu0 0.0
        %8064 = vmatprep.subr.mxu0 0.0
        %8065 = vmatpush1.msra.mxu0 0.0
        %8066 = vmatprep.subr.mxu0 0.0
        %8067 = vmatpush1.msra.mxu0 0.0
        %8068 = vmatprep.subr.mxu0 0.0
        %8069 = vmatpush1.msra.mxu0 0.0
        %8070 = vmatprep.subr.mxu0 0.0
        %8071 = vmatpush1.msra.mxu0 0.0
        %8072 = vmatprep.subr.mxu0 0.0
        %8073 = vmatpush1.msra.mxu0 0.0
        %8074 = vmatprep.subr.mxu0 0.0
        %8075 = vmatpush1.msra.mxu0 0.0
        %8076 = vmatprep.subr.mxu0 0.0
        %8077 = vmatpush1.msra.mxu0 0.0
        %8078 = vmatprep.subr.mxu0 0.0
        %8079 = vmatpush1.msra.mxu0 0.0
        %8080 = vmatprep.subr.mxu0 0.0
        %8081 = vmatpush1.msra.mxu0 0.0
        %8082 = vmatprep.subr.mxu0 0.0
        %8083 = vmatpush1.msra.mxu0 0.0
        %8084 = vmatprep.subr.mxu0 0.0
        %8085 = vmatpush1.msra.mxu0 0.0
        %8086 = vmatprep.subr.mxu0 0.0
        %8087 = vmatpush1.msra.mxu0 0.0
        %8088 = vmatprep.subr.mxu0 0.0
        %8089 = vmatpush1.msra.mxu0 0.0
        %8090 = vmatprep.subr.mxu0 0.0
        %8091 = vmatpush1.msra.mxu0 0.0
        %8092 = vmatprep.subr.mxu0 0.0
        %8093 = vmatpush1.msra.mxu0 0.0
        %8094 = vmatprep.mubr.f32.mxu0 0.0
        %8095 = vmatmul.mubr.f32.gmra.mrb[0].mxu0 %v8016
        %v8096 = vpop.f32.mrb[0].mxu0
        %v8097 = vadd.f32 0.0, %v8096
        %v8098 = vpop.f32.mrb[0].mxu0
        %v8099 = vadd.f32 0.0, %v8098
        %8100 = vdwg.mxu0
        %8101 = vmatprep.subr.mxu0 %v8024
        %8102 = vmatpush1.msra.mxu0 %v8022
        %8103 = vmatprep.subr.mxu0 0.0
        %8104 = vmatpush1.msra.mxu0 0.0
        %8105 = vmatprep.subr.mxu0 0.0
        %8106 = vmatpush1.msra.mxu0 0.0
        %8107 = vmatprep.subr.mxu0 0.0
        %8108 = vmatpush1.msra.mxu0 0.0
        %8109 = vmatprep.subr.mxu0 0.0
        %8110 = vmatpush1.msra.mxu0 0.0
        %8111 = vmatprep.subr.mxu0 0.0
        %8112 = vmatpush1.msra.mxu0 0.0
        %8113 = vmatprep.subr.mxu0 0.0
        %8114 = vmatpush1.msra.mxu0 0.0
        %8115 = vmatprep.subr.mxu0 0.0
        %8116 = vmatpush1.msra.mxu0 0.0
        %8117 = vmatprep.subr.mxu0 0.0
        %8118 = vmatpush1.msra.mxu0 0.0
        %8119 = vmatprep.subr.mxu0 0.0
        %8120 = vmatpush1.msra.mxu0 0.0
        %8121 = vmatprep.subr.mxu0 0.0
        %8122 = vmatpush1.msra.mxu0 0.0
        %8123 = vmatprep.subr.mxu0 0.0
        %8124 = vmatpush1.msra.mxu0 0.0
        %8125 = vmatprep.subr.mxu0 0.0
        %8126 = vmatpush1.msra.mxu0 0.0
        %8127 = vmatprep.subr.mxu0 0.0
        %8128 = vmatpush1.msra.mxu0 0.0
        %8129 = vmatprep.subr.mxu0 0.0
        %8130 = vmatpush1.msra.mxu0 0.0
        %8131 = vmatprep.subr.mxu0 0.0
        %8132 = vmatpush1.msra.mxu0 0.0
        %8133 = vmatprep.subr.mxu0 0.0
        %8134 = vmatpush1.msra.mxu0 0.0
        %8135 = vmatprep.subr.mxu0 0.0
        %8136 = vmatpush1.msra.mxu0 0.0
        %8137 = vmatprep.subr.mxu0 0.0
        %8138 = vmatpush1.msra.mxu0 0.0
        %8139 = vmatprep.subr.mxu0 0.0
        %8140 = vmatpush1.msra.mxu0 0.0
        %8141 = vmatprep.subr.mxu0 0.0
        %8142 = vmatpush1.msra.mxu0 0.0
        %8143 = vmatprep.subr.mxu0 0.0
        %8144 = vmatpush1.msra.mxu0 0.0
        %8145 = vmatprep.subr.mxu0 0.0
        %8146 = vmatpush1.msra.mxu0 0.0
        %8147 = vmatprep.subr.mxu0 0.0
        %8148 = vmatpush1.msra.mxu0 0.0
        %8149 = vmatprep.subr.mxu0 0.0
        %8150 = vmatpush1.msra.mxu0 0.0
        %8151 = vmatprep.subr.mxu0 0.0
        %8152 = vmatpush1.msra.mxu0 0.0
        %8153 = vmatprep.subr.mxu0 0.0
        %8154 = vmatpush1.msra.mxu0 0.0
        %8155 = vmatprep.subr.mxu0 0.0
        %8156 = vmatpush1.msra.mxu0 0.0
        %8157 = vmatprep.subr.mxu0 0.0
        %8158 = vmatpush1.msra.mxu0 0.0
        %8159 = vmatprep.subr.mxu0 0.0
        %8160 = vmatpush1.msra.mxu0 0.0
        %8161 = vmatprep.subr.mxu0 0.0
        %8162 = vmatpush1.msra.mxu0 0.0
        %8163 = vmatprep.subr.mxu0 0.0
        %8164 = vmatpush1.msra.mxu0 0.0
        %8165 = vmatprep.mubr.f32.mxu0 0.0
        %8166 = vmatmul.mubr.f32.gmra.mrb[0].mxu0 %v8016
        %v8167 = vpop.f32.mrb[0].mxu0
        %v8168 = vadd.f32 0.0, %v8167
        %v8169 = vpop.f32.mrb[0].mxu0
        %v8170 = vadd.f32 0.0, %v8169
        %8171 = vdwg.mxu0
        %8172 = vmatprep.subr.mxu0 %v8028
        %8173 = vmatpush1.msra.mxu0 %v8026
        %8174 = vmatprep.subr.mxu0 0.0
        %8175 = vmatpush1.msra.mxu0 0.0
        %8176 = vmatprep.subr.mxu0 0.0
        %8177 = vmatpush1.msra.mxu0 0.0
        %8178 = vmatprep.subr.mxu0 0.0
        %8179 = vmatpush1.msra.mxu0 0.0
        %8180 = vmatprep.subr.mxu0 0.0
        %8181 = vmatpush1.msra.mxu0 0.0
        %8182 = vmatprep.subr.mxu0 0.0
        %8183 = vmatpush1.msra.mxu0 0.0
        %8184 = vmatprep.subr.mxu0 0.0
        %8185 = vmatpush1.msra.mxu0 0.0
        %8186 = vmatprep.subr.mxu0 0.0
        %8187 = vmatpush1.msra.mxu0 0.0
        %8188 = vmatprep.subr.mxu0 0.0
        %8189 = vmatpush1.msra.mxu0 0.0
        %8190 = vmatprep.subr.mxu0 0.0
        %8191 = vmatpush1.msra.mxu0 0.0
        %8192 = vmatprep.subr.mxu0 0.0
        %8193 = vmatpush1.msra.mxu0 0.0
        %8194 = vmatprep.subr.mxu0 0.0
        %8195 = vmatpush1.msra.mxu0 0.0
        %8196 = vmatprep.subr.mxu0 0.0
        %8197 = vmatpush1.msra.mxu0 0.0
        %8198 = vmatprep.subr.mxu0 0.0
        %8199 = vmatpush1.msra.mxu0 0.0
        %8200 = vmatprep.subr.mxu0 0.0
        %8201 = vmatpush1.msra.mxu0 0.0
        %8202 = vmatprep.subr.mxu0 0.0
        %8203 = vmatpush1.msra.mxu0 0.0
        %8204 = vmatprep.subr.mxu0 0.0
        %8205 = vmatpush1.msra.mxu0 0.0
        %8206 = vmatprep.subr.mxu0 0.0
        %8207 = vmatpush1.msra.mxu0 0.0
        %8208 = vmatprep.subr.mxu0 0.0
        %8209 = vmatpush1.msra.mxu0 0.0
        %8210 = vmatprep.subr.mxu0 0.0
        %8211 = vmatpush1.msra.mxu0 0.0
        %8212 = vmatprep.subr.mxu0 0.0
        %8213 = vmatpush1.msra.mxu0 0.0
        %8214 = vmatprep.subr.mxu0 0.0
        %8215 = vmatpush1.msra.mxu0 0.0
        %8216 = vmatprep.subr.mxu0 0.0
        %8217 = vmatpush1.msra.mxu0 0.0
        %8218 = vmatprep.subr.mxu0 0.0
        %8219 = vmatpush1.msra.mxu0 0.0
        %8220 = vmatprep.subr.mxu0 0.0
        %8221 = vmatpush1.msra.mxu0 0.0
        %8222 = vmatprep.subr.mxu0 0.0
        %8223 = vmatpush1.msra.mxu0 0.0
        %8224 = vmatprep.subr.mxu0 0.0
        %8225 = vmatpush1.msra.mxu0 0.0
        %8226 = vmatprep.subr.mxu0 0.0
        %8227 = vmatpush1.msra.mxu0 0.0
        %8228 = vmatprep.subr.mxu0 0.0
        %8229 = vmatpush1.msra.mxu0 0.0
        %8230 = vmatprep.subr.mxu0 0.0
        %8231 = vmatpush1.msra.mxu0 0.0
        %8232 = vmatprep.subr.mxu0 0.0
        %8233 = vmatpush1.msra.mxu0 0.0
        %8234 = vmatprep.subr.mxu0 0.0
        %8235 = vmatpush1.msra.mxu0 0.0
        %8236 = vmatprep.mubr.f32.mxu0 0.0
        %8237 = vmatmul.mubr.f32.gmra.mrb[0].mxu0 %v8016
        %v8238 = vpop.f32.mrb[0].mxu0
        %v8239 = vadd.f32 0.0, %v8238
        %v8240 = vpop.f32.mrb[0].mxu0
        %v8241 = vadd.f32 0.0, %v8240
        %8242 = vdwg.mxu0
        %v8243 = vadd.f32 %v7835, %v8097
        %v8244 = vadd.f32 %v7837, %v8099
        %v8245 = vadd.f32 %v7906, %v8168
        %v8246 = vadd.f32 %v7908, %v8170
        %v8247 = vadd.f32 %v7977, %v8239
        %v8248 = vadd.f32 %v7979, %v8241
        %s8249 = scalar_lea.vmem %s298, 12
        %v8250 = vld [vmem:[%s8249] sm:$0xf]
        %v8251 = vld [vmem:[%s0] sm:$0xff]
        %v8252 = vld [vmem:[%s0 + $0x8] sm:$0xff]
        %v8253 = vld [vmem:[%s0 + $0x10] sm:$0xff]
        %v8254 = vld [vmem:[%s0 + $0x18] sm:$0xf]
        %v8259 = vcombine.high %v8251, %v8251
        %v8260 = vcombine.high %v8252, %v8252
        %v8261 = vcombine.high %v8253, %v8253
        %8262 = vrot.lane.b32.xlu0 %v8251, 2
        %v8263 = vpop.permute.xlu0 %8262
        %8264 = vrot.lane.b32.xlu0 %v8259, 2
        %v8265 = vpop.permute.xlu0 %8264
        %8266 = vrot.lane.b32.xlu0 %v8252, 2
        %v8267 = vpop.permute.xlu0 %8266
        %8268 = vrot.lane.b32.xlu0 %v8260, 2
        %v8269 = vpop.permute.xlu0 %8268
        %8270 = vrot.lane.b32.xlu0 %v8253, 2
        %v8271 = vpop.permute.xlu0 %8270
        %8272 = vrot.lane.b32.xlu0 %v8261, 2
        %v8273 = vpop.permute.xlu0 %8272
        %8274 = vrot.lane.b32.xlu0 %v8254, 2
        %v8275 = vpop.permute.xlu0 %8274
        %vm8276 = vcmask 15360
        %v8277 = vsel %vm8276, %v8263, %v8265
        %v8278 = vsel %vm8276, %v8265, %v8267
        %v8279 = vsel %vm8276, %v8267, %v8269
        %v8280 = vsel %vm8276, %v8269, %v8271
        %v8281 = vsel %vm8276, %v8271, %v8273
        %v8282 = vsel %vm8276, %v8273, %v8275
        %v8284 = vsel %vm7523, %v8250, 0
        %v8286 = vsel %vm7527, %v8277, 0
        %v8288 = vsel %vm7527, %v8278, 0
        %v8290 = vsel %vm7527, %v8279, 0
        %v8292 = vsel %vm7527, %v8280, 0
        %v8294 = vsel %vm7527, %v8281, 0
        %v8296 = vsel %vm7527, %v8282, 0
        %8298 = vmatprep.subr.mxu0 %v8288
        %8299 = vmatpush1.msra.mxu0 %v8286
        %8300 = vmatprep.subr.mxu0 0.0
        %8301 = vmatpush1.msra.mxu0 0.0
        %8302 = vmatprep.subr.mxu0 0.0
        %8303 = vmatpush1.msra.mxu0 0.0
        %8304 = vmatprep.subr.mxu0 0.0
        %8305 = vmatpush1.msra.mxu0 0.0
        %8306 = vmatprep.subr.mxu0 0.0
        %8307 = vmatpush1.msra.mxu0 0.0
        %8308 = vmatprep.subr.mxu0 0.0
        %8309 = vmatpush1.msra.mxu0 0.0
        %8310 = vmatprep.subr.mxu0 0.0
        %8311 = vmatpush1.msra.mxu0 0.0
        %8312 = vmatprep.subr.mxu0 0.0
        %8313 = vmatpush1.msra.mxu0 0.0
        %8314 = vmatprep.subr.mxu0 0.0
        %8315 = vmatpush1.msra.mxu0 0.0
        %8316 = vmatprep.subr.mxu0 0.0
        %8317 = vmatpush1.msra.mxu0 0.0
        %8318 = vmatprep.subr.mxu0 0.0
        %8319 = vmatpush1.msra.mxu0 0.0
        %8320 = vmatprep.subr.mxu0 0.0
        %8321 = vmatpush1.msra.mxu0 0.0
        %8322 = vmatprep.subr.mxu0 0.0
        %8323 = vmatpush1.msra.mxu0 0.0
        %8324 = vmatprep.subr.mxu0 0.0
        %8325 = vmatpush1.msra.mxu0 0.0
        %8326 = vmatprep.subr.mxu0 0.0
        %8327 = vmatpush1.msra.mxu0 0.0
        %8328 = vmatprep.subr.mxu0 0.0
        %8329 = vmatpush1.msra.mxu0 0.0
        %8330 = vmatprep.subr.mxu0 0.0
        %8331 = vmatpush1.msra.mxu0 0.0
        %8332 = vmatprep.subr.mxu0 0.0
        %8333 = vmatpush1.msra.mxu0 0.0
        %8334 = vmatprep.subr.mxu0 0.0
        %8335 = vmatpush1.msra.mxu0 0.0
        %8336 = vmatprep.subr.mxu0 0.0
        %8337 = vmatpush1.msra.mxu0 0.0
        %8338 = vmatprep.subr.mxu0 0.0
        %8339 = vmatpush1.msra.mxu0 0.0
        %8340 = vmatprep.subr.mxu0 0.0
        %8341 = vmatpush1.msra.mxu0 0.0
        %8342 = vmatprep.subr.mxu0 0.0
        %8343 = vmatpush1.msra.mxu0 0.0
        %8344 = vmatprep.subr.mxu0 0.0
        %8345 = vmatpush1.msra.mxu0 0.0
        %8346 = vmatprep.subr.mxu0 0.0
        %8347 = vmatpush1.msra.mxu0 0.0
        %8348 = vmatprep.subr.mxu0 0.0
        %8349 = vmatpush1.msra.mxu0 0.0
        %8350 = vmatprep.subr.mxu0 0.0
        %8351 = vmatpush1.msra.mxu0 0.0
        %8352 = vmatprep.subr.mxu0 0.0
        %8353 = vmatpush1.msra.mxu0 0.0
        %8354 = vmatprep.subr.mxu0 0.0
        %8355 = vmatpush1.msra.mxu0 0.0
        %8356 = vmatprep.subr.mxu0 0.0
        %8357 = vmatpush1.msra.mxu0 0.0
        %8358 = vmatprep.subr.mxu0 0.0
        %8359 = vmatpush1.msra.mxu0 0.0
        %8360 = vmatprep.subr.mxu0 0.0
        %8361 = vmatpush1.msra.mxu0 0.0
        %8362 = vmatprep.mubr.f32.mxu0 0.0
        %8363 = vmatmul.mubr.f32.gmra.mrb[0].mxu0 %v8284
        %v8364 = vpop.f32.mrb[0].mxu0
        %v8365 = vadd.f32 0.0, %v8364
        %v8366 = vpop.f32.mrb[0].mxu0
        %v8367 = vadd.f32 0.0, %v8366
        %8368 = vdwg.mxu0
        %8369 = vmatprep.subr.mxu0 %v8292
        %8370 = vmatpush1.msra.mxu0 %v8290
        %8371 = vmatprep.subr.mxu0 0.0
        %8372 = vmatpush1.msra.mxu0 0.0
        %8373 = vmatprep.subr.mxu0 0.0
        %8374 = vmatpush1.msra.mxu0 0.0
        %8375 = vmatprep.subr.mxu0 0.0
        %8376 = vmatpush1.msra.mxu0 0.0
        %8377 = vmatprep.subr.mxu0 0.0
        %8378 = vmatpush1.msra.mxu0 0.0
        %8379 = vmatprep.subr.mxu0 0.0
        %8380 = vmatpush1.msra.mxu0 0.0
        %8381 = vmatprep.subr.mxu0 0.0
        %8382 = vmatpush1.msra.mxu0 0.0
        %8383 = vmatprep.subr.mxu0 0.0
        %8384 = vmatpush1.msra.mxu0 0.0
        %8385 = vmatprep.subr.mxu0 0.0
        %8386 = vmatpush1.msra.mxu0 0.0
        %8387 = vmatprep.subr.mxu0 0.0
        %8388 = vmatpush1.msra.mxu0 0.0
        %8389 = vmatprep.subr.mxu0 0.0
        %8390 = vmatpush1.msra.mxu0 0.0
        %8391 = vmatprep.subr.mxu0 0.0
        %8392 = vmatpush1.msra.mxu0 0.0
        %8393 = vmatprep.subr.mxu0 0.0
        %8394 = vmatpush1.msra.mxu0 0.0
        %8395 = vmatprep.subr.mxu0 0.0
        %8396 = vmatpush1.msra.mxu0 0.0
        %8397 = vmatprep.subr.mxu0 0.0
        %8398 = vmatpush1.msra.mxu0 0.0
        %8399 = vmatprep.subr.mxu0 0.0
        %8400 = vmatpush1.msra.mxu0 0.0
        %8401 = vmatprep.subr.mxu0 0.0
        %8402 = vmatpush1.msra.mxu0 0.0
        %8403 = vmatprep.subr.mxu0 0.0
        %8404 = vmatpush1.msra.mxu0 0.0
        %8405 = vmatprep.subr.mxu0 0.0
        %8406 = vmatpush1.msra.mxu0 0.0
        %8407 = vmatprep.subr.mxu0 0.0
        %8408 = vmatpush1.msra.mxu0 0.0
        %8409 = vmatprep.subr.mxu0 0.0
        %8410 = vmatpush1.msra.mxu0 0.0
        %8411 = vmatprep.subr.mxu0 0.0
        %8412 = vmatpush1.msra.mxu0 0.0
        %8413 = vmatprep.subr.mxu0 0.0
        %8414 = vmatpush1.msra.mxu0 0.0
        %8415 = vmatprep.subr.mxu0 0.0
        %8416 = vmatpush1.msra.mxu0 0.0
        %8417 = vmatprep.subr.mxu0 0.0
        %8418 = vmatpush1.msra.mxu0 0.0
        %8419 = vmatprep.subr.mxu0 0.0
        %8420 = vmatpush1.msra.mxu0 0.0
        %8421 = vmatprep.subr.mxu0 0.0
        %8422 = vmatpush1.msra.mxu0 0.0
        %8423 = vmatprep.subr.mxu0 0.0
        %8424 = vmatpush1.msra.mxu0 0.0
        %8425 = vmatprep.subr.mxu0 0.0
        %8426 = vmatpush1.msra.mxu0 0.0
        %8427 = vmatprep.subr.mxu0 0.0
        %8428 = vmatpush1.msra.mxu0 0.0
        %8429 = vmatprep.subr.mxu0 0.0
        %8430 = vmatpush1.msra.mxu0 0.0
        %8431 = vmatprep.subr.mxu0 0.0
        %8432 = vmatpush1.msra.mxu0 0.0
        %8433 = vmatprep.mubr.f32.mxu0 0.0
        %8434 = vmatmul.mubr.f32.gmra.mrb[0].mxu0 %v8284
        %v8435 = vpop.f32.mrb[0].mxu0
        %v8436 = vadd.f32 0.0, %v8435
        %v8437 = vpop.f32.mrb[0].mxu0
        %v8438 = vadd.f32 0.0, %v8437
        %8439 = vdwg.mxu0
        %8440 = vmatprep.subr.mxu0 %v8296
        %8441 = vmatpush1.msra.mxu0 %v8294
        %8442 = vmatprep.subr.mxu0 0.0
        %8443 = vmatpush1.msra.mxu0 0.0
        %8444 = vmatprep.subr.mxu0 0.0
        %8445 = vmatpush1.msra.mxu0 0.0
        %8446 = vmatprep.subr.mxu0 0.0
        %8447 = vmatpush1.msra.mxu0 0.0
        %8448 = vmatprep.subr.mxu0 0.0
        %8449 = vmatpush1.msra.mxu0 0.0
        %8450 = vmatprep.subr.mxu0 0.0
        %8451 = vmatpush1.msra.mxu0 0.0
        %8452 = vmatprep.subr.mxu0 0.0
        %8453 = vmatpush1.msra.mxu0 0.0
        %8454 = vmatprep.subr.mxu0 0.0
        %8455 = vmatpush1.msra.mxu0 0.0
        %8456 = vmatprep.subr.mxu0 0.0
        %8457 = vmatpush1.msra.mxu0 0.0
        %8458 = vmatprep.subr.mxu0 0.0
        %8459 = vmatpush1.msra.mxu0 0.0
        %8460 = vmatprep.subr.mxu0 0.0
        %8461 = vmatpush1.msra.mxu0 0.0
        %8462 = vmatprep.subr.mxu0 0.0
        %8463 = vmatpush1.msra.mxu0 0.0
        %8464 = vmatprep.subr.mxu0 0.0
        %8465 = vmatpush1.msra.mxu0 0.0
        %8466 = vmatprep.subr.mxu0 0.0
        %8467 = vmatpush1.msra.mxu0 0.0
        %8468 = vmatprep.subr.mxu0 0.0
        %8469 = vmatpush1.msra.mxu0 0.0
        %8470 = vmatprep.subr.mxu0 0.0
        %8471 = vmatpush1.msra.mxu0 0.0
        %8472 = vmatprep.subr.mxu0 0.0
        %8473 = vmatpush1.msra.mxu0 0.0
        %8474 = vmatprep.subr.mxu0 0.0
        %8475 = vmatpush1.msra.mxu0 0.0
        %8476 = vmatprep.subr.mxu0 0.0
        %8477 = vmatpush1.msra.mxu0 0.0
        %8478 = vmatprep.subr.mxu0 0.0
        %8479 = vmatpush1.msra.mxu0 0.0
        %8480 = vmatprep.subr.mxu0 0.0
        %8481 = vmatpush1.msra.mxu0 0.0
        %8482 = vmatprep.subr.mxu0 0.0
        %8483 = vmatpush1.msra.mxu0 0.0
        %8484 = vmatprep.subr.mxu0 0.0
        %8485 = vmatpush1.msra.mxu0 0.0
        %8486 = vmatprep.subr.mxu0 0.0
        %8487 = vmatpush1.msra.mxu0 0.0
        %8488 = vmatprep.subr.mxu0 0.0
        %8489 = vmatpush1.msra.mxu0 0.0
        %8490 = vmatprep.subr.mxu0 0.0
        %8491 = vmatpush1.msra.mxu0 0.0
        %8492 = vmatprep.subr.mxu0 0.0
        %8493 = vmatpush1.msra.mxu0 0.0
        %8494 = vmatprep.subr.mxu0 0.0
        %8495 = vmatpush1.msra.mxu0 0.0
        %8496 = vmatprep.subr.mxu0 0.0
        %8497 = vmatpush1.msra.mxu0 0.0
        %8498 = vmatprep.subr.mxu0 0.0
        %8499 = vmatpush1.msra.mxu0 0.0
        %8500 = vmatprep.subr.mxu0 0.0
        %8501 = vmatpush1.msra.mxu0 0.0
        %8502 = vmatprep.subr.mxu0 0.0
        %8503 = vmatpush1.msra.mxu0 0.0
        %8504 = vmatprep.mubr.f32.mxu0 0.0
        %8505 = vmatmul.mubr.f32.gmra.mrb[0].mxu0 %v8284
        %v8506 = vpop.f32.mrb[0].mxu0
        %v8507 = vadd.f32 0.0, %v8506
        %v8508 = vpop.f32.mrb[0].mxu0
        %v8509 = vadd.f32 0.0, %v8508
        %8510 = vdwg.mxu0
        %v8511 = vadd.f32 %v8243, %v8365
        %v8512 = vadd.f32 %v8244, %v8367
        %v8513 = vadd.f32 %v8245, %v8436
        %v8514 = vadd.f32 %v8246, %v8438
        %v8515 = vadd.f32 %v8247, %v8507
        %v8516 = vadd.f32 %v8248, %v8509
        %s8517 = scalar_lea.vmem %s298, 16
        %v8518 = vld [vmem:[%s8517] sm:$0xf]
        %v8519 = vld [vmem:[%s0 + $0x4] sm:$0xff]
        %v8520 = vld [vmem:[%s0 + $0xc] sm:$0xff]
        %v8521 = vld [vmem:[%s0 + $0x14] sm:$0xff]
        %v8522 = vld [vmem:[%s0 + $0x1c] sm:$0xf]
        %v8527 = vcombine.high %v8519, %v8519
        %v8528 = vcombine.high %v8520, %v8520
        %v8529 = vcombine.high %v8521, %v8521
        %8530 = vrot.lane.b32.xlu0 %v8519, 123
        %v8531 = vpop.permute.xlu0 %8530
        %8532 = vrot.lane.b32.xlu0 %v8527, 123
        %v8533 = vpop.permute.xlu0 %8532
        %8534 = vrot.lane.b32.xlu0 %v8520, 123
        %v8535 = vpop.permute.xlu0 %8534
        %8536 = vrot.lane.b32.xlu0 %v8528, 123
        %v8537 = vpop.permute.xlu0 %8536
        %8538 = vrot.lane.b32.xlu0 %v8521, 123
        %v8539 = vpop.permute.xlu0 %8538
        %8540 = vrot.lane.b32.xlu0 %v8529, 123
        %v8541 = vpop.permute.xlu0 %8540
        %8542 = vrot.lane.b32.xlu0 %v8522, 123
        %v8543 = vpop.permute.xlu0 %8542
        %vm8544 = vcmask 1006592
        %v8545 = vsel %vm8544, %v8531, %v8533
        %v8546 = vsel %vm8544, %v8533, %v8535
        %v8547 = vsel %vm8544, %v8535, %v8537
        %v8548 = vsel %vm8544, %v8537, %v8539
        %v8549 = vsel %vm8544, %v8539, %v8541
        %v8550 = vsel %vm8544, %v8541, %v8543
        %v8552 = vsel %vm7523, %v8518, 0
        %v8554 = vsel %vm7527, %v8545, 0
        %v8556 = vsel %vm7527, %v8546, 0
        %v8558 = vsel %vm7527, %v8547, 0
        %v8560 = vsel %vm7527, %v8548, 0
        %v8562 = vsel %vm7527, %v8549, 0
        %v8564 = vsel %vm7527, %v8550, 0
        %8566 = vmatprep.subr.mxu0 %v8556
        %8567 = vmatpush1.msra.mxu0 %v8554
        %8568 = vmatprep.subr.mxu0 0.0
        %8569 = vmatpush1.msra.mxu0 0.0
        %8570 = vmatprep.subr.mxu0 0.0
        %8571 = vmatpush1.msra.mxu0 0.0
        %8572 = vmatprep.subr.mxu0 0.0
        %8573 = vmatpush1.msra.mxu0 0.0
        %8574 = vmatprep.subr.mxu0 0.0
        %8575 = vmatpush1.msra.mxu0 0.0
        %8576 = vmatprep.subr.mxu0 0.0
        %8577 = vmatpush1.msra.mxu0 0.0
        %8578 = vmatprep.subr.mxu0 0.0
        %8579 = vmatpush1.msra.mxu0 0.0
        %8580 = vmatprep.subr.mxu0 0.0
        %8581 = vmatpush1.msra.mxu0 0.0
        %8582 = vmatprep.subr.mxu0 0.0
        %8583 = vmatpush1.msra.mxu0 0.0
        %8584 = vmatprep.subr.mxu0 0.0
        %8585 = vmatpush1.msra.mxu0 0.0
        %8586 = vmatprep.subr.mxu0 0.0
        %8587 = vmatpush1.msra.mxu0 0.0
        %8588 = vmatprep.subr.mxu0 0.0
        %8589 = vmatpush1.msra.mxu0 0.0
        %8590 = vmatprep.subr.mxu0 0.0
        %8591 = vmatpush1.msra.mxu0 0.0
        %8592 = vmatprep.subr.mxu0 0.0
        %8593 = vmatpush1.msra.mxu0 0.0
        %8594 = vmatprep.subr.mxu0 0.0
        %8595 = vmatpush1.msra.mxu0 0.0
        %8596 = vmatprep.subr.mxu0 0.0
        %8597 = vmatpush1.msra.mxu0 0.0
        %8598 = vmatprep.subr.mxu0 0.0
        %8599 = vmatpush1.msra.mxu0 0.0
        %8600 = vmatprep.subr.mxu0 0.0
        %8601 = vmatpush1.msra.mxu0 0.0
        %8602 = vmatprep.subr.mxu0 0.0
        %8603 = vmatpush1.msra.mxu0 0.0
        %8604 = vmatprep.subr.mxu0 0.0
        %8605 = vmatpush1.msra.mxu0 0.0
        %8606 = vmatprep.subr.mxu0 0.0
        %8607 = vmatpush1.msra.mxu0 0.0
        %8608 = vmatprep.subr.mxu0 0.0
        %8609 = vmatpush1.msra.mxu0 0.0
        %8610 = vmatprep.subr.mxu0 0.0
        %8611 = vmatpush1.msra.mxu0 0.0
        %8612 = vmatprep.subr.mxu0 0.0
        %8613 = vmatpush1.msra.mxu0 0.0
        %8614 = vmatprep.subr.mxu0 0.0
        %8615 = vmatpush1.msra.mxu0 0.0
        %8616 = vmatprep.subr.mxu0 0.0
        %8617 = vmatpush1.msra.mxu0 0.0
        %8618 = vmatprep.subr.mxu0 0.0
        %8619 = vmatpush1.msra.mxu0 0.0
        %8620 = vmatprep.subr.mxu0 0.0
        %8621 = vmatpush1.msra.mxu0 0.0
        %8622 = vmatprep.subr.mxu0 0.0
        %8623 = vmatpush1.msra.mxu0 0.0
        %8624 = vmatprep.subr.mxu0 0.0
        %8625 = vmatpush1.msra.mxu0 0.0
        %8626 = vmatprep.subr.mxu0 0.0
        %8627 = vmatpush1.msra.mxu0 0.0
        %8628 = vmatprep.subr.mxu0 0.0
        %8629 = vmatpush1.msra.mxu0 0.0
        %8630 = vmatprep.mubr.f32.mxu0 0.0
        %8631 = vmatmul.mubr.f32.gmra.mrb[0].mxu0 %v8552
        %v8632 = vpop.f32.mrb[0].mxu0
        %v8633 = vadd.f32 0.0, %v8632
        %v8634 = vpop.f32.mrb[0].mxu0
        %v8635 = vadd.f32 0.0, %v8634
        %8636 = vdwg.mxu0
        %8637 = vmatprep.subr.mxu0 %v8560
        %8638 = vmatpush1.msra.mxu0 %v8558
        %8639 = vmatprep.subr.mxu0 0.0
        %8640 = vmatpush1.msra.mxu0 0.0
        %8641 = vmatprep.subr.mxu0 0.0
        %8642 = vmatpush1.msra.mxu0 0.0
        %8643 = vmatprep.subr.mxu0 0.0
        %8644 = vmatpush1.msra.mxu0 0.0
        %8645 = vmatprep.subr.mxu0 0.0
        %8646 = vmatpush1.msra.mxu0 0.0
        %8647 = vmatprep.subr.mxu0 0.0
        %8648 = vmatpush1.msra.mxu0 0.0
        %8649 = vmatprep.subr.mxu0 0.0
        %8650 = vmatpush1.msra.mxu0 0.0
        %8651 = vmatprep.subr.mxu0 0.0
        %8652 = vmatpush1.msra.mxu0 0.0
        %8653 = vmatprep.subr.mxu0 0.0
        %8654 = vmatpush1.msra.mxu0 0.0
        %8655 = vmatprep.subr.mxu0 0.0
        %8656 = vmatpush1.msra.mxu0 0.0
        %8657 = vmatprep.subr.mxu0 0.0
        %8658 = vmatpush1.msra.mxu0 0.0
        %8659 = vmatprep.subr.mxu0 0.0
        %8660 = vmatpush1.msra.mxu0 0.0
        %8661 = vmatprep.subr.mxu0 0.0
        %8662 = vmatpush1.msra.mxu0 0.0
        %8663 = vmatprep.subr.mxu0 0.0
        %8664 = vmatpush1.msra.mxu0 0.0
        %8665 = vmatprep.subr.mxu0 0.0
        %8666 = vmatpush1.msra.mxu0 0.0
        %8667 = vmatprep.subr.mxu0 0.0
        %8668 = vmatpush1.msra.mxu0 0.0
        %8669 = vmatprep.subr.mxu0 0.0
        %8670 = vmatpush1.msra.mxu0 0.0
        %8671 = vmatprep.subr.mxu0 0.0
        %8672 = vmatpush1.msra.mxu0 0.0
        %8673 = vmatprep.subr.mxu0 0.0
        %8674 = vmatpush1.msra.mxu0 0.0
        %8675 = vmatprep.subr.mxu0 0.0
        %8676 = vmatpush1.msra.mxu0 0.0
        %8677 = vmatprep.subr.mxu0 0.0
        %8678 = vmatpush1.msra.mxu0 0.0
        %8679 = vmatprep.subr.mxu0 0.0
        %8680 = vmatpush1.msra.mxu0 0.0
        %8681 = vmatprep.subr.mxu0 0.0
        %8682 = vmatpush1.msra.mxu0 0.0
        %8683 = vmatprep.subr.mxu0 0.0
        %8684 = vmatpush1.msra.mxu0 0.0
        %8685 = vmatprep.subr.mxu0 0.0
        %8686 = vmatpush1.msra.mxu0 0.0
        %8687 = vmatprep.subr.mxu0 0.0
        %8688 = vmatpush1.msra.mxu0 0.0
        %8689 = vmatprep.subr.mxu0 0.0
        %8690 = vmatpush1.msra.mxu0 0.0
        %8691 = vmatprep.subr.mxu0 0.0
        %8692 = vmatpush1.msra.mxu0 0.0
        %8693 = vmatprep.subr.mxu0 0.0
        %8694 = vmatpush1.msra.mxu0 0.0
        %8695 = vmatprep.subr.mxu0 0.0
        %8696 = vmatpush1.msra.mxu0 0.0
        %8697 = vmatprep.subr.mxu0 0.0
        %8698 = vmatpush1.msra.mxu0 0.0
        %8699 = vmatprep.subr.mxu0 0.0
        %8700 = vmatpush1.msra.mxu0 0.0
        %8701 = vmatprep.mubr.f32.mxu0 0.0
        %8702 = vmatmul.mubr.f32.gmra.mrb[0].mxu0 %v8552
        %v8703 = vpop.f32.mrb[0].mxu0
        %v8704 = vadd.f32 0.0, %v8703
        %v8705 = vpop.f32.mrb[0].mxu0
        %v8706 = vadd.f32 0.0, %v8705
        %8707 = vdwg.mxu0
        %8708 = vmatprep.subr.mxu0 %v8564
        %8709 = vmatpush1.msra.mxu0 %v8562
        %8710 = vmatprep.subr.mxu0 0.0
        %8711 = vmatpush1.msra.mxu0 0.0
        %8712 = vmatprep.subr.mxu0 0.0
        %8713 = vmatpush1.msra.mxu0 0.0
        %8714 = vmatprep.subr.mxu0 0.0
        %8715 = vmatpush1.msra.mxu0 0.0
        %8716 = vmatprep.subr.mxu0 0.0
        %8717 = vmatpush1.msra.mxu0 0.0
        %8718 = vmatprep.subr.mxu0 0.0
        %8719 = vmatpush1.msra.mxu0 0.0
        %8720 = vmatprep.subr.mxu0 0.0
        %8721 = vmatpush1.msra.mxu0 0.0
        %8722 = vmatprep.subr.mxu0 0.0
        %8723 = vmatpush1.msra.mxu0 0.0
        %8724 = vmatprep.subr.mxu0 0.0
        %8725 = vmatpush1.msra.mxu0 0.0
        %8726 = vmatprep.subr.mxu0 0.0
        %8727 = vmatpush1.msra.mxu0 0.0
        %8728 = vmatprep.subr.mxu0 0.0
        %8729 = vmatpush1.msra.mxu0 0.0
        %8730 = vmatprep.subr.mxu0 0.0
        %8731 = vmatpush1.msra.mxu0 0.0
        %8732 = vmatprep.subr.mxu0 0.0
        %8733 = vmatpush1.msra.mxu0 0.0
        %8734 = vmatprep.subr.mxu0 0.0
        %8735 = vmatpush1.msra.mxu0 0.0
        %8736 = vmatprep.subr.mxu0 0.0
        %8737 = vmatpush1.msra.mxu0 0.0
        %8738 = vmatprep.subr.mxu0 0.0
        %8739 = vmatpush1.msra.mxu0 0.0
        %8740 = vmatprep.subr.mxu0 0.0
        %8741 = vmatpush1.msra.mxu0 0.0
        %8742 = vmatprep.subr.mxu0 0.0
        %8743 = vmatpush1.msra.mxu0 0.0
        %8744 = vmatprep.subr.mxu0 0.0
        %8745 = vmatpush1.msra.mxu0 0.0
        %8746 = vmatprep.subr.mxu0 0.0
        %8747 = vmatpush1.msra.mxu0 0.0
        %8748 = vmatprep.subr.mxu0 0.0
        %8749 = vmatpush1.msra.mxu0 0.0
        %8750 = vmatprep.subr.mxu0 0.0
        %8751 = vmatpush1.msra.mxu0 0.0
        %8752 = vmatprep.subr.mxu0 0.0
        %8753 = vmatpush1.msra.mxu0 0.0
        %8754 = vmatprep.subr.mxu0 0.0
        %8755 = vmatpush1.msra.mxu0 0.0
        %8756 = vmatprep.subr.mxu0 0.0
        %8757 = vmatpush1.msra.mxu0 0.0
        %8758 = vmatprep.subr.mxu0 0.0
        %8759 = vmatpush1.msra.mxu0 0.0
        %8760 = vmatprep.subr.mxu0 0.0
        %8761 = vmatpush1.msra.mxu0 0.0
        %8762 = vmatprep.subr.mxu0 0.0
        %8763 = vmatpush1.msra.mxu0 0.0
        %8764 = vmatprep.subr.mxu0 0.0
        %8765 = vmatpush1.msra.mxu0 0.0
        %8766 = vmatprep.subr.mxu0 0.0
        %8767 = vmatpush1.msra.mxu0 0.0
        %8768 = vmatprep.subr.mxu0 0.0
        %8769 = vmatpush1.msra.mxu0 0.0
        %8770 = vmatprep.subr.mxu0 0.0
        %8771 = vmatpush1.msra.mxu0 0.0
        %8772 = vmatprep.mubr.f32.mxu0 0.0
        %8773 = vmatmul.mubr.f32.gmra.mrb[0].mxu0 %v8552
        %v8774 = vpop.f32.mrb[0].mxu0
        %v8775 = vadd.f32 0.0, %v8774
        %v8776 = vpop.f32.mrb[0].mxu0
        %v8777 = vadd.f32 0.0, %v8776
        %8778 = vdwg.mxu0
        %v8779 = vadd.f32 %v8511, %v8633
        %v8780 = vadd.f32 %v8512, %v8635
        %v8781 = vadd.f32 %v8513, %v8704
        %v8782 = vadd.f32 %v8514, %v8706
        %v8783 = vadd.f32 %v8515, %v8775
        %v8784 = vadd.f32 %v8516, %v8777
        %s8785 = scalar_lea.vmem %s298, 20
        %v8786 = vld [vmem:[%s8785] sm:$0xf]
        %v8787 = vld [vmem:[%s0 + $0x4] sm:$0xff]
        %v8788 = vld [vmem:[%s0 + $0xc] sm:$0xff]
        %v8789 = vld [vmem:[%s0 + $0x14] sm:$0xff]
        %v8790 = vld [vmem:[%s0 + $0x1c] sm:$0xf]
        %v8795 = vcombine.high %v8787, %v8787
        %v8796 = vcombine.high %v8788, %v8788
        %v8797 = vcombine.high %v8789, %v8789
        %8798 = vrot.lane.b32.xlu0 %v8787, 116
        %v8799 = vpop.permute.xlu0 %8798
        %8800 = vrot.lane.b32.xlu0 %v8795, 116
        %v8801 = vpop.permute.xlu0 %8800
        %8802 = vrot.lane.b32.xlu0 %v8788, 116
        %v8803 = vpop.permute.xlu0 %8802
        %8804 = vrot.lane.b32.xlu0 %v8796, 116
        %v8805 = vpop.permute.xlu0 %8804
        %8806 = vrot.lane.b32.xlu0 %v8789, 116
        %v8807 = vpop.permute.xlu0 %8806
        %8808 = vrot.lane.b32.xlu0 %v8797, 116
        %v8809 = vpop.permute.xlu0 %8808
        %8810 = vrot.lane.b32.xlu0 %v8790, 116
        %v8811 = vpop.permute.xlu0 %8810
        %vm8812 = vcmask 949248
        %v8813 = vsel %vm8812, %v8799, %v8801
        %v8814 = vsel %vm8812, %v8801, %v8803
        %v8815 = vsel %vm8812, %v8803, %v8805
        %v8816 = vsel %vm8812, %v8805, %v8807
        %v8817 = vsel %vm8812, %v8807, %v8809
        %v8818 = vsel %vm8812, %v8809, %v8811
        %v8820 = vsel %vm7523, %v8786, 0
        %v8822 = vsel %vm7527, %v8813, 0
        %v8824 = vsel %vm7527, %v8814, 0
        %v8826 = vsel %vm7527, %v8815, 0
        %v8828 = vsel %vm7527, %v8816, 0
        %v8830 = vsel %vm7527, %v8817, 0
        %v8832 = vsel %vm7527, %v8818, 0
        %8834 = vmatprep.subr.mxu0 %v8824
        %8835 = vmatpush1.msra.mxu0 %v8822
        %8836 = vmatprep.subr.mxu0 0.0
        %8837 = vmatpush1.msra.mxu0 0.0
        %8838 = vmatprep.subr.mxu0 0.0
        %8839 = vmatpush1.msra.mxu0 0.0
        %8840 = vmatprep.subr.mxu0 0.0
        %8841 = vmatpush1.msra.mxu0 0.0
        %8842 = vmatprep.subr.mxu0 0.0
        %8843 = vmatpush1.msra.mxu0 0.0
        %8844 = vmatprep.subr.mxu0 0.0
        %8845 = vmatpush1.msra.mxu0 0.0
        %8846 = vmatprep.subr.mxu0 0.0
        %8847 = vmatpush1.msra.mxu0 0.0
        %8848 = vmatprep.subr.mxu0 0.0
        %8849 = vmatpush1.msra.mxu0 0.0
        %8850 = vmatprep.subr.mxu0 0.0
        %8851 = vmatpush1.msra.mxu0 0.0
        %8852 = vmatprep.subr.mxu0 0.0
        %8853 = vmatpush1.msra.mxu0 0.0
        %8854 = vmatprep.subr.mxu0 0.0
        %8855 = vmatpush1.msra.mxu0 0.0
        %8856 = vmatprep.subr.mxu0 0.0
        %8857 = vmatpush1.msra.mxu0 0.0
        %8858 = vmatprep.subr.mxu0 0.0
        %8859 = vmatpush1.msra.mxu0 0.0
        %8860 = vmatprep.subr.mxu0 0.0
        %8861 = vmatpush1.msra.mxu0 0.0
        %8862 = vmatprep.subr.mxu0 0.0
        %8863 = vmatpush1.msra.mxu0 0.0
        %8864 = vmatprep.subr.mxu0 0.0
        %8865 = vmatpush1.msra.mxu0 0.0
        %8866 = vmatprep.subr.mxu0 0.0
        %8867 = vmatpush1.msra.mxu0 0.0
        %8868 = vmatprep.subr.mxu0 0.0
        %8869 = vmatpush1.msra.mxu0 0.0
        %8870 = vmatprep.subr.mxu0 0.0
        %8871 = vmatpush1.msra.mxu0 0.0
        %8872 = vmatprep.subr.mxu0 0.0
        %8873 = vmatpush1.msra.mxu0 0.0
        %8874 = vmatprep.subr.mxu0 0.0
        %8875 = vmatpush1.msra.mxu0 0.0
        %8876 = vmatprep.subr.mxu0 0.0
        %8877 = vmatpush1.msra.mxu0 0.0
        %8878 = vmatprep.subr.mxu0 0.0
        %8879 = vmatpush1.msra.mxu0 0.0
        %8880 = vmatprep.subr.mxu0 0.0
        %8881 = vmatpush1.msra.mxu0 0.0
        %8882 = vmatprep.subr.mxu0 0.0
        %8883 = vmatpush1.msra.mxu0 0.0
        %8884 = vmatprep.subr.mxu0 0.0
        %8885 = vmatpush1.msra.mxu0 0.0
        %8886 = vmatprep.subr.mxu0 0.0
        %8887 = vmatpush1.msra.mxu0 0.0
        %8888 = vmatprep.subr.mxu0 0.0
        %8889 = vmatpush1.msra.mxu0 0.0
        %8890 = vmatprep.subr.mxu0 0.0
        %8891 = vmatpush1.msra.mxu0 0.0
        %8892 = vmatprep.subr.mxu0 0.0
        %8893 = vmatpush1.msra.mxu0 0.0
        %8894 = vmatprep.subr.mxu0 0.0
        %8895 = vmatpush1.msra.mxu0 0.0
        %8896 = vmatprep.subr.mxu0 0.0
        %8897 = vmatpush1.msra.mxu0 0.0
        %8898 = vmatprep.mubr.f32.mxu0 0.0
        %8899 = vmatmul.mubr.f32.gmra.mrb[0].mxu0 %v8820
        %v8900 = vpop.f32.mrb[0].mxu0
        %v8901 = vadd.f32 0.0, %v8900
        %v8902 = vpop.f32.mrb[0].mxu0
        %v8903 = vadd.f32 0.0, %v8902
        %8904 = vdwg.mxu0
        %8905 = vmatprep.subr.mxu0 %v8828
        %8906 = vmatpush1.msra.mxu0 %v8826
        %8907 = vmatprep.subr.mxu0 0.0
        %8908 = vmatpush1.msra.mxu0 0.0
        %8909 = vmatprep.subr.mxu0 0.0
        %8910 = vmatpush1.msra.mxu0 0.0
        %8911 = vmatprep.subr.mxu0 0.0
        %8912 = vmatpush1.msra.mxu0 0.0
        %8913 = vmatprep.subr.mxu0 0.0
        %8914 = vmatpush1.msra.mxu0 0.0
        %8915 = vmatprep.subr.mxu0 0.0
        %8916 = vmatpush1.msra.mxu0 0.0
        %8917 = vmatprep.subr.mxu0 0.0
        %8918 = vmatpush1.msra.mxu0 0.0
        %8919 = vmatprep.subr.mxu0 0.0
        %8920 = vmatpush1.msra.mxu0 0.0
        %8921 = vmatprep.subr.mxu0 0.0
        %8922 = vmatpush1.msra.mxu0 0.0
        %8923 = vmatprep.subr.mxu0 0.0
        %8924 = vmatpush1.msra.mxu0 0.0
        %8925 = vmatprep.subr.mxu0 0.0
        %8926 = vmatpush1.msra.mxu0 0.0
        %8927 = vmatprep.subr.mxu0 0.0
        %8928 = vmatpush1.msra.mxu0 0.0
        %8929 = vmatprep.subr.mxu0 0.0
        %8930 = vmatpush1.msra.mxu0 0.0
        %8931 = vmatprep.subr.mxu0 0.0
        %8932 = vmatpush1.msra.mxu0 0.0
        %8933 = vmatprep.subr.mxu0 0.0
        %8934 = vmatpush1.msra.mxu0 0.0
        %8935 = vmatprep.subr.mxu0 0.0
        %8936 = vmatpush1.msra.mxu0 0.0
        %8937 = vmatprep.subr.mxu0 0.0
        %8938 = vmatpush1.msra.mxu0 0.0
        %8939 = vmatprep.subr.mxu0 0.0
        %8940 = vmatpush1.msra.mxu0 0.0
        %8941 = vmatprep.subr.mxu0 0.0
        %8942 = vmatpush1.msra.mxu0 0.0
        %8943 = vmatprep.subr.mxu0 0.0
        %8944 = vmatpush1.msra.mxu0 0.0
        %8945 = vmatprep.subr.mxu0 0.0
        %8946 = vmatpush1.msra.mxu0 0.0
        %8947 = vmatprep.subr.mxu0 0.0
        %8948 = vmatpush1.msra.mxu0 0.0
        %8949 = vmatprep.subr.mxu0 0.0
        %8950 = vmatpush1.msra.mxu0 0.0
        %8951 = vmatprep.subr.mxu0 0.0
        %8952 = vmatpush1.msra.mxu0 0.0
        %8953 = vmatprep.subr.mxu0 0.0
        %8954 = vmatpush1.msra.mxu0 0.0
        %8955 = vmatprep.subr.mxu0 0.0
        %8956 = vmatpush1.msra.mxu0 0.0
        %8957 = vmatprep.subr.mxu0 0.0
        %8958 = vmatpush1.msra.mxu0 0.0
        %8959 = vmatprep.subr.mxu0 0.0
        %8960 = vmatpush1.msra.mxu0 0.0
        %8961 = vmatprep.subr.mxu0 0.0
        %8962 = vmatpush1.msra.mxu0 0.0
        %8963 = vmatprep.subr.mxu0 0.0
        %8964 = vmatpush1.msra.mxu0 0.0
        %8965 = vmatprep.subr.mxu0 0.0
        %8966 = vmatpush1.msra.mxu0 0.0
        %8967 = vmatprep.subr.mxu0 0.0
        %8968 = vmatpush1.msra.mxu0 0.0
        %8969 = vmatprep.mubr.f32.mxu0 0.0
        %8970 = vmatmul.mubr.f32.gmra.mrb[0].mxu0 %v8820
        %v8971 = vpop.f32.mrb[0].mxu0
        %v8972 = vadd.f32 0.0, %v8971
        %v8973 = vpop.f32.mrb[0].mxu0
        %v8974 = vadd.f32 0.0, %v8973
        %8975 = vdwg.mxu0
        %8976 = vmatprep.subr.mxu0 %v8832
        %8977 = vmatpush1.msra.mxu0 %v8830
        %8978 = vmatprep.subr.mxu0 0.0
        %8979 = vmatpush1.msra.mxu0 0.0
        %8980 = vmatprep.subr.mxu0 0.0
        %8981 = vmatpush1.msra.mxu0 0.0
        %8982 = vmatprep.subr.mxu0 0.0
        %8983 = vmatpush1.msra.mxu0 0.0
        %8984 = vmatprep.subr.mxu0 0.0
        %8985 = vmatpush1.msra.mxu0 0.0
        %8986 = vmatprep.subr.mxu0 0.0
        %8987 = vmatpush1.msra.mxu0 0.0
        %8988 = vmatprep.subr.mxu0 0.0
        %8989 = vmatpush1.msra.mxu0 0.0
        %8990 = vmatprep.subr.mxu0 0.0
        %8991 = vmatpush1.msra.mxu0 0.0
        %8992 = vmatprep.subr.mxu0 0.0
        %8993 = vmatpush1.msra.mxu0 0.0
        %8994 = vmatprep.subr.mxu0 0.0
        %8995 = vmatpush1.msra.mxu0 0.0
        %8996 = vmatprep.subr.mxu0 0.0
        %8997 = vmatpush1.msra.mxu0 0.0
        %8998 = vmatprep.subr.mxu0 0.0
        %8999 = vmatpush1.msra.mxu0 0.0
        %9000 = vmatprep.subr.mxu0 0.0
        %9001 = vmatpush1.msra.mxu0 0.0
        %9002 = vmatprep.subr.mxu0 0.0
        %9003 = vmatpush1.msra.mxu0 0.0
        %9004 = vmatprep.subr.mxu0 0.0
        %9005 = vmatpush1.msra.mxu0 0.0
        %9006 = vmatprep.subr.mxu0 0.0
        %9007 = vmatpush1.msra.mxu0 0.0
        %9008 = vmatprep.subr.mxu0 0.0
        %9009 = vmatpush1.msra.mxu0 0.0
        %9010 = vmatprep.subr.mxu0 0.0
        %9011 = vmatpush1.msra.mxu0 0.0
        %9012 = vmatprep.subr.mxu0 0.0
        %9013 = vmatpush1.msra.mxu0 0.0
        %9014 = vmatprep.subr.mxu0 0.0
        %9015 = vmatpush1.msra.mxu0 0.0
        %9016 = vmatprep.subr.mxu0 0.0
        %9017 = vmatpush1.msra.mxu0 0.0
        %9018 = vmatprep.subr.mxu0 0.0
        %9019 = vmatpush1.msra.mxu0 0.0
        %9020 = vmatprep.subr.mxu0 0.0
        %9021 = vmatpush1.msra.mxu0 0.0
        %9022 = vmatprep.subr.mxu0 0.0
        %9023 = vmatpush1.msra.mxu0 0.0
        %9024 = vmatprep.subr.mxu0 0.0
        %9025 = vmatpush1.msra.mxu0 0.0
        %9026 = vmatprep.subr.mxu0 0.0
        %9027 = vmatpush1.msra.mxu0 0.0
        %9028 = vmatprep.subr.mxu0 0.0
        %9029 = vmatpush1.msra.mxu0 0.0
        %9030 = vmatprep.subr.mxu0 0.0
        %9031 = vmatpush1.msra.mxu0 0.0
        %9032 = vmatprep.subr.mxu0 0.0
        %9033 = vmatpush1.msra.mxu0 0.0
        %9034 = vmatprep.subr.mxu0 0.0
        %9035 = vmatpush1.msra.mxu0 0.0
        %9036 = vmatprep.subr.mxu0 0.0
        %9037 = vmatpush1.msra.mxu0 0.0
        %9038 = vmatprep.subr.mxu0 0.0
        %9039 = vmatpush1.msra.mxu0 0.0
        %9040 = vmatprep.mubr.f32.mxu0 0.0
        %9041 = vmatmul.mubr.f32.gmra.mrb[0].mxu0 %v8820
        %v9042 = vpop.f32.mrb[0].mxu0
        %v9043 = vadd.f32 0.0, %v9042
        %v9044 = vpop.f32.mrb[0].mxu0
        %v9045 = vadd.f32 0.0, %v9044
        %9046 = vdwg.mxu0
        %v9047 = vadd.f32 %v8779, %v8901
        %v9048 = vadd.f32 %v8780, %v8903
        %v9049 = vadd.f32 %v8781, %v8972
        %v9050 = vadd.f32 %v8782, %v8974
        %v9051 = vadd.f32 %v8783, %v9043
        %v9052 = vadd.f32 %v8784, %v9045
        %s9053 = scalar_lea.vmem %s298, 24
        %v9054 = vld [vmem:[%s9053] sm:$0xf]
        %v9055 = vld [vmem:[%s0 + $0x4] sm:$0xff]
        %v9056 = vld [vmem:[%s0 + $0xc] sm:$0xff]
        %v9057 = vld [vmem:[%s0 + $0x14] sm:$0xff]
        %v9058 = vld [vmem:[%s0 + $0x1c] sm:$0xf]
        %v9063 = vcombine.high %v9055, %v9055
        %v9064 = vcombine.high %v9056, %v9056
        %v9065 = vcombine.high %v9057, %v9057
        %9066 = vrot.lane.b32.xlu0 %v9055, 4
        %v9067 = vpop.permute.xlu0 %9066
        %9068 = vrot.lane.b32.xlu0 %v9063, 4
        %v9069 = vpop.permute.xlu0 %9068
        %9070 = vrot.lane.b32.xlu0 %v9056, 4
        %v9071 = vpop.permute.xlu0 %9070
        %9072 = vrot.lane.b32.xlu0 %v9064, 4
        %v9073 = vpop.permute.xlu0 %9072
        %9074 = vrot.lane.b32.xlu0 %v9057, 4
        %v9075 = vpop.permute.xlu0 %9074
        %9076 = vrot.lane.b32.xlu0 %v9065, 4
        %v9077 = vpop.permute.xlu0 %9076
        %9078 = vrot.lane.b32.xlu0 %v9058, 4
        %v9079 = vpop.permute.xlu0 %9078
        %v9080 = vsel %vm7523, %v9067, %v9069
        %v9081 = vsel %vm7523, %v9069, %v9071
        %v9082 = vsel %vm7523, %v9071, %v9073
        %v9083 = vsel %vm7523, %v9073, %v9075
        %v9084 = vsel %vm7523, %v9075, %v9077
        %v9085 = vsel %vm7523, %v9077, %v9079
        %v9087 = vsel %vm7523, %v9054, 0
        %v9089 = vsel %vm7527, %v9080, 0
        %v9091 = vsel %vm7527, %v9081, 0
        %v9093 = vsel %vm7527, %v9082, 0
        %v9095 = vsel %vm7527, %v9083, 0
        %v9097 = vsel %vm7527, %v9084, 0
        %v9099 = vsel %vm7527, %v9085, 0
        %9101 = vmatprep.subr.mxu0 %v9091
        %9102 = vmatpush1.msra.mxu0 %v9089
        %9103 = vmatprep.subr.mxu0 0.0
        %9104 = vmatpush1.msra.mxu0 0.0
        %9105 = vmatprep.subr.mxu0 0.0
        %9106 = vmatpush1.msra.mxu0 0.0
        %9107 = vmatprep.subr.mxu0 0.0
        %9108 = vmatpush1.msra.mxu0 0.0
        %9109 = vmatprep.subr.mxu0 0.0
        %9110 = vmatpush1.msra.mxu0 0.0
        %9111 = vmatprep.subr.mxu0 0.0
        %9112 = vmatpush1.msra.mxu0 0.0
        %9113 = vmatprep.subr.mxu0 0.0
        %9114 = vmatpush1.msra.mxu0 0.0
        %9115 = vmatprep.subr.mxu0 0.0
        %9116 = vmatpush1.msra.mxu0 0.0
        %9117 = vmatprep.subr.mxu0 0.0
        %9118 = vmatpush1.msra.mxu0 0.0
        %9119 = vmatprep.subr.mxu0 0.0
        %9120 = vmatpush1.msra.mxu0 0.0
        %9121 = vmatprep.subr.mxu0 0.0
        %9122 = vmatpush1.msra.mxu0 0.0
        %9123 = vmatprep.subr.mxu0 0.0
        %9124 = vmatpush1.msra.mxu0 0.0
        %9125 = vmatprep.subr.mxu0 0.0
        %9126 = vmatpush1.msra.mxu0 0.0
        %9127 = vmatprep.subr.mxu0 0.0
        %9128 = vmatpush1.msra.mxu0 0.0
        %9129 = vmatprep.subr.mxu0 0.0
        %9130 = vmatpush1.msra.mxu0 0.0
        %9131 = vmatprep.subr.mxu0 0.0
        %9132 = vmatpush1.msra.mxu0 0.0
        %9133 = vmatprep.subr.mxu0 0.0
        %9134 = vmatpush1.msra.mxu0 0.0
        %9135 = vmatprep.subr.mxu0 0.0
        %9136 = vmatpush1.msra.mxu0 0.0
        %9137 = vmatprep.subr.mxu0 0.0
        %9138 = vmatpush1.msra.mxu0 0.0
        %9139 = vmatprep.subr.mxu0 0.0
        %9140 = vmatpush1.msra.mxu0 0.0
        %9141 = vmatprep.subr.mxu0 0.0
        %9142 = vmatpush1.msra.mxu0 0.0
        %9143 = vmatprep.subr.mxu0 0.0
        %9144 = vmatpush1.msra.mxu0 0.0
        %9145 = vmatprep.subr.mxu0 0.0
        %9146 = vmatpush1.msra.mxu0 0.0
        %9147 = vmatprep.subr.mxu0 0.0
        %9148 = vmatpush1.msra.mxu0 0.0
        %9149 = vmatprep.subr.mxu0 0.0
        %9150 = vmatpush1.msra.mxu0 0.0
        %9151 = vmatprep.subr.mxu0 0.0
        %9152 = vmatpush1.msra.mxu0 0.0
        %9153 = vmatprep.subr.mxu0 0.0
        %9154 = vmatpush1.msra.mxu0 0.0
        %9155 = vmatprep.subr.mxu0 0.0
        %9156 = vmatpush1.msra.mxu0 0.0
        %9157 = vmatprep.subr.mxu0 0.0
        %9158 = vmatpush1.msra.mxu0 0.0
        %9159 = vmatprep.subr.mxu0 0.0
        %9160 = vmatpush1.msra.mxu0 0.0
        %9161 = vmatprep.subr.mxu0 0.0
        %9162 = vmatpush1.msra.mxu0 0.0
        %9163 = vmatprep.subr.mxu0 0.0
        %9164 = vmatpush1.msra.mxu0 0.0
        %9165 = vmatprep.mubr.f32.mxu0 0.0
        %9166 = vmatmul.mubr.f32.gmra.mrb[0].mxu0 %v9087
        %v9167 = vpop.f32.mrb[0].mxu0
        %v9168 = vadd.f32 0.0, %v9167
        %v9169 = vpop.f32.mrb[0].mxu0
        %v9170 = vadd.f32 0.0, %v9169
        %9171 = vdwg.mxu0
        %9172 = vmatprep.subr.mxu0 %v9095
        %9173 = vmatpush1.msra.mxu0 %v9093
        %9174 = vmatprep.subr.mxu0 0.0
        %9175 = vmatpush1.msra.mxu0 0.0
        %9176 = vmatprep.subr.mxu0 0.0
        %9177 = vmatpush1.msra.mxu0 0.0
        %9178 = vmatprep.subr.mxu0 0.0
        %9179 = vmatpush1.msra.mxu0 0.0
        %9180 = vmatprep.subr.mxu0 0.0
        %9181 = vmatpush1.msra.mxu0 0.0
        %9182 = vmatprep.subr.mxu0 0.0
        %9183 = vmatpush1.msra.mxu0 0.0
        %9184 = vmatprep.subr.mxu0 0.0
        %9185 = vmatpush1.msra.mxu0 0.0
        %9186 = vmatprep.subr.mxu0 0.0
        %9187 = vmatpush1.msra.mxu0 0.0
        %9188 = vmatprep.subr.mxu0 0.0
        %9189 = vmatpush1.msra.mxu0 0.0
        %9190 = vmatprep.subr.mxu0 0.0
        %9191 = vmatpush1.msra.mxu0 0.0
        %9192 = vmatprep.subr.mxu0 0.0
        %9193 = vmatpush1.msra.mxu0 0.0
        %9194 = vmatprep.subr.mxu0 0.0
        %9195 = vmatpush1.msra.mxu0 0.0
        %9196 = vmatprep.subr.mxu0 0.0
        %9197 = vmatpush1.msra.mxu0 0.0
        %9198 = vmatprep.subr.mxu0 0.0
        %9199 = vmatpush1.msra.mxu0 0.0
        %9200 = vmatprep.subr.mxu0 0.0
        %9201 = vmatpush1.msra.mxu0 0.0
        %9202 = vmatprep.subr.mxu0 0.0
        %9203 = vmatpush1.msra.mxu0 0.0
        %9204 = vmatprep.subr.mxu0 0.0
        %9205 = vmatpush1.msra.mxu0 0.0
        %9206 = vmatprep.subr.mxu0 0.0
        %9207 = vmatpush1.msra.mxu0 0.0
        %9208 = vmatprep.subr.mxu0 0.0
        %9209 = vmatpush1.msra.mxu0 0.0
        %9210 = vmatprep.subr.mxu0 0.0
        %9211 = vmatpush1.msra.mxu0 0.0
        %9212 = vmatprep.subr.mxu0 0.0
        %9213 = vmatpush1.msra.mxu0 0.0
        %9214 = vmatprep.subr.mxu0 0.0
        %9215 = vmatpush1.msra.mxu0 0.0
        %9216 = vmatprep.subr.mxu0 0.0
        %9217 = vmatpush1.msra.mxu0 0.0
        %9218 = vmatprep.subr.mxu0 0.0
        %9219 = vmatpush1.msra.mxu0 0.0
        %9220 = vmatprep.subr.mxu0 0.0
        %9221 = vmatpush1.msra.mxu0 0.0
        %9222 = vmatprep.subr.mxu0 0.0
        %9223 = vmatpush1.msra.mxu0 0.0
        %9224 = vmatprep.subr.mxu0 0.0
        %9225 = vmatpush1.msra.mxu0 0.0
        %9226 = vmatprep.subr.mxu0 0.0
        %9227 = vmatpush1.msra.mxu0 0.0
        %9228 = vmatprep.subr.mxu0 0.0
        %9229 = vmatpush1.msra.mxu0 0.0
        %9230 = vmatprep.subr.mxu0 0.0
        %9231 = vmatpush1.msra.mxu0 0.0
        %9232 = vmatprep.subr.mxu0 0.0
        %9233 = vmatpush1.msra.mxu0 0.0
        %9234 = vmatprep.subr.mxu0 0.0
        %9235 = vmatpush1.msra.mxu0 0.0
        %9236 = vmatprep.mubr.f32.mxu0 0.0
        %9237 = vmatmul.mubr.f32.gmra.mrb[0].mxu0 %v9087
        %v9238 = vpop.f32.mrb[0].mxu0
        %v9239 = vadd.f32 0.0, %v9238
        %v9240 = vpop.f32.mrb[0].mxu0
        %v9241 = vadd.f32 0.0, %v9240
        %9242 = vdwg.mxu0
        %9243 = vmatprep.subr.mxu0 %v9099
        %9244 = vmatpush1.msra.mxu0 %v9097
        %9245 = vmatprep.subr.mxu0 0.0
        %9246 = vmatpush1.msra.mxu0 0.0
        %9247 = vmatprep.subr.mxu0 0.0
        %9248 = vmatpush1.msra.mxu0 0.0
        %9249 = vmatprep.subr.mxu0 0.0
        %9250 = vmatpush1.msra.mxu0 0.0
        %9251 = vmatprep.subr.mxu0 0.0
        %9252 = vmatpush1.msra.mxu0 0.0
        %9253 = vmatprep.subr.mxu0 0.0
        %9254 = vmatpush1.msra.mxu0 0.0
        %9255 = vmatprep.subr.mxu0 0.0
        %9256 = vmatpush1.msra.mxu0 0.0
        %9257 = vmatprep.subr.mxu0 0.0
        %9258 = vmatpush1.msra.mxu0 0.0
        %9259 = vmatprep.subr.mxu0 0.0
        %9260 = vmatpush1.msra.mxu0 0.0
        %9261 = vmatprep.subr.mxu0 0.0
        %9262 = vmatpush1.msra.mxu0 0.0
        %9263 = vmatprep.subr.mxu0 0.0
        %9264 = vmatpush1.msra.mxu0 0.0
        %9265 = vmatprep.subr.mxu0 0.0
        %9266 = vmatpush1.msra.mxu0 0.0
        %9267 = vmatprep.subr.mxu0 0.0
        %9268 = vmatpush1.msra.mxu0 0.0
        %9269 = vmatprep.subr.mxu0 0.0
        %9270 = vmatpush1.msra.mxu0 0.0
        %9271 = vmatprep.subr.mxu0 0.0
        %9272 = vmatpush1.msra.mxu0 0.0
        %9273 = vmatprep.subr.mxu0 0.0
        %9274 = vmatpush1.msra.mxu0 0.0
        %9275 = vmatprep.subr.mxu0 0.0
        %9276 = vmatpush1.msra.mxu0 0.0
        %9277 = vmatprep.subr.mxu0 0.0
        %9278 = vmatpush1.msra.mxu0 0.0
        %9279 = vmatprep.subr.mxu0 0.0
        %9280 = vmatpush1.msra.mxu0 0.0
        %9281 = vmatprep.subr.mxu0 0.0
        %9282 = vmatpush1.msra.mxu0 0.0
        %9283 = vmatprep.subr.mxu0 0.0
        %9284 = vmatpush1.msra.mxu0 0.0
        %9285 = vmatprep.subr.mxu0 0.0
        %9286 = vmatpush1.msra.mxu0 0.0
        %9287 = vmatprep.subr.mxu0 0.0
        %9288 = vmatpush1.msra.mxu0 0.0
        %9289 = vmatprep.subr.mxu0 0.0
        %9290 = vmatpush1.msra.mxu0 0.0
        %9291 = vmatprep.subr.mxu0 0.0
        %9292 = vmatpush1.msra.mxu0 0.0
        %9293 = vmatprep.subr.mxu0 0.0
        %9294 = vmatpush1.msra.mxu0 0.0
        %9295 = vmatprep.subr.mxu0 0.0
        %9296 = vmatpush1.msra.mxu0 0.0
        %9297 = vmatprep.subr.mxu0 0.0
        %9298 = vmatpush1.msra.mxu0 0.0
        %9299 = vmatprep.subr.mxu0 0.0
        %9300 = vmatpush1.msra.mxu0 0.0
        %9301 = vmatprep.subr.mxu0 0.0
        %9302 = vmatpush1.msra.mxu0 0.0
        %9303 = vmatprep.subr.mxu0 0.0
        %9304 = vmatpush1.msra.mxu0 0.0
        %9305 = vmatprep.subr.mxu0 0.0
        %9306 = vmatpush1.msra.mxu0 0.0
        %9307 = vmatprep.mubr.f32.mxu0 0.0
        %9308 = vmatmul.mubr.f32.gmra.mrb[0].mxu0 %v9087
        %v9309 = vpop.f32.mrb[0].mxu0
        %v9310 = vadd.f32 0.0, %v9309
        %v9311 = vpop.f32.mrb[0].mxu0
        %v9312 = vadd.f32 0.0, %v9311
        %9313 = vdwg.mxu0
        %v9314 = vadd.f32 %v9047, %v9168
        %v9315 = vadd.f32 %v9048, %v9170
        %v9316 = vadd.f32 %v9049, %v9239
        %v9317 = vadd.f32 %v9050, %v9241
        %v9318 = vadd.f32 %v9051, %v9310
        %v9319 = vadd.f32 %v9052, %v9312
        %s9320 = scalar_lea.vmem %s298, 28
        %v9321 = vld [vmem:[%s9320] sm:$0xf]
        %v9322 = vld [vmem:[%s0 + $0x8] sm:$0xff]
        %v9323 = vld [vmem:[%s0 + $0x10] sm:$0xff]
        %v9324 = vld [vmem:[%s0 + $0x18] sm:$0xff]
        %v9325 = vld [vmem:[%s0 + $0x20] sm:$0xf]
        %v9330 = vcombine.high %v9322, %v9322
        %v9331 = vcombine.high %v9323, %v9323
        %v9332 = vcombine.high %v9324, %v9324
        %9333 = vrot.lane.b32.xlu0 %v9322, 125
        %v9334 = vpop.permute.xlu0 %9333
        %9335 = vrot.lane.b32.xlu0 %v9330, 125
        %v9336 = vpop.permute.xlu0 %9335
        %9337 = vrot.lane.b32.xlu0 %v9323, 125
        %v9338 = vpop.permute.xlu0 %9337
        %9339 = vrot.lane.b32.xlu0 %v9331, 125
        %v9340 = vpop.permute.xlu0 %9339
        %9341 = vrot.lane.b32.xlu0 %v9324, 125
        %v9342 = vpop.permute.xlu0 %9341
        %9343 = vrot.lane.b32.xlu0 %v9332, 125
        %v9344 = vpop.permute.xlu0 %9343
        %9345 = vrot.lane.b32.xlu0 %v9325, 125
        %v9346 = vpop.permute.xlu0 %9345
        %vm9347 = vcmask 1022976
        %v9348 = vsel %vm9347, %v9334, %v9336
        %v9349 = vsel %vm9347, %v9336, %v9338
        %v9350 = vsel %vm9347, %v9338, %v9340
        %v9351 = vsel %vm9347, %v9340, %v9342
        %v9352 = vsel %vm9347, %v9342, %v9344
        %v9353 = vsel %vm9347, %v9344, %v9346
        %v9355 = vsel %vm7523, %v9321, 0
        %v9357 = vsel %vm7527, %v9348, 0
        %v9359 = vsel %vm7527, %v9349, 0
        %v9361 = vsel %vm7527, %v9350, 0
        %v9363 = vsel %vm7527, %v9351, 0
        %v9365 = vsel %vm7527, %v9352, 0
        %v9367 = vsel %vm7527, %v9353, 0
        %9369 = vmatprep.subr.mxu0 %v9359
        %9370 = vmatpush1.msra.mxu0 %v9357
        %9371 = vmatprep.subr.mxu0 0.0
        %9372 = vmatpush1.msra.mxu0 0.0
        %9373 = vmatprep.subr.mxu0 0.0
        %9374 = vmatpush1.msra.mxu0 0.0
        %9375 = vmatprep.subr.mxu0 0.0
        %9376 = vmatpush1.msra.mxu0 0.0
        %9377 = vmatprep.subr.mxu0 0.0
        %9378 = vmatpush1.msra.mxu0 0.0
        %9379 = vmatprep.subr.mxu0 0.0
        %9380 = vmatpush1.msra.mxu0 0.0
        %9381 = vmatprep.subr.mxu0 0.0
        %9382 = vmatpush1.msra.mxu0 0.0
        %9383 = vmatprep.subr.mxu0 0.0
        %9384 = vmatpush1.msra.mxu0 0.0
        %9385 = vmatprep.subr.mxu0 0.0
        %9386 = vmatpush1.msra.mxu0 0.0
        %9387 = vmatprep.subr.mxu0 0.0
        %9388 = vmatpush1.msra.mxu0 0.0
        %9389 = vmatprep.subr.mxu0 0.0
        %9390 = vmatpush1.msra.mxu0 0.0
        %9391 = vmatprep.subr.mxu0 0.0
        %9392 = vmatpush1.msra.mxu0 0.0
        %9393 = vmatprep.subr.mxu0 0.0
        %9394 = vmatpush1.msra.mxu0 0.0
        %9395 = vmatprep.subr.mxu0 0.0
        %9396 = vmatpush1.msra.mxu0 0.0
        %9397 = vmatprep.subr.mxu0 0.0
        %9398 = vmatpush1.msra.mxu0 0.0
        %9399 = vmatprep.subr.mxu0 0.0
        %9400 = vmatpush1.msra.mxu0 0.0
        %9401 = vmatprep.subr.mxu0 0.0
        %9402 = vmatpush1.msra.mxu0 0.0
        %9403 = vmatprep.subr.mxu0 0.0
        %9404 = vmatpush1.msra.mxu0 0.0
        %9405 = vmatprep.subr.mxu0 0.0
        %9406 = vmatpush1.msra.mxu0 0.0
        %9407 = vmatprep.subr.mxu0 0.0
        %9408 = vmatpush1.msra.mxu0 0.0
        %9409 = vmatprep.subr.mxu0 0.0
        %9410 = vmatpush1.msra.mxu0 0.0
        %9411 = vmatprep.subr.mxu0 0.0
        %9412 = vmatpush1.msra.mxu0 0.0
        %9413 = vmatprep.subr.mxu0 0.0
        %9414 = vmatpush1.msra.mxu0 0.0
        %9415 = vmatprep.subr.mxu0 0.0
        %9416 = vmatpush1.msra.mxu0 0.0
        %9417 = vmatprep.subr.mxu0 0.0
        %9418 = vmatpush1.msra.mxu0 0.0
        %9419 = vmatprep.subr.mxu0 0.0
        %9420 = vmatpush1.msra.mxu0 0.0
        %9421 = vmatprep.subr.mxu0 0.0
        %9422 = vmatpush1.msra.mxu0 0.0
        %9423 = vmatprep.subr.mxu0 0.0
        %9424 = vmatpush1.msra.mxu0 0.0
        %9425 = vmatprep.subr.mxu0 0.0
        %9426 = vmatpush1.msra.mxu0 0.0
        %9427 = vmatprep.subr.mxu0 0.0
        %9428 = vmatpush1.msra.mxu0 0.0
        %9429 = vmatprep.subr.mxu0 0.0
        %9430 = vmatpush1.msra.mxu0 0.0
        %9431 = vmatprep.subr.mxu0 0.0
        %9432 = vmatpush1.msra.mxu0 0.0
        %9433 = vmatprep.mubr.f32.mxu0 0.0
        %9434 = vmatmul.mubr.f32.gmra.mrb[0].mxu0 %v9355
        %v9435 = vpop.f32.mrb[0].mxu0
        %v9436 = vadd.f32 0.0, %v9435
        %v9437 = vpop.f32.mrb[0].mxu0
        %v9438 = vadd.f32 0.0, %v9437
        %9439 = vdwg.mxu0
        %9440 = vmatprep.subr.mxu0 %v9363
        %9441 = vmatpush1.msra.mxu0 %v9361
        %9442 = vmatprep.subr.mxu0 0.0
        %9443 = vmatpush1.msra.mxu0 0.0
        %9444 = vmatprep.subr.mxu0 0.0
        %9445 = vmatpush1.msra.mxu0 0.0
        %9446 = vmatprep.subr.mxu0 0.0
        %9447 = vmatpush1.msra.mxu0 0.0
        %9448 = vmatprep.subr.mxu0 0.0
        %9449 = vmatpush1.msra.mxu0 0.0
        %9450 = vmatprep.subr.mxu0 0.0
        %9451 = vmatpush1.msra.mxu0 0.0
        %9452 = vmatprep.subr.mxu0 0.0
        %9453 = vmatpush1.msra.mxu0 0.0
        %9454 = vmatprep.subr.mxu0 0.0
        %9455 = vmatpush1.msra.mxu0 0.0
        %9456 = vmatprep.subr.mxu0 0.0
        %9457 = vmatpush1.msra.mxu0 0.0
        %9458 = vmatprep.subr.mxu0 0.0
        %9459 = vmatpush1.msra.mxu0 0.0
        %9460 = vmatprep.subr.mxu0 0.0
        %9461 = vmatpush1.msra.mxu0 0.0
        %9462 = vmatprep.subr.mxu0 0.0
        %9463 = vmatpush1.msra.mxu0 0.0
        %9464 = vmatprep.subr.mxu0 0.0
        %9465 = vmatpush1.msra.mxu0 0.0
        %9466 = vmatprep.subr.mxu0 0.0
        %9467 = vmatpush1.msra.mxu0 0.0
        %9468 = vmatprep.subr.mxu0 0.0
        %9469 = vmatpush1.msra.mxu0 0.0
        %9470 = vmatprep.subr.mxu0 0.0
        %9471 = vmatpush1.msra.mxu0 0.0
        %9472 = vmatprep.subr.mxu0 0.0
        %9473 = vmatpush1.msra.mxu0 0.0
        %9474 = vmatprep.subr.mxu0 0.0
        %9475 = vmatpush1.msra.mxu0 0.0
        %9476 = vmatprep.subr.mxu0 0.0
        %9477 = vmatpush1.msra.mxu0 0.0
        %9478 = vmatprep.subr.mxu0 0.0
        %9479 = vmatpush1.msra.mxu0 0.0
        %9480 = vmatprep.subr.mxu0 0.0
        %9481 = vmatpush1.msra.mxu0 0.0
        %9482 = vmatprep.subr.mxu0 0.0
        %9483 = vmatpush1.msra.mxu0 0.0
        %9484 = vmatprep.subr.mxu0 0.0
        %9485 = vmatpush1.msra.mxu0 0.0
        %9486 = vmatprep.subr.mxu0 0.0
        %9487 = vmatpush1.msra.mxu0 0.0
        %9488 = vmatprep.subr.mxu0 0.0
        %9489 = vmatpush1.msra.mxu0 0.0
        %9490 = vmatprep.subr.mxu0 0.0
        %9491 = vmatpush1.msra.mxu0 0.0
        %9492 = vmatprep.subr.mxu0 0.0
        %9493 = vmatpush1.msra.mxu0 0.0
        %9494 = vmatprep.subr.mxu0 0.0
        %9495 = vmatpush1.msra.mxu0 0.0
        %9496 = vmatprep.subr.mxu0 0.0
        %9497 = vmatpush1.msra.mxu0 0.0
        %9498 = vmatprep.subr.mxu0 0.0
        %9499 = vmatpush1.msra.mxu0 0.0
        %9500 = vmatprep.subr.mxu0 0.0
        %9501 = vmatpush1.msra.mxu0 0.0
        %9502 = vmatprep.subr.mxu0 0.0
        %9503 = vmatpush1.msra.mxu0 0.0
        %9504 = vmatprep.mubr.f32.mxu0 0.0
        %9505 = vmatmul.mubr.f32.gmra.mrb[0].mxu0 %v9355
        %v9506 = vpop.f32.mrb[0].mxu0
        %v9507 = vadd.f32 0.0, %v9506
        %v9508 = vpop.f32.mrb[0].mxu0
        %v9509 = vadd.f32 0.0, %v9508
        %9510 = vdwg.mxu0
        %9511 = vmatprep.subr.mxu0 %v9367
        %9512 = vmatpush1.msra.mxu0 %v9365
        %9513 = vmatprep.subr.mxu0 0.0
        %9514 = vmatpush1.msra.mxu0 0.0
        %9515 = vmatprep.subr.mxu0 0.0
        %9516 = vmatpush1.msra.mxu0 0.0
        %9517 = vmatprep.subr.mxu0 0.0
        %9518 = vmatpush1.msra.mxu0 0.0
        %9519 = vmatprep.subr.mxu0 0.0
        %9520 = vmatpush1.msra.mxu0 0.0
        %9521 = vmatprep.subr.mxu0 0.0
        %9522 = vmatpush1.msra.mxu0 0.0
        %9523 = vmatprep.subr.mxu0 0.0
        %9524 = vmatpush1.msra.mxu0 0.0
        %9525 = vmatprep.subr.mxu0 0.0
        %9526 = vmatpush1.msra.mxu0 0.0
        %9527 = vmatprep.subr.mxu0 0.0
        %9528 = vmatpush1.msra.mxu0 0.0
        %9529 = vmatprep.subr.mxu0 0.0
        %9530 = vmatpush1.msra.mxu0 0.0
        %9531 = vmatprep.subr.mxu0 0.0
        %9532 = vmatpush1.msra.mxu0 0.0
        %9533 = vmatprep.subr.mxu0 0.0
        %9534 = vmatpush1.msra.mxu0 0.0
        %9535 = vmatprep.subr.mxu0 0.0
        %9536 = vmatpush1.msra.mxu0 0.0
        %9537 = vmatprep.subr.mxu0 0.0
        %9538 = vmatpush1.msra.mxu0 0.0
        %9539 = vmatprep.subr.mxu0 0.0
        %9540 = vmatpush1.msra.mxu0 0.0
        %9541 = vmatprep.subr.mxu0 0.0
        %9542 = vmatpush1.msra.mxu0 0.0
        %9543 = vmatprep.subr.mxu0 0.0
        %9544 = vmatpush1.msra.mxu0 0.0
        %9545 = vmatprep.subr.mxu0 0.0
        %9546 = vmatpush1.msra.mxu0 0.0
        %9547 = vmatprep.subr.mxu0 0.0
        %9548 = vmatpush1.msra.mxu0 0.0
        %9549 = vmatprep.subr.mxu0 0.0
        %9550 = vmatpush1.msra.mxu0 0.0
        %9551 = vmatprep.subr.mxu0 0.0
        %9552 = vmatpush1.msra.mxu0 0.0
        %9553 = vmatprep.subr.mxu0 0.0
        %9554 = vmatpush1.msra.mxu0 0.0
        %9555 = vmatprep.subr.mxu0 0.0
        %9556 = vmatpush1.msra.mxu0 0.0
        %9557 = vmatprep.subr.mxu0 0.0
        %9558 = vmatpush1.msra.mxu0 0.0
        %9559 = vmatprep.subr.mxu0 0.0
        %9560 = vmatpush1.msra.mxu0 0.0
        %9561 = vmatprep.subr.mxu0 0.0
        %9562 = vmatpush1.msra.mxu0 0.0
        %9563 = vmatprep.subr.mxu0 0.0
        %9564 = vmatpush1.msra.mxu0 0.0
        %9565 = vmatprep.subr.mxu0 0.0
        %9566 = vmatpush1.msra.mxu0 0.0
        %9567 = vmatprep.subr.mxu0 0.0
        %9568 = vmatpush1.msra.mxu0 0.0
        %9569 = vmatprep.subr.mxu0 0.0
        %9570 = vmatpush1.msra.mxu0 0.0
        %9571 = vmatprep.subr.mxu0 0.0
        %9572 = vmatpush1.msra.mxu0 0.0
        %9573 = vmatprep.subr.mxu0 0.0
        %9574 = vmatpush1.msra.mxu0 0.0
        %9575 = vmatprep.mubr.f32.mxu0 0.0
        %9576 = vmatmul.mubr.f32.gmra.mrb[0].mxu0 %v9355
        %v9577 = vpop.f32.mrb[0].mxu0
        %v9578 = vadd.f32 0.0, %v9577
        %v9579 = vpop.f32.mrb[0].mxu0
        %v9580 = vadd.f32 0.0, %v9579
        %9581 = vdwg.mxu0
        %v9582 = vadd.f32 %v9314, %v9436
        %v9583 = vadd.f32 %v9315, %v9438
        %v9584 = vadd.f32 %v9316, %v9507
        %v9585 = vadd.f32 %v9317, %v9509
        %v9586 = vadd.f32 %v9318, %v9578
        %v9587 = vadd.f32 %v9319, %v9580
        %s9588 = scalar_lea.vmem %s298, 32
        %v9589 = vld [vmem:[%s9588] sm:$0xf]
        %v9590 = vld [vmem:[%s0 + $0x8] sm:$0xff]
        %v9591 = vld [vmem:[%s0 + $0x10] sm:$0xff]
        %v9592 = vld [vmem:[%s0 + $0x18] sm:$0xff]
        %v9593 = vld [vmem:[%s0 + $0x20] sm:$0xf]
        %v9598 = vcombine.high %v9590, %v9590
        %v9599 = vcombine.high %v9591, %v9591
        %v9600 = vcombine.high %v9592, %v9592
        %9601 = vrot.lane.b32.xlu0 %v9590, 118
        %v9602 = vpop.permute.xlu0 %9601
        %9603 = vrot.lane.b32.xlu0 %v9598, 118
        %v9604 = vpop.permute.xlu0 %9603
        %9605 = vrot.lane.b32.xlu0 %v9591, 118
        %v9606 = vpop.permute.xlu0 %9605
        %9607 = vrot.lane.b32.xlu0 %v9599, 118
        %v9608 = vpop.permute.xlu0 %9607
        %9609 = vrot.lane.b32.xlu0 %v9592, 118
        %v9610 = vpop.permute.xlu0 %9609
        %9611 = vrot.lane.b32.xlu0 %v9600, 118
        %v9612 = vpop.permute.xlu0 %9611
        %9613 = vrot.lane.b32.xlu0 %v9593, 118
        %v9614 = vpop.permute.xlu0 %9613
        %vm9615 = vcmask 965632
        %v9616 = vsel %vm9615, %v9602, %v9604
        %v9617 = vsel %vm9615, %v9604, %v9606
        %v9618 = vsel %vm9615, %v9606, %v9608
        %v9619 = vsel %vm9615, %v9608, %v9610
        %v9620 = vsel %vm9615, %v9610, %v9612
        %v9621 = vsel %vm9615, %v9612, %v9614
        %v9623 = vsel %vm7523, %v9589, 0
        %v9625 = vsel %vm7527, %v9616, 0
        %v9627 = vsel %vm7527, %v9617, 0
        %v9629 = vsel %vm7527, %v9618, 0
        %v9631 = vsel %vm7527, %v9619, 0
        %v9633 = vsel %vm7527, %v9620, 0
        %v9635 = vsel %vm7527, %v9621, 0
        %9637 = vmatprep.subr.mxu0 %v9627
        %9638 = vmatpush1.msra.mxu0 %v9625
        %9639 = vmatprep.subr.mxu0 0.0
        %9640 = vmatpush1.msra.mxu0 0.0
        %9641 = vmatprep.subr.mxu0 0.0
        %9642 = vmatpush1.msra.mxu0 0.0
        %9643 = vmatprep.subr.mxu0 0.0
        %9644 = vmatpush1.msra.mxu0 0.0
        %9645 = vmatprep.subr.mxu0 0.0
        %9646 = vmatpush1.msra.mxu0 0.0
        %9647 = vmatprep.subr.mxu0 0.0
        %9648 = vmatpush1.msra.mxu0 0.0
        %9649 = vmatprep.subr.mxu0 0.0
        %9650 = vmatpush1.msra.mxu0 0.0
        %9651 = vmatprep.subr.mxu0 0.0
        %9652 = vmatpush1.msra.mxu0 0.0
        %9653 = vmatprep.subr.mxu0 0.0
        %9654 = vmatpush1.msra.mxu0 0.0
        %9655 = vmatprep.subr.mxu0 0.0
        %9656 = vmatpush1.msra.mxu0 0.0
        %9657 = vmatprep.subr.mxu0 0.0
        %9658 = vmatpush1.msra.mxu0 0.0
        %9659 = vmatprep.subr.mxu0 0.0
        %9660 = vmatpush1.msra.mxu0 0.0
        %9661 = vmatprep.subr.mxu0 0.0
        %9662 = vmatpush1.msra.mxu0 0.0
        %9663 = vmatprep.subr.mxu0 0.0
        %9664 = vmatpush1.msra.mxu0 0.0
        %9665 = vmatprep.subr.mxu0 0.0
        %9666 = vmatpush1.msra.mxu0 0.0
        %9667 = vmatprep.subr.mxu0 0.0
        %9668 = vmatpush1.msra.mxu0 0.0
        %9669 = vmatprep.subr.mxu0 0.0
        %9670 = vmatpush1.msra.mxu0 0.0
        %9671 = vmatprep.subr.mxu0 0.0
        %9672 = vmatpush1.msra.mxu0 0.0
        %9673 = vmatprep.subr.mxu0 0.0
        %9674 = vmatpush1.msra.mxu0 0.0
        %9675 = vmatprep.subr.mxu0 0.0
        %9676 = vmatpush1.msra.mxu0 0.0
        %9677 = vmatprep.subr.mxu0 0.0
        %9678 = vmatpush1.msra.mxu0 0.0
        %9679 = vmatprep.subr.mxu0 0.0
        %9680 = vmatpush1.msra.mxu0 0.0
        %9681 = vmatprep.subr.mxu0 0.0
        %9682 = vmatpush1.msra.mxu0 0.0
        %9683 = vmatprep.subr.mxu0 0.0
        %9684 = vmatpush1.msra.mxu0 0.0
        %9685 = vmatprep.subr.mxu0 0.0
        %9686 = vmatpush1.msra.mxu0 0.0
        %9687 = vmatprep.subr.mxu0 0.0
        %9688 = vmatpush1.msra.mxu0 0.0
        %9689 = vmatprep.subr.mxu0 0.0
        %9690 = vmatpush1.msra.mxu0 0.0
        %9691 = vmatprep.subr.mxu0 0.0
        %9692 = vmatpush1.msra.mxu0 0.0
        %9693 = vmatprep.subr.mxu0 0.0
        %9694 = vmatpush1.msra.mxu0 0.0
        %9695 = vmatprep.subr.mxu0 0.0
        %9696 = vmatpush1.msra.mxu0 0.0
        %9697 = vmatprep.subr.mxu0 0.0
        %9698 = vmatpush1.msra.mxu0 0.0
        %9699 = vmatprep.subr.mxu0 0.0
        %9700 = vmatpush1.msra.mxu0 0.0
        %9701 = vmatprep.mubr.f32.mxu0 0.0
        %9702 = vmatmul.mubr.f32.gmra.mrb[0].mxu0 %v9623
        %v9703 = vpop.f32.mrb[0].mxu0
        %v9704 = vadd.f32 0.0, %v9703
        %v9705 = vpop.f32.mrb[0].mxu0
        %v9706 = vadd.f32 0.0, %v9705
        %9707 = vdwg.mxu0
        %9708 = vmatprep.subr.mxu0 %v9631
        %9709 = vmatpush1.msra.mxu0 %v9629
        %9710 = vmatprep.subr.mxu0 0.0
        %9711 = vmatpush1.msra.mxu0 0.0
        %9712 = vmatprep.subr.mxu0 0.0
        %9713 = vmatpush1.msra.mxu0 0.0
        %9714 = vmatprep.subr.mxu0 0.0
        %9715 = vmatpush1.msra.mxu0 0.0
        %9716 = vmatprep.subr.mxu0 0.0
        %9717 = vmatpush1.msra.mxu0 0.0
        %9718 = vmatprep.subr.mxu0 0.0
        %9719 = vmatpush1.msra.mxu0 0.0
        %9720 = vmatprep.subr.mxu0 0.0
        %9721 = vmatpush1.msra.mxu0 0.0
        %9722 = vmatprep.subr.mxu0 0.0
        %9723 = vmatpush1.msra.mxu0 0.0
        %9724 = vmatprep.subr.mxu0 0.0
        %9725 = vmatpush1.msra.mxu0 0.0
        %9726 = vmatprep.subr.mxu0 0.0
        %9727 = vmatpush1.msra.mxu0 0.0
        %9728 = vmatprep.subr.mxu0 0.0
        %9729 = vmatpush1.msra.mxu0 0.0
        %9730 = vmatprep.subr.mxu0 0.0
        %9731 = vmatpush1.msra.mxu0 0.0
        %9732 = vmatprep.subr.mxu0 0.0
        %9733 = vmatpush1.msra.mxu0 0.0
        %9734 = vmatprep.subr.mxu0 0.0
        %9735 = vmatpush1.msra.mxu0 0.0
        %9736 = vmatprep.subr.mxu0 0.0
        %9737 = vmatpush1.msra.mxu0 0.0
        %9738 = vmatprep.subr.mxu0 0.0
        %9739 = vmatpush1.msra.mxu0 0.0
        %9740 = vmatprep.subr.mxu0 0.0
        %9741 = vmatpush1.msra.mxu0 0.0
        %9742 = vmatprep.subr.mxu0 0.0
        %9743 = vmatpush1.msra.mxu0 0.0
        %9744 = vmatprep.subr.mxu0 0.0
        %9745 = vmatpush1.msra.mxu0 0.0
        %9746 = vmatprep.subr.mxu0 0.0
        %9747 = vmatpush1.msra.mxu0 0.0
        %9748 = vmatprep.subr.mxu0 0.0
        %9749 = vmatpush1.msra.mxu0 0.0
        %9750 = vmatprep.subr.mxu0 0.0
        %9751 = vmatpush1.msra.mxu0 0.0
        %9752 = vmatprep.subr.mxu0 0.0
        %9753 = vmatpush1.msra.mxu0 0.0
        %9754 = vmatprep.subr.mxu0 0.0
        %9755 = vmatpush1.msra.mxu0 0.0
        %9756 = vmatprep.subr.mxu0 0.0
        %9757 = vmatpush1.msra.mxu0 0.0
        %9758 = vmatprep.subr.mxu0 0.0
        %9759 = vmatpush1.msra.mxu0 0.0
        %9760 = vmatprep.subr.mxu0 0.0
        %9761 = vmatpush1.msra.mxu0 0.0
        %9762 = vmatprep.subr.mxu0 0.0
        %9763 = vmatpush1.msra.mxu0 0.0
        %9764 = vmatprep.subr.mxu0 0.0
        %9765 = vmatpush1.msra.mxu0 0.0
        %9766 = vmatprep.subr.mxu0 0.0
        %9767 = vmatpush1.msra.mxu0 0.0
        %9768 = vmatprep.subr.mxu0 0.0
        %9769 = vmatpush1.msra.mxu0 0.0
        %9770 = vmatprep.subr.mxu0 0.0
        %9771 = vmatpush1.msra.mxu0 0.0
        %9772 = vmatprep.mubr.f32.mxu0 0.0
        %9773 = vmatmul.mubr.f32.gmra.mrb[0].mxu0 %v9623
        %v9774 = vpop.f32.mrb[0].mxu0
        %v9775 = vadd.f32 0.0, %v9774
        %v9776 = vpop.f32.mrb[0].mxu0
        %v9777 = vadd.f32 0.0, %v9776
        %9778 = vdwg.mxu0
        %9779 = vmatprep.subr.mxu0 %v9635
        %9780 = vmatpush1.msra.mxu0 %v9633
        %9781 = vmatprep.subr.mxu0 0.0
        %9782 = vmatpush1.msra.mxu0 0.0
        %9783 = vmatprep.subr.mxu0 0.0
        %9784 = vmatpush1.msra.mxu0 0.0
        %9785 = vmatprep.subr.mxu0 0.0
        %9786 = vmatpush1.msra.mxu0 0.0
        %9787 = vmatprep.subr.mxu0 0.0
        %9788 = vmatpush1.msra.mxu0 0.0
        %9789 = vmatprep.subr.mxu0 0.0
        %9790 = vmatpush1.msra.mxu0 0.0
        %9791 = vmatprep.subr.mxu0 0.0
        %9792 = vmatpush1.msra.mxu0 0.0
        %9793 = vmatprep.subr.mxu0 0.0
        %9794 = vmatpush1.msra.mxu0 0.0
        %9795 = vmatprep.subr.mxu0 0.0
        %9796 = vmatpush1.msra.mxu0 0.0
        %9797 = vmatprep.subr.mxu0 0.0
        %9798 = vmatpush1.msra.mxu0 0.0
        %9799 = vmatprep.subr.mxu0 0.0
        %9800 = vmatpush1.msra.mxu0 0.0
        %9801 = vmatprep.subr.mxu0 0.0
        %9802 = vmatpush1.msra.mxu0 0.0
        %9803 = vmatprep.subr.mxu0 0.0
        %9804 = vmatpush1.msra.mxu0 0.0
        %9805 = vmatprep.subr.mxu0 0.0
        %9806 = vmatpush1.msra.mxu0 0.0
        %9807 = vmatprep.subr.mxu0 0.0
        %9808 = vmatpush1.msra.mxu0 0.0
        %9809 = vmatprep.subr.mxu0 0.0
        %9810 = vmatpush1.msra.mxu0 0.0
        %9811 = vmatprep.subr.mxu0 0.0
        %9812 = vmatpush1.msra.mxu0 0.0
        %9813 = vmatprep.subr.mxu0 0.0
        %9814 = vmatpush1.msra.mxu0 0.0
        %9815 = vmatprep.subr.mxu0 0.0
        %9816 = vmatpush1.msra.mxu0 0.0
        %9817 = vmatprep.subr.mxu0 0.0
        %9818 = vmatpush1.msra.mxu0 0.0
        %9819 = vmatprep.subr.mxu0 0.0
        %9820 = vmatpush1.msra.mxu0 0.0
        %9821 = vmatprep.subr.mxu0 0.0
        %9822 = vmatpush1.msra.mxu0 0.0
        %9823 = vmatprep.subr.mxu0 0.0
        %9824 = vmatpush1.msra.mxu0 0.0
        %9825 = vmatprep.subr.mxu0 0.0
        %9826 = vmatpush1.msra.mxu0 0.0
        %9827 = vmatprep.subr.mxu0 0.0
        %9828 = vmatpush1.msra.mxu0 0.0
        %9829 = vmatprep.subr.mxu0 0.0
        %9830 = vmatpush1.msra.mxu0 0.0
        %9831 = vmatprep.subr.mxu0 0.0
        %9832 = vmatpush1.msra.mxu0 0.0
        %9833 = vmatprep.subr.mxu0 0.0
        %9834 = vmatpush1.msra.mxu0 0.0
        %9835 = vmatprep.subr.mxu0 0.0
        %9836 = vmatpush1.msra.mxu0 0.0
        %9837 = vmatprep.subr.mxu0 0.0
        %9838 = vmatpush1.msra.mxu0 0.0
        %9839 = vmatprep.subr.mxu0 0.0
        %9840 = vmatpush1.msra.mxu0 0.0
        %9841 = vmatprep.subr.mxu0 0.0
        %9842 = vmatpush1.msra.mxu0 0.0
        %9843 = vmatprep.mubr.f32.mxu0 0.0
        %9844 = vmatmul.mubr.f32.gmra.mrb[0].mxu0 %v9623
        %v9845 = vpop.f32.mrb[0].mxu0
        %v9846 = vadd.f32 0.0, %v9845
        %v9847 = vpop.f32.mrb[0].mxu0
        %v9848 = vadd.f32 0.0, %v9847
        %9849 = vdwg.mxu0
        %v9850 = vadd.f32 %v9582, %v9704
        %v9851 = vadd.f32 %v9583, %v9706
        %v9852 = vadd.f32 %v9584, %v9775
        %v9853 = vadd.f32 %v9585, %v9777
        %v9854 = vadd.f32 %v9586, %v9846
        %v9855 = vadd.f32 %v9587, %v9848
        %v9862 = vcombine.low %v9850, %v9851
        %v9863 = vcombine.low %v9852, %v9853
        %v9864 = vcombine.low %v9854, %v9855
        %9868 = vst [vmem:[#allocation2] sm:$0xff] %v9862
        %9869 = vst [vmem:[#allocation2 + $0x8] sm:$0xff] %v9863
        %9870 = vst [vmem:[#allocation2 + $0x10] sm:$0xff] %v9864
      $region60: #{spatial_attention.2} parent=43 // pred_fallthru
        _
      %v9871 = vld [vmem:[#allocation2] sm:$0xff]
      %v9872 = vld [vmem:[#allocation2 + $0x8] sm:$0xff]
      %v9873 = vld [vmem:[#allocation2 + $0x10] sm:$0xff]
      %v9874 = vld [vmem:[%s314] sm:$0x3f]
      %v9876 = vlaneseq
      %v9877 = vshrl.u32 %v9876, 7
      %v9878 = vsub.s32 0, %v9877
      %v9879 = vrot.slane %v9874, %v9878
      %v9880 = vlaneseq
      %v9881 = vshrl.u32 %v9880, 7
      %v9882 = vsub.s32 1, %v9881
      %v9883 = vrot.slane %v9874, %v9882
      %v9884 = vlaneseq
      %v9885 = vshrl.u32 %v9884, 7
      %v9886 = vsub.s32 2, %v9885
      %v9887 = vrot.slane %v9874, %v9886
      %v9888 = vlaneseq
      %v9889 = vshrl.u32 %v9888, 7
      %v9890 = vsub.s32 3, %v9889
      %v9891 = vrot.slane %v9874, %v9890
      %v9892 = vlaneseq
      %v9893 = vshrl.u32 %v9892, 7
      %v9894 = vsub.s32 4, %v9893
      %v9895 = vrot.slane %v9874, %v9894
      %v9896 = vlaneseq
      %v9897 = vshrl.u32 %v9896, 7
      %v9898 = vsub.s32 5, %v9897
      %v9899 = vrot.slane %v9874, %v9898
      %vm9906 = vcmask 1040384
      %v9907 = vsel %vm9906, %v9879, 0.0
      %v9908 = vsel %vm9906, %v9883, 0.0
      %v9909 = vadd.f32 %v9907, %v9908
      %v9910 = vsel %vm9906, %v9887, 0.0
      %v9911 = vadd.f32 %v9909, %v9910
      %v9912 = vsel %vm9906, %v9891, 0.0
      %v9913 = vadd.f32 %v9911, %v9912
      %v9914 = vsel %vm9906, %v9895, 0.0
      %v9915 = vadd.f32 %v9913, %v9914
      %v9916 = vsel %vm9906, %v9899, 0.0
      %v9917 = vadd.f32 %v9915, %v9916
      %9918 = vadd.xlane.f32.xlu0 %v9917
      %v9919 = vpop.xlane.xlu0 %9918
      %v9920 = vrot.slane %v9919, 4
      %v9921 = vadd.f32 %v9919, %v9920
      %v9922 = vrot.slane %v9921, 2
      %v9923 = vadd.f32 %v9921, %v9922
      %v9924 = vrot.slane %v9923, 1
      %v9925 = vadd.f32 %v9923, %v9924
      %s9926 = vtos %v9925
      %v9927 = vstv %s9926
      %v9928 = vrcp.pop %v9927
      %s9929 = vtos %v9928
      %v9930 = vcombine.low %v9879, %v9883
      %v9931 = vcombine.low %v9887, %v9891
      %v9932 = vcombine.low %v9895, %v9899
      %v9936 = vmul.f32 %v9871, %v9930
      %v9937 = vmul.f32 %v9872, %v9931
      %v9938 = vmul.f32 %v9873, %v9932
      %v9942 = vcombine.high %v9936, %v9936
      %v9943 = vcombine.high %v9937, %v9937
      %v9944 = vcombine.high %v9938, %v9938
      %vm9948 = vcmask 1043456
      %v9949 = vsel %vm9948, %v9936, 0.0
      %v9950 = vsel %vm9948, %v9942, 0.0
      %v9951 = vadd.f32 %v9949, %v9950
      %v9952 = vsel %vm9948, %v9937, 0.0
      %v9953 = vadd.f32 %v9951, %v9952
      %v9954 = vsel %vm9948, %v9943, 0.0
      %v9955 = vadd.f32 %v9953, %v9954
      %v9956 = vsel %vm9948, %v9938, 0.0
      %v9957 = vadd.f32 %v9955, %v9956
      %v9958 = vsel %vm9948, %v9944, 0.0
      %v9959 = vadd.f32 %v9957, %v9958
      %9960 = vadd.xlane.f32.xlu0 %v9959
      %v9961 = vpop.xlane.xlu0 %9960
      %v9962 = vstv %s9929
      %v9963 = vmul.f32 %v9961, %v9962
      %v9964 = vmul.f32 %v9936, %v9871
      %v9965 = vmul.f32 %v9937, %v9872
      %v9966 = vmul.f32 %v9938, %v9873
      %v9970 = vcombine.high %v9964, %v9964
      %v9971 = vcombine.high %v9965, %v9965
      %v9972 = vcombine.high %v9966, %v9966
      %v9976 = vsel %vm9948, %v9964, 0.0
      %v9977 = vsel %vm9948, %v9970, 0.0
      %v9978 = vadd.f32 %v9976, %v9977
      %v9979 = vsel %vm9948, %v9965, 0.0
      %v9980 = vadd.f32 %v9978, %v9979
      %v9981 = vsel %vm9948, %v9971, 0.0
      %v9982 = vadd.f32 %v9980, %v9981
      %v9983 = vsel %vm9948, %v9966, 0.0
      %v9984 = vadd.f32 %v9982, %v9983
      %v9985 = vsel %vm9948, %v9972, 0.0
      %v9986 = vadd.f32 %v9984, %v9985
      %9987 = vadd.xlane.f32.xlu0 %v9986
      %v9988 = vpop.xlane.xlu0 %9987
      %v9989 = vmul.f32 %v9988, %v9962
      %v9990 = vmul.f32 %v9963, %v9963
      %v9991 = vsub.f32 %v9989, %v9990
      %v9992 = vmax.f32 %v9991, 0.0
      %v9993 = vld [vmem:[%s302] sm:$0xf]
      %v9994 = vadd.f32 %v9992, 1e-05
      %v9995 = vrsqrt.pop %v9994
      %v9996 = vmul.f32 %v9993, %v9995
      %v9997 = vld [vmem:[%s306] sm:$0xf]
      %v9998 = vmul.f32 %v9963, %v9996
      %v9999 = vsub.f32 %v9997, %v9998
      %10001 = vset.pattern.permute.xlu0 0
      %10002 = vperm.xlu0 %10001, %v9996
      %v10003 = vpop.permute.xlu0 %10002
      %v10005 = vunpack.c.l.s4 839922192
      %v10006 = vunpack.c.0.s8 %v10005
      %v10007 = vlaneseq
      %v10008 = vshrl.u32 %v10007, 7
      %v10009 = vsub.s32 %v10006, %v10008
      %v10010 = vrot.slane %v10003, %v10009
      %v10012 = vmul.f32 %v9871, %v10010
      %v10013 = vmul.f32 %v9872, %v10010
      %v10014 = vmul.f32 %v9873, %v10010
      %10016 = vset.pattern.permute.xlu0 0
      %10017 = vperm.xlu0 %10016, %v9999
      %v10018 = vpop.permute.xlu0 %10017
      %v10020 = vunpack.c.l.s4 839922192
      %v10021 = vunpack.c.0.s8 %v10020
      %v10022 = vlaneseq
      %v10023 = vshrl.u32 %v10022, 7
      %v10024 = vsub.s32 %v10021, %v10023
      %v10025 = vrot.slane %v10018, %v10024
      %v10027 = vadd.f32 %v10012, %v10025
      %v10028 = vadd.f32 %v10013, %v10025
      %v10029 = vadd.f32 %v10014, %v10025
      %v10030 = vmax.f32 %v10027, 0.0
      %v10031 = vmax.f32 %v10028, 0.0
      %v10032 = vmax.f32 %v10029, 0.0
      %v10033 = vld [vmem:[%s310] sm:$0xf]
      %v10037 = vcombine.high %v10030, %v10030
      %v10038 = vcombine.high %v10031, %v10031
      %v10039 = vcombine.high %v10032, %v10032
      %vm10040 = vcmask 31744
      %v10042 = vsel %vm10040, %v10033, 0
      %v10044 = vsel %vm9948, %v10030, 0
      %v10046 = vsel %vm9948, %v10037, 0
      %v10048 = vsel %vm9948, %v10031, 0
      %v10050 = vsel %vm9948, %v10038, 0
      %v10052 = vsel %vm9948, %v10032, 0
      %v10054 = vsel %vm9948, %v10039, 0
      %10056 = vmatprep.subr.mxu0 %v10046
      %10057 = vmatpush1.msra.mxu0 %v10044
      %10058 = vmatprep.subr.mxu0 0.0
      %10059 = vmatpush1.msra.mxu0 0.0
      %10060 = vmatprep.subr.mxu0 0.0
      %10061 = vmatpush1.msra.mxu0 0.0
      %10062 = vmatprep.subr.mxu0 0.0
      %10063 = vmatpush1.msra.mxu0 0.0
      %10064 = vmatprep.subr.mxu0 0.0
      %10065 = vmatpush1.msra.mxu0 0.0
      %10066 = vmatprep.subr.mxu0 0.0
      %10067 = vmatpush1.msra.mxu0 0.0
      %10068 = vmatprep.subr.mxu0 0.0
      %10069 = vmatpush1.msra.mxu0 0.0
      %10070 = vmatprep.subr.mxu0 0.0
      %10071 = vmatpush1.msra.mxu0 0.0
      %10072 = vmatprep.subr.mxu0 0.0
      %10073 = vmatpush1.msra.mxu0 0.0
      %10074 = vmatprep.subr.mxu0 0.0
      %10075 = vmatpush1.msra.mxu0 0.0
      %10076 = vmatprep.subr.mxu0 0.0
      %10077 = vmatpush1.msra.mxu0 0.0
      %10078 = vmatprep.subr.mxu0 0.0
      %10079 = vmatpush1.msra.mxu0 0.0
      %10080 = vmatprep.subr.mxu0 0.0
      %10081 = vmatpush1.msra.mxu0 0.0
      %10082 = vmatprep.subr.mxu0 0.0
      %10083 = vmatpush1.msra.mxu0 0.0
      %10084 = vmatprep.subr.mxu0 0.0
      %10085 = vmatpush1.msra.mxu0 0.0
      %10086 = vmatprep.subr.mxu0 0.0
      %10087 = vmatpush1.msra.mxu0 0.0
      %10088 = vmatprep.subr.mxu0 0.0
      %10089 = vmatpush1.msra.mxu0 0.0
      %10090 = vmatprep.subr.mxu0 0.0
      %10091 = vmatpush1.msra.mxu0 0.0
      %10092 = vmatprep.subr.mxu0 0.0
      %10093 = vmatpush1.msra.mxu0 0.0
      %10094 = vmatprep.subr.mxu0 0.0
      %10095 = vmatpush1.msra.mxu0 0.0
      %10096 = vmatprep.subr.mxu0 0.0
      %10097 = vmatpush1.msra.mxu0 0.0
      %10098 = vmatprep.subr.mxu0 0.0
      %10099 = vmatpush1.msra.mxu0 0.0
      %10100 = vmatprep.subr.mxu0 0.0
      %10101 = vmatpush1.msra.mxu0 0.0
      %10102 = vmatprep.subr.mxu0 0.0
      %10103 = vmatpush1.msra.mxu0 0.0
      %10104 = vmatprep.subr.mxu0 0.0
      %10105 = vmatpush1.msra.mxu0 0.0
      %10106 = vmatprep.subr.mxu0 0.0
      %10107 = vmatpush1.msra.mxu0 0.0
      %10108 = vmatprep.subr.mxu0 0.0
      %10109 = vmatpush1.msra.mxu0 0.0
      %10110 = vmatprep.subr.mxu0 0.0
      %10111 = vmatpush1.msra.mxu0 0.0
      %10112 = vmatprep.subr.mxu0 0.0
      %10113 = vmatpush1.msra.mxu0 0.0
      %10114 = vmatprep.subr.mxu0 0.0
      %10115 = vmatpush1.msra.mxu0 0.0
      %10116 = vmatprep.subr.mxu0 0.0
      %10117 = vmatpush1.msra.mxu0 0.0
      %10118 = vmatprep.subr.mxu0 0.0
      %10119 = vmatpush1.msra.mxu0 0.0
      %10120 = vmatprep.mubr.f32.mxu0 0.0
      %10121 = vmatmul.mubr.f32.gmra.mrb[0].mxu0 %v10042
      %v10122 = vpop.f32.mrb[0].mxu0
      %v10123 = vadd.f32 0.0, %v10122
      %v10124 = vpop.f32.mrb[0].mxu0
      %v10125 = vadd.f32 0.0, %v10124
      %10126 = vdwg.mxu0
      %10127 = vmatprep.subr.mxu0 %v10050
      %10128 = vmatpush1.msra.mxu0 %v10048
      %10129 = vmatprep.subr.mxu0 0.0
      %10130 = vmatpush1.msra.mxu0 0.0
      %10131 = vmatprep.subr.mxu0 0.0
      %10132 = vmatpush1.msra.mxu0 0.0
      %10133 = vmatprep.subr.mxu0 0.0
      %10134 = vmatpush1.msra.mxu0 0.0
      %10135 = vmatprep.subr.mxu0 0.0
      %10136 = vmatpush1.msra.mxu0 0.0
      %10137 = vmatprep.subr.mxu0 0.0
      %10138 = vmatpush1.msra.mxu0 0.0
      %10139 = vmatprep.subr.mxu0 0.0
      %10140 = vmatpush1.msra.mxu0 0.0
      %10141 = vmatprep.subr.mxu0 0.0
      %10142 = vmatpush1.msra.mxu0 0.0
      %10143 = vmatprep.subr.mxu0 0.0
      %10144 = vmatpush1.msra.mxu0 0.0
      %10145 = vmatprep.subr.mxu0 0.0
      %10146 = vmatpush1.msra.mxu0 0.0
      %10147 = vmatprep.subr.mxu0 0.0
      %10148 = vmatpush1.msra.mxu0 0.0
      %10149 = vmatprep.subr.mxu0 0.0
      %10150 = vmatpush1.msra.mxu0 0.0
      %10151 = vmatprep.subr.mxu0 0.0
      %10152 = vmatpush1.msra.mxu0 0.0
      %10153 = vmatprep.subr.mxu0 0.0
      %10154 = vmatpush1.msra.mxu0 0.0
      %10155 = vmatprep.subr.mxu0 0.0
      %10156 = vmatpush1.msra.mxu0 0.0
      %10157 = vmatprep.subr.mxu0 0.0
      %10158 = vmatpush1.msra.mxu0 0.0
      %10159 = vmatprep.subr.mxu0 0.0
      %10160 = vmatpush1.msra.mxu0 0.0
      %10161 = vmatprep.subr.mxu0 0.0
      %10162 = vmatpush1.msra.mxu0 0.0
      %10163 = vmatprep.subr.mxu0 0.0
      %10164 = vmatpush1.msra.mxu0 0.0
      %10165 = vmatprep.subr.mxu0 0.0
      %10166 = vmatpush1.msra.mxu0 0.0
      %10167 = vmatprep.subr.mxu0 0.0
      %10168 = vmatpush1.msra.mxu0 0.0
      %10169 = vmatprep.subr.mxu0 0.0
      %10170 = vmatpush1.msra.mxu0 0.0
      %10171 = vmatprep.subr.mxu0 0.0
      %10172 = vmatpush1.msra.mxu0 0.0
      %10173 = vmatprep.subr.mxu0 0.0
      %10174 = vmatpush1.msra.mxu0 0.0
      %10175 = vmatprep.subr.mxu0 0.0
      %10176 = vmatpush1.msra.mxu0 0.0
      %10177 = vmatprep.subr.mxu0 0.0
      %10178 = vmatpush1.msra.mxu0 0.0
      %10179 = vmatprep.subr.mxu0 0.0
      %10180 = vmatpush1.msra.mxu0 0.0
      %10181 = vmatprep.subr.mxu0 0.0
      %10182 = vmatpush1.msra.mxu0 0.0
      %10183 = vmatprep.subr.mxu0 0.0
      %10184 = vmatpush1.msra.mxu0 0.0
      %10185 = vmatprep.subr.mxu0 0.0
      %10186 = vmatpush1.msra.mxu0 0.0
      %10187 = vmatprep.subr.mxu0 0.0
      %10188 = vmatpush1.msra.mxu0 0.0
      %10189 = vmatprep.subr.mxu0 0.0
      %10190 = vmatpush1.msra.mxu0 0.0
      %10191 = vmatprep.mubr.f32.mxu0 0.0
      %10192 = vmatmul.mubr.f32.gmra.mrb[0].mxu0 %v10042
      %v10193 = vpop.f32.mrb[0].mxu0
      %v10194 = vadd.f32 0.0, %v10193
      %v10195 = vpop.f32.mrb[0].mxu0
      %v10196 = vadd.f32 0.0, %v10195
      %10197 = vdwg.mxu0
      %10198 = vmatprep.subr.mxu0 %v10054
      %10199 = vmatpush1.msra.mxu0 %v10052
      %10200 = vmatprep.subr.mxu0 0.0
      %10201 = vmatpush1.msra.mxu0 0.0
      %10202 = vmatprep.subr.mxu0 0.0
      %10203 = vmatpush1.msra.mxu0 0.0
      %10204 = vmatprep.subr.mxu0 0.0
      %10205 = vmatpush1.msra.mxu0 0.0
      %10206 = vmatprep.subr.mxu0 0.0
      %10207 = vmatpush1.msra.mxu0 0.0
      %10208 = vmatprep.subr.mxu0 0.0
      %10209 = vmatpush1.msra.mxu0 0.0
      %10210 = vmatprep.subr.mxu0 0.0
      %10211 = vmatpush1.msra.mxu0 0.0
      %10212 = vmatprep.subr.mxu0 0.0
      %10213 = vmatpush1.msra.mxu0 0.0
      %10214 = vmatprep.subr.mxu0 0.0
      %10215 = vmatpush1.msra.mxu0 0.0
      %10216 = vmatprep.subr.mxu0 0.0
      %10217 = vmatpush1.msra.mxu0 0.0
      %10218 = vmatprep.subr.mxu0 0.0
      %10219 = vmatpush1.msra.mxu0 0.0
      %10220 = vmatprep.subr.mxu0 0.0
      %10221 = vmatpush1.msra.mxu0 0.0
      %10222 = vmatprep.subr.mxu0 0.0
      %10223 = vmatpush1.msra.mxu0 0.0
      %10224 = vmatprep.subr.mxu0 0.0
      %10225 = vmatpush1.msra.mxu0 0.0
      %10226 = vmatprep.subr.mxu0 0.0
      %10227 = vmatpush1.msra.mxu0 0.0
      %10228 = vmatprep.subr.mxu0 0.0
      %10229 = vmatpush1.msra.mxu0 0.0
      %10230 = vmatprep.subr.mxu0 0.0
      %10231 = vmatpush1.msra.mxu0 0.0
      %10232 = vmatprep.subr.mxu0 0.0
      %10233 = vmatpush1.msra.mxu0 0.0
      %10234 = vmatprep.subr.mxu0 0.0
      %10235 = vmatpush1.msra.mxu0 0.0
      %10236 = vmatprep.subr.mxu0 0.0
      %10237 = vmatpush1.msra.mxu0 0.0
      %10238 = vmatprep.subr.mxu0 0.0
      %10239 = vmatpush1.msra.mxu0 0.0
      %10240 = vmatprep.subr.mxu0 0.0
      %10241 = vmatpush1.msra.mxu0 0.0
      %10242 = vmatprep.subr.mxu0 0.0
      %10243 = vmatpush1.msra.mxu0 0.0
      %10244 = vmatprep.subr.mxu0 0.0
      %10245 = vmatpush1.msra.mxu0 0.0
      %10246 = vmatprep.subr.mxu0 0.0
      %10247 = vmatpush1.msra.mxu0 0.0
      %10248 = vmatprep.subr.mxu0 0.0
      %10249 = vmatpush1.msra.mxu0 0.0
      %10250 = vmatprep.subr.mxu0 0.0
      %10251 = vmatpush1.msra.mxu0 0.0
      %10252 = vmatprep.subr.mxu0 0.0
      %10253 = vmatpush1.msra.mxu0 0.0
      %10254 = vmatprep.subr.mxu0 0.0
      %10255 = vmatpush1.msra.mxu0 0.0
      %10256 = vmatprep.subr.mxu0 0.0
      %10257 = vmatpush1.msra.mxu0 0.0
      %10258 = vmatprep.subr.mxu0 0.0
      %10259 = vmatpush1.msra.mxu0 0.0
      %10260 = vmatprep.subr.mxu0 0.0
      %10261 = vmatpush1.msra.mxu0 0.0
      %10262 = vmatprep.mubr.f32.mxu0 0.0
      %10263 = vmatmul.mubr.f32.gmra.mrb[0].mxu0 %v10042
      %v10264 = vpop.f32.mrb[0].mxu0
      %v10265 = vadd.f32 0.0, %v10264
      %v10266 = vpop.f32.mrb[0].mxu0
      %v10267 = vadd.f32 0.0, %v10266
      %10268 = vdwg.mxu0
      %v10275 = vcombine.low %v10123, %v10125
      %v10276 = vcombine.low %v10194, %v10196
      %v10277 = vcombine.low %v10265, %v10267
      %10281 = vst [vmem:[%s319] sm:$0xff] %v10275
      %10282 = vst [vmem:[%s319 + $0x8] sm:$0xff] %v10276
      %10283 = vst [vmem:[%s319 + $0x10] sm:$0xff] %v10277
      %p10284 = scmp.lt.s32.totalorder %s17, 3
      %s10285 = scalar_select %p10284, %s17, 3
      %s10286 = smul.addr %s10285, 6
      %s10287 = smul.addr %s10286, 4
      %s10288 = scalar_lea.vmem %s6, %s10287
      // Predicated region
      $region61: #{spatial_attention.2} parent=43 // pred_check
        %p10289 = pneg %p186
      $region62: #{spatial_attention.2} parent=43 // pred_check_branch
        %10291 = sbr.rel (%p10289) target = $region64
      $region63: #{spatial_attention.2} parent=43 // pred_region
        _
      $region64: #{spatial_attention.2} parent=43 // pred_fallthru
        _
    $region44: #{spatial_attention.2} parent=5 // pred_fallthru
      _
    %p10292 = scmp.le.s32.totalorder 2, %s12
    // Predicated region
    $region65: #{spatial_attention.2} parent=5 // pred_check
      %p10293 = pneg %p10292
    $region66: #{spatial_attention.2} parent=5 // pred_check_branch
      %10295 = sbr.rel (%p10293) target = $region68
    $region67: #{spatial_attention.2} parent=5 // pred_region
      %s10296 = ssub.s32 %s12, 2
      // Predicated region
      $region69: #{spatial_attention.2} parent=67 // pred_check
        %p10297 = pneg %p192
      $region70: #{spatial_attention.2} parent=67 // pred_check_branch
        %10299 = sbr.rel (%p10297) target = $region72
      $region71: #{spatial_attention.2} parent=67 // pred_region
        %p10300 = scmp.lt.s32.totalorder %s18, 3
        %s10301 = scalar_select %p10300, %s18, 3
        %s10302 = smul.addr %s10301, 6
        %s10303 = smul.addr %s10302, 4
        %s10304 = scalar_lea.vmem %s6, %s10303
      $region72: #{spatial_attention.2} parent=67 // pred_fallthru
        _
    $region68: #{spatial_attention.2} parent=5 // pred_fallthru
      _
  $region6: #{spatial_attention.2} parent=0 // loop_footer
    %s16 = sadd.s32 1, %s12
  $region7: #{spatial_attention.2} parent=0 // loop_footer_branch
    %11 = sbr.rel target = $region3
  $region8: #{spatial_attention.2} parent=0 // loop_exit
    _

</llo_original>
